<compile_context>
chip_gen: v5e
topology: v5e:2x2
jax: 0.10.0
libtpu: 0.0.40
codegen_flags: <defaults>
</compile_context>

<pallas_src>
import jax
import jax.numpy as jnp
import numpy as np
from jax.experimental import pallas as pl
from jax.experimental.pallas import tpu as pltpu

LEAKY_SLOPE = 0.01   # InPlaceABN default activation_param
BN_EPS = 1e-5        # InPlaceABN default eps


# ---------------------------------------------------------------------------
# Pallas kernel:  out(R, M) = [leaky]( W(R,K) @ A(K,M) + shift(R,1) ) [+ res(R,M)]
# Lane-dense output: rows = channels (sublanes), cols = flattened voxels (lanes).
# ---------------------------------------------------------------------------
def _make_kernel(act: bool, add_res: bool):
    def kernel(w_ref, a_ref, shift_ref, *rest):
        if add_res:
            res_ref, o_ref = rest
        else:
            (o_ref,) = rest
        acc = jnp.dot(w_ref[...], a_ref[...],
                      preferred_element_type=jnp.float32)   # bf16 x bf16 -> f32
        out = acc + shift_ref[...]
        if act:
            out = jnp.where(out >= 0, out, LEAKY_SLOPE * out)
        if add_res:
            out = out + res_ref[...].astype(jnp.float32)
        o_ref[...] = out.astype(o_ref.dtype)
    return kernel


def fused_matmul(Wm, A, shift, residual=None, act=True, out_dtype=jnp.bfloat16):
    """Wm: (R, K) bf16 (BN scale pre-folded), A: (K, M) bf16, shift: (R,) f32."""
    R, K = Wm.shape
    K2, M = A.shape
    assert K == K2 and shift.shape[0] == R

    # M (flattened voxels) is the lane axis.  Keep whole-layer tiles except for the
    # biggest layers, which are split 4-way so v7x's two TensorCores both get work
    # (on v5e/v6e the ~0.35us per extra step is negligible).
    nblk = 4 if (M >= 4096 and M % (4 * 128) == 0) else 1
    TM = M // nblk
    shift2 = shift.reshape(R, 1).astype(jnp.float32)

    in_specs = [pl.BlockSpec((R, K), lambda i: (0, 0)),
                pl.BlockSpec((K, TM), lambda i: (0, i)),
                pl.BlockSpec((R, 1), lambda i: (0, 0))]
    args = [Wm, A, shift2]
    if residual is not None:
        in_specs.append(pl.BlockSpec((R, TM), lambda i: (0, i)))
        args.append(residual)

    return pl.pallas_call(
        _make_kernel(act, residual is not None),
        out_shape=jax.ShapeDtypeStruct((R, M), out_dtype),
        grid=(nblk,),
        in_specs=in_specs,
        out_specs=pl.BlockSpec((R, TM), lambda i: (0, i)),
        compiler_params=pltpu.CompilerParams(
            dimension_semantics=("parallel",)),
    )(*args)


# ---------------------------------------------------------------------------
# JAX glue: transposed im2col (K, M) + conv wrappers
# ---------------------------------------------------------------------------
def im2col_T(xc, k, stride, pad, k_pad_to):
    """xc: (Cin, N, D, H, W) -> A of shape (k_pad_to, N*Do*Ho*Wo); K order (kd,kh,kw,cin)."""
    Cin, N, D, H, W = xc.shape
    xp = jnp.pad(xc, ((0, 0), (0, 0), (pad, pad), (pad, pad), (pad, pad)))
    Do = (D + 2 * pad - k) // stride + 1
    Ho = (H + 2 * pad - k) // stride + 1
    Wo = (W + 2 * pad - k) // stride + 1
    M = N * Do * Ho * Wo
    rows = []
    for kd in range(k):
        for kh in range(k):
            for kw in range(k):
                rows.append(xp[:, :, kd:kd + stride * Do:stride,
                               kh:kh + stride * Ho:stride,
                               kw:kw + stride * Wo:stride].reshape(Cin, M))
    K = k * k * k * Cin
    if k_pad_to > K:                       # K padded to bf16 sublane granule (16)
        rows.append(jnp.zeros((k_pad_to - K, M), xc.dtype))
    return jnp.concatenate(rows, axis=0), (N, Do, Ho, Wo)


def conv3d_fused(xc, Wf, shift, stride=1, act=True):
    """xc: (Cin, N, D, H, W) bf16;  Wf: (Cout, Kpad) bf16 (scale folded)."""
    A, (N, Do, Ho, Wo) = im2col_T(xc, 3, stride, 1, Wf.shape[1])
    out = fused_matmul(Wf, A, shift, act=act)          # (Cout, M)
    return out.reshape(Wf.shape[0], N, Do, Ho, Wo)


def conv_transpose3d_fused(xc, Wall, shift8, residual, act=True,
                           out_dtype=jnp.bfloat16):
    """8-phase decomposition of ConvTranspose3d(k=3, stride=2, pad=1, out_pad=1).

    xc: (Cin, N, S, S, S);  Wall: (8*Cout, 8*Cin) phase-stacked weights;
    shift8: (8*Cout,);  residual: (Cout, N, 2S, 2S, 2S)  (added AFTER bn+act).
    """
    Cin, N, S = xc.shape[0], xc.shape[1], xc.shape[2]
    Cout = Wall.shape[0] // 8
    M = N * S * S * S

    # shared offset matrix: all 8 phases read the same 8 shifted input views
    xp = jnp.pad(xc, ((0, 0), (0, 0), (0, 1), (0, 1), (0, 1)))
    rows = []
    for dd in (0, 1):
        for dh in (0, 1):
            for dw in (0, 1):
                rows.append(xp[:, :, dd:dd + S, dh:dh + S, dw:dw + S].reshape(Cin, M))
    A = jnp.concatenate(rows, axis=0)                                  # (8*Cin, M)

    # residual rearranged into the same phase-stacked (8*Cout, M) layout
    res8 = residual.reshape(Cout, N, S, 2, S, 2, S, 2)
    res8 = jnp.transpose(res8, (3, 5, 7, 0, 1, 2, 4, 6)).reshape(8 * Cout, M)

    out = fused_matmul(Wall, A, shift8, residual=res8, act=act,
                       out_dtype=out_dtype)                            # (8*Cout, M)

    # interleave phases back to full resolution
    out = out.reshape(2, 2, 2, Cout, N, S, S, S)
    out = jnp.transpose(out, (3, 4, 5, 0, 6, 1, 7, 2))
    return out.reshape(Cout, N, 2 * S, 2 * S, 2 * S)


# ---------------------------------------------------------------------------
# Parameter init (deterministic, synthetic) + host-side prep (fold BN, pack weights)
# ---------------------------------------------------------------------------
def _conv_w(key, cout, cin, k=3):
    fan_in = cin * k ** 3
    return jax.random.normal(key, (cout, cin, k, k, k), jnp.float32) * np.sqrt(2.0 / fan_in)


def _convt_w(key, cin, cout, k=3):
    fan_in = cin * k ** 3
    return jax.random.normal(key, (cin, cout, k, k, k), jnp.float32) * np.sqrt(2.0 / fan_in)


def _bn(key, c):
    # eval-mode InPlaceABN folded to per-channel scale/shift
    k1, k2 = jax.random.split(key)
    gamma = 1.0 + 0.1 * jax.random.normal(k1, (c,), jnp.float32)
    beta = 0.1 * jax.random.normal(k2, (c,), jnp.float32)
    mean = jnp.zeros((c,), jnp.float32)
    var = jnp.ones((c,), jnp.float32)
    scale = gamma / jnp.sqrt(var + BN_EPS)
    shift = beta - mean * scale
    return scale, shift


def init_params(key, in_channels):
    ks = jax.random.split(key, 24)
    p = {}
    p["w0"], p["bn0"] = _conv_w(ks[0], 8, in_channels), _bn(ks[1], 8)
    p["w1"], p["bn1"] = _conv_w(ks[2], 16, 8), _bn(ks[3], 16)
    p["w2"], p["bn2"] = _conv_w(ks[4], 16, 16), _bn(ks[5], 16)
    p["w3"], p["bn3"] = _conv_w(ks[6], 32, 16), _bn(ks[7], 32)
    p["w4"], p["bn4"] = _conv_w(ks[8], 32, 32), _bn(ks[9], 32)
    p["w5"], p["bn5"] = _conv_w(ks[10], 64, 32), _bn(ks[11], 64)
    p["w6"], p["bn6"] = _conv_w(ks[12], 64, 64), _bn(ks[13], 64)
    p["w7"], p["bn7"] = _convt_w(ks[14], 64, 32), _bn(ks[15], 32)
    p["w9"], p["bn9"] = _convt_w(ks[16], 32, 16), _bn(ks[17], 16)
    p["w11"] = _convt_w(ks[18], 16, 8)
    p["b11"] = 0.1 * jax.random.normal(ks[19], (8,), jnp.float32)
    return p


def prepare_params(p):
    """Fold BN scale into weights, build matmul-ready bf16 matrices (done once)."""
    def conv_mat(w, scale):
        Cout, Cin, k = w.shape[0], w.shape[1], w.shape[2]
        Wf = jnp.transpose(w, (0, 2, 3, 4, 1)).reshape(Cout, k ** 3 * Cin) * scale[:, None]
        K = Wf.shape[1]
        Kp = ((K + 15) // 16) * 16
        if Kp != K:
            Wf = jnp.pad(Wf, ((0, 0), (0, Kp - K)))
        return Wf.astype(jnp.bfloat16)

    def convT_mat(w_t, scale):
        # phase-stacked weight: rows = (phase p)x(Cout), cols = (offset q)x(Cin)
        # phase bit 0: only offset d=0 valid, tap k=1;  phase bit 1: d=0 -> k=2, d=1 -> k=0
        Cin, Cout = w_t.shape[0], w_t.shape[1]
        p_rows = []
        for pd in (0, 1):
            for ph in (0, 1):
                for pw in (0, 1):
                    blks = []
                    for dd in (0, 1):
                        for dh in (0, 1):
                            for dw in (0, 1):
                                ks, ok = [], True
                                for pbit, dbit in ((pd, dd), (ph, dh), (pw, dw)):
                                    if pbit == 0:
                                        if dbit:
                                            ok = False
                                        ks.append(1)
                                    else:
                                        ks.append(2 if dbit == 0 else 0)
                                if ok:
                                    blks.append(jnp.transpose(w_t[:, :, ks[0], ks[1], ks[2]]))
                                else:
                                    blks.append(jnp.zeros((Cout, Cin), w_t.dtype))
                    p_rows.append(jnp.concatenate(blks, axis=1))       # (Cout, 8*Cin)
        Wall = jnp.concatenate(p_rows, axis=0) * jnp.tile(scale, 8)[:, None]
        return Wall.astype(jnp.bfloat16)

    prep = {}
    for i in range(7):
        scale, shift = p[f"bn{i}"]
        prep[f"w{i}"] = conv_mat(p[f"w{i}"], scale)
        prep[f"s{i}"] = shift.astype(jnp.float32)
    for i in (7, 9):
        scale, shift = p[f"bn{i}"]
        prep[f"w{i}"] = convT_mat(p[f"w{i}"], scale)
        prep[f"s{i}"] = jnp.tile(shift, 8).astype(jnp.float32)
    prep["w11"] = convT_mat(p["w11"], jnp.ones((8,), jnp.float32))
    prep["s11"] = jnp.tile(p["b11"], 8).astype(jnp.float32)            # bias as shift
    return prep


# ---------------------------------------------------------------------------
# Forward pass
# ---------------------------------------------------------------------------
@jax.jit
def voxel_encoder_forward(x, prep):
    """x: (N, Cin, D, H, W) f32 (PyTorch NCDHW).  Returns (N, Cin + 8, D, H, W) f32."""
    xc = jnp.transpose(x, (1, 0, 2, 3, 4)).astype(jnp.bfloat16)        # (C, N, D, H, W)
    conv0 = conv3d_fused(xc, prep["w0"], prep["s0"])
    conv1 = conv3d_fused(conv0, prep["w1"], prep["s1"], stride=2)
    conv2 = conv3d_fused(conv1, prep["w2"], prep["s2"])
    conv3 = conv3d_fused(conv2, prep["w3"], prep["s3"], stride=2)
    conv4 = conv3d_fused(conv3, prep["w4"], prep["s4"])
    conv5 = conv3d_fused(conv4, prep["w5"], prep["s5"], stride=2)
    x6 = conv3d_fused(conv5, prep["w6"], prep["s6"])
    x7 = conv_transpose3d_fused(x6, prep["w7"], prep["s7"], conv4)            # conv4 + conv7(x)
    x9 = conv_transpose3d_fused(x7, prep["w9"], prep["s9"], conv2)            # conv2 + conv9(x)
    x11 = conv_transpose3d_fused(x9, prep["w11"], prep["s11"], conv0,
                                 act=False, out_dtype=jnp.float32)            # conv11(x) + conv0
    return jnp.concatenate([x, jnp.transpose(x11, (1, 0, 2, 3, 4))], axis=1)


# ---------------------------------------------------------------------------
# Pure-lax reference (mirrors the Pallas pipeline's bf16 rounding points)
# ---------------------------------------------------------------------------
@jax.jit
def reference_forward(x, p):
    dn = ("NCDHW", "OIDHW", "NCDHW")

    def conv(inp, w, scale, shift, stride=1, act=True):
        wf = (w * scale[:, None, None, None, None]).astype(jnp.bfloat16)
        y = jax.lax.conv_general_dilated(
            inp.astype(jnp.bfloat16), wf, (stride,) * 3, ((1, 1),) * 3,
            dimension_numbers=dn, preferred_element_type=jnp.float32)
        y = y + shift[None, :, None, None, None]
        if act:
            y = jnp.where(y >= 0, y, LEAKY_SLOPE * y)
        return y.astype(jnp.bfloat16)

    def convT(inp, w_t, scale, shift, residual, act=True, final=False):
        w_eff = jnp.transpose(jnp.flip(w_t, (2, 3, 4)), (1, 0, 2, 3, 4))
        w_eff = (w_eff * scale[:, None, None, None, None]).astype(jnp.bfloat16)
        y = jax.lax.conv_general_dilated(
            inp.astype(jnp.bfloat16), w_eff, (1, 1, 1), ((1, 2),) * 3,
            lhs_dilation=(2, 2, 2), dimension_numbers=dn,
            preferred_element_type=jnp.float32)
        y = y + shift[None, :, None, None, None]
        if act:
            y = jnp.where(y >= 0, y, LEAKY_SLOPE * y)
        y = y + residual.astype(jnp.float32)
        return y if final else y.astype(jnp.bfloat16)

    c0 = conv(x, p["w0"], *p["bn0"])
    c1 = conv(c0, p["w1"], *p["bn1"], stride=2)
    c2 = conv(c1, p["w2"], *p["bn2"])
    c3 = conv(c2, p["w3"], *p["bn3"], stride=2)
    c4 = conv(c3, p["w4"], *p["bn4"])
    c5 = conv(c4, p["w5"], *p["bn5"], stride=2)
    c6 = conv(c5, p["w6"], *p["bn6"])
    x7 = convT(c6, p["w7"], *p["bn7"], residual=c4)
    x9 = convT(x7, p["w9"], *p["bn9"], residual=c2)
    x11 = convT(x9, p["w11"], jnp.ones((8,), jnp.float32), p["b11"],
                residual=c0, act=False, final=True)
    return jnp.concatenate([x, x11], axis=1)


# ---------------------------------------------------------------------------
if __name__ == "__main__":
    key = jax.random.PRNGKey(0)
    kx, kp = jax.random.split(key)

    N, Cin, D, H, W = 2, 4, 16, 16, 16                  # PyTorch NCDHW input
    x = jax.random.normal(kx, (N, Cin, D, H, W), jnp.float32)
    params = init_params(kp, Cin)
    prep = prepare_params(params)

    out = jax.block_until_ready(voxel_encoder_forward(x, prep))
    assert out.shape == (N, Cin + 8, D, H, W), out.shape

    # End-to-end check against a pure-lax reference that uses the same folded
    # bf16 weights and the same inter-layer bf16 quantisation points.
    ref = jax.block_until_ready(reference_forward(x, params))
    np.testing.assert_allclose(np.asarray(out), np.asarray(ref), rtol=5e-2, atol=5e-2)

    print("KERNEL_OK")
</pallas_src>

<mosaic_0001>
module attributes {stable_mosaic.version = 11 : i64} {
  func.func @kernel(%arg0: i32, %arg1: memref<8x112xbf16, #tpu.memory_space<vmem>>, %arg2: memref<112x2048xbf16, #tpu.memory_space<vmem>>, %arg3: memref<8x1xf32, #tpu.memory_space<vmem>>, %arg4: memref<8x2048xbf16, #tpu.memory_space<vmem>>) attributes {dimension_semantics = [#tpu.dimension_semantics<parallel>], iteration_bounds = array<i64: 4>, scalar_prefetch = 0 : i64, scratch_operands = 0 : i64, tpu.core_type = #tpu.core_type<tc>, window_params = [{pipeline_mode = #tpu.pipeline_mode<synchronous>, transform_indices = @transform_0, window_bounds = array<i64: 8, 112>}, {transform_indices = @transform_1, window_bounds = array<i64: 112, 2048>}, {pipeline_mode = #tpu.pipeline_mode<synchronous>, transform_indices = @transform_2, window_bounds = array<i64: 8, 1>}, {transform_indices = @transform_3, window_bounds = array<i64: 8, 2048>}]} {
    %c0 = arith.constant 0 : index
    %c0_0 = arith.constant 0 : index
    %0 = vector.load %arg1[%c0, %c0_0] : memref<8x112xbf16, #tpu.memory_space<vmem>>, vector<8x112xbf16>
    %c0_1 = arith.constant 0 : index
    %c0_2 = arith.constant 0 : index
    %1 = vector.load %arg2[%c0_1, %c0_2] : memref<112x2048xbf16, #tpu.memory_space<vmem>>, vector<112x2048xbf16>
    %cst = arith.constant dense<0.000000e+00> : vector<8x2048xf32>
    %2 = tpu.matmul %0, %1, %cst {dimension_numbers = #tpu.dot_dimension_numbers<[1], [0], [0], [1], [0, 0, 1, 1], [], []>} : vector<8x112xbf16>, vector<112x2048xbf16>, vector<8x2048xf32> -> vector<8x2048xf32>
    %c0_3 = arith.constant 0 : index
    %c0_4 = arith.constant 0 : index
    %3 = vector.load %arg3[%c0_3, %c0_4] : memref<8x1xf32, #tpu.memory_space<vmem>>, vector<8x1xf32>
    %4 = vector.broadcast %3 : vector<8x1xf32> to vector<8x2048xf32>
    %5 = arith.addf %2, %4 : vector<8x2048xf32>
    %cst_5 = arith.constant 0.000000e+00 : f32
    %6 = vector.broadcast %cst_5 : f32 to vector<8x2048xf32>
    %7 = arith.cmpf oge, %5, %6 : vector<8x2048xf32>
    %cst_6 = arith.constant 0.00999999977 : f32
    %8 = vector.broadcast %cst_6 : f32 to vector<8x2048xf32>
    %9 = arith.mulf %8, %5 : vector<8x2048xf32>
    %10 = arith.select %7, %5, %9 : vector<8x2048xi1>, vector<8x2048xf32>
    %11 = arith.truncf %10 : vector<8x2048xf32> to vector<8x2048xbf16>
    %c0_7 = arith.constant 0 : index
    %c0_8 = arith.constant 0 : index
    %12 = vector.load %arg4[%c0_7, %c0_8] : memref<8x2048xbf16, #tpu.memory_space<vmem>>, vector<8x2048xbf16>
    tpu.vector_store %arg4[%c0_7, %c0_8], %11 {strides = array<i32>} : memref<8x2048xbf16, #tpu.memory_space<vmem>>, vector<8x2048xbf16>,
    return
  }
  func.func @transform_0(%arg0: i32) -> (i32, i32) {
    %c0_i32 = arith.constant 0 : i32
    %c0_i32_0 = arith.constant 0 : i32
    %c0_i32_1 = arith.constant 0 : i32
    return %c0_i32, %c0_i32_0 : i32, i32
  }
  func.func @transform_1(%arg0: i32) -> (i32, i32) {
    %c0_i32 = arith.constant 0 : i32
    %c0_i32_0 = arith.constant 0 : i32
    return %c0_i32, %arg0 : i32, i32
  }
  func.func @transform_2(%arg0: i32) -> (i32, i32) {
    %c0_i32 = arith.constant 0 : i32
    %c0_i32_0 = arith.constant 0 : i32
    %c0_i32_1 = arith.constant 0 : i32
    return %c0_i32, %c0_i32_0 : i32, i32
  }
  func.func @transform_3(%arg0: i32) -> (i32, i32) {
    %c0_i32 = arith.constant 0 : i32
    %c0_i32_0 = arith.constant 0 : i32
    return %c0_i32, %arg0 : i32, i32
  }
}

module attributes {stable_mosaic.version = 11 : i64} {
  func.func @kernel(%arg0: i32, %arg1: memref<16x224xbf16, #tpu.memory_space<vmem>>, %arg2: memref<224x1024xbf16, #tpu.memory_space<vmem>>, %arg3: memref<16x1xf32, #tpu.memory_space<vmem>>, %arg4: memref<16x1024xbf16, #tpu.memory_space<vmem>>) attributes {dimension_semantics = [#tpu.dimension_semantics<parallel>], iteration_bounds = array<i64: 1>, scalar_prefetch = 0 : i64, scratch_operands = 0 : i64, tpu.core_type = #tpu.core_type<tc>, window_params = [{pipeline_mode = #tpu.pipeline_mode<synchronous>, transform_indices = @transform_0, window_bounds = array<i64: 16, 224>}, {transform_indices = @transform_1, window_bounds = array<i64: 224, 1024>}, {pipeline_mode = #tpu.pipeline_mode<synchronous>, transform_indices = @transform_2, window_bounds = array<i64: 16, 1>}, {transform_indices = @transform_3, window_bounds = array<i64: 16, 1024>}]} {
    %c0 = arith.constant 0 : index
    %c0_0 = arith.constant 0 : index
    %0 = vector.load %arg1[%c0, %c0_0] : memref<16x224xbf16, #tpu.memory_space<vmem>>, vector<16x224xbf16>
    %c0_1 = arith.constant 0 : index
    %c0_2 = arith.constant 0 : index
    %1 = vector.load %arg2[%c0_1, %c0_2] : memref<224x1024xbf16, #tpu.memory_space<vmem>>, vector<224x1024xbf16>
    %cst = arith.constant dense<0.000000e+00> : vector<16x1024xf32>
    %2 = tpu.matmul %0, %1, %cst {dimension_numbers = #tpu.dot_dimension_numbers<[1], [0], [0], [1], [0, 0, 1, 1], [], []>} : vector<16x224xbf16>, vector<224x1024xbf16>, vector<16x1024xf32> -> vector<16x1024xf32>
    %c0_3 = arith.constant 0 : index
    %c0_4 = arith.constant 0 : index
    %3 = vector.load %arg3[%c0_3, %c0_4] : memref<16x1xf32, #tpu.memory_space<vmem>>, vector<16x1xf32>
    %4 = vector.broadcast %3 : vector<16x1xf32> to vector<16x1024xf32>
    %5 = arith.addf %2, %4 : vector<16x1024xf32>
    %cst_5 = arith.constant 0.000000e+00 : f32
    %6 = vector.broadcast %cst_5 : f32 to vector<16x1024xf32>
    %7 = arith.cmpf oge, %5, %6 : vector<16x1024xf32>
    %cst_6 = arith.constant 0.00999999977 : f32
    %8 = vector.broadcast %cst_6 : f32 to vector<16x1024xf32>
    %9 = arith.mulf %8, %5 : vector<16x1024xf32>
    %10 = arith.select %7, %5, %9 : vector<16x1024xi1>, vector<16x1024xf32>
    %11 = arith.truncf %10 : vector<16x1024xf32> to vector<16x1024xbf16>
    %c0_7 = arith.constant 0 : index
    %c0_8 = arith.constant 0 : index
    %12 = vector.load %arg4[%c0_7, %c0_8] : memref<16x1024xbf16, #tpu.memory_space<vmem>>, vector<16x1024xbf16>
    tpu.vector_store %arg4[%c0_7, %c0_8], %11 {strides = array<i32>} : memref<16x1024xbf16, #tpu.memory_space<vmem>>, vector<16x1024xbf16>,
    return
  }
  func.func @transform_0(%arg0: i32) -> (i32, i32) {
    %c0_i32 = arith.constant 0 : i32
    %c0_i32_0 = arith.constant 0 : i32
    %c0_i32_1 = arith.constant 0 : i32
    return %c0_i32, %c0_i32_0 : i32, i32
  }
  func.func @transform_1(%arg0: i32) -> (i32, i32) {
    %c0_i32 = arith.constant 0 : i32
    %c0_i32_0 = arith.constant 0 : i32
    return %c0_i32, %arg0 : i32, i32
  }
  func.func @transform_2(%arg0: i32) -> (i32, i32) {
    %c0_i32 = arith.constant 0 : i32
    %c0_i32_0 = arith.constant 0 : i32
    %c0_i32_1 = arith.constant 0 : i32
    return %c0_i32, %c0_i32_0 : i32, i32
  }
  func.func @transform_3(%arg0: i32) -> (i32, i32) {
    %c0_i32 = arith.constant 0 : i32
    %c0_i32_0 = arith.constant 0 : i32
    return %c0_i32, %arg0 : i32, i32
  }
}

module attributes {stable_mosaic.version = 11 : i64} {
  func.func @kernel(%arg0: i32, %arg1: memref<16x432xbf16, #tpu.memory_space<vmem>>, %arg2: memref<432x1024xbf16, #tpu.memory_space<vmem>>, %arg3: memref<16x1xf32, #tpu.memory_space<vmem>>, %arg4: memref<16x1024xbf16, #tpu.memory_space<vmem>>) attributes {dimension_semantics = [#tpu.dimension_semantics<parallel>], iteration_bounds = array<i64: 1>, scalar_prefetch = 0 : i64, scratch_operands = 0 : i64, tpu.core_type = #tpu.core_type<tc>, window_params = [{pipeline_mode = #tpu.pipeline_mode<synchronous>, transform_indices = @transform_0, window_bounds = array<i64: 16, 432>}, {transform_indices = @transform_1, window_bounds = array<i64: 432, 1024>}, {pipeline_mode = #tpu.pipeline_mode<synchronous>, transform_indices = @transform_2, window_bounds = array<i64: 16, 1>}, {transform_indices = @transform_3, window_bounds = array<i64: 16, 1024>}]} {
    %c0 = arith.constant 0 : index
    %c0_0 = arith.constant 0 : index
    %0 = vector.load %arg1[%c0, %c0_0] : memref<16x432xbf16, #tpu.memory_space<vmem>>, vector<16x432xbf16>
    %c0_1 = arith.constant 0 : index
    %c0_2 = arith.constant 0 : index
    %1 = vector.load %arg2[%c0_1, %c0_2] : memref<432x1024xbf16, #tpu.memory_space<vmem>>, vector<432x1024xbf16>
    %cst = arith.constant dense<0.000000e+00> : vector<16x1024xf32>
    %2 = tpu.matmul %0, %1, %cst {dimension_numbers = #tpu.dot_dimension_numbers<[1], [0], [0], [1], [0, 0, 1, 1], [], []>} : vector<16x432xbf16>, vector<432x1024xbf16>, vector<16x1024xf32> -> vector<16x1024xf32>
    %c0_3 = arith.constant 0 : index
    %c0_4 = arith.constant 0 : index
    %3 = vector.load %arg3[%c0_3, %c0_4] : memref<16x1xf32, #tpu.memory_space<vmem>>, vector<16x1xf32>
    %4 = vector.broadcast %3 : vector<16x1xf32> to vector<16x1024xf32>
    %5 = arith.addf %2, %4 : vector<16x1024xf32>
    %cst_5 = arith.constant 0.000000e+00 : f32
    %6 = vector.broadcast %cst_5 : f32 to vector<16x1024xf32>
    %7 = arith.cmpf oge, %5, %6 : vector<16x1024xf32>
    %cst_6 = arith.constant 0.00999999977 : f32
    %8 = vector.broadcast %cst_6 : f32 to vector<16x1024xf32>
    %9 = arith.mulf %8, %5 : vector<16x1024xf32>
    %10 = arith.select %7, %5, %9 : vector<16x1024xi1>, vector<16x1024xf32>
    %11 = arith.truncf %10 : vector<16x1024xf32> to vector<16x1024xbf16>
    %c0_7 = arith.constant 0 : index
    %c0_8 = arith.constant 0 : index
    %12 = vector.load %arg4[%c0_7, %c0_8] : memref<16x1024xbf16, #tpu.memory_space<vmem>>, vector<16x1024xbf16>
    tpu.vector_store %arg4[%c0_7, %c0_8], %11 {strides = array<i32>} : memref<16x1024xbf16, #tpu.memory_space<vmem>>, vector<16x1024xbf16>,
    return
  }
  func.func @transform_0(%arg0: i32) -> (i32, i32) {
    %c0_i32 = arith.constant 0 : i32
    %c0_i32_0 = arith.constant 0 : i32
    %c0_i32_1 = arith.constant 0 : i32
    return %c0_i32, %c0_i32_0 : i32, i32
  }
  func.func @transform_1(%arg0: i32) -> (i32, i32) {
    %c0_i32 = arith.constant 0 : i32
    %c0_i32_0 = arith.constant 0 : i32
    return %c0_i32, %arg0 : i32, i32
  }
  func.func @transform_2(%arg0: i32) -> (i32, i32) {
    %c0_i32 = arith.constant 0 : i32
    %c0_i32_0 = arith.constant 0 : i32
    %c0_i32_1 = arith.constant 0 : i32
    return %c0_i32, %c0_i32_0 : i32, i32
  }
  func.func @transform_3(%arg0: i32) -> (i32, i32) {
    %c0_i32 = arith.constant 0 : i32
    %c0_i32_0 = arith.constant 0 : i32
    return %c0_i32, %arg0 : i32, i32
  }
}

module attributes {stable_mosaic.version = 11 : i64} {
  func.func @kernel(%arg0: i32, %arg1: memref<32x432xbf16, #tpu.memory_space<vmem>>, %arg2: memref<432x128xbf16, #tpu.memory_space<vmem>>, %arg3: memref<32x1xf32, #tpu.memory_space<vmem>>, %arg4: memref<32x128xbf16, #tpu.memory_space<vmem>>) attributes {dimension_semantics = [#tpu.dimension_semantics<parallel>], iteration_bounds = array<i64: 1>, scalar_prefetch = 0 : i64, scratch_operands = 0 : i64, tpu.core_type = #tpu.core_type<tc>, window_params = [{pipeline_mode = #tpu.pipeline_mode<synchronous>, transform_indices = @transform_0, window_bounds = array<i64: 32, 432>}, {transform_indices = @transform_1, window_bounds = array<i64: 432, 128>}, {pipeline_mode = #tpu.pipeline_mode<synchronous>, transform_indices = @transform_2, window_bounds = array<i64: 32, 1>}, {transform_indices = @transform_3, window_bounds = array<i64: 32, 128>}]} {
    %c0 = arith.constant 0 : index
    %c0_0 = arith.constant 0 : index
    %0 = vector.load %arg1[%c0, %c0_0] : memref<32x432xbf16, #tpu.memory_space<vmem>>, vector<32x432xbf16>
    %c0_1 = arith.constant 0 : index
    %c0_2 = arith.constant 0 : index
    %1 = vector.load %arg2[%c0_1, %c0_2] : memref<432x128xbf16, #tpu.memory_space<vmem>>, vector<432x128xbf16>
    %cst = arith.constant dense<0.000000e+00> : vector<32x128xf32>
    %2 = tpu.matmul %0, %1, %cst {dimension_numbers = #tpu.dot_dimension_numbers<[1], [0], [0], [1], [0, 0, 1, 1], [], []>} : vector<32x432xbf16>, vector<432x128xbf16>, vector<32x128xf32> -> vector<32x128xf32>
    %c0_3 = arith.constant 0 : index
    %c0_4 = arith.constant 0 : index
    %3 = vector.load %arg3[%c0_3, %c0_4] : memref<32x1xf32, #tpu.memory_space<vmem>>, vector<32x1xf32>
    %4 = vector.broadcast %3 : vector<32x1xf32> to vector<32x128xf32>
    %5 = arith.addf %2, %4 : vector<32x128xf32>
    %cst_5 = arith.constant 0.000000e+00 : f32
    %6 = vector.broadcast %cst_5 : f32 to vector<32x128xf32>
    %7 = arith.cmpf oge, %5, %6 : vector<32x128xf32>
    %cst_6 = arith.constant 0.00999999977 : f32
    %8 = vector.broadcast %cst_6 : f32 to vector<32x128xf32>
    %9 = arith.mulf %8, %5 : vector<32x128xf32>
    %10 = arith.select %7, %5, %9 : vector<32x128xi1>, vector<32x128xf32>
    %11 = arith.truncf %10 : vector<32x128xf32> to vector<32x128xbf16>
    %c0_7 = arith.constant 0 : index
    %c0_8 = arith.constant 0 : index
    %12 = vector.load %arg4[%c0_7, %c0_8] : memref<32x128xbf16, #tpu.memory_space<vmem>>, vector<32x128xbf16>
    tpu.vector_store %arg4[%c0_7, %c0_8], %11 {strides = array<i32>} : memref<32x128xbf16, #tpu.memory_space<vmem>>, vector<32x128xbf16>,
    return
  }
  func.func @transform_0(%arg0: i32) -> (i32, i32) {
    %c0_i32 = arith.constant 0 : i32
    %c0_i32_0 = arith.constant 0 : i32
    %c0_i32_1 = arith.constant 0 : i32
    return %c0_i32, %c0_i32_0 : i32, i32
  }
  func.func @transform_1(%arg0: i32) -> (i32, i32) {
    %c0_i32 = arith.constant 0 : i32
    %c0_i32_0 = arith.constant 0 : i32
    return %c0_i32, %arg0 : i32, i32
  }
  func.func @transform_2(%arg0: i32) -> (i32, i32) {
    %c0_i32 = arith.constant 0 : i32
    %c0_i32_0 = arith.constant 0 : i32
    %c0_i32_1 = arith.constant 0 : i32
    return %c0_i32, %c0_i32_0 : i32, i32
  }
  func.func @transform_3(%arg0: i32) -> (i32, i32) {
    %c0_i32 = arith.constant 0 : i32
    %c0_i32_0 = arith.constant 0 : i32
    return %c0_i32, %arg0 : i32, i32
  }
}

module attributes {stable_mosaic.version = 11 : i64} {
  func.func @kernel(%arg0: i32, %arg1: memref<32x864xbf16, #tpu.memory_space<vmem>>, %arg2: memref<864x128xbf16, #tpu.memory_space<vmem>>, %arg3: memref<32x1xf32, #tpu.memory_space<vmem>>, %arg4: memref<32x128xbf16, #tpu.memory_space<vmem>>) attributes {dimension_semantics = [#tpu.dimension_semantics<parallel>], iteration_bounds = array<i64: 1>, scalar_prefetch = 0 : i64, scratch_operands = 0 : i64, tpu.core_type = #tpu.core_type<tc>, window_params = [{pipeline_mode = #tpu.pipeline_mode<synchronous>, transform_indices = @transform_0, window_bounds = array<i64: 32, 864>}, {transform_indices = @transform_1, window_bounds = array<i64: 864, 128>}, {pipeline_mode = #tpu.pipeline_mode<synchronous>, transform_indices = @transform_2, window_bounds = array<i64: 32, 1>}, {transform_indices = @transform_3, window_bounds = array<i64: 32, 128>}]} {
    %c0 = arith.constant 0 : index
    %c0_0 = arith.constant 0 : index
    %0 = vector.load %arg1[%c0, %c0_0] : memref<32x864xbf16, #tpu.memory_space<vmem>>, vector<32x864xbf16>
    %c0_1 = arith.constant 0 : index
    %c0_2 = arith.constant 0 : index
    %1 = vector.load %arg2[%c0_1, %c0_2] : memref<864x128xbf16, #tpu.memory_space<vmem>>, vector<864x128xbf16>
    %cst = arith.constant dense<0.000000e+00> : vector<32x128xf32>
    %2 = tpu.matmul %0, %1, %cst {dimension_numbers = #tpu.dot_dimension_numbers<[1], [0], [0], [1], [0, 0, 1, 1], [], []>} : vector<32x864xbf16>, vector<864x128xbf16>, vector<32x128xf32> -> vector<32x128xf32>
    %c0_3 = arith.constant 0 : index
    %c0_4 = arith.constant 0 : index
    %3 = vector.load %arg3[%c0_3, %c0_4] : memref<32x1xf32, #tpu.memory_space<vmem>>, vector<32x1xf32>
    %4 = vector.broadcast %3 : vector<32x1xf32> to vector<32x128xf32>
    %5 = arith.addf %2, %4 : vector<32x128xf32>
    %cst_5 = arith.constant 0.000000e+00 : f32
    %6 = vector.broadcast %cst_5 : f32 to vector<32x128xf32>
    %7 = arith.cmpf oge, %5, %6 : vector<32x128xf32>
    %cst_6 = arith.constant 0.00999999977 : f32
    %8 = vector.broadcast %cst_6 : f32 to vector<32x128xf32>
    %9 = arith.mulf %8, %5 : vector<32x128xf32>
    %10 = arith.select %7, %5, %9 : vector<32x128xi1>, vector<32x128xf32>
    %11 = arith.truncf %10 : vector<32x128xf32> to vector<32x128xbf16>
    %c0_7 = arith.constant 0 : index
    %c0_8 = arith.constant 0 : index
    %12 = vector.load %arg4[%c0_7, %c0_8] : memref<32x128xbf16, #tpu.memory_space<vmem>>, vector<32x128xbf16>
    tpu.vector_store %arg4[%c0_7, %c0_8], %11 {strides = array<i32>} : memref<32x128xbf16, #tpu.memory_space<vmem>>, vector<32x128xbf16>,
    return
  }
  func.func @transform_0(%arg0: i32) -> (i32, i32) {
    %c0_i32 = arith.constant 0 : i32
    %c0_i32_0 = arith.constant 0 : i32
    %c0_i32_1 = arith.constant 0 : i32
    return %c0_i32, %c0_i32_0 : i32, i32
  }
  func.func @transform_1(%arg0: i32) -> (i32, i32) {
    %c0_i32 = arith.constant 0 : i32
    %c0_i32_0 = arith.constant 0 : i32
    return %c0_i32, %arg0 : i32, i32
  }
  func.func @transform_2(%arg0: i32) -> (i32, i32) {
    %c0_i32 = arith.constant 0 : i32
    %c0_i32_0 = arith.constant 0 : i32
    %c0_i32_1 = arith.constant 0 : i32
    return %c0_i32, %c0_i32_0 : i32, i32
  }
  func.func @transform_3(%arg0: i32) -> (i32, i32) {
    %c0_i32 = arith.constant 0 : i32
    %c0_i32_0 = arith.constant 0 : i32
    return %c0_i32, %arg0 : i32, i32
  }
}

module attributes {stable_mosaic.version = 11 : i64} {
  func.func @kernel(%arg0: i32, %arg1: memref<64x864xbf16, #tpu.memory_space<vmem>>, %arg2: memref<864x16xbf16, #tpu.memory_space<vmem>>, %arg3: memref<64x1xf32, #tpu.memory_space<vmem>>, %arg4: memref<64x16xbf16, #tpu.memory_space<vmem>>) attributes {dimension_semantics = [#tpu.dimension_semantics<parallel>], iteration_bounds = array<i64: 1>, scalar_prefetch = 0 : i64, scratch_operands = 0 : i64, tpu.core_type = #tpu.core_type<tc>, window_params = [{pipeline_mode = #tpu.pipeline_mode<synchronous>, transform_indices = @transform_0, window_bounds = array<i64: 64, 864>}, {transform_indices = @transform_1, window_bounds = array<i64: 864, 16>}, {pipeline_mode = #tpu.pipeline_mode<synchronous>, transform_indices = @transform_2, window_bounds = array<i64: 64, 1>}, {transform_indices = @transform_3, window_bounds = array<i64: 64, 16>}]} {
    %c0 = arith.constant 0 : index
    %c0_0 = arith.constant 0 : index
    %0 = vector.load %arg1[%c0, %c0_0] : memref<64x864xbf16, #tpu.memory_space<vmem>>, vector<64x864xbf16>
    %c0_1 = arith.constant 0 : index
    %c0_2 = arith.constant 0 : index
    %1 = vector.load %arg2[%c0_1, %c0_2] : memref<864x16xbf16, #tpu.memory_space<vmem>>, vector<864x16xbf16>
    %cst = arith.constant dense<0.000000e+00> : vector<64x16xf32>
    %2 = tpu.matmul %0, %1, %cst {dimension_numbers = #tpu.dot_dimension_numbers<[1], [0], [0], [1], [0, 0, 1, 1], [], []>} : vector<64x864xbf16>, vector<864x16xbf16>, vector<64x16xf32> -> vector<64x16xf32>
    %c0_3 = arith.constant 0 : index
    %c0_4 = arith.constant 0 : index
    %3 = vector.load %arg3[%c0_3, %c0_4] : memref<64x1xf32, #tpu.memory_space<vmem>>, vector<64x1xf32>
    %4 = vector.broadcast %3 : vector<64x1xf32> to vector<64x16xf32>
    %5 = arith.addf %2, %4 : vector<64x16xf32>
    %cst_5 = arith.constant 0.000000e+00 : f32
    %6 = vector.broadcast %cst_5 : f32 to vector<64x16xf32>
    %7 = arith.cmpf oge, %5, %6 : vector<64x16xf32>
    %cst_6 = arith.constant 0.00999999977 : f32
    %8 = vector.broadcast %cst_6 : f32 to vector<64x16xf32>
    %9 = arith.mulf %8, %5 : vector<64x16xf32>
    %10 = arith.select %7, %5, %9 : vector<64x16xi1>, vector<64x16xf32>
    %11 = arith.truncf %10 : vector<64x16xf32> to vector<64x16xbf16>
    %c0_7 = arith.constant 0 : index
    %c0_8 = arith.constant 0 : index
    %12 = vector.load %arg4[%c0_7, %c0_8] : memref<64x16xbf16, #tpu.memory_space<vmem>>, vector<64x16xbf16>
    tpu.vector_store %arg4[%c0_7, %c0_8], %11 {strides = array<i32>} : memref<64x16xbf16, #tpu.memory_space<vmem>>, vector<64x16xbf16>,
    return
  }
  func.func @transform_0(%arg0: i32) -> (i32, i32) {
    %c0_i32 = arith.constant 0 : i32
    %c0_i32_0 = arith.constant 0 : i32
    %c0_i32_1 = arith.constant 0 : i32
    return %c0_i32, %c0_i32_0 : i32, i32
  }
  func.func @transform_1(%arg0: i32) -> (i32, i32) {
    %c0_i32 = arith.constant 0 : i32
    %c0_i32_0 = arith.constant 0 : i32
    return %c0_i32, %arg0 : i32, i32
  }
  func.func @transform_2(%arg0: i32) -> (i32, i32) {
    %c0_i32 = arith.constant 0 : i32
    %c0_i32_0 = arith.constant 0 : i32
    %c0_i32_1 = arith.constant 0 : i32
    return %c0_i32, %c0_i32_0 : i32, i32
  }
  func.func @transform_3(%arg0: i32) -> (i32, i32) {
    %c0_i32 = arith.constant 0 : i32
    %c0_i32_0 = arith.constant 0 : i32
    return %c0_i32, %arg0 : i32, i32
  }
}

module attributes {stable_mosaic.version = 11 : i64} {
  func.func @kernel(%arg0: i32, %arg1: memref<64x1728xbf16, #tpu.memory_space<vmem>>, %arg2: memref<1728x16xbf16, #tpu.memory_space<vmem>>, %arg3: memref<64x1xf32, #tpu.memory_space<vmem>>, %arg4: memref<64x16xbf16, #tpu.memory_space<vmem>>) attributes {dimension_semantics = [#tpu.dimension_semantics<parallel>], iteration_bounds = array<i64: 1>, scalar_prefetch = 0 : i64, scratch_operands = 0 : i64, tpu.core_type = #tpu.core_type<tc>, window_params = [{pipeline_mode = #tpu.pipeline_mode<synchronous>, transform_indices = @transform_0, window_bounds = array<i64: 64, 1728>}, {transform_indices = @transform_1, window_bounds = array<i64: 1728, 16>}, {pipeline_mode = #tpu.pipeline_mode<synchronous>, transform_indices = @transform_2, window_bounds = array<i64: 64, 1>}, {transform_indices = @transform_3, window_bounds = array<i64: 64, 16>}]} {
    %c0 = arith.constant 0 : index
    %c0_0 = arith.constant 0 : index
    %0 = vector.load %arg1[%c0, %c0_0] : memref<64x1728xbf16, #tpu.memory_space<vmem>>, vector<64x1728xbf16>
    %c0_1 = arith.constant 0 : index
    %c0_2 = arith.constant 0 : index
    %1 = vector.load %arg2[%c0_1, %c0_2] : memref<1728x16xbf16, #tpu.memory_space<vmem>>, vector<1728x16xbf16>
    %cst = arith.constant dense<0.000000e+00> : vector<64x16xf32>
    %2 = tpu.matmul %0, %1, %cst {dimension_numbers = #tpu.dot_dimension_numbers<[1], [0], [0], [1], [0, 0, 1, 1], [], []>} : vector<64x1728xbf16>, vector<1728x16xbf16>, vector<64x16xf32> -> vector<64x16xf32>
    %c0_3 = arith.constant 0 : index
    %c0_4 = arith.constant 0 : index
    %3 = vector.load %arg3[%c0_3, %c0_4] : memref<64x1xf32, #tpu.memory_space<vmem>>, vector<64x1xf32>
    %4 = vector.broadcast %3 : vector<64x1xf32> to vector<64x16xf32>
    %5 = arith.addf %2, %4 : vector<64x16xf32>
    %cst_5 = arith.constant 0.000000e+00 : f32
    %6 = vector.broadcast %cst_5 : f32 to vector<64x16xf32>
    %7 = arith.cmpf oge, %5, %6 : vector<64x16xf32>
    %cst_6 = arith.constant 0.00999999977 : f32
    %8 = vector.broadcast %cst_6 : f32 to vector<64x16xf32>
    %9 = arith.mulf %8, %5 : vector<64x16xf32>
    %10 = arith.select %7, %5, %9 : vector<64x16xi1>, vector<64x16xf32>
    %11 = arith.truncf %10 : vector<64x16xf32> to vector<64x16xbf16>
    %c0_7 = arith.constant 0 : index
    %c0_8 = arith.constant 0 : index
    %12 = vector.load %arg4[%c0_7, %c0_8] : memref<64x16xbf16, #tpu.memory_space<vmem>>, vector<64x16xbf16>
    tpu.vector_store %arg4[%c0_7, %c0_8], %11 {strides = array<i32>} : memref<64x16xbf16, #tpu.memory_space<vmem>>, vector<64x16xbf16>,
    return
  }
  func.func @transform_0(%arg0: i32) -> (i32, i32) {
    %c0_i32 = arith.constant 0 : i32
    %c0_i32_0 = arith.constant 0 : i32
    %c0_i32_1 = arith.constant 0 : i32
    return %c0_i32, %c0_i32_0 : i32, i32
  }
  func.func @transform_1(%arg0: i32) -> (i32, i32) {
    %c0_i32 = arith.constant 0 : i32
    %c0_i32_0 = arith.constant 0 : i32
    return %c0_i32, %arg0 : i32, i32
  }
  func.func @transform_2(%arg0: i32) -> (i32, i32) {
    %c0_i32 = arith.constant 0 : i32
    %c0_i32_0 = arith.constant 0 : i32
    %c0_i32_1 = arith.constant 0 : i32
    return %c0_i32, %c0_i32_0 : i32, i32
  }
  func.func @transform_3(%arg0: i32) -> (i32, i32) {
    %c0_i32 = arith.constant 0 : i32
    %c0_i32_0 = arith.constant 0 : i32
    return %c0_i32, %arg0 : i32, i32
  }
}

module attributes {stable_mosaic.version = 11 : i64} {
  func.func @kernel(%arg0: i32, %arg1: memref<256x512xbf16, #tpu.memory_space<vmem>>, %arg2: memref<512x16xbf16, #tpu.memory_space<vmem>>, %arg3: memref<256x1xf32, #tpu.memory_space<vmem>>, %arg4: memref<256x16xbf16, #tpu.memory_space<vmem>>, %arg5: memref<256x16xbf16, #tpu.memory_space<vmem>>) attributes {dimension_semantics = [#tpu.dimension_semantics<parallel>], iteration_bounds = array<i64: 1>, scalar_prefetch = 0 : i64, scratch_operands = 0 : i64, tpu.core_type = #tpu.core_type<tc>, window_params = [{pipeline_mode = #tpu.pipeline_mode<synchronous>, transform_indices = @transform_0, window_bounds = array<i64: 256, 512>}, {transform_indices = @transform_1, window_bounds = array<i64: 512, 16>}, {pipeline_mode = #tpu.pipeline_mode<synchronous>, transform_indices = @transform_2, window_bounds = array<i64: 256, 1>}, {transform_indices = @transform_3, window_bounds = array<i64: 256, 16>}, {transform_indices = @transform_4, window_bounds = array<i64: 256, 16>}]} {
    %c0 = arith.constant 0 : index
    %c0_0 = arith.constant 0 : index
    %0 = vector.load %arg1[%c0, %c0_0] : memref<256x512xbf16, #tpu.memory_space<vmem>>, vector<256x512xbf16>
    %c0_1 = arith.constant 0 : index
    %c0_2 = arith.constant 0 : index
    %1 = vector.load %arg2[%c0_1, %c0_2] : memref<512x16xbf16, #tpu.memory_space<vmem>>, vector<512x16xbf16>
    %cst = arith.constant dense<0.000000e+00> : vector<256x16xf32>
    %2 = tpu.matmul %0, %1, %cst {dimension_numbers = #tpu.dot_dimension_numbers<[1], [0], [0], [1], [0, 0, 1, 1], [], []>} : vector<256x512xbf16>, vector<512x16xbf16>, vector<256x16xf32> -> vector<256x16xf32>
    %c0_3 = arith.constant 0 : index
    %c0_4 = arith.constant 0 : index
    %3 = vector.load %arg3[%c0_3, %c0_4] : memref<256x1xf32, #tpu.memory_space<vmem>>, vector<256x1xf32>
    %4 = vector.broadcast %3 : vector<256x1xf32> to vector<256x16xf32>
    %5 = arith.addf %2, %4 : vector<256x16xf32>
    %cst_5 = arith.constant 0.000000e+00 : f32
    %6 = vector.broadcast %cst_5 : f32 to vector<256x16xf32>
    %7 = arith.cmpf oge, %5, %6 : vector<256x16xf32>
    %cst_6 = arith.constant 0.00999999977 : f32
    %8 = vector.broadcast %cst_6 : f32 to vector<256x16xf32>
    %9 = arith.mulf %8, %5 : vector<256x16xf32>
    %10 = arith.select %7, %5, %9 : vector<256x16xi1>, vector<256x16xf32>
    %c0_7 = arith.constant 0 : index
    %c0_8 = arith.constant 0 : index
    %11 = vector.load %arg4[%c0_7, %c0_8] : memref<256x16xbf16, #tpu.memory_space<vmem>>, vector<256x16xbf16>
    %12 = arith.extf %11 : vector<256x16xbf16> to vector<256x16xf32>
    %13 = arith.addf %10, %12 : vector<256x16xf32>
    %14 = arith.truncf %13 : vector<256x16xf32> to vector<256x16xbf16>
    %c0_9 = arith.constant 0 : index
    %c0_10 = arith.constant 0 : index
    %15 = vector.load %arg5[%c0_9, %c0_10] : memref<256x16xbf16, #tpu.memory_space<vmem>>, vector<256x16xbf16>
    tpu.vector_store %arg5[%c0_9, %c0_10], %14 {strides = array<i32>} : memref<256x16xbf16, #tpu.memory_space<vmem>>, vector<256x16xbf16>,
    return
  }
  func.func @transform_0(%arg0: i32) -> (i32, i32) {
    %c0_i32 = arith.constant 0 : i32
    %c0_i32_0 = arith.constant 0 : i32
    %c0_i32_1 = arith.constant 0 : i32
    return %c0_i32, %c0_i32_0 : i32, i32
  }
  func.func @transform_1(%arg0: i32) -> (i32, i32) {
    %c0_i32 = arith.constant 0 : i32
    %c0_i32_0 = arith.constant 0 : i32
    return %c0_i32, %arg0 : i32, i32
  }
  func.func @transform_2(%arg0: i32) -> (i32, i32) {
    %c0_i32 = arith.constant 0 : i32
    %c0_i32_0 = arith.constant 0 : i32
    %c0_i32_1 = arith.constant 0 : i32
    return %c0_i32, %c0_i32_0 : i32, i32
  }
  func.func @transform_3(%arg0: i32) -> (i32, i32) {
    %c0_i32 = arith.constant 0 : i32
    %c0_i32_0 = arith.constant 0 : i32
    return %c0_i32, %arg0 : i32, i32
  }
  func.func @transform_4(%arg0: i32) -> (i32, i32) {
    %c0_i32 = arith.constant 0 : i32
    %c0_i32_0 = arith.constant 0 : i32
    return %c0_i32, %arg0 : i32, i32
  }
}

module attributes {stable_mosaic.version = 11 : i64} {
  func.func @kernel(%arg0: i32, %arg1: memref<128x256xbf16, #tpu.memory_space<vmem>>, %arg2: memref<256x128xbf16, #tpu.memory_space<vmem>>, %arg3: memref<128x1xf32, #tpu.memory_space<vmem>>, %arg4: memref<128x128xbf16, #tpu.memory_space<vmem>>, %arg5: memref<128x128xbf16, #tpu.memory_space<vmem>>) attributes {dimension_semantics = [#tpu.dimension_semantics<parallel>], iteration_bounds = array<i64: 1>, scalar_prefetch = 0 : i64, scratch_operands = 0 : i64, tpu.core_type = #tpu.core_type<tc>, window_params = [{pipeline_mode = #tpu.pipeline_mode<synchronous>, transform_indices = @transform_0, window_bounds = array<i64: 128, 256>}, {transform_indices = @transform_1, window_bounds = array<i64: 256, 128>}, {pipeline_mode = #tpu.pipeline_mode<synchronous>, transform_indices = @transform_2, window_bounds = array<i64: 128, 1>}, {transform_indices = @transform_3, window_bounds = array<i64: 128, 128>}, {transform_indices = @transform_4, window_bounds = array<i64: 128, 128>}]} {
    %c0 = arith.constant 0 : index
    %c0_0 = arith.constant 0 : index
    %0 = vector.load %arg1[%c0, %c0_0] : memref<128x256xbf16, #tpu.memory_space<vmem>>, vector<128x256xbf16>
    %c0_1 = arith.constant 0 : index
    %c0_2 = arith.constant 0 : index
    %1 = vector.load %arg2[%c0_1, %c0_2] : memref<256x128xbf16, #tpu.memory_space<vmem>>, vector<256x128xbf16>
    %cst = arith.constant dense<0.000000e+00> : vector<128x128xf32>
    %2 = tpu.matmul %0, %1, %cst {dimension_numbers = #tpu.dot_dimension_numbers<[1], [0], [0], [1], [0, 0, 1, 1], [], []>} : vector<128x256xbf16>, vector<256x128xbf16>, vector<128x128xf32> -> vector<128x128xf32>
    %c0_3 = arith.constant 0 : index
    %c0_4 = arith.constant 0 : index
    %3 = vector.load %arg3[%c0_3, %c0_4] : memref<128x1xf32, #tpu.memory_space<vmem>>, vector<128x1xf32>
    %4 = vector.broadcast %3 : vector<128x1xf32> to vector<128x128xf32>
    %5 = arith.addf %2, %4 : vector<128x128xf32>
    %cst_5 = arith.constant 0.000000e+00 : f32
    %6 = vector.broadcast %cst_5 : f32 to vector<128x128xf32>
    %7 = arith.cmpf oge, %5, %6 : vector<128x128xf32>
    %cst_6 = arith.constant 0.00999999977 : f32
    %8 = vector.broadcast %cst_6 : f32 to vector<128x128xf32>
    %9 = arith.mulf %8, %5 : vector<128x128xf32>
    %10 = arith.select %7, %5, %9 : vector<128x128xi1>, vector<128x128xf32>
    %c0_7 = arith.constant 0 : index
    %c0_8 = arith.constant 0 : index
    %11 = vector.load %arg4[%c0_7, %c0_8] : memref<128x128xbf16, #tpu.memory_space<vmem>>, vector<128x128xbf16>
    %12 = arith.extf %11 : vector<128x128xbf16> to vector<128x128xf32>
    %13 = arith.addf %10, %12 : vector<128x128xf32>
    %14 = arith.truncf %13 : vector<128x128xf32> to vector<128x128xbf16>
    %c0_9 = arith.constant 0 : index
    %c0_10 = arith.constant 0 : index
    %15 = vector.load %arg5[%c0_9, %c0_10] : memref<128x128xbf16, #tpu.memory_space<vmem>>, vector<128x128xbf16>
    tpu.vector_store %arg5[%c0_9, %c0_10], %14 {strides = array<i32>} : memref<128x128xbf16, #tpu.memory_space<vmem>>, vector<128x128xbf16>,
    return
  }
  func.func @transform_0(%arg0: i32) -> (i32, i32) {
    %c0_i32 = arith.constant 0 : i32
    %c0_i32_0 = arith.constant 0 : i32
    %c0_i32_1 = arith.constant 0 : i32
    return %c0_i32, %c0_i32_0 : i32, i32
  }
  func.func @transform_1(%arg0: i32) -> (i32, i32) {
    %c0_i32 = arith.constant 0 : i32
    %c0_i32_0 = arith.constant 0 : i32
    return %c0_i32, %arg0 : i32, i32
  }
  func.func @transform_2(%arg0: i32) -> (i32, i32) {
    %c0_i32 = arith.constant 0 : i32
    %c0_i32_0 = arith.constant 0 : i32
    %c0_i32_1 = arith.constant 0 : i32
    return %c0_i32, %c0_i32_0 : i32, i32
  }
  func.func @transform_3(%arg0: i32) -> (i32, i32) {
    %c0_i32 = arith.constant 0 : i32
    %c0_i32_0 = arith.constant 0 : i32
    return %c0_i32, %arg0 : i32, i32
  }
  func.func @transform_4(%arg0: i32) -> (i32, i32) {
    %c0_i32 = arith.constant 0 : i32
    %c0_i32_0 = arith.constant 0 : i32
    return %c0_i32, %arg0 : i32, i32
  }
}

module attributes {stable_mosaic.version = 11 : i64} {
  func.func @kernel(%arg0: i32, %arg1: memref<64x128xbf16, #tpu.memory_space<vmem>>, %arg2: memref<128x1024xbf16, #tpu.memory_space<vmem>>, %arg3: memref<64x1xf32, #tpu.memory_space<vmem>>, %arg4: memref<64x1024xbf16, #tpu.memory_space<vmem>>, %arg5: memref<64x1024xf32, #tpu.memory_space<vmem>>) attributes {dimension_semantics = [#tpu.dimension_semantics<parallel>], iteration_bounds = array<i64: 1>, scalar_prefetch = 0 : i64, scratch_operands = 0 : i64, tpu.core_type = #tpu.core_type<tc>, window_params = [{pipeline_mode = #tpu.pipeline_mode<synchronous>, transform_indices = @transform_0, window_bounds = array<i64: 64, 128>}, {transform_indices = @transform_1, window_bounds = array<i64: 128, 1024>}, {pipeline_mode = #tpu.pipeline_mode<synchronous>, transform_indices = @transform_2, window_bounds = array<i64: 64, 1>}, {transform_indices = @transform_3, window_bounds = array<i64: 64, 1024>}, {transform_indices = @transform_4, window_bounds = array<i64: 64, 1024>}]} {
    %c0 = arith.constant 0 : index
    %c0_0 = arith.constant 0 : index
    %0 = vector.load %arg1[%c0, %c0_0] : memref<64x128xbf16, #tpu.memory_space<vmem>>, vector<64x128xbf16>
    %c0_1 = arith.constant 0 : index
    %c0_2 = arith.constant 0 : index
    %1 = vector.load %arg2[%c0_1, %c0_2] : memref<128x1024xbf16, #tpu.memory_space<vmem>>, vector<128x1024xbf16>
    %cst = arith.constant dense<0.000000e+00> : vector<64x1024xf32>
    %2 = tpu.matmul %0, %1, %cst {dimension_numbers = #tpu.dot_dimension_numbers<[1], [0], [0], [1], [0, 0, 1, 1], [], []>} : vector<64x128xbf16>, vector<128x1024xbf16>, vector<64x1024xf32> -> vector<64x1024xf32>
    %c0_3 = arith.constant 0 : index
    %c0_4 = arith.constant 0 : index
    %3 = vector.load %arg3[%c0_3, %c0_4] : memref<64x1xf32, #tpu.memory_space<vmem>>, vector<64x1xf32>
    %4 = vector.broadcast %3 : vector<64x1xf32> to vector<64x1024xf32>
    %5 = arith.addf %2, %4 : vector<64x1024xf32>
    %c0_5 = arith.constant 0 : index
    %c0_6 = arith.constant 0 : index
    %6 = vector.load %arg4[%c0_5, %c0_6] : memref<64x1024xbf16, #tpu.memory_space<vmem>>, vector<64x1024xbf16>
    %7 = arith.extf %6 : vector<64x1024xbf16> to vector<64x1024xf32>
    %8 = arith.addf %5, %7 : vector<64x1024xf32>
    %c0_7 = arith.constant 0 : index
    %c0_8 = arith.constant 0 : index
    %9 = vector.load %arg5[%c0_7, %c0_8] : memref<64x1024xf32, #tpu.memory_space<vmem>>, vector<64x1024xf32>
    tpu.vector_store %arg5[%c0_7, %c0_8], %8 {strides = array<i32>} : memref<64x1024xf32, #tpu.memory_space<vmem>>, vector<64x1024xf32>,
    return
  }
  func.func @transform_0(%arg0: i32) -> (i32, i32) {
    %c0_i32 = arith.constant 0 : i32
    %c0_i32_0 = arith.constant 0 : i32
    %c0_i32_1 = arith.constant 0 : i32
    return %c0_i32, %c0_i32_0 : i32, i32
  }
  func.func @transform_1(%arg0: i32) -> (i32, i32) {
    %c0_i32 = arith.constant 0 : i32
    %c0_i32_0 = arith.constant 0 : i32
    return %c0_i32, %arg0 : i32, i32
  }
  func.func @transform_2(%arg0: i32) -> (i32, i32) {
    %c0_i32 = arith.constant 0 : i32
    %c0_i32_0 = arith.constant 0 : i32
    %c0_i32_1 = arith.constant 0 : i32
    return %c0_i32, %c0_i32_0 : i32, i32
  }
  func.func @transform_3(%arg0: i32) -> (i32, i32) {
    %c0_i32 = arith.constant 0 : i32
    %c0_i32_0 = arith.constant 0 : i32
    return %c0_i32, %arg0 : i32, i32
  }
  func.func @transform_4(%arg0: i32) -> (i32, i32) {
    %c0_i32 = arith.constant 0 : i32
    %c0_i32_0 = arith.constant 0 : i32
    return %c0_i32, %arg0 : i32, i32
  }
}

</mosaic_0001>

<llo_original>
// kernel: voxel_encoder_forward.10
$region0: #{voxel_encoder_forward.10}
  #allocation0 [shape = 'u32[]', space=smem, size = 0x4, offset = 0x4, fixed_abs, tag = 'smem constant byte address 0x4 - core index']
  #allocation1 [shape = 'u32[72,128]{1,0:T(1,128)}', space=vmem, size = 0x9000, scoped, tag = 'internal scratch']
  %s0 = inlined_call_operand.vmem [shape: bf16[8,112], index: 0, kind: input, shape index: {}]
  %s1 = inlined_call_operand.vmem [shape: bf16[112,8192], index: 1, kind: input, shape index: {}]
  %s2 = inlined_call_operand.vmem [shape: f32[8,1], index: 2, kind: input, shape index: {}]
  %s3 = inlined_call_operand.vmem [shape: bf16[8,8192], index: 3, kind: output, shape index: {}]
  %s4 = sld [smem:[#allocation0]]
  $region68: #{voxel_encoder_forward.10} parent=0
    _
  %s6 = ssub.s32 1, %s4
  %s7 = scalar_select 0, %s6, %s4
  $region1: #{voxel_encoder_forward.10} parent=0
    #allocation2 [shape = 'u8[917504]{0}', space=vmem, size = 0xe0000, scoped, tag = 'input window, operand 1']
    loop: start=0, step=1, limit=6
    $region2: #{voxel_encoder_forward.10} parent=1 // loop_pre_header
      _
    $region3: #{voxel_encoder_forward.10} parent=1 // loop_header
      %s9 = sphi 0, %s13
      %p10 = scmp.ge.s32.totalorder %s9, 6
      %s17 = sphi 0, %s17
      %s19 = sphi 0, %s17
      %s20 = sphi 0, %s19
      %s34 = sphi 0, %s20
      %s40 = sphi 0, %s42
      %s43 = sphi 0, %s40
      %s44 = sphi 0, %s43
      %s60 = sphi 0, %s44
      %s64 = sphi 0, %s64
      %s66 = sphi 0, %s64
      %s67 = sphi 0, %s66
      %s81 = sphi 0, %s67
      %s87 = sphi 0, %s89
      %s90 = sphi 0, %s87
      %s91 = sphi 0, %s90
      %s107 = sphi 0, %s91
    $region4: #{voxel_encoder_forward.10} parent=1 // loop_header_branch
      %12 = sbr.rel (%p10) target = $region8
    $region5: #{voxel_encoder_forward.10} parent=1 // loop_body
      %s14 = ssub.s32 %s9, 1
      %s15 = ssub.s32 %s9, 2
      %s16 = sadd.s32 %s9, 1
      %s18 = sadd.s32 %s17, 1
      %p21 = scmp.eq.s32.totalorder %s9, 3
      %p22 = scmp.ne.s32.totalorder %s17, %s19
      %p23 = scmp.eq.s32.totalorder %s9, 0
      %p24 = por %p22, %p23
      %p25 = scmp.ne.s32.totalorder %s17, %s19
      %p26 = scmp.eq.s32.totalorder %s14, 3
      %p27 = por %p25, %p26
      %p28 = scmp.ne.s32.totalorder %s19, %s20
      %p29 = scmp.eq.s32.totalorder %s14, 0
      %p30 = por %p28, %p29
      %p31 = scmp.ne.s32.totalorder %s19, %s20
      %p32 = scmp.eq.s32.totalorder %s15, 3
      %p33 = por %p31, %p32
      %p35 = scmp.ne.s32.totalorder %s20, %s34
      %p36 = scmp.eq.s32.totalorder %s15, 0
      %p37 = por %p35, %p36
      %s38 = ssub.s32 %s9, %s16
      %p39 = scmp.eq.s32.totalorder %s38, 0
      %s41 = sadd.s32 %s40, 1
      %s42 = scalar_select %p39, %s40, %s41
      %p45 = pneg %p39
      %p46 = scmp.eq.s32.totalorder %s9, 3
      %p47 = por %p45, %p46
      %p48 = scmp.ne.s32.totalorder %s40, %s43
      %p49 = scmp.eq.s32.totalorder %s9, 0
      %p50 = por %p48, %p49
      %p51 = scmp.ne.s32.totalorder %s40, %s43
      %p52 = scmp.eq.s32.totalorder %s14, 3
      %p53 = por %p51, %p52
      %p54 = scmp.ne.s32.totalorder %s43, %s44
      %p55 = scmp.eq.s32.totalorder %s14, 0
      %p56 = por %p54, %p55
      %p57 = scmp.ne.s32.totalorder %s43, %s44
      %p58 = scmp.eq.s32.totalorder %s15, 3
      %p59 = por %p57, %p58
      %p61 = scmp.ne.s32.totalorder %s44, %s60
      %p62 = scmp.eq.s32.totalorder %s15, 0
      %p63 = por %p61, %p62
      %s65 = sadd.s32 %s64, 1
      %p68 = scmp.eq.s32.totalorder %s9, 3
      %p69 = scmp.ne.s32.totalorder %s64, %s66
      %p70 = scmp.eq.s32.totalorder %s9, 0
      %p71 = por %p69, %p70
      %p72 = scmp.ne.s32.totalorder %s64, %s66
      %p73 = scmp.eq.s32.totalorder %s14, 3
      %p74 = por %p72, %p73
      %p75 = scmp.ne.s32.totalorder %s66, %s67
      %p76 = scmp.eq.s32.totalorder %s14, 0
      %p77 = por %p75, %p76
      %p78 = scmp.ne.s32.totalorder %s66, %s67
      %p79 = scmp.eq.s32.totalorder %s15, 3
      %p80 = por %p78, %p79
      %p82 = scmp.ne.s32.totalorder %s67, %s81
      %p83 = scmp.eq.s32.totalorder %s15, 0
      %p84 = por %p82, %p83
      %s85 = ssub.s32 %s9, %s16
      %p86 = scmp.eq.s32.totalorder %s85, 0
      %s88 = sadd.s32 %s87, 1
      %s89 = scalar_select %p86, %s87, %s88
      %p92 = pneg %p86
      %p93 = scmp.eq.s32.totalorder %s9, 3
      %p94 = por %p92, %p93
      %p95 = scmp.ne.s32.totalorder %s87, %s90
      %p96 = scmp.eq.s32.totalorder %s9, 0
      %p97 = por %p95, %p96
      %p98 = scmp.ne.s32.totalorder %s87, %s90
      %p99 = scmp.eq.s32.totalorder %s14, 3
      %p100 = por %p98, %p99
      %p101 = scmp.ne.s32.totalorder %s90, %s91
      %p102 = scmp.eq.s32.totalorder %s14, 0
      %p103 = por %p101, %p102
      %p104 = scmp.ne.s32.totalorder %s90, %s91
      %p105 = scmp.eq.s32.totalorder %s15, 3
      %p106 = por %p104, %p105
      %p108 = scmp.ne.s32.totalorder %s91, %s107
      %p109 = scmp.eq.s32.totalorder %s15, 0
      %p110 = por %p108, %p109
      %p111 = scmp.le.s32.totalorder 1, %s9
      %p112 = scmp.lt.s32.totalorder %s9, 5
      %p113 = pnand %p111, %p112
      %p114 = pneg %p113
      // Predicated region
      $region9: #{voxel_encoder_forward.10} parent=5 // pred_check
        _
      $region10: #{voxel_encoder_forward.10} parent=5 // pred_check_branch
        %116 = sbr.rel (%p113) target = $region12
      $region11: #{voxel_encoder_forward.10} parent=5 // pred_region
        %s117 = ssub.s32 %s9, 1
        // Predicated region
        $region13: #{voxel_encoder_forward.10} parent=11 // pred_check
          %p118 = pneg %p30
        $region14: #{voxel_encoder_forward.10} parent=11 // pred_check_branch
          %120 = sbr.rel (%p118) target = $region16
        $region15: #{voxel_encoder_forward.10} parent=11 // pred_region
          _
        $region16: #{voxel_encoder_forward.10} parent=11 // pred_fallthru
          _
        // Predicated region
        $region17: #{voxel_encoder_forward.10} parent=11 // pred_check
          %p121 = pneg %p77
        $region18: #{voxel_encoder_forward.10} parent=11 // pred_check_branch
          %123 = sbr.rel (%p121) target = $region20
        $region19: #{voxel_encoder_forward.10} parent=11 // pred_region
          _
        $region20: #{voxel_encoder_forward.10} parent=11 // pred_fallthru
          _
      $region12: #{voxel_encoder_forward.10} parent=5 // pred_fallthru
        _
      %p124 = scmp.lt.s32.totalorder %s9, 4
      // Predicated region
      $region21: #{voxel_encoder_forward.10} parent=5 // pred_check
        %p125 = pneg %p124
      $region22: #{voxel_encoder_forward.10} parent=5 // pred_check_branch
        %127 = sbr.rel (%p125) target = $region24
      $region23: #{voxel_encoder_forward.10} parent=5 // pred_region
        // Predicated region
        $region25: #{voxel_encoder_forward.10} parent=23 // pred_check
          %p128 = pneg %p50
        $region26: #{voxel_encoder_forward.10} parent=23 // pred_check_branch
          %130 = sbr.rel (%p128) target = $region28
        $region27: #{voxel_encoder_forward.10} parent=23 // pred_region
          %s131 = sand.u32 %s40, 1
          %s132 = sand.u32 %s40, 1
          %s133 = smul.addr %s132, 896
          %s134 = scalar_lea.vmem [#allocation2], %s133
          %s135 = smul.u32 16, %s9
          %s136 = smul.addr %s135, 4
          %s137 = scalar_lea.vmem %s1, %s136
          // Predicated region
          $region29: #{voxel_encoder_forward.10} parent=27 // pred_check
            _
          $region30: #{voxel_encoder_forward.10} parent=27 // pred_check_branch
            %139 = sbr.rel (0) target = $region32
          $region31: #{voxel_encoder_forward.10} parent=27 // pred_region
            // Predicated region
            $region33: #{voxel_encoder_forward.10} parent=31 // pred_check
              _
            $region34: #{voxel_encoder_forward.10} parent=31 // pred_check_branch
              %141 = sbr.rel (0) target = $region36
            $region35: #{voxel_encoder_forward.10} parent=31 // pred_region
              loop: start=0, step=1, limit=1
              $region37: #{voxel_encoder_forward.10} parent=35 // loop_pre_header
                _
              $region38: #{voxel_encoder_forward.10} parent=35 // loop_header
                %s143 = sphi 0, %s147
                %p144 = scmp.ge.s32.totalorder %s143, 1
                %s148 = sphi %s137, %s137
                %s149 = sphi %s134, %s134
              $region39: #{voxel_encoder_forward.10} parent=35 // loop_header_branch
                %146 = sbr.rel (%p144) target = $region43
              $region40: #{voxel_encoder_forward.10} parent=35 // loop_body
                %v150 = vld [vmem:[%s148] sm:$0xff]
                %151 = vst [vmem:[%s149] sm:$0xff] %v150
                %v152 = vld [vmem:[%s148 + $0x8] sm:$0xff]
                %153 = vst [vmem:[%s149 + $0x8] sm:$0xff] %v152
                %v154 = vld [vmem:[%s148 + $0x10] sm:$0xff]
                %155 = vst [vmem:[%s149 + $0x10] sm:$0xff] %v154
                %v156 = vld [vmem:[%s148 + $0x18] sm:$0xff]
                %157 = vst [vmem:[%s149 + $0x18] sm:$0xff] %v156
                %v158 = vld [vmem:[%s148 + $0x20] sm:$0xff]
                %159 = vst [vmem:[%s149 + $0x20] sm:$0xff] %v158
                %v160 = vld [vmem:[%s148 + $0x28] sm:$0xff]
                %161 = vst [vmem:[%s149 + $0x28] sm:$0xff] %v160
                %v162 = vld [vmem:[%s148 + $0x30] sm:$0xff]
                %163 = vst [vmem:[%s149 + $0x30] sm:$0xff] %v162
                %v164 = vld [vmem:[%s148 + $0x38] sm:$0xff]
                %165 = vst [vmem:[%s149 + $0x38] sm:$0xff] %v164
                %v166 = vld [vmem:[%s148 + $0x100] sm:$0xff]
                %167 = vst [vmem:[%s149 + $0x40] sm:$0xff] %v166
                %v168 = vld [vmem:[%s148 + $0x108] sm:$0xff]
                %169 = vst [vmem:[%s149 + $0x48] sm:$0xff] %v168
                %v170 = vld [vmem:[%s148 + $0x110] sm:$0xff]
                %171 = vst [vmem:[%s149 + $0x50] sm:$0xff] %v170
                %v172 = vld [vmem:[%s148 + $0x118] sm:$0xff]
                %173 = vst [vmem:[%s149 + $0x58] sm:$0xff] %v172
                %v174 = vld [vmem:[%s148 + $0x120] sm:$0xff]
                %175 = vst [vmem:[%s149 + $0x60] sm:$0xff] %v174
                %v176 = vld [vmem:[%s148 + $0x128] sm:$0xff]
                %177 = vst [vmem:[%s149 + $0x68] sm:$0xff] %v176
                %v178 = vld [vmem:[%s148 + $0x130] sm:$0xff]
                %179 = vst [vmem:[%s149 + $0x70] sm:$0xff] %v178
                %v180 = vld [vmem:[%s148 + $0x138] sm:$0xff]
                %181 = vst [vmem:[%s149 + $0x78] sm:$0xff] %v180
                %v182 = vld [vmem:[%s148 + $0x200] sm:$0xff]
                %183 = vst [vmem:[%s149 + $0x80] sm:$0xff] %v182
                %v184 = vld [vmem:[%s148 + $0x208] sm:$0xff]
                %185 = vst [vmem:[%s149 + $0x88] sm:$0xff] %v184
                %v186 = vld [vmem:[%s148 + $0x210] sm:$0xff]
                %187 = vst [vmem:[%s149 + $0x90] sm:$0xff] %v186
                %v188 = vld [vmem:[%s148 + $0x218] sm:$0xff]
                %189 = vst [vmem:[%s149 + $0x98] sm:$0xff] %v188
                %v190 = vld [vmem:[%s148 + $0x220] sm:$0xff]
                %191 = vst [vmem:[%s149 + $0xa0] sm:$0xff] %v190
                %v192 = vld [vmem:[%s148 + $0x228] sm:$0xff]
                %193 = vst [vmem:[%s149 + $0xa8] sm:$0xff] %v192
                %v194 = vld [vmem:[%s148 + $0x230] sm:$0xff]
                %195 = vst [vmem:[%s149 + $0xb0] sm:$0xff] %v194
                %v196 = vld [vmem:[%s148 + $0x238] sm:$0xff]
                %197 = vst [vmem:[%s149 + $0xb8] sm:$0xff] %v196
                %v198 = vld [vmem:[%s148 + $0x300] sm:$0xff]
                %199 = vst [vmem:[%s149 + $0xc0] sm:$0xff] %v198
                %v200 = vld [vmem:[%s148 + $0x308] sm:$0xff]
                %201 = vst [vmem:[%s149 + $0xc8] sm:$0xff] %v200
                %v202 = vld [vmem:[%s148 + $0x310] sm:$0xff]
                %203 = vst [vmem:[%s149 + $0xd0] sm:$0xff] %v202
                %v204 = vld [vmem:[%s148 + $0x318] sm:$0xff]
                %205 = vst [vmem:[%s149 + $0xd8] sm:$0xff] %v204
                %v206 = vld [vmem:[%s148 + $0x320] sm:$0xff]
                %207 = vst [vmem:[%s149 + $0xe0] sm:$0xff] %v206
                %v208 = vld [vmem:[%s148 + $0x328] sm:$0xff]
                %209 = vst [vmem:[%s149 + $0xe8] sm:$0xff] %v208
                %v210 = vld [vmem:[%s148 + $0x330] sm:$0xff]
                %211 = vst [vmem:[%s149 + $0xf0] sm:$0xff] %v210
                %v212 = vld [vmem:[%s148 + $0x338] sm:$0xff]
                %213 = vst [vmem:[%s149 + $0xf8] sm:$0xff] %v212
                %v214 = vld [vmem:[%s148 + $0x400] sm:$0xff]
                %215 = vst [vmem:[%s149 + $0x100] sm:$0xff] %v214
                %v216 = vld [vmem:[%s148 + $0x408] sm:$0xff]
                %217 = vst [vmem:[%s149 + $0x108] sm:$0xff] %v216
                %v218 = vld [vmem:[%s148 + $0x410] sm:$0xff]
                %219 = vst [vmem:[%s149 + $0x110] sm:$0xff] %v218
                %v220 = vld [vmem:[%s148 + $0x418] sm:$0xff]
                %221 = vst [vmem:[%s149 + $0x118] sm:$0xff] %v220
                %v222 = vld [vmem:[%s148 + $0x420] sm:$0xff]
                %223 = vst [vmem:[%s149 + $0x120] sm:$0xff] %v222
                %v224 = vld [vmem:[%s148 + $0x428] sm:$0xff]
                %225 = vst [vmem:[%s149 + $0x128] sm:$0xff] %v224
                %v226 = vld [vmem:[%s148 + $0x430] sm:$0xff]
                %227 = vst [vmem:[%s149 + $0x130] sm:$0xff] %v226
                %v228 = vld [vmem:[%s148 + $0x438] sm:$0xff]
                %229 = vst [vmem:[%s149 + $0x138] sm:$0xff] %v228
                %v230 = vld [vmem:[%s148 + $0x500] sm:$0xff]
                %231 = vst [vmem:[%s149 + $0x140] sm:$0xff] %v230
                %v232 = vld [vmem:[%s148 + $0x508] sm:$0xff]
                %233 = vst [vmem:[%s149 + $0x148] sm:$0xff] %v232
                %v234 = vld [vmem:[%s148 + $0x510] sm:$0xff]
                %235 = vst [vmem:[%s149 + $0x150] sm:$0xff] %v234
                %v236 = vld [vmem:[%s148 + $0x518] sm:$0xff]
                %237 = vst [vmem:[%s149 + $0x158] sm:$0xff] %v236
                %v238 = vld [vmem:[%s148 + $0x520] sm:$0xff]
                %239 = vst [vmem:[%s149 + $0x160] sm:$0xff] %v238
                %v240 = vld [vmem:[%s148 + $0x528] sm:$0xff]
                %241 = vst [vmem:[%s149 + $0x168] sm:$0xff] %v240
                %v242 = vld [vmem:[%s148 + $0x530] sm:$0xff]
                %243 = vst [vmem:[%s149 + $0x170] sm:$0xff] %v242
                %v244 = vld [vmem:[%s148 + $0x538] sm:$0xff]
                %245 = vst [vmem:[%s149 + $0x178] sm:$0xff] %v244
                %v246 = vld [vmem:[%s148 + $0x600] sm:$0xff]
                %247 = vst [vmem:[%s149 + $0x180] sm:$0xff] %v246
                %v248 = vld [vmem:[%s148 + $0x608] sm:$0xff]
                %249 = vst [vmem:[%s149 + $0x188] sm:$0xff] %v248
                %v250 = vld [vmem:[%s148 + $0x610] sm:$0xff]
                %251 = vst [vmem:[%s149 + $0x190] sm:$0xff] %v250
                %v252 = vld [vmem:[%s148 + $0x618] sm:$0xff]
                %253 = vst [vmem:[%s149 + $0x198] sm:$0xff] %v252
                %v254 = vld [vmem:[%s148 + $0x620] sm:$0xff]
                %255 = vst [vmem:[%s149 + $0x1a0] sm:$0xff] %v254
                %v256 = vld [vmem:[%s148 + $0x628] sm:$0xff]
                %257 = vst [vmem:[%s149 + $0x1a8] sm:$0xff] %v256
                %v258 = vld [vmem:[%s148 + $0x630] sm:$0xff]
                %259 = vst [vmem:[%s149 + $0x1b0] sm:$0xff] %v258
                %v260 = vld [vmem:[%s148 + $0x638] sm:$0xff]
                %261 = vst [vmem:[%s149 + $0x1b8] sm:$0xff] %v260
                %v262 = vld [vmem:[%s148 + $0x700] sm:$0xff]
                %263 = vst [vmem:[%s149 + $0x1c0] sm:$0xff] %v262
                %v264 = vld [vmem:[%s148 + $0x708] sm:$0xff]
                %265 = vst [vmem:[%s149 + $0x1c8] sm:$0xff] %v264
                %v266 = vld [vmem:[%s148 + $0x710] sm:$0xff]
                %267 = vst [vmem:[%s149 + $0x1d0] sm:$0xff] %v266
                %v268 = vld [vmem:[%s148 + $0x718] sm:$0xff]
                %269 = vst [vmem:[%s149 + $0x1d8] sm:$0xff] %v268
                %v270 = vld [vmem:[%s148 + $0x720] sm:$0xff]
                %271 = vst [vmem:[%s149 + $0x1e0] sm:$0xff] %v270
                %v272 = vld [vmem:[%s148 + $0x728] sm:$0xff]
                %273 = vst [vmem:[%s149 + $0x1e8] sm:$0xff] %v272
                %v274 = vld [vmem:[%s148 + $0x730] sm:$0xff]
                %275 = vst [vmem:[%s149 + $0x1f0] sm:$0xff] %v274
                %v276 = vld [vmem:[%s148 + $0x738] sm:$0xff]
                %277 = vst [vmem:[%s149 + $0x1f8] sm:$0xff] %v276
                %v278 = vld [vmem:[%s148 + $0x800] sm:$0xff]
                %279 = vst [vmem:[%s149 + $0x200] sm:$0xff] %v278
                %v280 = vld [vmem:[%s148 + $0x808] sm:$0xff]
                %281 = vst [vmem:[%s149 + $0x208] sm:$0xff] %v280
                %v282 = vld [vmem:[%s148 + $0x810] sm:$0xff]
                %283 = vst [vmem:[%s149 + $0x210] sm:$0xff] %v282
                %v284 = vld [vmem:[%s148 + $0x818] sm:$0xff]
                %285 = vst [vmem:[%s149 + $0x218] sm:$0xff] %v284
                %v286 = vld [vmem:[%s148 + $0x820] sm:$0xff]
                %287 = vst [vmem:[%s149 + $0x220] sm:$0xff] %v286
                %v288 = vld [vmem:[%s148 + $0x828] sm:$0xff]
                %289 = vst [vmem:[%s149 + $0x228] sm:$0xff] %v288
                %v290 = vld [vmem:[%s148 + $0x830] sm:$0xff]
                %291 = vst [vmem:[%s149 + $0x230] sm:$0xff] %v290
                %v292 = vld [vmem:[%s148 + $0x838] sm:$0xff]
                %293 = vst [vmem:[%s149 + $0x238] sm:$0xff] %v292
                %v294 = vld [vmem:[%s148 + $0x900] sm:$0xff]
                %295 = vst [vmem:[%s149 + $0x240] sm:$0xff] %v294
                %v296 = vld [vmem:[%s148 + $0x908] sm:$0xff]
                %297 = vst [vmem:[%s149 + $0x248] sm:$0xff] %v296
                %v298 = vld [vmem:[%s148 + $0x910] sm:$0xff]
                %299 = vst [vmem:[%s149 + $0x250] sm:$0xff] %v298
                %v300 = vld [vmem:[%s148 + $0x918] sm:$0xff]
                %301 = vst [vmem:[%s149 + $0x258] sm:$0xff] %v300
                %v302 = vld [vmem:[%s148 + $0x920] sm:$0xff]
                %303 = vst [vmem:[%s149 + $0x260] sm:$0xff] %v302
                %v304 = vld [vmem:[%s148 + $0x928] sm:$0xff]
                %305 = vst [vmem:[%s149 + $0x268] sm:$0xff] %v304
                %v306 = vld [vmem:[%s148 + $0x930] sm:$0xff]
                %307 = vst [vmem:[%s149 + $0x270] sm:$0xff] %v306
                %v308 = vld [vmem:[%s148 + $0x938] sm:$0xff]
                %309 = vst [vmem:[%s149 + $0x278] sm:$0xff] %v308
                %v310 = vld [vmem:[%s148 + $0xa00] sm:$0xff]
                %311 = vst [vmem:[%s149 + $0x280] sm:$0xff] %v310
                %v312 = vld [vmem:[%s148 + $0xa08] sm:$0xff]
                %313 = vst [vmem:[%s149 + $0x288] sm:$0xff] %v312
                %v314 = vld [vmem:[%s148 + $0xa10] sm:$0xff]
                %315 = vst [vmem:[%s149 + $0x290] sm:$0xff] %v314
                %v316 = vld [vmem:[%s148 + $0xa18] sm:$0xff]
                %317 = vst [vmem:[%s149 + $0x298] sm:$0xff] %v316
                %v318 = vld [vmem:[%s148 + $0xa20] sm:$0xff]
                %319 = vst [vmem:[%s149 + $0x2a0] sm:$0xff] %v318
                %v320 = vld [vmem:[%s148 + $0xa28] sm:$0xff]
                %321 = vst [vmem:[%s149 + $0x2a8] sm:$0xff] %v320
                %v322 = vld [vmem:[%s148 + $0xa30] sm:$0xff]
                %323 = vst [vmem:[%s149 + $0x2b0] sm:$0xff] %v322
                %v324 = vld [vmem:[%s148 + $0xa38] sm:$0xff]
                %325 = vst [vmem:[%s149 + $0x2b8] sm:$0xff] %v324
                %v326 = vld [vmem:[%s148 + $0xb00] sm:$0xff]
                %327 = vst [vmem:[%s149 + $0x2c0] sm:$0xff] %v326
                %v328 = vld [vmem:[%s148 + $0xb08] sm:$0xff]
                %329 = vst [vmem:[%s149 + $0x2c8] sm:$0xff] %v328
                %v330 = vld [vmem:[%s148 + $0xb10] sm:$0xff]
                %331 = vst [vmem:[%s149 + $0x2d0] sm:$0xff] %v330
                %v332 = vld [vmem:[%s148 + $0xb18] sm:$0xff]
                %333 = vst [vmem:[%s149 + $0x2d8] sm:$0xff] %v332
                %v334 = vld [vmem:[%s148 + $0xb20] sm:$0xff]
                %335 = vst [vmem:[%s149 + $0x2e0] sm:$0xff] %v334
                %v336 = vld [vmem:[%s148 + $0xb28] sm:$0xff]
                %337 = vst [vmem:[%s149 + $0x2e8] sm:$0xff] %v336
                %v338 = vld [vmem:[%s148 + $0xb30] sm:$0xff]
                %339 = vst [vmem:[%s149 + $0x2f0] sm:$0xff] %v338
                %v340 = vld [vmem:[%s148 + $0xb38] sm:$0xff]
                %341 = vst [vmem:[%s149 + $0x2f8] sm:$0xff] %v340
                %v342 = vld [vmem:[%s148 + $0xc00] sm:$0xff]
                %343 = vst [vmem:[%s149 + $0x300] sm:$0xff] %v342
                %v344 = vld [vmem:[%s148 + $0xc08] sm:$0xff]
                %345 = vst [vmem:[%s149 + $0x308] sm:$0xff] %v344
                %v346 = vld [vmem:[%s148 + $0xc10] sm:$0xff]
                %347 = vst [vmem:[%s149 + $0x310] sm:$0xff] %v346
                %v348 = vld [vmem:[%s148 + $0xc18] sm:$0xff]
                %349 = vst [vmem:[%s149 + $0x318] sm:$0xff] %v348
                %v350 = vld [vmem:[%s148 + $0xc20] sm:$0xff]
                %351 = vst [vmem:[%s149 + $0x320] sm:$0xff] %v350
                %v352 = vld [vmem:[%s148 + $0xc28] sm:$0xff]
                %353 = vst [vmem:[%s149 + $0x328] sm:$0xff] %v352
                %v354 = vld [vmem:[%s148 + $0xc30] sm:$0xff]
                %355 = vst [vmem:[%s149 + $0x330] sm:$0xff] %v354
                %v356 = vld [vmem:[%s148 + $0xc38] sm:$0xff]
                %357 = vst [vmem:[%s149 + $0x338] sm:$0xff] %v356
                %v358 = vld [vmem:[%s148 + $0xd00] sm:$0xff]
                %359 = vst [vmem:[%s149 + $0x340] sm:$0xff] %v358
                %v360 = vld [vmem:[%s148 + $0xd08] sm:$0xff]
                %361 = vst [vmem:[%s149 + $0x348] sm:$0xff] %v360
                %v362 = vld [vmem:[%s148 + $0xd10] sm:$0xff]
                %363 = vst [vmem:[%s149 + $0x350] sm:$0xff] %v362
                %v364 = vld [vmem:[%s148 + $0xd18] sm:$0xff]
                %365 = vst [vmem:[%s149 + $0x358] sm:$0xff] %v364
                %v366 = vld [vmem:[%s148 + $0xd20] sm:$0xff]
                %367 = vst [vmem:[%s149 + $0x360] sm:$0xff] %v366
                %v368 = vld [vmem:[%s148 + $0xd28] sm:$0xff]
                %369 = vst [vmem:[%s149 + $0x368] sm:$0xff] %v368
                %v370 = vld [vmem:[%s148 + $0xd30] sm:$0xff]
                %371 = vst [vmem:[%s149 + $0x370] sm:$0xff] %v370
                %v372 = vld [vmem:[%s148 + $0xd38] sm:$0xff]
                %373 = vst [vmem:[%s149 + $0x378] sm:$0xff] %v372
              $region41: #{voxel_encoder_forward.10} parent=35 // loop_footer
                %s147 = sadd.s32 1, %s143
              $region42: #{voxel_encoder_forward.10} parent=35 // loop_footer_branch
                %142 = sbr.rel target = $region38
              $region43: #{voxel_encoder_forward.10} parent=35 // loop_exit
                _
            $region36: #{voxel_encoder_forward.10} parent=31 // pred_fallthru
              _
            // Predicated region
            $region44: #{voxel_encoder_forward.10} parent=31 // pred_check
              _
            $region45: #{voxel_encoder_forward.10} parent=31 // pred_check_branch
              %375 = sbr.rel target = $region47
            $region46: #{voxel_encoder_forward.10} parent=31 // pred_region
              _
            $region47: #{voxel_encoder_forward.10} parent=31 // pred_fallthru
              _
          $region32: #{voxel_encoder_forward.10} parent=27 // pred_fallthru
            _
          %376 = vnop
        $region28: #{voxel_encoder_forward.10} parent=23 // pred_fallthru
          _
      $region24: #{voxel_encoder_forward.10} parent=5 // pred_fallthru
        _
      %p377 = scmp.le.s32.totalorder 1, %s9
      %p378 = scmp.lt.s32.totalorder %s9, 5
      %p379 = pnand %p377, %p378
      %p380 = pneg %p379
      // Predicated region
      $region48: #{voxel_encoder_forward.10} parent=5 // pred_check
        _
      $region49: #{voxel_encoder_forward.10} parent=5 // pred_check_branch
        %382 = sbr.rel (%p379) target = $region51
      $region50: #{voxel_encoder_forward.10} parent=5 // pred_region
        %s383 = ssub.s32 %s9, 1
        %s384 = sand.u32 %s43, 1
        %s385 = sand.u32 %s43, 1
        %s386 = smul.addr %s385, 896
        %s387 = scalar_lea.vmem [#allocation2], %s386
        // Predicated region
        $region52: #{voxel_encoder_forward.10} parent=50 // pred_check
          %p388 = pneg %p56
        $region53: #{voxel_encoder_forward.10} parent=50 // pred_check_branch
          %390 = sbr.rel (%p388) target = $region55
        $region54: #{voxel_encoder_forward.10} parent=50 // pred_region
          _
        $region55: #{voxel_encoder_forward.10} parent=50 // pred_fallthru
          _
        %p391 = pneg %p30
        %p392 = pneg %p27
        %s393 = sand.u32 %s43, 1
        %s394 = sand.u32 %s43, 1
        %s395 = smul.addr %s394, 896
        %s396 = scalar_lea.vmem [#allocation2], %s395
        %p397 = pneg %p56
        %p398 = pneg %p53
        %p399 = pneg %p77
        %p400 = pneg %p74
        %p401 = pneg %p103
        %p402 = pneg %p100
        %s403 = smul.u32 16, %s14
        %p404 = scmp.lt.s32.totalorder %s403, 63
        %s405 = scalar_select %p404, %s403, 63
        %s406 = smul.addr %s405, 4
        %s407 = scalar_lea.vmem %s3, %s406
        %s408 = smul.u32 16, %s14
        %s409 = smul.u32 16, %s14
        %p410 = scmp.lt.s32.totalorder %s409, 63
        %s411 = scalar_select %p410, %s409, 63
        %s412 = smul.addr %s411, 4
        %s413 = scalar_lea.vmem %s3, %s412
        %s414 = smul.u32 16, %s14
        %v416 = vld [vmem:[%s0] sm:$0xf]
        %v417 = vld [vmem:[%s387] sm:$0xff]
        %v418 = vld [vmem:[%s387 + $0x8] sm:$0xff]
        %v419 = vld [vmem:[%s387 + $0x10] sm:$0xff]
        %v420 = vld [vmem:[%s387 + $0x18] sm:$0xff]
        %v421 = vld [vmem:[%s387 + $0x20] sm:$0xff]
        %v422 = vld [vmem:[%s387 + $0x28] sm:$0xff]
        %v423 = vld [vmem:[%s387 + $0x30] sm:$0xff]
        %v424 = vld [vmem:[%s387 + $0x38] sm:$0xff]
        %v425 = vld [vmem:[%s387 + $0x40] sm:$0xff]
        %v426 = vld [vmem:[%s387 + $0x48] sm:$0xff]
        %v427 = vld [vmem:[%s387 + $0x50] sm:$0xff]
        %v428 = vld [vmem:[%s387 + $0x58] sm:$0xff]
        %v429 = vld [vmem:[%s387 + $0x60] sm:$0xff]
        %v430 = vld [vmem:[%s387 + $0x68] sm:$0xff]
        %v431 = vld [vmem:[%s387 + $0x70] sm:$0xff]
        %v432 = vld [vmem:[%s387 + $0x78] sm:$0xff]
        %v433 = vld [vmem:[%s387 + $0x80] sm:$0xff]
        %v434 = vld [vmem:[%s387 + $0x88] sm:$0xff]
        %v435 = vld [vmem:[%s387 + $0x90] sm:$0xff]
        %v436 = vld [vmem:[%s387 + $0x98] sm:$0xff]
        %v437 = vld [vmem:[%s387 + $0xa0] sm:$0xff]
        %v438 = vld [vmem:[%s387 + $0xa8] sm:$0xff]
        %v439 = vld [vmem:[%s387 + $0xb0] sm:$0xff]
        %v440 = vld [vmem:[%s387 + $0xb8] sm:$0xff]
        %v441 = vld [vmem:[%s387 + $0xc0] sm:$0xff]
        %v442 = vld [vmem:[%s387 + $0xc8] sm:$0xff]
        %v443 = vld [vmem:[%s387 + $0xd0] sm:$0xff]
        %v444 = vld [vmem:[%s387 + $0xd8] sm:$0xff]
        %v445 = vld [vmem:[%s387 + $0xe0] sm:$0xff]
        %v446 = vld [vmem:[%s387 + $0xe8] sm:$0xff]
        %v447 = vld [vmem:[%s387 + $0xf0] sm:$0xff]
        %v448 = vld [vmem:[%s387 + $0xf8] sm:$0xff]
        %v449 = vld [vmem:[%s387 + $0x100] sm:$0xff]
        %v450 = vld [vmem:[%s387 + $0x108] sm:$0xff]
        %v451 = vld [vmem:[%s387 + $0x110] sm:$0xff]
        %v452 = vld [vmem:[%s387 + $0x118] sm:$0xff]
        %v453 = vld [vmem:[%s387 + $0x120] sm:$0xff]
        %v454 = vld [vmem:[%s387 + $0x128] sm:$0xff]
        %v455 = vld [vmem:[%s387 + $0x130] sm:$0xff]
        %v456 = vld [vmem:[%s387 + $0x138] sm:$0xff]
        %v457 = vld [vmem:[%s387 + $0x140] sm:$0xff]
        %v458 = vld [vmem:[%s387 + $0x148] sm:$0xff]
        %v459 = vld [vmem:[%s387 + $0x150] sm:$0xff]
        %v460 = vld [vmem:[%s387 + $0x158] sm:$0xff]
        %v461 = vld [vmem:[%s387 + $0x160] sm:$0xff]
        %v462 = vld [vmem:[%s387 + $0x168] sm:$0xff]
        %v463 = vld [vmem:[%s387 + $0x170] sm:$0xff]
        %v464 = vld [vmem:[%s387 + $0x178] sm:$0xff]
        %v465 = vld [vmem:[%s387 + $0x180] sm:$0xff]
        %v466 = vld [vmem:[%s387 + $0x188] sm:$0xff]
        %v467 = vld [vmem:[%s387 + $0x190] sm:$0xff]
        %v468 = vld [vmem:[%s387 + $0x198] sm:$0xff]
        %v469 = vld [vmem:[%s387 + $0x1a0] sm:$0xff]
        %v470 = vld [vmem:[%s387 + $0x1a8] sm:$0xff]
        %v471 = vld [vmem:[%s387 + $0x1b0] sm:$0xff]
        %v472 = vld [vmem:[%s387 + $0x1b8] sm:$0xff]
        %v473 = vld [vmem:[%s387 + $0x1c0] sm:$0xff]
        %v474 = vld [vmem:[%s387 + $0x1c8] sm:$0xff]
        %v475 = vld [vmem:[%s387 + $0x1d0] sm:$0xff]
        %v476 = vld [vmem:[%s387 + $0x1d8] sm:$0xff]
        %v477 = vld [vmem:[%s387 + $0x1e0] sm:$0xff]
        %v478 = vld [vmem:[%s387 + $0x1e8] sm:$0xff]
        %v479 = vld [vmem:[%s387 + $0x1f0] sm:$0xff]
        %v480 = vld [vmem:[%s387 + $0x1f8] sm:$0xff]
        %v481 = vld [vmem:[%s387 + $0x200] sm:$0xff]
        %v482 = vld [vmem:[%s387 + $0x208] sm:$0xff]
        %v483 = vld [vmem:[%s387 + $0x210] sm:$0xff]
        %v484 = vld [vmem:[%s387 + $0x218] sm:$0xff]
        %v485 = vld [vmem:[%s387 + $0x220] sm:$0xff]
        %v486 = vld [vmem:[%s387 + $0x228] sm:$0xff]
        %v487 = vld [vmem:[%s387 + $0x230] sm:$0xff]
        %v488 = vld [vmem:[%s387 + $0x238] sm:$0xff]
        %v489 = vld [vmem:[%s387 + $0x240] sm:$0xff]
        %v490 = vld [vmem:[%s387 + $0x248] sm:$0xff]
        %v491 = vld [vmem:[%s387 + $0x250] sm:$0xff]
        %v492 = vld [vmem:[%s387 + $0x258] sm:$0xff]
        %v493 = vld [vmem:[%s387 + $0x260] sm:$0xff]
        %v494 = vld [vmem:[%s387 + $0x268] sm:$0xff]
        %v495 = vld [vmem:[%s387 + $0x270] sm:$0xff]
        %v496 = vld [vmem:[%s387 + $0x278] sm:$0xff]
        %v497 = vld [vmem:[%s387 + $0x280] sm:$0xff]
        %v498 = vld [vmem:[%s387 + $0x288] sm:$0xff]
        %v499 = vld [vmem:[%s387 + $0x290] sm:$0xff]
        %v500 = vld [vmem:[%s387 + $0x298] sm:$0xff]
        %v501 = vld [vmem:[%s387 + $0x2a0] sm:$0xff]
        %v502 = vld [vmem:[%s387 + $0x2a8] sm:$0xff]
        %v503 = vld [vmem:[%s387 + $0x2b0] sm:$0xff]
        %v504 = vld [vmem:[%s387 + $0x2b8] sm:$0xff]
        %v505 = vld [vmem:[%s387 + $0x2c0] sm:$0xff]
        %v506 = vld [vmem:[%s387 + $0x2c8] sm:$0xff]
        %v507 = vld [vmem:[%s387 + $0x2d0] sm:$0xff]
        %v508 = vld [vmem:[%s387 + $0x2d8] sm:$0xff]
        %v509 = vld [vmem:[%s387 + $0x2e0] sm:$0xff]
        %v510 = vld [vmem:[%s387 + $0x2e8] sm:$0xff]
        %v511 = vld [vmem:[%s387 + $0x2f0] sm:$0xff]
        %v512 = vld [vmem:[%s387 + $0x2f8] sm:$0xff]
        %v513 = vld [vmem:[%s387 + $0x300] sm:$0xff]
        %v514 = vld [vmem:[%s387 + $0x308] sm:$0xff]
        %v515 = vld [vmem:[%s387 + $0x310] sm:$0xff]
        %v516 = vld [vmem:[%s387 + $0x318] sm:$0xff]
        %v517 = vld [vmem:[%s387 + $0x320] sm:$0xff]
        %v518 = vld [vmem:[%s387 + $0x328] sm:$0xff]
        %v519 = vld [vmem:[%s387 + $0x330] sm:$0xff]
        %v520 = vld [vmem:[%s387 + $0x338] sm:$0xff]
        %v521 = vld [vmem:[%s387 + $0x340] sm:$0xff]
        %v522 = vld [vmem:[%s387 + $0x348] sm:$0xff]
        %v523 = vld [vmem:[%s387 + $0x350] sm:$0xff]
        %v524 = vld [vmem:[%s387 + $0x358] sm:$0xff]
        %v525 = vld [vmem:[%s387 + $0x360] sm:$0xff]
        %v526 = vld [vmem:[%s387 + $0x368] sm:$0xff]
        %v527 = vld [vmem:[%s387 + $0x370] sm:$0xff]
        %v528 = vld [vmem:[%s387 + $0x378] sm:$0xff]
        %v529 = vld [vmem:[%s2] sm:$0xff]
        %531 = vset.pattern.permute.xlu0 0
        %532 = vperm.xlu0 %531, %v529
        %v533 = vpop.permute.xlu0 %532
        %v647 = vunpack.c.l.b16 %v417
        %v648 = vunpack.c.h.b16 %v417
        %v649 = vunpack.c.l.b16 %v418
        %v650 = vunpack.c.h.b16 %v418
        %v651 = vunpack.c.l.b16 %v419
        %v652 = vunpack.c.h.b16 %v419
        %v653 = vunpack.c.l.b16 %v420
        %v654 = vunpack.c.h.b16 %v420
        %v655 = vunpack.c.l.b16 %v421
        %v656 = vunpack.c.h.b16 %v421
        %v657 = vunpack.c.l.b16 %v422
        %v658 = vunpack.c.h.b16 %v422
        %v659 = vunpack.c.l.b16 %v423
        %v660 = vunpack.c.h.b16 %v423
        %v661 = vunpack.c.l.b16 %v424
        %v662 = vunpack.c.h.b16 %v424
        %v663 = vunpack.c.l.b16 %v425
        %v664 = vunpack.c.h.b16 %v425
        %v665 = vunpack.c.l.b16 %v426
        %v666 = vunpack.c.h.b16 %v426
        %v667 = vunpack.c.l.b16 %v427
        %v668 = vunpack.c.h.b16 %v427
        %v669 = vunpack.c.l.b16 %v428
        %v670 = vunpack.c.h.b16 %v428
        %v671 = vunpack.c.l.b16 %v429
        %v672 = vunpack.c.h.b16 %v429
        %v673 = vunpack.c.l.b16 %v430
        %v674 = vunpack.c.h.b16 %v430
        %v675 = vunpack.c.l.b16 %v431
        %v676 = vunpack.c.h.b16 %v431
        %v677 = vunpack.c.l.b16 %v432
        %v678 = vunpack.c.h.b16 %v432
        %v679 = vunpack.c.l.b16 %v433
        %v680 = vunpack.c.h.b16 %v433
        %v681 = vunpack.c.l.b16 %v434
        %v682 = vunpack.c.h.b16 %v434
        %v683 = vunpack.c.l.b16 %v435
        %v684 = vunpack.c.h.b16 %v435
        %v685 = vunpack.c.l.b16 %v436
        %v686 = vunpack.c.h.b16 %v436
        %v687 = vunpack.c.l.b16 %v437
        %v688 = vunpack.c.h.b16 %v437
        %v689 = vunpack.c.l.b16 %v438
        %v690 = vunpack.c.h.b16 %v438
        %v691 = vunpack.c.l.b16 %v439
        %v692 = vunpack.c.h.b16 %v439
        %v693 = vunpack.c.l.b16 %v440
        %v694 = vunpack.c.h.b16 %v440
        %v695 = vunpack.c.l.b16 %v441
        %v696 = vunpack.c.h.b16 %v441
        %v697 = vunpack.c.l.b16 %v442
        %v698 = vunpack.c.h.b16 %v442
        %v699 = vunpack.c.l.b16 %v443
        %v700 = vunpack.c.h.b16 %v443
        %v701 = vunpack.c.l.b16 %v444
        %v702 = vunpack.c.h.b16 %v444
        %v703 = vunpack.c.l.b16 %v445
        %v704 = vunpack.c.h.b16 %v445
        %v705 = vunpack.c.l.b16 %v446
        %v706 = vunpack.c.h.b16 %v446
        %v707 = vunpack.c.l.b16 %v447
        %v708 = vunpack.c.h.b16 %v447
        %v709 = vunpack.c.l.b16 %v448
        %v710 = vunpack.c.h.b16 %v448
        %v711 = vunpack.c.l.b16 %v449
        %v712 = vunpack.c.h.b16 %v449
        %v713 = vunpack.c.l.b16 %v450
        %v714 = vunpack.c.h.b16 %v450
        %v715 = vunpack.c.l.b16 %v451
        %v716 = vunpack.c.h.b16 %v451
        %v717 = vunpack.c.l.b16 %v452
        %v718 = vunpack.c.h.b16 %v452
        %v719 = vunpack.c.l.b16 %v453
        %v720 = vunpack.c.h.b16 %v453
        %v721 = vunpack.c.l.b16 %v454
        %v722 = vunpack.c.h.b16 %v454
        %v723 = vunpack.c.l.b16 %v455
        %v724 = vunpack.c.h.b16 %v455
        %v725 = vunpack.c.l.b16 %v456
        %v726 = vunpack.c.h.b16 %v456
        %v727 = vunpack.c.l.b16 %v457
        %v728 = vunpack.c.h.b16 %v457
        %v729 = vunpack.c.l.b16 %v458
        %v730 = vunpack.c.h.b16 %v458
        %v731 = vunpack.c.l.b16 %v459
        %v732 = vunpack.c.h.b16 %v459
        %v733 = vunpack.c.l.b16 %v460
        %v734 = vunpack.c.h.b16 %v460
        %v735 = vunpack.c.l.b16 %v461
        %v736 = vunpack.c.h.b16 %v461
        %v737 = vunpack.c.l.b16 %v462
        %v738 = vunpack.c.h.b16 %v462
        %v739 = vunpack.c.l.b16 %v463
        %v740 = vunpack.c.h.b16 %v463
        %v741 = vunpack.c.l.b16 %v464
        %v742 = vunpack.c.h.b16 %v464
        %v743 = vunpack.c.l.b16 %v465
        %v744 = vunpack.c.h.b16 %v465
        %v745 = vunpack.c.l.b16 %v466
        %v746 = vunpack.c.h.b16 %v466
        %v747 = vunpack.c.l.b16 %v467
        %v748 = vunpack.c.h.b16 %v467
        %v749 = vunpack.c.l.b16 %v468
        %v750 = vunpack.c.h.b16 %v468
        %v751 = vunpack.c.l.b16 %v469
        %v752 = vunpack.c.h.b16 %v469
        %v753 = vunpack.c.l.b16 %v470
        %v754 = vunpack.c.h.b16 %v470
        %v755 = vunpack.c.l.b16 %v471
        %v756 = vunpack.c.h.b16 %v471
        %v757 = vunpack.c.l.b16 %v472
        %v758 = vunpack.c.h.b16 %v472
        %v759 = vunpack.c.l.b16 %v473
        %v760 = vunpack.c.h.b16 %v473
        %v761 = vunpack.c.l.b16 %v474
        %v762 = vunpack.c.h.b16 %v474
        %v763 = vunpack.c.l.b16 %v475
        %v764 = vunpack.c.h.b16 %v475
        %v765 = vunpack.c.l.b16 %v476
        %v766 = vunpack.c.h.b16 %v476
        %v767 = vunpack.c.l.b16 %v477
        %v768 = vunpack.c.h.b16 %v477
        %v769 = vunpack.c.l.b16 %v478
        %v770 = vunpack.c.h.b16 %v478
        %v771 = vunpack.c.l.b16 %v479
        %v772 = vunpack.c.h.b16 %v479
        %v773 = vunpack.c.l.b16 %v480
        %v774 = vunpack.c.h.b16 %v480
        %v775 = vunpack.c.l.b16 %v481
        %v776 = vunpack.c.h.b16 %v481
        %v777 = vunpack.c.l.b16 %v482
        %v778 = vunpack.c.h.b16 %v482
        %v779 = vunpack.c.l.b16 %v483
        %v780 = vunpack.c.h.b16 %v483
        %v781 = vunpack.c.l.b16 %v484
        %v782 = vunpack.c.h.b16 %v484
        %v783 = vunpack.c.l.b16 %v485
        %v784 = vunpack.c.h.b16 %v485
        %v785 = vunpack.c.l.b16 %v486
        %v786 = vunpack.c.h.b16 %v486
        %v787 = vunpack.c.l.b16 %v487
        %v788 = vunpack.c.h.b16 %v487
        %v789 = vunpack.c.l.b16 %v488
        %v790 = vunpack.c.h.b16 %v488
        %v791 = vunpack.c.l.b16 %v489
        %v792 = vunpack.c.h.b16 %v489
        %v793 = vunpack.c.l.b16 %v490
        %v794 = vunpack.c.h.b16 %v490
        %v795 = vunpack.c.l.b16 %v491
        %v796 = vunpack.c.h.b16 %v491
        %v797 = vunpack.c.l.b16 %v492
        %v798 = vunpack.c.h.b16 %v492
        %v799 = vunpack.c.l.b16 %v493
        %v800 = vunpack.c.h.b16 %v493
        %v801 = vunpack.c.l.b16 %v494
        %v802 = vunpack.c.h.b16 %v494
        %v803 = vunpack.c.l.b16 %v495
        %v804 = vunpack.c.h.b16 %v495
        %v805 = vunpack.c.l.b16 %v496
        %v806 = vunpack.c.h.b16 %v496
        %v807 = vunpack.c.l.b16 %v497
        %v808 = vunpack.c.h.b16 %v497
        %v809 = vunpack.c.l.b16 %v498
        %v810 = vunpack.c.h.b16 %v498
        %v811 = vunpack.c.l.b16 %v499
        %v812 = vunpack.c.h.b16 %v499
        %v813 = vunpack.c.l.b16 %v500
        %v814 = vunpack.c.h.b16 %v500
        %v815 = vunpack.c.l.b16 %v501
        %v816 = vunpack.c.h.b16 %v501
        %v817 = vunpack.c.l.b16 %v502
        %v818 = vunpack.c.h.b16 %v502
        %v819 = vunpack.c.l.b16 %v503
        %v820 = vunpack.c.h.b16 %v503
        %v821 = vunpack.c.l.b16 %v504
        %v822 = vunpack.c.h.b16 %v504
        %v823 = vunpack.c.l.b16 %v505
        %v824 = vunpack.c.h.b16 %v505
        %v825 = vunpack.c.l.b16 %v506
        %v826 = vunpack.c.h.b16 %v506
        %v827 = vunpack.c.l.b16 %v507
        %v828 = vunpack.c.h.b16 %v507
        %v829 = vunpack.c.l.b16 %v508
        %v830 = vunpack.c.h.b16 %v508
        %v831 = vunpack.c.l.b16 %v509
        %v832 = vunpack.c.h.b16 %v509
        %v833 = vunpack.c.l.b16 %v510
        %v834 = vunpack.c.h.b16 %v510
        %v835 = vunpack.c.l.b16 %v511
        %v836 = vunpack.c.h.b16 %v511
        %v837 = vunpack.c.l.b16 %v512
        %v838 = vunpack.c.h.b16 %v512
        %v839 = vunpack.c.l.b16 %v513
        %v840 = vunpack.c.h.b16 %v513
        %v841 = vunpack.c.l.b16 %v514
        %v842 = vunpack.c.h.b16 %v514
        %v843 = vunpack.c.l.b16 %v515
        %v844 = vunpack.c.h.b16 %v515
        %v845 = vunpack.c.l.b16 %v516
        %v846 = vunpack.c.h.b16 %v516
        %v847 = vunpack.c.l.b16 %v517
        %v848 = vunpack.c.h.b16 %v517
        %v849 = vunpack.c.l.b16 %v518
        %v850 = vunpack.c.h.b16 %v518
        %v851 = vunpack.c.l.b16 %v519
        %v852 = vunpack.c.h.b16 %v519
        %v853 = vunpack.c.l.b16 %v520
        %v854 = vunpack.c.h.b16 %v520
        %v855 = vunpack.c.l.b16 %v521
        %v856 = vunpack.c.h.b16 %v521
        %v857 = vunpack.c.l.b16 %v522
        %v858 = vunpack.c.h.b16 %v522
        %v859 = vunpack.c.l.b16 %v523
        %v860 = vunpack.c.h.b16 %v523
        %v861 = vunpack.c.l.b16 %v524
        %v862 = vunpack.c.h.b16 %v524
        %v863 = vunpack.c.l.b16 %v525
        %v864 = vunpack.c.h.b16 %v525
        %v865 = vunpack.c.l.b16 %v526
        %v866 = vunpack.c.h.b16 %v526
        %v867 = vunpack.c.l.b16 %v527
        %v868 = vunpack.c.h.b16 %v527
        %v869 = vunpack.c.l.b16 %v528
        %v870 = vunpack.c.h.b16 %v528
        %v871 = vpack.c.b16 %v663, %v647
        %v872 = vpack.c.b16 %v664, %v648
        %v873 = vpack.c.b16 %v665, %v649
        %v874 = vpack.c.b16 %v666, %v650
        %v875 = vpack.c.b16 %v667, %v651
        %v876 = vpack.c.b16 %v668, %v652
        %v877 = vpack.c.b16 %v669, %v653
        %v878 = vpack.c.b16 %v670, %v654
        %v879 = vpack.c.b16 %v671, %v655
        %v880 = vpack.c.b16 %v672, %v656
        %v881 = vpack.c.b16 %v673, %v657
        %v882 = vpack.c.b16 %v674, %v658
        %v883 = vpack.c.b16 %v675, %v659
        %v884 = vpack.c.b16 %v676, %v660
        %v885 = vpack.c.b16 %v677, %v661
        %v886 = vpack.c.b16 %v678, %v662
        %v887 = vpack.c.b16 %v695, %v679
        %v888 = vpack.c.b16 %v696, %v680
        %v889 = vpack.c.b16 %v697, %v681
        %v890 = vpack.c.b16 %v698, %v682
        %v891 = vpack.c.b16 %v699, %v683
        %v892 = vpack.c.b16 %v700, %v684
        %v893 = vpack.c.b16 %v701, %v685
        %v894 = vpack.c.b16 %v702, %v686
        %v895 = vpack.c.b16 %v703, %v687
        %v896 = vpack.c.b16 %v704, %v688
        %v897 = vpack.c.b16 %v705, %v689
        %v898 = vpack.c.b16 %v706, %v690
        %v899 = vpack.c.b16 %v707, %v691
        %v900 = vpack.c.b16 %v708, %v692
        %v901 = vpack.c.b16 %v709, %v693
        %v902 = vpack.c.b16 %v710, %v694
        %v903 = vpack.c.b16 %v727, %v711
        %v904 = vpack.c.b16 %v728, %v712
        %v905 = vpack.c.b16 %v729, %v713
        %v906 = vpack.c.b16 %v730, %v714
        %v907 = vpack.c.b16 %v731, %v715
        %v908 = vpack.c.b16 %v732, %v716
        %v909 = vpack.c.b16 %v733, %v717
        %v910 = vpack.c.b16 %v734, %v718
        %v911 = vpack.c.b16 %v735, %v719
        %v912 = vpack.c.b16 %v736, %v720
        %v913 = vpack.c.b16 %v737, %v721
        %v914 = vpack.c.b16 %v738, %v722
        %v915 = vpack.c.b16 %v739, %v723
        %v916 = vpack.c.b16 %v740, %v724
        %v917 = vpack.c.b16 %v741, %v725
        %v918 = vpack.c.b16 %v742, %v726
        %v919 = vpack.c.b16 %v759, %v743
        %v920 = vpack.c.b16 %v760, %v744
        %v921 = vpack.c.b16 %v761, %v745
        %v922 = vpack.c.b16 %v762, %v746
        %v923 = vpack.c.b16 %v763, %v747
        %v924 = vpack.c.b16 %v764, %v748
        %v925 = vpack.c.b16 %v765, %v749
        %v926 = vpack.c.b16 %v766, %v750
        %v927 = vpack.c.b16 %v767, %v751
        %v928 = vpack.c.b16 %v768, %v752
        %v929 = vpack.c.b16 %v769, %v753
        %v930 = vpack.c.b16 %v770, %v754
        %v931 = vpack.c.b16 %v771, %v755
        %v932 = vpack.c.b16 %v772, %v756
        %v933 = vpack.c.b16 %v773, %v757
        %v934 = vpack.c.b16 %v774, %v758
        %v935 = vpack.c.b16 %v791, %v775
        %v936 = vpack.c.b16 %v792, %v776
        %v937 = vpack.c.b16 %v793, %v777
        %v938 = vpack.c.b16 %v794, %v778
        %v939 = vpack.c.b16 %v795, %v779
        %v940 = vpack.c.b16 %v796, %v780
        %v941 = vpack.c.b16 %v797, %v781
        %v942 = vpack.c.b16 %v798, %v782
        %v943 = vpack.c.b16 %v799, %v783
        %v944 = vpack.c.b16 %v800, %v784
        %v945 = vpack.c.b16 %v801, %v785
        %v946 = vpack.c.b16 %v802, %v786
        %v947 = vpack.c.b16 %v803, %v787
        %v948 = vpack.c.b16 %v804, %v788
        %v949 = vpack.c.b16 %v805, %v789
        %v950 = vpack.c.b16 %v806, %v790
        %v951 = vpack.c.b16 %v823, %v807
        %v952 = vpack.c.b16 %v824, %v808
        %v953 = vpack.c.b16 %v825, %v809
        %v954 = vpack.c.b16 %v826, %v810
        %v955 = vpack.c.b16 %v827, %v811
        %v956 = vpack.c.b16 %v828, %v812
        %v957 = vpack.c.b16 %v829, %v813
        %v958 = vpack.c.b16 %v830, %v814
        %v959 = vpack.c.b16 %v831, %v815
        %v960 = vpack.c.b16 %v832, %v816
        %v961 = vpack.c.b16 %v833, %v817
        %v962 = vpack.c.b16 %v834, %v818
        %v963 = vpack.c.b16 %v835, %v819
        %v964 = vpack.c.b16 %v836, %v820
        %v965 = vpack.c.b16 %v837, %v821
        %v966 = vpack.c.b16 %v838, %v822
        %v967 = vpack.c.b16 %v855, %v839
        %v968 = vpack.c.b16 %v856, %v840
        %v969 = vpack.c.b16 %v857, %v841
        %v970 = vpack.c.b16 %v858, %v842
        %v971 = vpack.c.b16 %v859, %v843
        %v972 = vpack.c.b16 %v860, %v844
        %v973 = vpack.c.b16 %v861, %v845
        %v974 = vpack.c.b16 %v862, %v846
        %v975 = vpack.c.b16 %v863, %v847
        %v976 = vpack.c.b16 %v864, %v848
        %v977 = vpack.c.b16 %v865, %v849
        %v978 = vpack.c.b16 %v866, %v850
        %v979 = vpack.c.b16 %v867, %v851
        %v980 = vpack.c.b16 %v868, %v852
        %v981 = vpack.c.b16 %v869, %v853
        %v982 = vpack.c.b16 %v870, %v854
        %vm1095 = vcmask 916480
        %v1097 = vsel %vm1095, %v416, 0
        %1099 = vmatpush.bf16.msra.mxu0 0
        %1100 = vmatpush.bf16.msra.mxu0 %v967
        %1101 = vmatpush.bf16.msra.mxu0 %v951
        %1102 = vmatpush.bf16.msra.mxu0 %v935
        %1103 = vmatpush.bf16.msra.mxu0 %v919
        %1104 = vmatpush.bf16.msra.mxu0 %v903
        %1105 = vmatpush.bf16.msra.mxu0 %v887
        %1106 = vmatpush.bf16.msra.mxu0 %v871
        %1107 = vmatmul.bf16.gmra.mxu0 %v1097
        %v1108 = vpop.f32.mrf.mxu0
        %v1109 = vadd.f32 %v533, %v1108
        %v1110 = vpop.f32.mrf.mxu0
        %1111 = vdwg.mxu0
        %1112 = vmatpush.bf16.msra.mxu0 0
        %1113 = vmatpush.bf16.msra.mxu0 %v968
        %1114 = vmatpush.bf16.msra.mxu0 %v952
        %1115 = vmatpush.bf16.msra.mxu0 %v936
        %1116 = vmatpush.bf16.msra.mxu0 %v920
        %1117 = vmatpush.bf16.msra.mxu0 %v904
        %1118 = vmatpush.bf16.msra.mxu0 %v888
        %1119 = vmatpush.bf16.msra.mxu0 %v872
        %1120 = vmatmul.bf16.gmra.mxu0 %v1097
        %v1121 = vpop.f32.mrf.mxu0
        %v1122 = vadd.f32 %v533, %v1121
        %v1123 = vpop.f32.mrf.mxu0
        %1124 = vdwg.mxu0
        %1125 = vmatpush.bf16.msra.mxu0 0
        %1126 = vmatpush.bf16.msra.mxu0 %v969
        %1127 = vmatpush.bf16.msra.mxu0 %v953
        %1128 = vmatpush.bf16.msra.mxu0 %v937
        %1129 = vmatpush.bf16.msra.mxu0 %v921
        %1130 = vmatpush.bf16.msra.mxu0 %v905
        %1131 = vmatpush.bf16.msra.mxu0 %v889
        %1132 = vmatpush.bf16.msra.mxu0 %v873
        %1133 = vmatmul.bf16.gmra.mxu0 %v1097
        %v1134 = vpop.f32.mrf.mxu0
        %v1135 = vadd.f32 %v533, %v1134
        %v1136 = vpop.f32.mrf.mxu0
        %1137 = vdwg.mxu0
        %1138 = vmatpush.bf16.msra.mxu0 0
        %1139 = vmatpush.bf16.msra.mxu0 %v970
        %1140 = vmatpush.bf16.msra.mxu0 %v954
        %1141 = vmatpush.bf16.msra.mxu0 %v938
        %1142 = vmatpush.bf16.msra.mxu0 %v922
        %1143 = vmatpush.bf16.msra.mxu0 %v906
        %1144 = vmatpush.bf16.msra.mxu0 %v890
        %1145 = vmatpush.bf16.msra.mxu0 %v874
        %1146 = vmatmul.bf16.gmra.mxu0 %v1097
        %v1147 = vpop.f32.mrf.mxu0
        %v1148 = vadd.f32 %v533, %v1147
        %v1149 = vpop.f32.mrf.mxu0
        %1150 = vdwg.mxu0
        %1151 = vmatpush.bf16.msra.mxu0 0
        %1152 = vmatpush.bf16.msra.mxu0 %v971
        %1153 = vmatpush.bf16.msra.mxu0 %v955
        %1154 = vmatpush.bf16.msra.mxu0 %v939
        %1155 = vmatpush.bf16.msra.mxu0 %v923
        %1156 = vmatpush.bf16.msra.mxu0 %v907
        %1157 = vmatpush.bf16.msra.mxu0 %v891
        %1158 = vmatpush.bf16.msra.mxu0 %v875
        %1159 = vmatmul.bf16.gmra.mxu0 %v1097
        %v1160 = vpop.f32.mrf.mxu0
        %v1161 = vadd.f32 %v533, %v1160
        %v1162 = vpop.f32.mrf.mxu0
        %1163 = vdwg.mxu0
        %1164 = vmatpush.bf16.msra.mxu0 0
        %1165 = vmatpush.bf16.msra.mxu0 %v972
        %1166 = vmatpush.bf16.msra.mxu0 %v956
        %1167 = vmatpush.bf16.msra.mxu0 %v940
        %1168 = vmatpush.bf16.msra.mxu0 %v924
        %1169 = vmatpush.bf16.msra.mxu0 %v908
        %1170 = vmatpush.bf16.msra.mxu0 %v892
        %1171 = vmatpush.bf16.msra.mxu0 %v876
        %1172 = vmatmul.bf16.gmra.mxu0 %v1097
        %v1173 = vpop.f32.mrf.mxu0
        %v1174 = vadd.f32 %v533, %v1173
        %v1175 = vpop.f32.mrf.mxu0
        %1176 = vdwg.mxu0
        %1177 = vmatpush.bf16.msra.mxu0 0
        %1178 = vmatpush.bf16.msra.mxu0 %v973
        %1179 = vmatpush.bf16.msra.mxu0 %v957
        %1180 = vmatpush.bf16.msra.mxu0 %v941
        %1181 = vmatpush.bf16.msra.mxu0 %v925
        %1182 = vmatpush.bf16.msra.mxu0 %v909
        %1183 = vmatpush.bf16.msra.mxu0 %v893
        %1184 = vmatpush.bf16.msra.mxu0 %v877
        %1185 = vmatmul.bf16.gmra.mxu0 %v1097
        %v1186 = vpop.f32.mrf.mxu0
        %v1187 = vadd.f32 %v533, %v1186
        %v1188 = vpop.f32.mrf.mxu0
        %1189 = vdwg.mxu0
        %1190 = vmatpush.bf16.msra.mxu0 0
        %1191 = vmatpush.bf16.msra.mxu0 %v974
        %1192 = vmatpush.bf16.msra.mxu0 %v958
        %1193 = vmatpush.bf16.msra.mxu0 %v942
        %1194 = vmatpush.bf16.msra.mxu0 %v926
        %1195 = vmatpush.bf16.msra.mxu0 %v910
        %1196 = vmatpush.bf16.msra.mxu0 %v894
        %1197 = vmatpush.bf16.msra.mxu0 %v878
        %1198 = vmatmul.bf16.gmra.mxu0 %v1097
        %v1199 = vpop.f32.mrf.mxu0
        %v1200 = vadd.f32 %v533, %v1199
        %v1201 = vpop.f32.mrf.mxu0
        %1202 = vdwg.mxu0
        %1203 = vmatpush.bf16.msra.mxu0 0
        %1204 = vmatpush.bf16.msra.mxu0 %v975
        %1205 = vmatpush.bf16.msra.mxu0 %v959
        %1206 = vmatpush.bf16.msra.mxu0 %v943
        %1207 = vmatpush.bf16.msra.mxu0 %v927
        %1208 = vmatpush.bf16.msra.mxu0 %v911
        %1209 = vmatpush.bf16.msra.mxu0 %v895
        %1210 = vmatpush.bf16.msra.mxu0 %v879
        %1211 = vmatmul.bf16.gmra.mxu0 %v1097
        %v1212 = vpop.f32.mrf.mxu0
        %v1213 = vadd.f32 %v533, %v1212
        %v1214 = vpop.f32.mrf.mxu0
        %1215 = vdwg.mxu0
        %1216 = vmatpush.bf16.msra.mxu0 0
        %1217 = vmatpush.bf16.msra.mxu0 %v976
        %1218 = vmatpush.bf16.msra.mxu0 %v960
        %1219 = vmatpush.bf16.msra.mxu0 %v944
        %1220 = vmatpush.bf16.msra.mxu0 %v928
        %1221 = vmatpush.bf16.msra.mxu0 %v912
        %1222 = vmatpush.bf16.msra.mxu0 %v896
        %1223 = vmatpush.bf16.msra.mxu0 %v880
        %1224 = vmatmul.bf16.gmra.mxu0 %v1097
        %v1225 = vpop.f32.mrf.mxu0
        %v1226 = vadd.f32 %v533, %v1225
        %v1227 = vpop.f32.mrf.mxu0
        %1228 = vdwg.mxu0
        %1229 = vmatpush.bf16.msra.mxu0 0
        %1230 = vmatpush.bf16.msra.mxu0 %v977
        %1231 = vmatpush.bf16.msra.mxu0 %v961
        %1232 = vmatpush.bf16.msra.mxu0 %v945
        %1233 = vmatpush.bf16.msra.mxu0 %v929
        %1234 = vmatpush.bf16.msra.mxu0 %v913
        %1235 = vmatpush.bf16.msra.mxu0 %v897
        %1236 = vmatpush.bf16.msra.mxu0 %v881
        %1237 = vmatmul.bf16.gmra.mxu0 %v1097
        %v1238 = vpop.f32.mrf.mxu0
        %v1239 = vadd.f32 %v533, %v1238
        %v1240 = vpop.f32.mrf.mxu0
        %1241 = vdwg.mxu0
        %1242 = vmatpush.bf16.msra.mxu0 0
        %1243 = vmatpush.bf16.msra.mxu0 %v978
        %1244 = vmatpush.bf16.msra.mxu0 %v962
        %1245 = vmatpush.bf16.msra.mxu0 %v946
        %1246 = vmatpush.bf16.msra.mxu0 %v930
        %1247 = vmatpush.bf16.msra.mxu0 %v914
        %1248 = vmatpush.bf16.msra.mxu0 %v898
        %1249 = vmatpush.bf16.msra.mxu0 %v882
        %1250 = vmatmul.bf16.gmra.mxu0 %v1097
        %v1251 = vpop.f32.mrf.mxu0
        %v1252 = vadd.f32 %v533, %v1251
        %v1253 = vpop.f32.mrf.mxu0
        %1254 = vdwg.mxu0
        %1255 = vmatpush.bf16.msra.mxu0 0
        %1256 = vmatpush.bf16.msra.mxu0 %v979
        %1257 = vmatpush.bf16.msra.mxu0 %v963
        %1258 = vmatpush.bf16.msra.mxu0 %v947
        %1259 = vmatpush.bf16.msra.mxu0 %v931
        %1260 = vmatpush.bf16.msra.mxu0 %v915
        %1261 = vmatpush.bf16.msra.mxu0 %v899
        %1262 = vmatpush.bf16.msra.mxu0 %v883
        %1263 = vmatmul.bf16.gmra.mxu0 %v1097
        %v1264 = vpop.f32.mrf.mxu0
        %v1265 = vadd.f32 %v533, %v1264
        %v1266 = vpop.f32.mrf.mxu0
        %1267 = vdwg.mxu0
        %1268 = vmatpush.bf16.msra.mxu0 0
        %1269 = vmatpush.bf16.msra.mxu0 %v980
        %1270 = vmatpush.bf16.msra.mxu0 %v964
        %1271 = vmatpush.bf16.msra.mxu0 %v948
        %1272 = vmatpush.bf16.msra.mxu0 %v932
        %1273 = vmatpush.bf16.msra.mxu0 %v916
        %1274 = vmatpush.bf16.msra.mxu0 %v900
        %1275 = vmatpush.bf16.msra.mxu0 %v884
        %1276 = vmatmul.bf16.gmra.mxu0 %v1097
        %v1277 = vpop.f32.mrf.mxu0
        %v1278 = vadd.f32 %v533, %v1277
        %v1279 = vpop.f32.mrf.mxu0
        %1280 = vdwg.mxu0
        %1281 = vmatpush.bf16.msra.mxu0 0
        %1282 = vmatpush.bf16.msra.mxu0 %v981
        %1283 = vmatpush.bf16.msra.mxu0 %v965
        %1284 = vmatpush.bf16.msra.mxu0 %v949
        %1285 = vmatpush.bf16.msra.mxu0 %v933
        %1286 = vmatpush.bf16.msra.mxu0 %v917
        %1287 = vmatpush.bf16.msra.mxu0 %v901
        %1288 = vmatpush.bf16.msra.mxu0 %v885
        %1289 = vmatmul.bf16.gmra.mxu0 %v1097
        %v1290 = vpop.f32.mrf.mxu0
        %v1291 = vadd.f32 %v533, %v1290
        %v1292 = vpop.f32.mrf.mxu0
        %1293 = vdwg.mxu0
        %1294 = vmatpush.bf16.msra.mxu0 0
        %1295 = vmatpush.bf16.msra.mxu0 %v982
        %1296 = vmatpush.bf16.msra.mxu0 %v966
        %1297 = vmatpush.bf16.msra.mxu0 %v950
        %1298 = vmatpush.bf16.msra.mxu0 %v934
        %1299 = vmatpush.bf16.msra.mxu0 %v918
        %1300 = vmatpush.bf16.msra.mxu0 %v902
        %1301 = vmatpush.bf16.msra.mxu0 %v886
        %1302 = vmatmul.bf16.gmra.mxu0 %v1097
        %v1303 = vpop.f32.mrf.mxu0
        %v1304 = vadd.f32 %v533, %v1303
        %v1305 = vpop.f32.mrf.mxu0
        %1306 = vdwg.mxu0
        %vm1307 = vcmp.ge.f32.partialorder %v1109, 0.0
        %vm1308 = vcmp.ge.f32.partialorder %v1122, 0.0
        %vm1309 = vcmp.ge.f32.partialorder %v1135, 0.0
        %vm1310 = vcmp.ge.f32.partialorder %v1148, 0.0
        %vm1311 = vcmp.ge.f32.partialorder %v1161, 0.0
        %vm1312 = vcmp.ge.f32.partialorder %v1174, 0.0
        %vm1313 = vcmp.ge.f32.partialorder %v1187, 0.0
        %vm1314 = vcmp.ge.f32.partialorder %v1200, 0.0
        %vm1315 = vcmp.ge.f32.partialorder %v1213, 0.0
        %vm1316 = vcmp.ge.f32.partialorder %v1226, 0.0
        %vm1317 = vcmp.ge.f32.partialorder %v1239, 0.0
        %vm1318 = vcmp.ge.f32.partialorder %v1252, 0.0
        %vm1319 = vcmp.ge.f32.partialorder %v1265, 0.0
        %vm1320 = vcmp.ge.f32.partialorder %v1278, 0.0
        %vm1321 = vcmp.ge.f32.partialorder %v1291, 0.0
        %vm1322 = vcmp.ge.f32.partialorder %v1304, 0.0
        %v1323 = vmul.f32 %v1109, 0.01
        %v1324 = vmul.f32 %v1122, 0.01
        %v1325 = vmul.f32 %v1135, 0.01
        %v1326 = vmul.f32 %v1148, 0.01
        %v1327 = vmul.f32 %v1161, 0.01
        %v1328 = vmul.f32 %v1174, 0.01
        %v1329 = vmul.f32 %v1187, 0.01
        %v1330 = vmul.f32 %v1200, 0.01
        %v1331 = vmul.f32 %v1213, 0.01
        %v1332 = vmul.f32 %v1226, 0.01
        %v1333 = vmul.f32 %v1239, 0.01
        %v1334 = vmul.f32 %v1252, 0.01
        %v1335 = vmul.f32 %v1265, 0.01
        %v1336 = vmul.f32 %v1278, 0.01
        %v1337 = vmul.f32 %v1291, 0.01
        %v1338 = vmul.f32 %v1304, 0.01
        %v1339 = vsel %vm1307, %v1109, %v1323
        %v1340 = vsel %vm1308, %v1122, %v1324
        %v1341 = vsel %vm1309, %v1135, %v1325
        %v1342 = vsel %vm1310, %v1148, %v1326
        %v1343 = vsel %vm1311, %v1161, %v1327
        %v1344 = vsel %vm1312, %v1174, %v1328
        %v1345 = vsel %vm1313, %v1187, %v1329
        %v1346 = vsel %vm1314, %v1200, %v1330
        %v1347 = vsel %vm1315, %v1213, %v1331
        %v1348 = vsel %vm1316, %v1226, %v1332
        %v1349 = vsel %vm1317, %v1239, %v1333
        %v1350 = vsel %vm1318, %v1252, %v1334
        %v1351 = vsel %vm1319, %v1265, %v1335
        %v1352 = vsel %vm1320, %v1278, %v1336
        %v1353 = vsel %vm1321, %v1291, %v1337
        %v1354 = vsel %vm1322, %v1304, %v1338
        %v1355 = vpack.c.bf16 %v1340, %v1339
        %v1356 = vpack.c.bf16 %v1342, %v1341
        %v1357 = vpack.c.bf16 %v1344, %v1343
        %v1358 = vpack.c.bf16 %v1346, %v1345
        %v1359 = vpack.c.bf16 %v1348, %v1347
        %v1360 = vpack.c.bf16 %v1350, %v1349
        %v1361 = vpack.c.bf16 %v1352, %v1351
        %v1362 = vpack.c.bf16 %v1354, %v1353
        %1363 = vst [vmem:[%s413] sm:$0xff] %v1355
        %1364 = vst [vmem:[%s413 + $0x8] sm:$0xff] %v1356
        %1365 = vst [vmem:[%s413 + $0x10] sm:$0xff] %v1357
        %1366 = vst [vmem:[%s413 + $0x18] sm:$0xff] %v1358
        %1367 = vst [vmem:[%s413 + $0x20] sm:$0xff] %v1359
        %1368 = vst [vmem:[%s413 + $0x28] sm:$0xff] %v1360
        %1369 = vst [vmem:[%s413 + $0x30] sm:$0xff] %v1361
        %1370 = vst [vmem:[%s413 + $0x38] sm:$0xff] %v1362
        %s1371 = smul.u32 16, %s14
        %p1372 = scmp.lt.s32.totalorder %s1371, 63
        %s1373 = scalar_select %p1372, %s1371, 63
        %s1374 = smul.addr %s1373, 4
        %s1375 = scalar_lea.vmem %s3, %s1374
        // Predicated region
        $region56: #{voxel_encoder_forward.10} parent=50 // pred_check
          %p1376 = pneg %p100
        $region57: #{voxel_encoder_forward.10} parent=50 // pred_check_branch
          %1378 = sbr.rel (%p1376) target = $region59
        $region58: #{voxel_encoder_forward.10} parent=50 // pred_region
          %s1379 = smul.u32 16, %s14
        $region59: #{voxel_encoder_forward.10} parent=50 // pred_fallthru
          _
      $region51: #{voxel_encoder_forward.10} parent=5 // pred_fallthru
        _
      %p1380 = scmp.le.s32.totalorder 2, %s9
      // Predicated region
      $region60: #{voxel_encoder_forward.10} parent=5 // pred_check
        %p1381 = pneg %p1380
      $region61: #{voxel_encoder_forward.10} parent=5 // pred_check_branch
        %1383 = sbr.rel (%p1381) target = $region63
      $region62: #{voxel_encoder_forward.10} parent=5 // pred_region
        %s1384 = ssub.s32 %s9, 2
        // Predicated region
        $region64: #{voxel_encoder_forward.10} parent=62 // pred_check
          %p1385 = pneg %p106
        $region65: #{voxel_encoder_forward.10} parent=62 // pred_check_branch
          %1387 = sbr.rel (%p1385) target = $region67
        $region66: #{voxel_encoder_forward.10} parent=62 // pred_region
          %s1388 = smul.u32 16, %s15
          %p1389 = scmp.lt.s32.totalorder %s1388, 63
          %s1390 = scalar_select %p1389, %s1388, 63
          %s1391 = smul.addr %s1390, 4
          %s1392 = scalar_lea.vmem %s3, %s1391
        $region67: #{voxel_encoder_forward.10} parent=62 // pred_fallthru
          _
      $region63: #{voxel_encoder_forward.10} parent=5 // pred_fallthru
        _
    $region6: #{voxel_encoder_forward.10} parent=1 // loop_footer
      %s13 = sadd.s32 1, %s9
    $region7: #{voxel_encoder_forward.10} parent=1 // loop_footer_branch
      %8 = sbr.rel target = $region3
    $region8: #{voxel_encoder_forward.10} parent=1 // loop_exit
      _

// kernel: voxel_encoder_forward.11
$region0: #{voxel_encoder_forward.11}
  #allocation0 [shape = 'u32[]', space=smem, size = 0x4, offset = 0x4, fixed_abs, tag = 'smem constant byte address 0x4 - core index']
  #allocation1 [shape = 'u32[72,128]{1,0:T(1,128)}', space=vmem, size = 0x9000, scoped, tag = 'internal scratch']
  %s0 = inlined_call_operand.vmem [shape: bf16[16,224], index: 0, kind: input, shape index: {}]
  %s1 = inlined_call_operand.vmem [shape: bf16[224,1024], index: 1, kind: input, shape index: {}]
  %s2 = inlined_call_operand.vmem [shape: f32[16,1], index: 2, kind: input, shape index: {}]
  %s3 = inlined_call_operand.vmem [shape: bf16[16,1024], index: 3, kind: output, shape index: {}]
  %s4 = sld [smem:[#allocation0]]
  $region22: #{voxel_encoder_forward.11} parent=0
    _
  %s6 = ssub.s32 1, %s4
  %s7 = scalar_select 0, %s6, %s4
  // Predicated region
  $region2: #{voxel_encoder_forward.11} parent=0 // pred_check
    _
  $region3: #{voxel_encoder_forward.11} parent=0 // pred_check_branch
    %9 = sbr.rel (0) target = $region5
  $region4: #{voxel_encoder_forward.11} parent=0 // pred_region
    _
  $region5: #{voxel_encoder_forward.11} parent=0 // pred_fallthru
    _
  // Predicated region
  $region6: #{voxel_encoder_forward.11} parent=0 // pred_check
    _
  $region7: #{voxel_encoder_forward.11} parent=0 // pred_check_branch
    %11 = sbr.rel (0) target = $region9
  $region8: #{voxel_encoder_forward.11} parent=0 // pred_region
    _
  $region9: #{voxel_encoder_forward.11} parent=0 // pred_fallthru
    _
  // Predicated region
  $region10: #{voxel_encoder_forward.11} parent=0 // pred_check
    _
  $region11: #{voxel_encoder_forward.11} parent=0 // pred_check_branch
    %13 = sbr.rel (0) target = $region13
  $region12: #{voxel_encoder_forward.11} parent=0 // pred_region
    _
  $region13: #{voxel_encoder_forward.11} parent=0 // pred_fallthru
    _
  %v15 = vld [vmem:[%s0] sm:$0xff]
  %v16 = vld [vmem:[%s0 + $0x8] sm:$0xff]
  %v17 = vld [vmem:[%s1] sm:$0xff]
  %v18 = vld [vmem:[%s1 + $0x8] sm:$0xff]
  %v19 = vld [vmem:[%s1 + $0x10] sm:$0xff]
  %v20 = vld [vmem:[%s1 + $0x18] sm:$0xff]
  %v21 = vld [vmem:[%s1 + $0x20] sm:$0xff]
  %v22 = vld [vmem:[%s1 + $0x28] sm:$0xff]
  %v23 = vld [vmem:[%s1 + $0x30] sm:$0xff]
  %v24 = vld [vmem:[%s1 + $0x38] sm:$0xff]
  %v25 = vld [vmem:[%s1 + $0x40] sm:$0xff]
  %v26 = vld [vmem:[%s1 + $0x48] sm:$0xff]
  %v27 = vld [vmem:[%s1 + $0x50] sm:$0xff]
  %v28 = vld [vmem:[%s1 + $0x58] sm:$0xff]
  %v29 = vld [vmem:[%s1 + $0x60] sm:$0xff]
  %v30 = vld [vmem:[%s1 + $0x68] sm:$0xff]
  %v31 = vld [vmem:[%s1 + $0x70] sm:$0xff]
  %v32 = vld [vmem:[%s1 + $0x78] sm:$0xff]
  %v33 = vld [vmem:[%s1 + $0x80] sm:$0xff]
  %v34 = vld [vmem:[%s1 + $0x88] sm:$0xff]
  %v35 = vld [vmem:[%s1 + $0x90] sm:$0xff]
  %v36 = vld [vmem:[%s1 + $0x98] sm:$0xff]
  %v37 = vld [vmem:[%s1 + $0xa0] sm:$0xff]
  %v38 = vld [vmem:[%s1 + $0xa8] sm:$0xff]
  %v39 = vld [vmem:[%s1 + $0xb0] sm:$0xff]
  %v40 = vld [vmem:[%s1 + $0xb8] sm:$0xff]
  %v41 = vld [vmem:[%s1 + $0xc0] sm:$0xff]
  %v42 = vld [vmem:[%s1 + $0xc8] sm:$0xff]
  %v43 = vld [vmem:[%s1 + $0xd0] sm:$0xff]
  %v44 = vld [vmem:[%s1 + $0xd8] sm:$0xff]
  %v45 = vld [vmem:[%s1 + $0xe0] sm:$0xff]
  %v46 = vld [vmem:[%s1 + $0xe8] sm:$0xff]
  %v47 = vld [vmem:[%s1 + $0xf0] sm:$0xff]
  %v48 = vld [vmem:[%s1 + $0xf8] sm:$0xff]
  %v49 = vld [vmem:[%s1 + $0x100] sm:$0xff]
  %v50 = vld [vmem:[%s1 + $0x108] sm:$0xff]
  %v51 = vld [vmem:[%s1 + $0x110] sm:$0xff]
  %v52 = vld [vmem:[%s1 + $0x118] sm:$0xff]
  %v53 = vld [vmem:[%s1 + $0x120] sm:$0xff]
  %v54 = vld [vmem:[%s1 + $0x128] sm:$0xff]
  %v55 = vld [vmem:[%s1 + $0x130] sm:$0xff]
  %v56 = vld [vmem:[%s1 + $0x138] sm:$0xff]
  %v57 = vld [vmem:[%s1 + $0x140] sm:$0xff]
  %v58 = vld [vmem:[%s1 + $0x148] sm:$0xff]
  %v59 = vld [vmem:[%s1 + $0x150] sm:$0xff]
  %v60 = vld [vmem:[%s1 + $0x158] sm:$0xff]
  %v61 = vld [vmem:[%s1 + $0x160] sm:$0xff]
  %v62 = vld [vmem:[%s1 + $0x168] sm:$0xff]
  %v63 = vld [vmem:[%s1 + $0x170] sm:$0xff]
  %v64 = vld [vmem:[%s1 + $0x178] sm:$0xff]
  %v65 = vld [vmem:[%s1 + $0x180] sm:$0xff]
  %v66 = vld [vmem:[%s1 + $0x188] sm:$0xff]
  %v67 = vld [vmem:[%s1 + $0x190] sm:$0xff]
  %v68 = vld [vmem:[%s1 + $0x198] sm:$0xff]
  %v69 = vld [vmem:[%s1 + $0x1a0] sm:$0xff]
  %v70 = vld [vmem:[%s1 + $0x1a8] sm:$0xff]
  %v71 = vld [vmem:[%s1 + $0x1b0] sm:$0xff]
  %v72 = vld [vmem:[%s1 + $0x1b8] sm:$0xff]
  %v73 = vld [vmem:[%s1 + $0x1c0] sm:$0xff]
  %v74 = vld [vmem:[%s1 + $0x1c8] sm:$0xff]
  %v75 = vld [vmem:[%s1 + $0x1d0] sm:$0xff]
  %v76 = vld [vmem:[%s1 + $0x1d8] sm:$0xff]
  %v77 = vld [vmem:[%s1 + $0x1e0] sm:$0xff]
  %v78 = vld [vmem:[%s1 + $0x1e8] sm:$0xff]
  %v79 = vld [vmem:[%s1 + $0x1f0] sm:$0xff]
  %v80 = vld [vmem:[%s1 + $0x1f8] sm:$0xff]
  %v81 = vld [vmem:[%s1 + $0x200] sm:$0xff]
  %v82 = vld [vmem:[%s1 + $0x208] sm:$0xff]
  %v83 = vld [vmem:[%s1 + $0x210] sm:$0xff]
  %v84 = vld [vmem:[%s1 + $0x218] sm:$0xff]
  %v85 = vld [vmem:[%s1 + $0x220] sm:$0xff]
  %v86 = vld [vmem:[%s1 + $0x228] sm:$0xff]
  %v87 = vld [vmem:[%s1 + $0x230] sm:$0xff]
  %v88 = vld [vmem:[%s1 + $0x238] sm:$0xff]
  %v89 = vld [vmem:[%s1 + $0x240] sm:$0xff]
  %v90 = vld [vmem:[%s1 + $0x248] sm:$0xff]
  %v91 = vld [vmem:[%s1 + $0x250] sm:$0xff]
  %v92 = vld [vmem:[%s1 + $0x258] sm:$0xff]
  %v93 = vld [vmem:[%s1 + $0x260] sm:$0xff]
  %v94 = vld [vmem:[%s1 + $0x268] sm:$0xff]
  %v95 = vld [vmem:[%s1 + $0x270] sm:$0xff]
  %v96 = vld [vmem:[%s1 + $0x278] sm:$0xff]
  %v97 = vld [vmem:[%s1 + $0x280] sm:$0xff]
  %v98 = vld [vmem:[%s1 + $0x288] sm:$0xff]
  %v99 = vld [vmem:[%s1 + $0x290] sm:$0xff]
  %v100 = vld [vmem:[%s1 + $0x298] sm:$0xff]
  %v101 = vld [vmem:[%s1 + $0x2a0] sm:$0xff]
  %v102 = vld [vmem:[%s1 + $0x2a8] sm:$0xff]
  %v103 = vld [vmem:[%s1 + $0x2b0] sm:$0xff]
  %v104 = vld [vmem:[%s1 + $0x2b8] sm:$0xff]
  %v105 = vld [vmem:[%s1 + $0x2c0] sm:$0xff]
  %v106 = vld [vmem:[%s1 + $0x2c8] sm:$0xff]
  %v107 = vld [vmem:[%s1 + $0x2d0] sm:$0xff]
  %v108 = vld [vmem:[%s1 + $0x2d8] sm:$0xff]
  %v109 = vld [vmem:[%s1 + $0x2e0] sm:$0xff]
  %v110 = vld [vmem:[%s1 + $0x2e8] sm:$0xff]
  %v111 = vld [vmem:[%s1 + $0x2f0] sm:$0xff]
  %v112 = vld [vmem:[%s1 + $0x2f8] sm:$0xff]
  %v113 = vld [vmem:[%s1 + $0x300] sm:$0xff]
  %v114 = vld [vmem:[%s1 + $0x308] sm:$0xff]
  %v115 = vld [vmem:[%s1 + $0x310] sm:$0xff]
  %v116 = vld [vmem:[%s1 + $0x318] sm:$0xff]
  %v117 = vld [vmem:[%s1 + $0x320] sm:$0xff]
  %v118 = vld [vmem:[%s1 + $0x328] sm:$0xff]
  %v119 = vld [vmem:[%s1 + $0x330] sm:$0xff]
  %v120 = vld [vmem:[%s1 + $0x338] sm:$0xff]
  %v121 = vld [vmem:[%s1 + $0x340] sm:$0xff]
  %v122 = vld [vmem:[%s1 + $0x348] sm:$0xff]
  %v123 = vld [vmem:[%s1 + $0x350] sm:$0xff]
  %v124 = vld [vmem:[%s1 + $0x358] sm:$0xff]
  %v125 = vld [vmem:[%s1 + $0x360] sm:$0xff]
  %v126 = vld [vmem:[%s1 + $0x368] sm:$0xff]
  %v127 = vld [vmem:[%s1 + $0x370] sm:$0xff]
  %v128 = vld [vmem:[%s1 + $0x378] sm:$0xff]
  %v129 = vld [vmem:[%s2] sm:$0xff]
  %v130 = vld [vmem:[%s2 + $0x8] sm:$0xff]
  %132 = vset.pattern.permute.xlu0 0
  %133 = vperm.xlu0 %132, %v129
  %v134 = vpop.permute.xlu0 %133
  %137 = vset.pattern.permute.xlu0 0
  %138 = vperm.xlu0 %137, %v130
  %v139 = vpop.permute.xlu0 %138
  %v143 = vunpack.c.l.b16 %v15
  %v144 = vunpack.c.h.b16 %v15
  %v145 = vunpack.c.l.b16 %v16
  %v146 = vunpack.c.h.b16 %v16
  %v147 = vpack.c.b16 %v145, %v143
  %v148 = vpack.c.b16 %v146, %v144
  %v262 = vunpack.c.l.b16 %v17
  %v263 = vunpack.c.h.b16 %v17
  %v264 = vunpack.c.l.b16 %v18
  %v265 = vunpack.c.h.b16 %v18
  %v266 = vunpack.c.l.b16 %v19
  %v267 = vunpack.c.h.b16 %v19
  %v268 = vunpack.c.l.b16 %v20
  %v269 = vunpack.c.h.b16 %v20
  %v270 = vunpack.c.l.b16 %v21
  %v271 = vunpack.c.h.b16 %v21
  %v272 = vunpack.c.l.b16 %v22
  %v273 = vunpack.c.h.b16 %v22
  %v274 = vunpack.c.l.b16 %v23
  %v275 = vunpack.c.h.b16 %v23
  %v276 = vunpack.c.l.b16 %v24
  %v277 = vunpack.c.h.b16 %v24
  %v278 = vunpack.c.l.b16 %v25
  %v279 = vunpack.c.h.b16 %v25
  %v280 = vunpack.c.l.b16 %v26
  %v281 = vunpack.c.h.b16 %v26
  %v282 = vunpack.c.l.b16 %v27
  %v283 = vunpack.c.h.b16 %v27
  %v284 = vunpack.c.l.b16 %v28
  %v285 = vunpack.c.h.b16 %v28
  %v286 = vunpack.c.l.b16 %v29
  %v287 = vunpack.c.h.b16 %v29
  %v288 = vunpack.c.l.b16 %v30
  %v289 = vunpack.c.h.b16 %v30
  %v290 = vunpack.c.l.b16 %v31
  %v291 = vunpack.c.h.b16 %v31
  %v292 = vunpack.c.l.b16 %v32
  %v293 = vunpack.c.h.b16 %v32
  %v294 = vunpack.c.l.b16 %v33
  %v295 = vunpack.c.h.b16 %v33
  %v296 = vunpack.c.l.b16 %v34
  %v297 = vunpack.c.h.b16 %v34
  %v298 = vunpack.c.l.b16 %v35
  %v299 = vunpack.c.h.b16 %v35
  %v300 = vunpack.c.l.b16 %v36
  %v301 = vunpack.c.h.b16 %v36
  %v302 = vunpack.c.l.b16 %v37
  %v303 = vunpack.c.h.b16 %v37
  %v304 = vunpack.c.l.b16 %v38
  %v305 = vunpack.c.h.b16 %v38
  %v306 = vunpack.c.l.b16 %v39
  %v307 = vunpack.c.h.b16 %v39
  %v308 = vunpack.c.l.b16 %v40
  %v309 = vunpack.c.h.b16 %v40
  %v310 = vunpack.c.l.b16 %v41
  %v311 = vunpack.c.h.b16 %v41
  %v312 = vunpack.c.l.b16 %v42
  %v313 = vunpack.c.h.b16 %v42
  %v314 = vunpack.c.l.b16 %v43
  %v315 = vunpack.c.h.b16 %v43
  %v316 = vunpack.c.l.b16 %v44
  %v317 = vunpack.c.h.b16 %v44
  %v318 = vunpack.c.l.b16 %v45
  %v319 = vunpack.c.h.b16 %v45
  %v320 = vunpack.c.l.b16 %v46
  %v321 = vunpack.c.h.b16 %v46
  %v322 = vunpack.c.l.b16 %v47
  %v323 = vunpack.c.h.b16 %v47
  %v324 = vunpack.c.l.b16 %v48
  %v325 = vunpack.c.h.b16 %v48
  %v326 = vunpack.c.l.b16 %v49
  %v327 = vunpack.c.h.b16 %v49
  %v328 = vunpack.c.l.b16 %v50
  %v329 = vunpack.c.h.b16 %v50
  %v330 = vunpack.c.l.b16 %v51
  %v331 = vunpack.c.h.b16 %v51
  %v332 = vunpack.c.l.b16 %v52
  %v333 = vunpack.c.h.b16 %v52
  %v334 = vunpack.c.l.b16 %v53
  %v335 = vunpack.c.h.b16 %v53
  %v336 = vunpack.c.l.b16 %v54
  %v337 = vunpack.c.h.b16 %v54
  %v338 = vunpack.c.l.b16 %v55
  %v339 = vunpack.c.h.b16 %v55
  %v340 = vunpack.c.l.b16 %v56
  %v341 = vunpack.c.h.b16 %v56
  %v342 = vunpack.c.l.b16 %v57
  %v343 = vunpack.c.h.b16 %v57
  %v344 = vunpack.c.l.b16 %v58
  %v345 = vunpack.c.h.b16 %v58
  %v346 = vunpack.c.l.b16 %v59
  %v347 = vunpack.c.h.b16 %v59
  %v348 = vunpack.c.l.b16 %v60
  %v349 = vunpack.c.h.b16 %v60
  %v350 = vunpack.c.l.b16 %v61
  %v351 = vunpack.c.h.b16 %v61
  %v352 = vunpack.c.l.b16 %v62
  %v353 = vunpack.c.h.b16 %v62
  %v354 = vunpack.c.l.b16 %v63
  %v355 = vunpack.c.h.b16 %v63
  %v356 = vunpack.c.l.b16 %v64
  %v357 = vunpack.c.h.b16 %v64
  %v358 = vunpack.c.l.b16 %v65
  %v359 = vunpack.c.h.b16 %v65
  %v360 = vunpack.c.l.b16 %v66
  %v361 = vunpack.c.h.b16 %v66
  %v362 = vunpack.c.l.b16 %v67
  %v363 = vunpack.c.h.b16 %v67
  %v364 = vunpack.c.l.b16 %v68
  %v365 = vunpack.c.h.b16 %v68
  %v366 = vunpack.c.l.b16 %v69
  %v367 = vunpack.c.h.b16 %v69
  %v368 = vunpack.c.l.b16 %v70
  %v369 = vunpack.c.h.b16 %v70
  %v370 = vunpack.c.l.b16 %v71
  %v371 = vunpack.c.h.b16 %v71
  %v372 = vunpack.c.l.b16 %v72
  %v373 = vunpack.c.h.b16 %v72
  %v374 = vunpack.c.l.b16 %v73
  %v375 = vunpack.c.h.b16 %v73
  %v376 = vunpack.c.l.b16 %v74
  %v377 = vunpack.c.h.b16 %v74
  %v378 = vunpack.c.l.b16 %v75
  %v379 = vunpack.c.h.b16 %v75
  %v380 = vunpack.c.l.b16 %v76
  %v381 = vunpack.c.h.b16 %v76
  %v382 = vunpack.c.l.b16 %v77
  %v383 = vunpack.c.h.b16 %v77
  %v384 = vunpack.c.l.b16 %v78
  %v385 = vunpack.c.h.b16 %v78
  %v386 = vunpack.c.l.b16 %v79
  %v387 = vunpack.c.h.b16 %v79
  %v388 = vunpack.c.l.b16 %v80
  %v389 = vunpack.c.h.b16 %v80
  %v390 = vunpack.c.l.b16 %v81
  %v391 = vunpack.c.h.b16 %v81
  %v392 = vunpack.c.l.b16 %v82
  %v393 = vunpack.c.h.b16 %v82
  %v394 = vunpack.c.l.b16 %v83
  %v395 = vunpack.c.h.b16 %v83
  %v396 = vunpack.c.l.b16 %v84
  %v397 = vunpack.c.h.b16 %v84
  %v398 = vunpack.c.l.b16 %v85
  %v399 = vunpack.c.h.b16 %v85
  %v400 = vunpack.c.l.b16 %v86
  %v401 = vunpack.c.h.b16 %v86
  %v402 = vunpack.c.l.b16 %v87
  %v403 = vunpack.c.h.b16 %v87
  %v404 = vunpack.c.l.b16 %v88
  %v405 = vunpack.c.h.b16 %v88
  %v406 = vunpack.c.l.b16 %v89
  %v407 = vunpack.c.h.b16 %v89
  %v408 = vunpack.c.l.b16 %v90
  %v409 = vunpack.c.h.b16 %v90
  %v410 = vunpack.c.l.b16 %v91
  %v411 = vunpack.c.h.b16 %v91
  %v412 = vunpack.c.l.b16 %v92
  %v413 = vunpack.c.h.b16 %v92
  %v414 = vunpack.c.l.b16 %v93
  %v415 = vunpack.c.h.b16 %v93
  %v416 = vunpack.c.l.b16 %v94
  %v417 = vunpack.c.h.b16 %v94
  %v418 = vunpack.c.l.b16 %v95
  %v419 = vunpack.c.h.b16 %v95
  %v420 = vunpack.c.l.b16 %v96
  %v421 = vunpack.c.h.b16 %v96
  %v422 = vunpack.c.l.b16 %v97
  %v423 = vunpack.c.h.b16 %v97
  %v424 = vunpack.c.l.b16 %v98
  %v425 = vunpack.c.h.b16 %v98
  %v426 = vunpack.c.l.b16 %v99
  %v427 = vunpack.c.h.b16 %v99
  %v428 = vunpack.c.l.b16 %v100
  %v429 = vunpack.c.h.b16 %v100
  %v430 = vunpack.c.l.b16 %v101
  %v431 = vunpack.c.h.b16 %v101
  %v432 = vunpack.c.l.b16 %v102
  %v433 = vunpack.c.h.b16 %v102
  %v434 = vunpack.c.l.b16 %v103
  %v435 = vunpack.c.h.b16 %v103
  %v436 = vunpack.c.l.b16 %v104
  %v437 = vunpack.c.h.b16 %v104
  %v438 = vunpack.c.l.b16 %v105
  %v439 = vunpack.c.h.b16 %v105
  %v440 = vunpack.c.l.b16 %v106
  %v441 = vunpack.c.h.b16 %v106
  %v442 = vunpack.c.l.b16 %v107
  %v443 = vunpack.c.h.b16 %v107
  %v444 = vunpack.c.l.b16 %v108
  %v445 = vunpack.c.h.b16 %v108
  %v446 = vunpack.c.l.b16 %v109
  %v447 = vunpack.c.h.b16 %v109
  %v448 = vunpack.c.l.b16 %v110
  %v449 = vunpack.c.h.b16 %v110
  %v450 = vunpack.c.l.b16 %v111
  %v451 = vunpack.c.h.b16 %v111
  %v452 = vunpack.c.l.b16 %v112
  %v453 = vunpack.c.h.b16 %v112
  %v454 = vunpack.c.l.b16 %v113
  %v455 = vunpack.c.h.b16 %v113
  %v456 = vunpack.c.l.b16 %v114
  %v457 = vunpack.c.h.b16 %v114
  %v458 = vunpack.c.l.b16 %v115
  %v459 = vunpack.c.h.b16 %v115
  %v460 = vunpack.c.l.b16 %v116
  %v461 = vunpack.c.h.b16 %v116
  %v462 = vunpack.c.l.b16 %v117
  %v463 = vunpack.c.h.b16 %v117
  %v464 = vunpack.c.l.b16 %v118
  %v465 = vunpack.c.h.b16 %v118
  %v466 = vunpack.c.l.b16 %v119
  %v467 = vunpack.c.h.b16 %v119
  %v468 = vunpack.c.l.b16 %v120
  %v469 = vunpack.c.h.b16 %v120
  %v470 = vunpack.c.l.b16 %v121
  %v471 = vunpack.c.h.b16 %v121
  %v472 = vunpack.c.l.b16 %v122
  %v473 = vunpack.c.h.b16 %v122
  %v474 = vunpack.c.l.b16 %v123
  %v475 = vunpack.c.h.b16 %v123
  %v476 = vunpack.c.l.b16 %v124
  %v477 = vunpack.c.h.b16 %v124
  %v478 = vunpack.c.l.b16 %v125
  %v479 = vunpack.c.h.b16 %v125
  %v480 = vunpack.c.l.b16 %v126
  %v481 = vunpack.c.h.b16 %v126
  %v482 = vunpack.c.l.b16 %v127
  %v483 = vunpack.c.h.b16 %v127
  %v484 = vunpack.c.l.b16 %v128
  %v485 = vunpack.c.h.b16 %v128
  %v486 = vpack.c.b16 %v270, %v262
  %v487 = vpack.c.b16 %v271, %v263
  %v488 = vpack.c.b16 %v272, %v264
  %v489 = vpack.c.b16 %v273, %v265
  %v490 = vpack.c.b16 %v274, %v266
  %v491 = vpack.c.b16 %v275, %v267
  %v492 = vpack.c.b16 %v276, %v268
  %v493 = vpack.c.b16 %v277, %v269
  %v494 = vpack.c.b16 %v286, %v278
  %v495 = vpack.c.b16 %v287, %v279
  %v496 = vpack.c.b16 %v288, %v280
  %v497 = vpack.c.b16 %v289, %v281
  %v498 = vpack.c.b16 %v290, %v282
  %v499 = vpack.c.b16 %v291, %v283
  %v500 = vpack.c.b16 %v292, %v284
  %v501 = vpack.c.b16 %v293, %v285
  %v502 = vpack.c.b16 %v302, %v294
  %v503 = vpack.c.b16 %v303, %v295
  %v504 = vpack.c.b16 %v304, %v296
  %v505 = vpack.c.b16 %v305, %v297
  %v506 = vpack.c.b16 %v306, %v298
  %v507 = vpack.c.b16 %v307, %v299
  %v508 = vpack.c.b16 %v308, %v300
  %v509 = vpack.c.b16 %v309, %v301
  %v510 = vpack.c.b16 %v318, %v310
  %v511 = vpack.c.b16 %v319, %v311
  %v512 = vpack.c.b16 %v320, %v312
  %v513 = vpack.c.b16 %v321, %v313
  %v514 = vpack.c.b16 %v322, %v314
  %v515 = vpack.c.b16 %v323, %v315
  %v516 = vpack.c.b16 %v324, %v316
  %v517 = vpack.c.b16 %v325, %v317
  %v518 = vpack.c.b16 %v334, %v326
  %v519 = vpack.c.b16 %v335, %v327
  %v520 = vpack.c.b16 %v336, %v328
  %v521 = vpack.c.b16 %v337, %v329
  %v522 = vpack.c.b16 %v338, %v330
  %v523 = vpack.c.b16 %v339, %v331
  %v524 = vpack.c.b16 %v340, %v332
  %v525 = vpack.c.b16 %v341, %v333
  %v526 = vpack.c.b16 %v350, %v342
  %v527 = vpack.c.b16 %v351, %v343
  %v528 = vpack.c.b16 %v352, %v344
  %v529 = vpack.c.b16 %v353, %v345
  %v530 = vpack.c.b16 %v354, %v346
  %v531 = vpack.c.b16 %v355, %v347
  %v532 = vpack.c.b16 %v356, %v348
  %v533 = vpack.c.b16 %v357, %v349
  %v534 = vpack.c.b16 %v366, %v358
  %v535 = vpack.c.b16 %v367, %v359
  %v536 = vpack.c.b16 %v368, %v360
  %v537 = vpack.c.b16 %v369, %v361
  %v538 = vpack.c.b16 %v370, %v362
  %v539 = vpack.c.b16 %v371, %v363
  %v540 = vpack.c.b16 %v372, %v364
  %v541 = vpack.c.b16 %v373, %v365
  %v542 = vpack.c.b16 %v382, %v374
  %v543 = vpack.c.b16 %v383, %v375
  %v544 = vpack.c.b16 %v384, %v376
  %v545 = vpack.c.b16 %v385, %v377
  %v546 = vpack.c.b16 %v386, %v378
  %v547 = vpack.c.b16 %v387, %v379
  %v548 = vpack.c.b16 %v388, %v380
  %v549 = vpack.c.b16 %v389, %v381
  %v550 = vpack.c.b16 %v398, %v390
  %v551 = vpack.c.b16 %v399, %v391
  %v552 = vpack.c.b16 %v400, %v392
  %v553 = vpack.c.b16 %v401, %v393
  %v554 = vpack.c.b16 %v402, %v394
  %v555 = vpack.c.b16 %v403, %v395
  %v556 = vpack.c.b16 %v404, %v396
  %v557 = vpack.c.b16 %v405, %v397
  %v558 = vpack.c.b16 %v414, %v406
  %v559 = vpack.c.b16 %v415, %v407
  %v560 = vpack.c.b16 %v416, %v408
  %v561 = vpack.c.b16 %v417, %v409
  %v562 = vpack.c.b16 %v418, %v410
  %v563 = vpack.c.b16 %v419, %v411
  %v564 = vpack.c.b16 %v420, %v412
  %v565 = vpack.c.b16 %v421, %v413
  %v566 = vpack.c.b16 %v430, %v422
  %v567 = vpack.c.b16 %v431, %v423
  %v568 = vpack.c.b16 %v432, %v424
  %v569 = vpack.c.b16 %v433, %v425
  %v570 = vpack.c.b16 %v434, %v426
  %v571 = vpack.c.b16 %v435, %v427
  %v572 = vpack.c.b16 %v436, %v428
  %v573 = vpack.c.b16 %v437, %v429
  %v574 = vpack.c.b16 %v446, %v438
  %v575 = vpack.c.b16 %v447, %v439
  %v576 = vpack.c.b16 %v448, %v440
  %v577 = vpack.c.b16 %v449, %v441
  %v578 = vpack.c.b16 %v450, %v442
  %v579 = vpack.c.b16 %v451, %v443
  %v580 = vpack.c.b16 %v452, %v444
  %v581 = vpack.c.b16 %v453, %v445
  %v582 = vpack.c.b16 %v462, %v454
  %v583 = vpack.c.b16 %v463, %v455
  %v584 = vpack.c.b16 %v464, %v456
  %v585 = vpack.c.b16 %v465, %v457
  %v586 = vpack.c.b16 %v466, %v458
  %v587 = vpack.c.b16 %v467, %v459
  %v588 = vpack.c.b16 %v468, %v460
  %v589 = vpack.c.b16 %v469, %v461
  %v590 = vpack.c.b16 %v478, %v470
  %v591 = vpack.c.b16 %v479, %v471
  %v592 = vpack.c.b16 %v480, %v472
  %v593 = vpack.c.b16 %v481, %v473
  %v594 = vpack.c.b16 %v482, %v474
  %v595 = vpack.c.b16 %v483, %v475
  %v596 = vpack.c.b16 %v484, %v476
  %v597 = vpack.c.b16 %v485, %v477
  %vm710 = vcmask 785408
  %v712 = vsel %vm710, %v148, 0
  %714 = vmatpush.bf16.msra.mxu0 %v542
  %715 = vmatpush.bf16.msra.mxu0 %v534
  %716 = vmatpush.bf16.msra.mxu0 %v526
  %717 = vmatpush.bf16.msra.mxu0 %v518
  %718 = vmatpush.bf16.msra.mxu0 %v510
  %719 = vmatpush.bf16.msra.mxu0 %v502
  %720 = vmatpush.bf16.msra.mxu0 %v494
  %721 = vmatpush.bf16.msra.mxu0 %v486
  %722 = vmatmul.bf16.gmra.mxu0 %v147
  %v723 = vpop.f32.mrf.mxu0
  %v724 = vadd.f32 %v134, %v723
  %v725 = vpop.f32.mrf.mxu0
  %v726 = vadd.f32 %v139, %v725
  %727 = vdwg.mxu0
  %728 = vmatpush.bf16.msra.mxu0 0
  %729 = vmatpush.bf16.msra.mxu0 0
  %730 = vmatpush.bf16.msra.mxu0 %v590
  %731 = vmatpush.bf16.msra.mxu0 %v582
  %732 = vmatpush.bf16.msra.mxu0 %v574
  %733 = vmatpush.bf16.msra.mxu0 %v566
  %734 = vmatpush.bf16.msra.mxu0 %v558
  %735 = vmatpush.bf16.msra.mxu0 %v550
  %736 = vmatmul.bf16.gmra.mxu0 %v712
  %v737 = vpop.f32.mrf.mxu0
  %v738 = vadd.f32 %v724, %v737
  %v739 = vpop.f32.mrf.mxu0
  %v740 = vadd.f32 %v726, %v739
  %741 = vdwg.mxu0
  %742 = vmatpush.bf16.msra.mxu0 %v543
  %743 = vmatpush.bf16.msra.mxu0 %v535
  %744 = vmatpush.bf16.msra.mxu0 %v527
  %745 = vmatpush.bf16.msra.mxu0 %v519
  %746 = vmatpush.bf16.msra.mxu0 %v511
  %747 = vmatpush.bf16.msra.mxu0 %v503
  %748 = vmatpush.bf16.msra.mxu0 %v495
  %749 = vmatpush.bf16.msra.mxu0 %v487
  %750 = vmatmul.bf16.gmra.mxu0 %v147
  %v751 = vpop.f32.mrf.mxu0
  %v752 = vadd.f32 %v134, %v751
  %v753 = vpop.f32.mrf.mxu0
  %v754 = vadd.f32 %v139, %v753
  %755 = vdwg.mxu0
  %756 = vmatpush.bf16.msra.mxu0 0
  %757 = vmatpush.bf16.msra.mxu0 0
  %758 = vmatpush.bf16.msra.mxu0 %v591
  %759 = vmatpush.bf16.msra.mxu0 %v583
  %760 = vmatpush.bf16.msra.mxu0 %v575
  %761 = vmatpush.bf16.msra.mxu0 %v567
  %762 = vmatpush.bf16.msra.mxu0 %v559
  %763 = vmatpush.bf16.msra.mxu0 %v551
  %764 = vmatmul.bf16.gmra.mxu0 %v712
  %v765 = vpop.f32.mrf.mxu0
  %v766 = vadd.f32 %v752, %v765
  %v767 = vpop.f32.mrf.mxu0
  %v768 = vadd.f32 %v754, %v767
  %769 = vdwg.mxu0
  %770 = vmatpush.bf16.msra.mxu0 %v544
  %771 = vmatpush.bf16.msra.mxu0 %v536
  %772 = vmatpush.bf16.msra.mxu0 %v528
  %773 = vmatpush.bf16.msra.mxu0 %v520
  %774 = vmatpush.bf16.msra.mxu0 %v512
  %775 = vmatpush.bf16.msra.mxu0 %v504
  %776 = vmatpush.bf16.msra.mxu0 %v496
  %777 = vmatpush.bf16.msra.mxu0 %v488
  %778 = vmatmul.bf16.gmra.mxu0 %v147
  %v779 = vpop.f32.mrf.mxu0
  %v780 = vadd.f32 %v134, %v779
  %v781 = vpop.f32.mrf.mxu0
  %v782 = vadd.f32 %v139, %v781
  %783 = vdwg.mxu0
  %784 = vmatpush.bf16.msra.mxu0 0
  %785 = vmatpush.bf16.msra.mxu0 0
  %786 = vmatpush.bf16.msra.mxu0 %v592
  %787 = vmatpush.bf16.msra.mxu0 %v584
  %788 = vmatpush.bf16.msra.mxu0 %v576
  %789 = vmatpush.bf16.msra.mxu0 %v568
  %790 = vmatpush.bf16.msra.mxu0 %v560
  %791 = vmatpush.bf16.msra.mxu0 %v552
  %792 = vmatmul.bf16.gmra.mxu0 %v712
  %v793 = vpop.f32.mrf.mxu0
  %v794 = vadd.f32 %v780, %v793
  %v795 = vpop.f32.mrf.mxu0
  %v796 = vadd.f32 %v782, %v795
  %797 = vdwg.mxu0
  %798 = vmatpush.bf16.msra.mxu0 %v545
  %799 = vmatpush.bf16.msra.mxu0 %v537
  %800 = vmatpush.bf16.msra.mxu0 %v529
  %801 = vmatpush.bf16.msra.mxu0 %v521
  %802 = vmatpush.bf16.msra.mxu0 %v513
  %803 = vmatpush.bf16.msra.mxu0 %v505
  %804 = vmatpush.bf16.msra.mxu0 %v497
  %805 = vmatpush.bf16.msra.mxu0 %v489
  %806 = vmatmul.bf16.gmra.mxu0 %v147
  %v807 = vpop.f32.mrf.mxu0
  %v808 = vadd.f32 %v134, %v807
  %v809 = vpop.f32.mrf.mxu0
  %v810 = vadd.f32 %v139, %v809
  %811 = vdwg.mxu0
  %812 = vmatpush.bf16.msra.mxu0 0
  %813 = vmatpush.bf16.msra.mxu0 0
  %814 = vmatpush.bf16.msra.mxu0 %v593
  %815 = vmatpush.bf16.msra.mxu0 %v585
  %816 = vmatpush.bf16.msra.mxu0 %v577
  %817 = vmatpush.bf16.msra.mxu0 %v569
  %818 = vmatpush.bf16.msra.mxu0 %v561
  %819 = vmatpush.bf16.msra.mxu0 %v553
  %820 = vmatmul.bf16.gmra.mxu0 %v712
  %v821 = vpop.f32.mrf.mxu0
  %v822 = vadd.f32 %v808, %v821
  %v823 = vpop.f32.mrf.mxu0
  %v824 = vadd.f32 %v810, %v823
  %825 = vdwg.mxu0
  %826 = vmatpush.bf16.msra.mxu0 %v546
  %827 = vmatpush.bf16.msra.mxu0 %v538
  %828 = vmatpush.bf16.msra.mxu0 %v530
  %829 = vmatpush.bf16.msra.mxu0 %v522
  %830 = vmatpush.bf16.msra.mxu0 %v514
  %831 = vmatpush.bf16.msra.mxu0 %v506
  %832 = vmatpush.bf16.msra.mxu0 %v498
  %833 = vmatpush.bf16.msra.mxu0 %v490
  %834 = vmatmul.bf16.gmra.mxu0 %v147
  %v835 = vpop.f32.mrf.mxu0
  %v836 = vadd.f32 %v134, %v835
  %v837 = vpop.f32.mrf.mxu0
  %v838 = vadd.f32 %v139, %v837
  %839 = vdwg.mxu0
  %840 = vmatpush.bf16.msra.mxu0 0
  %841 = vmatpush.bf16.msra.mxu0 0
  %842 = vmatpush.bf16.msra.mxu0 %v594
  %843 = vmatpush.bf16.msra.mxu0 %v586
  %844 = vmatpush.bf16.msra.mxu0 %v578
  %845 = vmatpush.bf16.msra.mxu0 %v570
  %846 = vmatpush.bf16.msra.mxu0 %v562
  %847 = vmatpush.bf16.msra.mxu0 %v554
  %848 = vmatmul.bf16.gmra.mxu0 %v712
  %v849 = vpop.f32.mrf.mxu0
  %v850 = vadd.f32 %v836, %v849
  %v851 = vpop.f32.mrf.mxu0
  %v852 = vadd.f32 %v838, %v851
  %853 = vdwg.mxu0
  %854 = vmatpush.bf16.msra.mxu0 %v547
  %855 = vmatpush.bf16.msra.mxu0 %v539
  %856 = vmatpush.bf16.msra.mxu0 %v531
  %857 = vmatpush.bf16.msra.mxu0 %v523
  %858 = vmatpush.bf16.msra.mxu0 %v515
  %859 = vmatpush.bf16.msra.mxu0 %v507
  %860 = vmatpush.bf16.msra.mxu0 %v499
  %861 = vmatpush.bf16.msra.mxu0 %v491
  %862 = vmatmul.bf16.gmra.mxu0 %v147
  %v863 = vpop.f32.mrf.mxu0
  %v864 = vadd.f32 %v134, %v863
  %v865 = vpop.f32.mrf.mxu0
  %v866 = vadd.f32 %v139, %v865
  %867 = vdwg.mxu0
  %868 = vmatpush.bf16.msra.mxu0 0
  %869 = vmatpush.bf16.msra.mxu0 0
  %870 = vmatpush.bf16.msra.mxu0 %v595
  %871 = vmatpush.bf16.msra.mxu0 %v587
  %872 = vmatpush.bf16.msra.mxu0 %v579
  %873 = vmatpush.bf16.msra.mxu0 %v571
  %874 = vmatpush.bf16.msra.mxu0 %v563
  %875 = vmatpush.bf16.msra.mxu0 %v555
  %876 = vmatmul.bf16.gmra.mxu0 %v712
  %v877 = vpop.f32.mrf.mxu0
  %v878 = vadd.f32 %v864, %v877
  %v879 = vpop.f32.mrf.mxu0
  %v880 = vadd.f32 %v866, %v879
  %881 = vdwg.mxu0
  %882 = vmatpush.bf16.msra.mxu0 %v548
  %883 = vmatpush.bf16.msra.mxu0 %v540
  %884 = vmatpush.bf16.msra.mxu0 %v532
  %885 = vmatpush.bf16.msra.mxu0 %v524
  %886 = vmatpush.bf16.msra.mxu0 %v516
  %887 = vmatpush.bf16.msra.mxu0 %v508
  %888 = vmatpush.bf16.msra.mxu0 %v500
  %889 = vmatpush.bf16.msra.mxu0 %v492
  %890 = vmatmul.bf16.gmra.mxu0 %v147
  %v891 = vpop.f32.mrf.mxu0
  %v892 = vadd.f32 %v134, %v891
  %v893 = vpop.f32.mrf.mxu0
  %v894 = vadd.f32 %v139, %v893
  %895 = vdwg.mxu0
  %896 = vmatpush.bf16.msra.mxu0 0
  %897 = vmatpush.bf16.msra.mxu0 0
  %898 = vmatpush.bf16.msra.mxu0 %v596
  %899 = vmatpush.bf16.msra.mxu0 %v588
  %900 = vmatpush.bf16.msra.mxu0 %v580
  %901 = vmatpush.bf16.msra.mxu0 %v572
  %902 = vmatpush.bf16.msra.mxu0 %v564
  %903 = vmatpush.bf16.msra.mxu0 %v556
  %904 = vmatmul.bf16.gmra.mxu0 %v712
  %v905 = vpop.f32.mrf.mxu0
  %v906 = vadd.f32 %v892, %v905
  %v907 = vpop.f32.mrf.mxu0
  %v908 = vadd.f32 %v894, %v907
  %909 = vdwg.mxu0
  %910 = vmatpush.bf16.msra.mxu0 %v549
  %911 = vmatpush.bf16.msra.mxu0 %v541
  %912 = vmatpush.bf16.msra.mxu0 %v533
  %913 = vmatpush.bf16.msra.mxu0 %v525
  %914 = vmatpush.bf16.msra.mxu0 %v517
  %915 = vmatpush.bf16.msra.mxu0 %v509
  %916 = vmatpush.bf16.msra.mxu0 %v501
  %917 = vmatpush.bf16.msra.mxu0 %v493
  %918 = vmatmul.bf16.gmra.mxu0 %v147
  %v919 = vpop.f32.mrf.mxu0
  %v920 = vadd.f32 %v134, %v919
  %v921 = vpop.f32.mrf.mxu0
  %v922 = vadd.f32 %v139, %v921
  %923 = vdwg.mxu0
  %924 = vmatpush.bf16.msra.mxu0 0
  %925 = vmatpush.bf16.msra.mxu0 0
  %926 = vmatpush.bf16.msra.mxu0 %v597
  %927 = vmatpush.bf16.msra.mxu0 %v589
  %928 = vmatpush.bf16.msra.mxu0 %v581
  %929 = vmatpush.bf16.msra.mxu0 %v573
  %930 = vmatpush.bf16.msra.mxu0 %v565
  %931 = vmatpush.bf16.msra.mxu0 %v557
  %932 = vmatmul.bf16.gmra.mxu0 %v712
  %v933 = vpop.f32.mrf.mxu0
  %v934 = vadd.f32 %v920, %v933
  %v935 = vpop.f32.mrf.mxu0
  %v936 = vadd.f32 %v922, %v935
  %937 = vdwg.mxu0
  %vm938 = vcmp.ge.f32.partialorder %v738, 0.0
  %vm939 = vcmp.ge.f32.partialorder %v766, 0.0
  %vm940 = vcmp.ge.f32.partialorder %v794, 0.0
  %vm941 = vcmp.ge.f32.partialorder %v822, 0.0
  %vm942 = vcmp.ge.f32.partialorder %v850, 0.0
  %vm943 = vcmp.ge.f32.partialorder %v878, 0.0
  %vm944 = vcmp.ge.f32.partialorder %v906, 0.0
  %vm945 = vcmp.ge.f32.partialorder %v934, 0.0
  %vm946 = vcmp.ge.f32.partialorder %v740, 0.0
  %vm947 = vcmp.ge.f32.partialorder %v768, 0.0
  %vm948 = vcmp.ge.f32.partialorder %v796, 0.0
  %vm949 = vcmp.ge.f32.partialorder %v824, 0.0
  %vm950 = vcmp.ge.f32.partialorder %v852, 0.0
  %vm951 = vcmp.ge.f32.partialorder %v880, 0.0
  %vm952 = vcmp.ge.f32.partialorder %v908, 0.0
  %vm953 = vcmp.ge.f32.partialorder %v936, 0.0
  %v954 = vmul.f32 %v738, 0.01
  %v955 = vmul.f32 %v766, 0.01
  %v956 = vmul.f32 %v794, 0.01
  %v957 = vmul.f32 %v822, 0.01
  %v958 = vmul.f32 %v850, 0.01
  %v959 = vmul.f32 %v878, 0.01
  %v960 = vmul.f32 %v906, 0.01
  %v961 = vmul.f32 %v934, 0.01
  %v962 = vmul.f32 %v740, 0.01
  %v963 = vmul.f32 %v768, 0.01
  %v964 = vmul.f32 %v796, 0.01
  %v965 = vmul.f32 %v824, 0.01
  %v966 = vmul.f32 %v852, 0.01
  %v967 = vmul.f32 %v880, 0.01
  %v968 = vmul.f32 %v908, 0.01
  %v969 = vmul.f32 %v936, 0.01
  %v970 = vsel %vm938, %v738, %v954
  %v971 = vsel %vm939, %v766, %v955
  %v972 = vsel %vm940, %v794, %v956
  %v973 = vsel %vm941, %v822, %v957
  %v974 = vsel %vm942, %v850, %v958
  %v975 = vsel %vm943, %v878, %v959
  %v976 = vsel %vm944, %v906, %v960
  %v977 = vsel %vm945, %v934, %v961
  %v978 = vsel %vm946, %v740, %v962
  %v979 = vsel %vm947, %v768, %v963
  %v980 = vsel %vm948, %v796, %v964
  %v981 = vsel %vm949, %v824, %v965
  %v982 = vsel %vm950, %v852, %v966
  %v983 = vsel %vm951, %v880, %v967
  %v984 = vsel %vm952, %v908, %v968
  %v985 = vsel %vm953, %v936, %v969
  %v986 = vpack.c.bf16 %v971, %v970
  %v987 = vpack.c.bf16 %v973, %v972
  %v988 = vpack.c.bf16 %v975, %v974
  %v989 = vpack.c.bf16 %v977, %v976
  %v990 = vpack.c.bf16 %v979, %v978
  %v991 = vpack.c.bf16 %v981, %v980
  %v992 = vpack.c.bf16 %v983, %v982
  %v993 = vpack.c.bf16 %v985, %v984
  %994 = vst [vmem:[%s3] sm:$0xff] %v986
  %995 = vst [vmem:[%s3 + $0x8] sm:$0xff] %v987
  %996 = vst [vmem:[%s3 + $0x10] sm:$0xff] %v988
  %997 = vst [vmem:[%s3 + $0x18] sm:$0xff] %v989
  %998 = vst [vmem:[%s3 + $0x20] sm:$0xff] %v990
  %999 = vst [vmem:[%s3 + $0x28] sm:$0xff] %v991
  %1000 = vst [vmem:[%s3 + $0x30] sm:$0xff] %v992
  %1001 = vst [vmem:[%s3 + $0x38] sm:$0xff] %v993
  // Predicated region
  $region14: #{voxel_encoder_forward.11} parent=0 // pred_check
    _
  $region15: #{voxel_encoder_forward.11} parent=0 // pred_check_branch
    %1003 = sbr.rel (0) target = $region17
  $region16: #{voxel_encoder_forward.11} parent=0 // pred_region
    _
  $region17: #{voxel_encoder_forward.11} parent=0 // pred_fallthru
    _
  // Predicated region
  $region18: #{voxel_encoder_forward.11} parent=0 // pred_check
    _
  $region19: #{voxel_encoder_forward.11} parent=0 // pred_check_branch
    %1005 = sbr.rel (0) target = $region21
  $region20: #{voxel_encoder_forward.11} parent=0 // pred_region
    _
  $region21: #{voxel_encoder_forward.11} parent=0 // pred_fallthru
    _

// kernel: voxel_encoder_forward.12
$region0: #{voxel_encoder_forward.12}
  #allocation0 [shape = 'u32[]', space=smem, size = 0x4, offset = 0x4, fixed_abs, tag = 'smem constant byte address 0x4 - core index']
  #allocation1 [shape = 'u32[72,128]{1,0:T(1,128)}', space=vmem, size = 0x9000, scoped, tag = 'internal scratch']
  %s0 = inlined_call_operand.vmem [shape: bf16[16,432], index: 0, kind: input, shape index: {}]
  %s1 = inlined_call_operand.vmem [shape: bf16[432,1024], index: 1, kind: input, shape index: {}]
  %s2 = inlined_call_operand.vmem [shape: f32[16,1], index: 2, kind: input, shape index: {}]
  %s3 = inlined_call_operand.vmem [shape: bf16[16,1024], index: 3, kind: output, shape index: {}]
  %s4 = sld [smem:[#allocation0]]
  $region22: #{voxel_encoder_forward.12} parent=0
    _
  %s6 = ssub.s32 1, %s4
  %s7 = scalar_select 0, %s6, %s4
  // Predicated region
  $region2: #{voxel_encoder_forward.12} parent=0 // pred_check
    _
  $region3: #{voxel_encoder_forward.12} parent=0 // pred_check_branch
    %9 = sbr.rel (0) target = $region5
  $region4: #{voxel_encoder_forward.12} parent=0 // pred_region
    _
  $region5: #{voxel_encoder_forward.12} parent=0 // pred_fallthru
    _
  // Predicated region
  $region6: #{voxel_encoder_forward.12} parent=0 // pred_check
    _
  $region7: #{voxel_encoder_forward.12} parent=0 // pred_check_branch
    %11 = sbr.rel (0) target = $region9
  $region8: #{voxel_encoder_forward.12} parent=0 // pred_region
    _
  $region9: #{voxel_encoder_forward.12} parent=0 // pred_fallthru
    _
  // Predicated region
  $region10: #{voxel_encoder_forward.12} parent=0 // pred_check
    _
  $region11: #{voxel_encoder_forward.12} parent=0 // pred_check_branch
    %13 = sbr.rel (0) target = $region13
  $region12: #{voxel_encoder_forward.12} parent=0 // pred_region
    _
  $region13: #{voxel_encoder_forward.12} parent=0 // pred_fallthru
    _
  %v15 = vld [vmem:[%s0] sm:$0xff]
  %v16 = vld [vmem:[%s0 + $0x8] sm:$0xff]
  %v17 = vld [vmem:[%s0 + $0x10] sm:$0xff]
  %v18 = vld [vmem:[%s0 + $0x18] sm:$0xff]
  %v19 = vld [vmem:[%s1] sm:$0xff]
  %v20 = vld [vmem:[%s1 + $0x8] sm:$0xff]
  %v21 = vld [vmem:[%s1 + $0x10] sm:$0xff]
  %v22 = vld [vmem:[%s1 + $0x18] sm:$0xff]
  %v23 = vld [vmem:[%s1 + $0x20] sm:$0xff]
  %v24 = vld [vmem:[%s1 + $0x28] sm:$0xff]
  %v25 = vld [vmem:[%s1 + $0x30] sm:$0xff]
  %v26 = vld [vmem:[%s1 + $0x38] sm:$0xff]
  %v27 = vld [vmem:[%s1 + $0x40] sm:$0xff]
  %v28 = vld [vmem:[%s1 + $0x48] sm:$0xff]
  %v29 = vld [vmem:[%s1 + $0x50] sm:$0xff]
  %v30 = vld [vmem:[%s1 + $0x58] sm:$0xff]
  %v31 = vld [vmem:[%s1 + $0x60] sm:$0xff]
  %v32 = vld [vmem:[%s1 + $0x68] sm:$0xff]
  %v33 = vld [vmem:[%s1 + $0x70] sm:$0xff]
  %v34 = vld [vmem:[%s1 + $0x78] sm:$0xff]
  %v35 = vld [vmem:[%s1 + $0x80] sm:$0xff]
  %v36 = vld [vmem:[%s1 + $0x88] sm:$0xff]
  %v37 = vld [vmem:[%s1 + $0x90] sm:$0xff]
  %v38 = vld [vmem:[%s1 + $0x98] sm:$0xff]
  %v39 = vld [vmem:[%s1 + $0xa0] sm:$0xff]
  %v40 = vld [vmem:[%s1 + $0xa8] sm:$0xff]
  %v41 = vld [vmem:[%s1 + $0xb0] sm:$0xff]
  %v42 = vld [vmem:[%s1 + $0xb8] sm:$0xff]
  %v43 = vld [vmem:[%s1 + $0xc0] sm:$0xff]
  %v44 = vld [vmem:[%s1 + $0xc8] sm:$0xff]
  %v45 = vld [vmem:[%s1 + $0xd0] sm:$0xff]
  %v46 = vld [vmem:[%s1 + $0xd8] sm:$0xff]
  %v47 = vld [vmem:[%s1 + $0xe0] sm:$0xff]
  %v48 = vld [vmem:[%s1 + $0xe8] sm:$0xff]
  %v49 = vld [vmem:[%s1 + $0xf0] sm:$0xff]
  %v50 = vld [vmem:[%s1 + $0xf8] sm:$0xff]
  %v51 = vld [vmem:[%s1 + $0x100] sm:$0xff]
  %v52 = vld [vmem:[%s1 + $0x108] sm:$0xff]
  %v53 = vld [vmem:[%s1 + $0x110] sm:$0xff]
  %v54 = vld [vmem:[%s1 + $0x118] sm:$0xff]
  %v55 = vld [vmem:[%s1 + $0x120] sm:$0xff]
  %v56 = vld [vmem:[%s1 + $0x128] sm:$0xff]
  %v57 = vld [vmem:[%s1 + $0x130] sm:$0xff]
  %v58 = vld [vmem:[%s1 + $0x138] sm:$0xff]
  %v59 = vld [vmem:[%s1 + $0x140] sm:$0xff]
  %v60 = vld [vmem:[%s1 + $0x148] sm:$0xff]
  %v61 = vld [vmem:[%s1 + $0x150] sm:$0xff]
  %v62 = vld [vmem:[%s1 + $0x158] sm:$0xff]
  %v63 = vld [vmem:[%s1 + $0x160] sm:$0xff]
  %v64 = vld [vmem:[%s1 + $0x168] sm:$0xff]
  %v65 = vld [vmem:[%s1 + $0x170] sm:$0xff]
  %v66 = vld [vmem:[%s1 + $0x178] sm:$0xff]
  %v67 = vld [vmem:[%s1 + $0x180] sm:$0xff]
  %v68 = vld [vmem:[%s1 + $0x188] sm:$0xff]
  %v69 = vld [vmem:[%s1 + $0x190] sm:$0xff]
  %v70 = vld [vmem:[%s1 + $0x198] sm:$0xff]
  %v71 = vld [vmem:[%s1 + $0x1a0] sm:$0xff]
  %v72 = vld [vmem:[%s1 + $0x1a8] sm:$0xff]
  %v73 = vld [vmem:[%s1 + $0x1b0] sm:$0xff]
  %v74 = vld [vmem:[%s1 + $0x1b8] sm:$0xff]
  %v75 = vld [vmem:[%s1 + $0x1c0] sm:$0xff]
  %v76 = vld [vmem:[%s1 + $0x1c8] sm:$0xff]
  %v77 = vld [vmem:[%s1 + $0x1d0] sm:$0xff]
  %v78 = vld [vmem:[%s1 + $0x1d8] sm:$0xff]
  %v79 = vld [vmem:[%s1 + $0x1e0] sm:$0xff]
  %v80 = vld [vmem:[%s1 + $0x1e8] sm:$0xff]
  %v81 = vld [vmem:[%s1 + $0x1f0] sm:$0xff]
  %v82 = vld [vmem:[%s1 + $0x1f8] sm:$0xff]
  %v83 = vld [vmem:[%s1 + $0x200] sm:$0xff]
  %v84 = vld [vmem:[%s1 + $0x208] sm:$0xff]
  %v85 = vld [vmem:[%s1 + $0x210] sm:$0xff]
  %v86 = vld [vmem:[%s1 + $0x218] sm:$0xff]
  %v87 = vld [vmem:[%s1 + $0x220] sm:$0xff]
  %v88 = vld [vmem:[%s1 + $0x228] sm:$0xff]
  %v89 = vld [vmem:[%s1 + $0x230] sm:$0xff]
  %v90 = vld [vmem:[%s1 + $0x238] sm:$0xff]
  %v91 = vld [vmem:[%s1 + $0x240] sm:$0xff]
  %v92 = vld [vmem:[%s1 + $0x248] sm:$0xff]
  %v93 = vld [vmem:[%s1 + $0x250] sm:$0xff]
  %v94 = vld [vmem:[%s1 + $0x258] sm:$0xff]
  %v95 = vld [vmem:[%s1 + $0x260] sm:$0xff]
  %v96 = vld [vmem:[%s1 + $0x268] sm:$0xff]
  %v97 = vld [vmem:[%s1 + $0x270] sm:$0xff]
  %v98 = vld [vmem:[%s1 + $0x278] sm:$0xff]
  %v99 = vld [vmem:[%s1 + $0x280] sm:$0xff]
  %v100 = vld [vmem:[%s1 + $0x288] sm:$0xff]
  %v101 = vld [vmem:[%s1 + $0x290] sm:$0xff]
  %v102 = vld [vmem:[%s1 + $0x298] sm:$0xff]
  %v103 = vld [vmem:[%s1 + $0x2a0] sm:$0xff]
  %v104 = vld [vmem:[%s1 + $0x2a8] sm:$0xff]
  %v105 = vld [vmem:[%s1 + $0x2b0] sm:$0xff]
  %v106 = vld [vmem:[%s1 + $0x2b8] sm:$0xff]
  %v107 = vld [vmem:[%s1 + $0x2c0] sm:$0xff]
  %v108 = vld [vmem:[%s1 + $0x2c8] sm:$0xff]
  %v109 = vld [vmem:[%s1 + $0x2d0] sm:$0xff]
  %v110 = vld [vmem:[%s1 + $0x2d8] sm:$0xff]
  %v111 = vld [vmem:[%s1 + $0x2e0] sm:$0xff]
  %v112 = vld [vmem:[%s1 + $0x2e8] sm:$0xff]
  %v113 = vld [vmem:[%s1 + $0x2f0] sm:$0xff]
  %v114 = vld [vmem:[%s1 + $0x2f8] sm:$0xff]
  %v115 = vld [vmem:[%s1 + $0x300] sm:$0xff]
  %v116 = vld [vmem:[%s1 + $0x308] sm:$0xff]
  %v117 = vld [vmem:[%s1 + $0x310] sm:$0xff]
  %v118 = vld [vmem:[%s1 + $0x318] sm:$0xff]
  %v119 = vld [vmem:[%s1 + $0x320] sm:$0xff]
  %v120 = vld [vmem:[%s1 + $0x328] sm:$0xff]
  %v121 = vld [vmem:[%s1 + $0x330] sm:$0xff]
  %v122 = vld [vmem:[%s1 + $0x338] sm:$0xff]
  %v123 = vld [vmem:[%s1 + $0x340] sm:$0xff]
  %v124 = vld [vmem:[%s1 + $0x348] sm:$0xff]
  %v125 = vld [vmem:[%s1 + $0x350] sm:$0xff]
  %v126 = vld [vmem:[%s1 + $0x358] sm:$0xff]
  %v127 = vld [vmem:[%s1 + $0x360] sm:$0xff]
  %v128 = vld [vmem:[%s1 + $0x368] sm:$0xff]
  %v129 = vld [vmem:[%s1 + $0x370] sm:$0xff]
  %v130 = vld [vmem:[%s1 + $0x378] sm:$0xff]
  %v131 = vld [vmem:[%s1 + $0x380] sm:$0xff]
  %v132 = vld [vmem:[%s1 + $0x388] sm:$0xff]
  %v133 = vld [vmem:[%s1 + $0x390] sm:$0xff]
  %v134 = vld [vmem:[%s1 + $0x398] sm:$0xff]
  %v135 = vld [vmem:[%s1 + $0x3a0] sm:$0xff]
  %v136 = vld [vmem:[%s1 + $0x3a8] sm:$0xff]
  %v137 = vld [vmem:[%s1 + $0x3b0] sm:$0xff]
  %v138 = vld [vmem:[%s1 + $0x3b8] sm:$0xff]
  %v139 = vld [vmem:[%s1 + $0x3c0] sm:$0xff]
  %v140 = vld [vmem:[%s1 + $0x3c8] sm:$0xff]
  %v141 = vld [vmem:[%s1 + $0x3d0] sm:$0xff]
  %v142 = vld [vmem:[%s1 + $0x3d8] sm:$0xff]
  %v143 = vld [vmem:[%s1 + $0x3e0] sm:$0xff]
  %v144 = vld [vmem:[%s1 + $0x3e8] sm:$0xff]
  %v145 = vld [vmem:[%s1 + $0x3f0] sm:$0xff]
  %v146 = vld [vmem:[%s1 + $0x3f8] sm:$0xff]
  %v147 = vld [vmem:[%s1 + $0x400] sm:$0xff]
  %v148 = vld [vmem:[%s1 + $0x408] sm:$0xff]
  %v149 = vld [vmem:[%s1 + $0x410] sm:$0xff]
  %v150 = vld [vmem:[%s1 + $0x418] sm:$0xff]
  %v151 = vld [vmem:[%s1 + $0x420] sm:$0xff]
  %v152 = vld [vmem:[%s1 + $0x428] sm:$0xff]
  %v153 = vld [vmem:[%s1 + $0x430] sm:$0xff]
  %v154 = vld [vmem:[%s1 + $0x438] sm:$0xff]
  %v155 = vld [vmem:[%s1 + $0x440] sm:$0xff]
  %v156 = vld [vmem:[%s1 + $0x448] sm:$0xff]
  %v157 = vld [vmem:[%s1 + $0x450] sm:$0xff]
  %v158 = vld [vmem:[%s1 + $0x458] sm:$0xff]
  %v159 = vld [vmem:[%s1 + $0x460] sm:$0xff]
  %v160 = vld [vmem:[%s1 + $0x468] sm:$0xff]
  %v161 = vld [vmem:[%s1 + $0x470] sm:$0xff]
  %v162 = vld [vmem:[%s1 + $0x478] sm:$0xff]
  %v163 = vld [vmem:[%s1 + $0x480] sm:$0xff]
  %v164 = vld [vmem:[%s1 + $0x488] sm:$0xff]
  %v165 = vld [vmem:[%s1 + $0x490] sm:$0xff]
  %v166 = vld [vmem:[%s1 + $0x498] sm:$0xff]
  %v167 = vld [vmem:[%s1 + $0x4a0] sm:$0xff]
  %v168 = vld [vmem:[%s1 + $0x4a8] sm:$0xff]
  %v169 = vld [vmem:[%s1 + $0x4b0] sm:$0xff]
  %v170 = vld [vmem:[%s1 + $0x4b8] sm:$0xff]
  %v171 = vld [vmem:[%s1 + $0x4c0] sm:$0xff]
  %v172 = vld [vmem:[%s1 + $0x4c8] sm:$0xff]
  %v173 = vld [vmem:[%s1 + $0x4d0] sm:$0xff]
  %v174 = vld [vmem:[%s1 + $0x4d8] sm:$0xff]
  %v175 = vld [vmem:[%s1 + $0x4e0] sm:$0xff]
  %v176 = vld [vmem:[%s1 + $0x4e8] sm:$0xff]
  %v177 = vld [vmem:[%s1 + $0x4f0] sm:$0xff]
  %v178 = vld [vmem:[%s1 + $0x4f8] sm:$0xff]
  %v179 = vld [vmem:[%s1 + $0x500] sm:$0xff]
  %v180 = vld [vmem:[%s1 + $0x508] sm:$0xff]
  %v181 = vld [vmem:[%s1 + $0x510] sm:$0xff]
  %v182 = vld [vmem:[%s1 + $0x518] sm:$0xff]
  %v183 = vld [vmem:[%s1 + $0x520] sm:$0xff]
  %v184 = vld [vmem:[%s1 + $0x528] sm:$0xff]
  %v185 = vld [vmem:[%s1 + $0x530] sm:$0xff]
  %v186 = vld [vmem:[%s1 + $0x538] sm:$0xff]
  %v187 = vld [vmem:[%s1 + $0x540] sm:$0xff]
  %v188 = vld [vmem:[%s1 + $0x548] sm:$0xff]
  %v189 = vld [vmem:[%s1 + $0x550] sm:$0xff]
  %v190 = vld [vmem:[%s1 + $0x558] sm:$0xff]
  %v191 = vld [vmem:[%s1 + $0x560] sm:$0xff]
  %v192 = vld [vmem:[%s1 + $0x568] sm:$0xff]
  %v193 = vld [vmem:[%s1 + $0x570] sm:$0xff]
  %v194 = vld [vmem:[%s1 + $0x578] sm:$0xff]
  %v195 = vld [vmem:[%s1 + $0x580] sm:$0xff]
  %v196 = vld [vmem:[%s1 + $0x588] sm:$0xff]
  %v197 = vld [vmem:[%s1 + $0x590] sm:$0xff]
  %v198 = vld [vmem:[%s1 + $0x598] sm:$0xff]
  %v199 = vld [vmem:[%s1 + $0x5a0] sm:$0xff]
  %v200 = vld [vmem:[%s1 + $0x5a8] sm:$0xff]
  %v201 = vld [vmem:[%s1 + $0x5b0] sm:$0xff]
  %v202 = vld [vmem:[%s1 + $0x5b8] sm:$0xff]
  %v203 = vld [vmem:[%s1 + $0x5c0] sm:$0xff]
  %v204 = vld [vmem:[%s1 + $0x5c8] sm:$0xff]
  %v205 = vld [vmem:[%s1 + $0x5d0] sm:$0xff]
  %v206 = vld [vmem:[%s1 + $0x5d8] sm:$0xff]
  %v207 = vld [vmem:[%s1 + $0x5e0] sm:$0xff]
  %v208 = vld [vmem:[%s1 + $0x5e8] sm:$0xff]
  %v209 = vld [vmem:[%s1 + $0x5f0] sm:$0xff]
  %v210 = vld [vmem:[%s1 + $0x5f8] sm:$0xff]
  %v211 = vld [vmem:[%s1 + $0x600] sm:$0xff]
  %v212 = vld [vmem:[%s1 + $0x608] sm:$0xff]
  %v213 = vld [vmem:[%s1 + $0x610] sm:$0xff]
  %v214 = vld [vmem:[%s1 + $0x618] sm:$0xff]
  %v215 = vld [vmem:[%s1 + $0x620] sm:$0xff]
  %v216 = vld [vmem:[%s1 + $0x628] sm:$0xff]
  %v217 = vld [vmem:[%s1 + $0x630] sm:$0xff]
  %v218 = vld [vmem:[%s1 + $0x638] sm:$0xff]
  %v219 = vld [vmem:[%s1 + $0x640] sm:$0xff]
  %v220 = vld [vmem:[%s1 + $0x648] sm:$0xff]
  %v221 = vld [vmem:[%s1 + $0x650] sm:$0xff]
  %v222 = vld [vmem:[%s1 + $0x658] sm:$0xff]
  %v223 = vld [vmem:[%s1 + $0x660] sm:$0xff]
  %v224 = vld [vmem:[%s1 + $0x668] sm:$0xff]
  %v225 = vld [vmem:[%s1 + $0x670] sm:$0xff]
  %v226 = vld [vmem:[%s1 + $0x678] sm:$0xff]
  %v227 = vld [vmem:[%s1 + $0x680] sm:$0xff]
  %v228 = vld [vmem:[%s1 + $0x688] sm:$0xff]
  %v229 = vld [vmem:[%s1 + $0x690] sm:$0xff]
  %v230 = vld [vmem:[%s1 + $0x698] sm:$0xff]
  %v231 = vld [vmem:[%s1 + $0x6a0] sm:$0xff]
  %v232 = vld [vmem:[%s1 + $0x6a8] sm:$0xff]
  %v233 = vld [vmem:[%s1 + $0x6b0] sm:$0xff]
  %v234 = vld [vmem:[%s1 + $0x6b8] sm:$0xff]
  %v235 = vld [vmem:[%s2] sm:$0xff]
  %v236 = vld [vmem:[%s2 + $0x8] sm:$0xff]
  %238 = vset.pattern.permute.xlu0 0
  %239 = vperm.xlu0 %238, %v235
  %v240 = vpop.permute.xlu0 %239
  %243 = vset.pattern.permute.xlu0 0
  %244 = vperm.xlu0 %243, %v236
  %v245 = vpop.permute.xlu0 %244
  %v251 = vunpack.c.l.b16 %v15
  %v252 = vunpack.c.h.b16 %v15
  %v253 = vunpack.c.l.b16 %v16
  %v254 = vunpack.c.h.b16 %v16
  %v255 = vunpack.c.l.b16 %v17
  %v256 = vunpack.c.h.b16 %v17
  %v257 = vunpack.c.l.b16 %v18
  %v258 = vunpack.c.h.b16 %v18
  %v259 = vpack.c.b16 %v255, %v251
  %v260 = vpack.c.b16 %v256, %v252
  %v261 = vpack.c.b16 %v257, %v253
  %v262 = vpack.c.b16 %v258, %v254
  %v482 = vunpack.c.l.b16 %v19
  %v483 = vunpack.c.h.b16 %v19
  %v484 = vunpack.c.l.b16 %v20
  %v485 = vunpack.c.h.b16 %v20
  %v486 = vunpack.c.l.b16 %v21
  %v487 = vunpack.c.h.b16 %v21
  %v488 = vunpack.c.l.b16 %v22
  %v489 = vunpack.c.h.b16 %v22
  %v490 = vunpack.c.l.b16 %v23
  %v491 = vunpack.c.h.b16 %v23
  %v492 = vunpack.c.l.b16 %v24
  %v493 = vunpack.c.h.b16 %v24
  %v494 = vunpack.c.l.b16 %v25
  %v495 = vunpack.c.h.b16 %v25
  %v496 = vunpack.c.l.b16 %v26
  %v497 = vunpack.c.h.b16 %v26
  %v498 = vunpack.c.l.b16 %v27
  %v499 = vunpack.c.h.b16 %v27
  %v500 = vunpack.c.l.b16 %v28
  %v501 = vunpack.c.h.b16 %v28
  %v502 = vunpack.c.l.b16 %v29
  %v503 = vunpack.c.h.b16 %v29
  %v504 = vunpack.c.l.b16 %v30
  %v505 = vunpack.c.h.b16 %v30
  %v506 = vunpack.c.l.b16 %v31
  %v507 = vunpack.c.h.b16 %v31
  %v508 = vunpack.c.l.b16 %v32
  %v509 = vunpack.c.h.b16 %v32
  %v510 = vunpack.c.l.b16 %v33
  %v511 = vunpack.c.h.b16 %v33
  %v512 = vunpack.c.l.b16 %v34
  %v513 = vunpack.c.h.b16 %v34
  %v514 = vunpack.c.l.b16 %v35
  %v515 = vunpack.c.h.b16 %v35
  %v516 = vunpack.c.l.b16 %v36
  %v517 = vunpack.c.h.b16 %v36
  %v518 = vunpack.c.l.b16 %v37
  %v519 = vunpack.c.h.b16 %v37
  %v520 = vunpack.c.l.b16 %v38
  %v521 = vunpack.c.h.b16 %v38
  %v522 = vunpack.c.l.b16 %v39
  %v523 = vunpack.c.h.b16 %v39
  %v524 = vunpack.c.l.b16 %v40
  %v525 = vunpack.c.h.b16 %v40
  %v526 = vunpack.c.l.b16 %v41
  %v527 = vunpack.c.h.b16 %v41
  %v528 = vunpack.c.l.b16 %v42
  %v529 = vunpack.c.h.b16 %v42
  %v530 = vunpack.c.l.b16 %v43
  %v531 = vunpack.c.h.b16 %v43
  %v532 = vunpack.c.l.b16 %v44
  %v533 = vunpack.c.h.b16 %v44
  %v534 = vunpack.c.l.b16 %v45
  %v535 = vunpack.c.h.b16 %v45
  %v536 = vunpack.c.l.b16 %v46
  %v537 = vunpack.c.h.b16 %v46
  %v538 = vunpack.c.l.b16 %v47
  %v539 = vunpack.c.h.b16 %v47
  %v540 = vunpack.c.l.b16 %v48
  %v541 = vunpack.c.h.b16 %v48
  %v542 = vunpack.c.l.b16 %v49
  %v543 = vunpack.c.h.b16 %v49
  %v544 = vunpack.c.l.b16 %v50
  %v545 = vunpack.c.h.b16 %v50
  %v546 = vunpack.c.l.b16 %v51
  %v547 = vunpack.c.h.b16 %v51
  %v548 = vunpack.c.l.b16 %v52
  %v549 = vunpack.c.h.b16 %v52
  %v550 = vunpack.c.l.b16 %v53
  %v551 = vunpack.c.h.b16 %v53
  %v552 = vunpack.c.l.b16 %v54
  %v553 = vunpack.c.h.b16 %v54
  %v554 = vunpack.c.l.b16 %v55
  %v555 = vunpack.c.h.b16 %v55
  %v556 = vunpack.c.l.b16 %v56
  %v557 = vunpack.c.h.b16 %v56
  %v558 = vunpack.c.l.b16 %v57
  %v559 = vunpack.c.h.b16 %v57
  %v560 = vunpack.c.l.b16 %v58
  %v561 = vunpack.c.h.b16 %v58
  %v562 = vunpack.c.l.b16 %v59
  %v563 = vunpack.c.h.b16 %v59
  %v564 = vunpack.c.l.b16 %v60
  %v565 = vunpack.c.h.b16 %v60
  %v566 = vunpack.c.l.b16 %v61
  %v567 = vunpack.c.h.b16 %v61
  %v568 = vunpack.c.l.b16 %v62
  %v569 = vunpack.c.h.b16 %v62
  %v570 = vunpack.c.l.b16 %v63
  %v571 = vunpack.c.h.b16 %v63
  %v572 = vunpack.c.l.b16 %v64
  %v573 = vunpack.c.h.b16 %v64
  %v574 = vunpack.c.l.b16 %v65
  %v575 = vunpack.c.h.b16 %v65
  %v576 = vunpack.c.l.b16 %v66
  %v577 = vunpack.c.h.b16 %v66
  %v578 = vunpack.c.l.b16 %v67
  %v579 = vunpack.c.h.b16 %v67
  %v580 = vunpack.c.l.b16 %v68
  %v581 = vunpack.c.h.b16 %v68
  %v582 = vunpack.c.l.b16 %v69
  %v583 = vunpack.c.h.b16 %v69
  %v584 = vunpack.c.l.b16 %v70
  %v585 = vunpack.c.h.b16 %v70
  %v586 = vunpack.c.l.b16 %v71
  %v587 = vunpack.c.h.b16 %v71
  %v588 = vunpack.c.l.b16 %v72
  %v589 = vunpack.c.h.b16 %v72
  %v590 = vunpack.c.l.b16 %v73
  %v591 = vunpack.c.h.b16 %v73
  %v592 = vunpack.c.l.b16 %v74
  %v593 = vunpack.c.h.b16 %v74
  %v594 = vunpack.c.l.b16 %v75
  %v595 = vunpack.c.h.b16 %v75
  %v596 = vunpack.c.l.b16 %v76
  %v597 = vunpack.c.h.b16 %v76
  %v598 = vunpack.c.l.b16 %v77
  %v599 = vunpack.c.h.b16 %v77
  %v600 = vunpack.c.l.b16 %v78
  %v601 = vunpack.c.h.b16 %v78
  %v602 = vunpack.c.l.b16 %v79
  %v603 = vunpack.c.h.b16 %v79
  %v604 = vunpack.c.l.b16 %v80
  %v605 = vunpack.c.h.b16 %v80
  %v606 = vunpack.c.l.b16 %v81
  %v607 = vunpack.c.h.b16 %v81
  %v608 = vunpack.c.l.b16 %v82
  %v609 = vunpack.c.h.b16 %v82
  %v610 = vunpack.c.l.b16 %v83
  %v611 = vunpack.c.h.b16 %v83
  %v612 = vunpack.c.l.b16 %v84
  %v613 = vunpack.c.h.b16 %v84
  %v614 = vunpack.c.l.b16 %v85
  %v615 = vunpack.c.h.b16 %v85
  %v616 = vunpack.c.l.b16 %v86
  %v617 = vunpack.c.h.b16 %v86
  %v618 = vunpack.c.l.b16 %v87
  %v619 = vunpack.c.h.b16 %v87
  %v620 = vunpack.c.l.b16 %v88
  %v621 = vunpack.c.h.b16 %v88
  %v622 = vunpack.c.l.b16 %v89
  %v623 = vunpack.c.h.b16 %v89
  %v624 = vunpack.c.l.b16 %v90
  %v625 = vunpack.c.h.b16 %v90
  %v626 = vunpack.c.l.b16 %v91
  %v627 = vunpack.c.h.b16 %v91
  %v628 = vunpack.c.l.b16 %v92
  %v629 = vunpack.c.h.b16 %v92
  %v630 = vunpack.c.l.b16 %v93
  %v631 = vunpack.c.h.b16 %v93
  %v632 = vunpack.c.l.b16 %v94
  %v633 = vunpack.c.h.b16 %v94
  %v634 = vunpack.c.l.b16 %v95
  %v635 = vunpack.c.h.b16 %v95
  %v636 = vunpack.c.l.b16 %v96
  %v637 = vunpack.c.h.b16 %v96
  %v638 = vunpack.c.l.b16 %v97
  %v639 = vunpack.c.h.b16 %v97
  %v640 = vunpack.c.l.b16 %v98
  %v641 = vunpack.c.h.b16 %v98
  %v642 = vunpack.c.l.b16 %v99
  %v643 = vunpack.c.h.b16 %v99
  %v644 = vunpack.c.l.b16 %v100
  %v645 = vunpack.c.h.b16 %v100
  %v646 = vunpack.c.l.b16 %v101
  %v647 = vunpack.c.h.b16 %v101
  %v648 = vunpack.c.l.b16 %v102
  %v649 = vunpack.c.h.b16 %v102
  %v650 = vunpack.c.l.b16 %v103
  %v651 = vunpack.c.h.b16 %v103
  %v652 = vunpack.c.l.b16 %v104
  %v653 = vunpack.c.h.b16 %v104
  %v654 = vunpack.c.l.b16 %v105
  %v655 = vunpack.c.h.b16 %v105
  %v656 = vunpack.c.l.b16 %v106
  %v657 = vunpack.c.h.b16 %v106
  %v658 = vunpack.c.l.b16 %v107
  %v659 = vunpack.c.h.b16 %v107
  %v660 = vunpack.c.l.b16 %v108
  %v661 = vunpack.c.h.b16 %v108
  %v662 = vunpack.c.l.b16 %v109
  %v663 = vunpack.c.h.b16 %v109
  %v664 = vunpack.c.l.b16 %v110
  %v665 = vunpack.c.h.b16 %v110
  %v666 = vunpack.c.l.b16 %v111
  %v667 = vunpack.c.h.b16 %v111
  %v668 = vunpack.c.l.b16 %v112
  %v669 = vunpack.c.h.b16 %v112
  %v670 = vunpack.c.l.b16 %v113
  %v671 = vunpack.c.h.b16 %v113
  %v672 = vunpack.c.l.b16 %v114
  %v673 = vunpack.c.h.b16 %v114
  %v674 = vunpack.c.l.b16 %v115
  %v675 = vunpack.c.h.b16 %v115
  %v676 = vunpack.c.l.b16 %v116
  %v677 = vunpack.c.h.b16 %v116
  %v678 = vunpack.c.l.b16 %v117
  %v679 = vunpack.c.h.b16 %v117
  %v680 = vunpack.c.l.b16 %v118
  %v681 = vunpack.c.h.b16 %v118
  %v682 = vunpack.c.l.b16 %v119
  %v683 = vunpack.c.h.b16 %v119
  %v684 = vunpack.c.l.b16 %v120
  %v685 = vunpack.c.h.b16 %v120
  %v686 = vunpack.c.l.b16 %v121
  %v687 = vunpack.c.h.b16 %v121
  %v688 = vunpack.c.l.b16 %v122
  %v689 = vunpack.c.h.b16 %v122
  %v690 = vunpack.c.l.b16 %v123
  %v691 = vunpack.c.h.b16 %v123
  %v692 = vunpack.c.l.b16 %v124
  %v693 = vunpack.c.h.b16 %v124
  %v694 = vunpack.c.l.b16 %v125
  %v695 = vunpack.c.h.b16 %v125
  %v696 = vunpack.c.l.b16 %v126
  %v697 = vunpack.c.h.b16 %v126
  %v698 = vunpack.c.l.b16 %v127
  %v699 = vunpack.c.h.b16 %v127
  %v700 = vunpack.c.l.b16 %v128
  %v701 = vunpack.c.h.b16 %v128
  %v702 = vunpack.c.l.b16 %v129
  %v703 = vunpack.c.h.b16 %v129
  %v704 = vunpack.c.l.b16 %v130
  %v705 = vunpack.c.h.b16 %v130
  %v706 = vunpack.c.l.b16 %v131
  %v707 = vunpack.c.h.b16 %v131
  %v708 = vunpack.c.l.b16 %v132
  %v709 = vunpack.c.h.b16 %v132
  %v710 = vunpack.c.l.b16 %v133
  %v711 = vunpack.c.h.b16 %v133
  %v712 = vunpack.c.l.b16 %v134
  %v713 = vunpack.c.h.b16 %v134
  %v714 = vunpack.c.l.b16 %v135
  %v715 = vunpack.c.h.b16 %v135
  %v716 = vunpack.c.l.b16 %v136
  %v717 = vunpack.c.h.b16 %v136
  %v718 = vunpack.c.l.b16 %v137
  %v719 = vunpack.c.h.b16 %v137
  %v720 = vunpack.c.l.b16 %v138
  %v721 = vunpack.c.h.b16 %v138
  %v722 = vunpack.c.l.b16 %v139
  %v723 = vunpack.c.h.b16 %v139
  %v724 = vunpack.c.l.b16 %v140
  %v725 = vunpack.c.h.b16 %v140
  %v726 = vunpack.c.l.b16 %v141
  %v727 = vunpack.c.h.b16 %v141
  %v728 = vunpack.c.l.b16 %v142
  %v729 = vunpack.c.h.b16 %v142
  %v730 = vunpack.c.l.b16 %v143
  %v731 = vunpack.c.h.b16 %v143
  %v732 = vunpack.c.l.b16 %v144
  %v733 = vunpack.c.h.b16 %v144
  %v734 = vunpack.c.l.b16 %v145
  %v735 = vunpack.c.h.b16 %v145
  %v736 = vunpack.c.l.b16 %v146
  %v737 = vunpack.c.h.b16 %v146
  %v738 = vunpack.c.l.b16 %v147
  %v739 = vunpack.c.h.b16 %v147
  %v740 = vunpack.c.l.b16 %v148
  %v741 = vunpack.c.h.b16 %v148
  %v742 = vunpack.c.l.b16 %v149
  %v743 = vunpack.c.h.b16 %v149
  %v744 = vunpack.c.l.b16 %v150
  %v745 = vunpack.c.h.b16 %v150
  %v746 = vunpack.c.l.b16 %v151
  %v747 = vunpack.c.h.b16 %v151
  %v748 = vunpack.c.l.b16 %v152
  %v749 = vunpack.c.h.b16 %v152
  %v750 = vunpack.c.l.b16 %v153
  %v751 = vunpack.c.h.b16 %v153
  %v752 = vunpack.c.l.b16 %v154
  %v753 = vunpack.c.h.b16 %v154
  %v754 = vunpack.c.l.b16 %v155
  %v755 = vunpack.c.h.b16 %v155
  %v756 = vunpack.c.l.b16 %v156
  %v757 = vunpack.c.h.b16 %v156
  %v758 = vunpack.c.l.b16 %v157
  %v759 = vunpack.c.h.b16 %v157
  %v760 = vunpack.c.l.b16 %v158
  %v761 = vunpack.c.h.b16 %v158
  %v762 = vunpack.c.l.b16 %v159
  %v763 = vunpack.c.h.b16 %v159
  %v764 = vunpack.c.l.b16 %v160
  %v765 = vunpack.c.h.b16 %v160
  %v766 = vunpack.c.l.b16 %v161
  %v767 = vunpack.c.h.b16 %v161
  %v768 = vunpack.c.l.b16 %v162
  %v769 = vunpack.c.h.b16 %v162
  %v770 = vunpack.c.l.b16 %v163
  %v771 = vunpack.c.h.b16 %v163
  %v772 = vunpack.c.l.b16 %v164
  %v773 = vunpack.c.h.b16 %v164
  %v774 = vunpack.c.l.b16 %v165
  %v775 = vunpack.c.h.b16 %v165
  %v776 = vunpack.c.l.b16 %v166
  %v777 = vunpack.c.h.b16 %v166
  %v778 = vunpack.c.l.b16 %v167
  %v779 = vunpack.c.h.b16 %v167
  %v780 = vunpack.c.l.b16 %v168
  %v781 = vunpack.c.h.b16 %v168
  %v782 = vunpack.c.l.b16 %v169
  %v783 = vunpack.c.h.b16 %v169
  %v784 = vunpack.c.l.b16 %v170
  %v785 = vunpack.c.h.b16 %v170
  %v786 = vunpack.c.l.b16 %v171
  %v787 = vunpack.c.h.b16 %v171
  %v788 = vunpack.c.l.b16 %v172
  %v789 = vunpack.c.h.b16 %v172
  %v790 = vunpack.c.l.b16 %v173
  %v791 = vunpack.c.h.b16 %v173
  %v792 = vunpack.c.l.b16 %v174
  %v793 = vunpack.c.h.b16 %v174
  %v794 = vunpack.c.l.b16 %v175
  %v795 = vunpack.c.h.b16 %v175
  %v796 = vunpack.c.l.b16 %v176
  %v797 = vunpack.c.h.b16 %v176
  %v798 = vunpack.c.l.b16 %v177
  %v799 = vunpack.c.h.b16 %v177
  %v800 = vunpack.c.l.b16 %v178
  %v801 = vunpack.c.h.b16 %v178
  %v802 = vunpack.c.l.b16 %v179
  %v803 = vunpack.c.h.b16 %v179
  %v804 = vunpack.c.l.b16 %v180
  %v805 = vunpack.c.h.b16 %v180
  %v806 = vunpack.c.l.b16 %v181
  %v807 = vunpack.c.h.b16 %v181
  %v808 = vunpack.c.l.b16 %v182
  %v809 = vunpack.c.h.b16 %v182
  %v810 = vunpack.c.l.b16 %v183
  %v811 = vunpack.c.h.b16 %v183
  %v812 = vunpack.c.l.b16 %v184
  %v813 = vunpack.c.h.b16 %v184
  %v814 = vunpack.c.l.b16 %v185
  %v815 = vunpack.c.h.b16 %v185
  %v816 = vunpack.c.l.b16 %v186
  %v817 = vunpack.c.h.b16 %v186
  %v818 = vunpack.c.l.b16 %v187
  %v819 = vunpack.c.h.b16 %v187
  %v820 = vunpack.c.l.b16 %v188
  %v821 = vunpack.c.h.b16 %v188
  %v822 = vunpack.c.l.b16 %v189
  %v823 = vunpack.c.h.b16 %v189
  %v824 = vunpack.c.l.b16 %v190
  %v825 = vunpack.c.h.b16 %v190
  %v826 = vunpack.c.l.b16 %v191
  %v827 = vunpack.c.h.b16 %v191
  %v828 = vunpack.c.l.b16 %v192
  %v829 = vunpack.c.h.b16 %v192
  %v830 = vunpack.c.l.b16 %v193
  %v831 = vunpack.c.h.b16 %v193
  %v832 = vunpack.c.l.b16 %v194
  %v833 = vunpack.c.h.b16 %v194
  %v834 = vunpack.c.l.b16 %v195
  %v835 = vunpack.c.h.b16 %v195
  %v836 = vunpack.c.l.b16 %v196
  %v837 = vunpack.c.h.b16 %v196
  %v838 = vunpack.c.l.b16 %v197
  %v839 = vunpack.c.h.b16 %v197
  %v840 = vunpack.c.l.b16 %v198
  %v841 = vunpack.c.h.b16 %v198
  %v842 = vunpack.c.l.b16 %v199
  %v843 = vunpack.c.h.b16 %v199
  %v844 = vunpack.c.l.b16 %v200
  %v845 = vunpack.c.h.b16 %v200
  %v846 = vunpack.c.l.b16 %v201
  %v847 = vunpack.c.h.b16 %v201
  %v848 = vunpack.c.l.b16 %v202
  %v849 = vunpack.c.h.b16 %v202
  %v850 = vunpack.c.l.b16 %v203
  %v851 = vunpack.c.h.b16 %v203
  %v852 = vunpack.c.l.b16 %v204
  %v853 = vunpack.c.h.b16 %v204
  %v854 = vunpack.c.l.b16 %v205
  %v855 = vunpack.c.h.b16 %v205
  %v856 = vunpack.c.l.b16 %v206
  %v857 = vunpack.c.h.b16 %v206
  %v858 = vunpack.c.l.b16 %v207
  %v859 = vunpack.c.h.b16 %v207
  %v860 = vunpack.c.l.b16 %v208
  %v861 = vunpack.c.h.b16 %v208
  %v862 = vunpack.c.l.b16 %v209
  %v863 = vunpack.c.h.b16 %v209
  %v864 = vunpack.c.l.b16 %v210
  %v865 = vunpack.c.h.b16 %v210
  %v866 = vunpack.c.l.b16 %v211
  %v867 = vunpack.c.h.b16 %v211
  %v868 = vunpack.c.l.b16 %v212
  %v869 = vunpack.c.h.b16 %v212
  %v870 = vunpack.c.l.b16 %v213
  %v871 = vunpack.c.h.b16 %v213
  %v872 = vunpack.c.l.b16 %v214
  %v873 = vunpack.c.h.b16 %v214
  %v874 = vunpack.c.l.b16 %v215
  %v875 = vunpack.c.h.b16 %v215
  %v876 = vunpack.c.l.b16 %v216
  %v877 = vunpack.c.h.b16 %v216
  %v878 = vunpack.c.l.b16 %v217
  %v879 = vunpack.c.h.b16 %v217
  %v880 = vunpack.c.l.b16 %v218
  %v881 = vunpack.c.h.b16 %v218
  %v882 = vunpack.c.l.b16 %v219
  %v883 = vunpack.c.h.b16 %v219
  %v884 = vunpack.c.l.b16 %v220
  %v885 = vunpack.c.h.b16 %v220
  %v886 = vunpack.c.l.b16 %v221
  %v887 = vunpack.c.h.b16 %v221
  %v888 = vunpack.c.l.b16 %v222
  %v889 = vunpack.c.h.b16 %v222
  %v890 = vunpack.c.l.b16 %v223
  %v891 = vunpack.c.h.b16 %v223
  %v892 = vunpack.c.l.b16 %v224
  %v893 = vunpack.c.h.b16 %v224
  %v894 = vunpack.c.l.b16 %v225
  %v895 = vunpack.c.h.b16 %v225
  %v896 = vunpack.c.l.b16 %v226
  %v897 = vunpack.c.h.b16 %v226
  %v898 = vunpack.c.l.b16 %v227
  %v899 = vunpack.c.h.b16 %v227
  %v900 = vunpack.c.l.b16 %v228
  %v901 = vunpack.c.h.b16 %v228
  %v902 = vunpack.c.l.b16 %v229
  %v903 = vunpack.c.h.b16 %v229
  %v904 = vunpack.c.l.b16 %v230
  %v905 = vunpack.c.h.b16 %v230
  %v906 = vunpack.c.l.b16 %v231
  %v907 = vunpack.c.h.b16 %v231
  %v908 = vunpack.c.l.b16 %v232
  %v909 = vunpack.c.h.b16 %v232
  %v910 = vunpack.c.l.b16 %v233
  %v911 = vunpack.c.h.b16 %v233
  %v912 = vunpack.c.l.b16 %v234
  %v913 = vunpack.c.h.b16 %v234
  %v914 = vpack.c.b16 %v490, %v482
  %v915 = vpack.c.b16 %v491, %v483
  %v916 = vpack.c.b16 %v492, %v484
  %v917 = vpack.c.b16 %v493, %v485
  %v918 = vpack.c.b16 %v494, %v486
  %v919 = vpack.c.b16 %v495, %v487
  %v920 = vpack.c.b16 %v496, %v488
  %v921 = vpack.c.b16 %v497, %v489
  %v922 = vpack.c.b16 %v506, %v498
  %v923 = vpack.c.b16 %v507, %v499
  %v924 = vpack.c.b16 %v508, %v500
  %v925 = vpack.c.b16 %v509, %v501
  %v926 = vpack.c.b16 %v510, %v502
  %v927 = vpack.c.b16 %v511, %v503
  %v928 = vpack.c.b16 %v512, %v504
  %v929 = vpack.c.b16 %v513, %v505
  %v930 = vpack.c.b16 %v522, %v514
  %v931 = vpack.c.b16 %v523, %v515
  %v932 = vpack.c.b16 %v524, %v516
  %v933 = vpack.c.b16 %v525, %v517
  %v934 = vpack.c.b16 %v526, %v518
  %v935 = vpack.c.b16 %v527, %v519
  %v936 = vpack.c.b16 %v528, %v520
  %v937 = vpack.c.b16 %v529, %v521
  %v938 = vpack.c.b16 %v538, %v530
  %v939 = vpack.c.b16 %v539, %v531
  %v940 = vpack.c.b16 %v540, %v532
  %v941 = vpack.c.b16 %v541, %v533
  %v942 = vpack.c.b16 %v542, %v534
  %v943 = vpack.c.b16 %v543, %v535
  %v944 = vpack.c.b16 %v544, %v536
  %v945 = vpack.c.b16 %v545, %v537
  %v946 = vpack.c.b16 %v554, %v546
  %v947 = vpack.c.b16 %v555, %v547
  %v948 = vpack.c.b16 %v556, %v548
  %v949 = vpack.c.b16 %v557, %v549
  %v950 = vpack.c.b16 %v558, %v550
  %v951 = vpack.c.b16 %v559, %v551
  %v952 = vpack.c.b16 %v560, %v552
  %v953 = vpack.c.b16 %v561, %v553
  %v954 = vpack.c.b16 %v570, %v562
  %v955 = vpack.c.b16 %v571, %v563
  %v956 = vpack.c.b16 %v572, %v564
  %v957 = vpack.c.b16 %v573, %v565
  %v958 = vpack.c.b16 %v574, %v566
  %v959 = vpack.c.b16 %v575, %v567
  %v960 = vpack.c.b16 %v576, %v568
  %v961 = vpack.c.b16 %v577, %v569
  %v962 = vpack.c.b16 %v586, %v578
  %v963 = vpack.c.b16 %v587, %v579
  %v964 = vpack.c.b16 %v588, %v580
  %v965 = vpack.c.b16 %v589, %v581
  %v966 = vpack.c.b16 %v590, %v582
  %v967 = vpack.c.b16 %v591, %v583
  %v968 = vpack.c.b16 %v592, %v584
  %v969 = vpack.c.b16 %v593, %v585
  %v970 = vpack.c.b16 %v602, %v594
  %v971 = vpack.c.b16 %v603, %v595
  %v972 = vpack.c.b16 %v604, %v596
  %v973 = vpack.c.b16 %v605, %v597
  %v974 = vpack.c.b16 %v606, %v598
  %v975 = vpack.c.b16 %v607, %v599
  %v976 = vpack.c.b16 %v608, %v600
  %v977 = vpack.c.b16 %v609, %v601
  %v978 = vpack.c.b16 %v618, %v610
  %v979 = vpack.c.b16 %v619, %v611
  %v980 = vpack.c.b16 %v620, %v612
  %v981 = vpack.c.b16 %v621, %v613
  %v982 = vpack.c.b16 %v622, %v614
  %v983 = vpack.c.b16 %v623, %v615
  %v984 = vpack.c.b16 %v624, %v616
  %v985 = vpack.c.b16 %v625, %v617
  %v986 = vpack.c.b16 %v634, %v626
  %v987 = vpack.c.b16 %v635, %v627
  %v988 = vpack.c.b16 %v636, %v628
  %v989 = vpack.c.b16 %v637, %v629
  %v990 = vpack.c.b16 %v638, %v630
  %v991 = vpack.c.b16 %v639, %v631
  %v992 = vpack.c.b16 %v640, %v632
  %v993 = vpack.c.b16 %v641, %v633
  %v994 = vpack.c.b16 %v650, %v642
  %v995 = vpack.c.b16 %v651, %v643
  %v996 = vpack.c.b16 %v652, %v644
  %v997 = vpack.c.b16 %v653, %v645
  %v998 = vpack.c.b16 %v654, %v646
  %v999 = vpack.c.b16 %v655, %v647
  %v1000 = vpack.c.b16 %v656, %v648
  %v1001 = vpack.c.b16 %v657, %v649
  %v1002 = vpack.c.b16 %v666, %v658
  %v1003 = vpack.c.b16 %v667, %v659
  %v1004 = vpack.c.b16 %v668, %v660
  %v1005 = vpack.c.b16 %v669, %v661
  %v1006 = vpack.c.b16 %v670, %v662
  %v1007 = vpack.c.b16 %v671, %v663
  %v1008 = vpack.c.b16 %v672, %v664
  %v1009 = vpack.c.b16 %v673, %v665
  %v1010 = vpack.c.b16 %v682, %v674
  %v1011 = vpack.c.b16 %v683, %v675
  %v1012 = vpack.c.b16 %v684, %v676
  %v1013 = vpack.c.b16 %v685, %v677
  %v1014 = vpack.c.b16 %v686, %v678
  %v1015 = vpack.c.b16 %v687, %v679
  %v1016 = vpack.c.b16 %v688, %v680
  %v1017 = vpack.c.b16 %v689, %v681
  %v1018 = vpack.c.b16 %v698, %v690
  %v1019 = vpack.c.b16 %v699, %v691
  %v1020 = vpack.c.b16 %v700, %v692
  %v1021 = vpack.c.b16 %v701, %v693
  %v1022 = vpack.c.b16 %v702, %v694
  %v1023 = vpack.c.b16 %v703, %v695
  %v1024 = vpack.c.b16 %v704, %v696
  %v1025 = vpack.c.b16 %v705, %v697
  %v1026 = vpack.c.b16 %v714, %v706
  %v1027 = vpack.c.b16 %v715, %v707
  %v1028 = vpack.c.b16 %v716, %v708
  %v1029 = vpack.c.b16 %v717, %v709
  %v1030 = vpack.c.b16 %v718, %v710
  %v1031 = vpack.c.b16 %v719, %v711
  %v1032 = vpack.c.b16 %v720, %v712
  %v1033 = vpack.c.b16 %v721, %v713
  %v1034 = vpack.c.b16 %v730, %v722
  %v1035 = vpack.c.b16 %v731, %v723
  %v1036 = vpack.c.b16 %v732, %v724
  %v1037 = vpack.c.b16 %v733, %v725
  %v1038 = vpack.c.b16 %v734, %v726
  %v1039 = vpack.c.b16 %v735, %v727
  %v1040 = vpack.c.b16 %v736, %v728
  %v1041 = vpack.c.b16 %v737, %v729
  %v1042 = vpack.c.b16 %v746, %v738
  %v1043 = vpack.c.b16 %v747, %v739
  %v1044 = vpack.c.b16 %v748, %v740
  %v1045 = vpack.c.b16 %v749, %v741
  %v1046 = vpack.c.b16 %v750, %v742
  %v1047 = vpack.c.b16 %v751, %v743
  %v1048 = vpack.c.b16 %v752, %v744
  %v1049 = vpack.c.b16 %v753, %v745
  %v1050 = vpack.c.b16 %v762, %v754
  %v1051 = vpack.c.b16 %v763, %v755
  %v1052 = vpack.c.b16 %v764, %v756
  %v1053 = vpack.c.b16 %v765, %v757
  %v1054 = vpack.c.b16 %v766, %v758
  %v1055 = vpack.c.b16 %v767, %v759
  %v1056 = vpack.c.b16 %v768, %v760
  %v1057 = vpack.c.b16 %v769, %v761
  %v1058 = vpack.c.b16 %v778, %v770
  %v1059 = vpack.c.b16 %v779, %v771
  %v1060 = vpack.c.b16 %v780, %v772
  %v1061 = vpack.c.b16 %v781, %v773
  %v1062 = vpack.c.b16 %v782, %v774
  %v1063 = vpack.c.b16 %v783, %v775
  %v1064 = vpack.c.b16 %v784, %v776
  %v1065 = vpack.c.b16 %v785, %v777
  %v1066 = vpack.c.b16 %v794, %v786
  %v1067 = vpack.c.b16 %v795, %v787
  %v1068 = vpack.c.b16 %v796, %v788
  %v1069 = vpack.c.b16 %v797, %v789
  %v1070 = vpack.c.b16 %v798, %v790
  %v1071 = vpack.c.b16 %v799, %v791
  %v1072 = vpack.c.b16 %v800, %v792
  %v1073 = vpack.c.b16 %v801, %v793
  %v1074 = vpack.c.b16 %v810, %v802
  %v1075 = vpack.c.b16 %v811, %v803
  %v1076 = vpack.c.b16 %v812, %v804
  %v1077 = vpack.c.b16 %v813, %v805
  %v1078 = vpack.c.b16 %v814, %v806
  %v1079 = vpack.c.b16 %v815, %v807
  %v1080 = vpack.c.b16 %v816, %v808
  %v1081 = vpack.c.b16 %v817, %v809
  %v1082 = vpack.c.b16 %v826, %v818
  %v1083 = vpack.c.b16 %v827, %v819
  %v1084 = vpack.c.b16 %v828, %v820
  %v1085 = vpack.c.b16 %v829, %v821
  %v1086 = vpack.c.b16 %v830, %v822
  %v1087 = vpack.c.b16 %v831, %v823
  %v1088 = vpack.c.b16 %v832, %v824
  %v1089 = vpack.c.b16 %v833, %v825
  %v1090 = vpack.c.b16 %v842, %v834
  %v1091 = vpack.c.b16 %v843, %v835
  %v1092 = vpack.c.b16 %v844, %v836
  %v1093 = vpack.c.b16 %v845, %v837
  %v1094 = vpack.c.b16 %v846, %v838
  %v1095 = vpack.c.b16 %v847, %v839
  %v1096 = vpack.c.b16 %v848, %v840
  %v1097 = vpack.c.b16 %v849, %v841
  %v1098 = vpack.c.b16 %v858, %v850
  %v1099 = vpack.c.b16 %v859, %v851
  %v1100 = vpack.c.b16 %v860, %v852
  %v1101 = vpack.c.b16 %v861, %v853
  %v1102 = vpack.c.b16 %v862, %v854
  %v1103 = vpack.c.b16 %v863, %v855
  %v1104 = vpack.c.b16 %v864, %v856
  %v1105 = vpack.c.b16 %v865, %v857
  %v1106 = vpack.c.b16 %v874, %v866
  %v1107 = vpack.c.b16 %v875, %v867
  %v1108 = vpack.c.b16 %v876, %v868
  %v1109 = vpack.c.b16 %v877, %v869
  %v1110 = vpack.c.b16 %v878, %v870
  %v1111 = vpack.c.b16 %v879, %v871
  %v1112 = vpack.c.b16 %v880, %v872
  %v1113 = vpack.c.b16 %v881, %v873
  %v1114 = vpack.c.b16 %v890, %v882
  %v1115 = vpack.c.b16 %v891, %v883
  %v1116 = vpack.c.b16 %v892, %v884
  %v1117 = vpack.c.b16 %v893, %v885
  %v1118 = vpack.c.b16 %v894, %v886
  %v1119 = vpack.c.b16 %v895, %v887
  %v1120 = vpack.c.b16 %v896, %v888
  %v1121 = vpack.c.b16 %v897, %v889
  %v1122 = vpack.c.b16 %v906, %v898
  %v1123 = vpack.c.b16 %v907, %v899
  %v1124 = vpack.c.b16 %v908, %v900
  %v1125 = vpack.c.b16 %v909, %v901
  %v1126 = vpack.c.b16 %v910, %v902
  %v1127 = vpack.c.b16 %v911, %v903
  %v1128 = vpack.c.b16 %v912, %v904
  %v1129 = vpack.c.b16 %v913, %v905
  %vm1346 = vcmask 392192
  %v1348 = vsel %vm1346, %v262, 0
  %1350 = vmatpush.bf16.msra.mxu0 %v970
  %1351 = vmatpush.bf16.msra.mxu0 %v962
  %1352 = vmatpush.bf16.msra.mxu0 %v954
  %1353 = vmatpush.bf16.msra.mxu0 %v946
  %1354 = vmatpush.bf16.msra.mxu0 %v938
  %1355 = vmatpush.bf16.msra.mxu0 %v930
  %1356 = vmatpush.bf16.msra.mxu0 %v922
  %1357 = vmatpush.bf16.msra.mxu0 %v914
  %1358 = vmatmul.bf16.gmra.mxu0 %v259
  %v1359 = vpop.f32.mrf.mxu0
  %v1360 = vadd.f32 %v240, %v1359
  %v1361 = vpop.f32.mrf.mxu0
  %v1362 = vadd.f32 %v245, %v1361
  %1363 = vdwg.mxu0
  %1364 = vmatpush.bf16.msra.mxu0 %v1034
  %1365 = vmatpush.bf16.msra.mxu0 %v1026
  %1366 = vmatpush.bf16.msra.mxu0 %v1018
  %1367 = vmatpush.bf16.msra.mxu0 %v1010
  %1368 = vmatpush.bf16.msra.mxu0 %v1002
  %1369 = vmatpush.bf16.msra.mxu0 %v994
  %1370 = vmatpush.bf16.msra.mxu0 %v986
  %1371 = vmatpush.bf16.msra.mxu0 %v978
  %1372 = vmatmul.bf16.gmra.mxu0 %v260
  %v1373 = vpop.f32.mrf.mxu0
  %v1374 = vadd.f32 %v1360, %v1373
  %v1375 = vpop.f32.mrf.mxu0
  %v1376 = vadd.f32 %v1362, %v1375
  %1377 = vdwg.mxu0
  %1378 = vmatpush.bf16.msra.mxu0 %v1098
  %1379 = vmatpush.bf16.msra.mxu0 %v1090
  %1380 = vmatpush.bf16.msra.mxu0 %v1082
  %1381 = vmatpush.bf16.msra.mxu0 %v1074
  %1382 = vmatpush.bf16.msra.mxu0 %v1066
  %1383 = vmatpush.bf16.msra.mxu0 %v1058
  %1384 = vmatpush.bf16.msra.mxu0 %v1050
  %1385 = vmatpush.bf16.msra.mxu0 %v1042
  %1386 = vmatmul.bf16.gmra.mxu0 %v261
  %v1387 = vpop.f32.mrf.mxu0
  %v1388 = vadd.f32 %v1374, %v1387
  %v1389 = vpop.f32.mrf.mxu0
  %v1390 = vadd.f32 %v1376, %v1389
  %1391 = vdwg.mxu0
  %1392 = vmatpush.bf16.msra.mxu0 0
  %1393 = vmatpush.bf16.msra.mxu0 0
  %1394 = vmatpush.bf16.msra.mxu0 0
  %1395 = vmatpush.bf16.msra.mxu0 0
  %1396 = vmatpush.bf16.msra.mxu0 0
  %1397 = vmatpush.bf16.msra.mxu0 %v1122
  %1398 = vmatpush.bf16.msra.mxu0 %v1114
  %1399 = vmatpush.bf16.msra.mxu0 %v1106
  %1400 = vmatmul.bf16.gmra.mxu0 %v1348
  %v1401 = vpop.f32.mrf.mxu0
  %v1402 = vadd.f32 %v1388, %v1401
  %v1403 = vpop.f32.mrf.mxu0
  %v1404 = vadd.f32 %v1390, %v1403
  %1405 = vdwg.mxu0
  %1406 = vmatpush.bf16.msra.mxu0 %v971
  %1407 = vmatpush.bf16.msra.mxu0 %v963
  %1408 = vmatpush.bf16.msra.mxu0 %v955
  %1409 = vmatpush.bf16.msra.mxu0 %v947
  %1410 = vmatpush.bf16.msra.mxu0 %v939
  %1411 = vmatpush.bf16.msra.mxu0 %v931
  %1412 = vmatpush.bf16.msra.mxu0 %v923
  %1413 = vmatpush.bf16.msra.mxu0 %v915
  %1414 = vmatmul.bf16.gmra.mxu0 %v259
  %v1415 = vpop.f32.mrf.mxu0
  %v1416 = vadd.f32 %v240, %v1415
  %v1417 = vpop.f32.mrf.mxu0
  %v1418 = vadd.f32 %v245, %v1417
  %1419 = vdwg.mxu0
  %1420 = vmatpush.bf16.msra.mxu0 %v1035
  %1421 = vmatpush.bf16.msra.mxu0 %v1027
  %1422 = vmatpush.bf16.msra.mxu0 %v1019
  %1423 = vmatpush.bf16.msra.mxu0 %v1011
  %1424 = vmatpush.bf16.msra.mxu0 %v1003
  %1425 = vmatpush.bf16.msra.mxu0 %v995
  %1426 = vmatpush.bf16.msra.mxu0 %v987
  %1427 = vmatpush.bf16.msra.mxu0 %v979
  %1428 = vmatmul.bf16.gmra.mxu0 %v260
  %v1429 = vpop.f32.mrf.mxu0
  %v1430 = vadd.f32 %v1416, %v1429
  %v1431 = vpop.f32.mrf.mxu0
  %v1432 = vadd.f32 %v1418, %v1431
  %1433 = vdwg.mxu0
  %1434 = vmatpush.bf16.msra.mxu0 %v1099
  %1435 = vmatpush.bf16.msra.mxu0 %v1091
  %1436 = vmatpush.bf16.msra.mxu0 %v1083
  %1437 = vmatpush.bf16.msra.mxu0 %v1075
  %1438 = vmatpush.bf16.msra.mxu0 %v1067
  %1439 = vmatpush.bf16.msra.mxu0 %v1059
  %1440 = vmatpush.bf16.msra.mxu0 %v1051
  %1441 = vmatpush.bf16.msra.mxu0 %v1043
  %1442 = vmatmul.bf16.gmra.mxu0 %v261
  %v1443 = vpop.f32.mrf.mxu0
  %v1444 = vadd.f32 %v1430, %v1443
  %v1445 = vpop.f32.mrf.mxu0
  %v1446 = vadd.f32 %v1432, %v1445
  %1447 = vdwg.mxu0
  %1448 = vmatpush.bf16.msra.mxu0 0
  %1449 = vmatpush.bf16.msra.mxu0 0
  %1450 = vmatpush.bf16.msra.mxu0 0
  %1451 = vmatpush.bf16.msra.mxu0 0
  %1452 = vmatpush.bf16.msra.mxu0 0
  %1453 = vmatpush.bf16.msra.mxu0 %v1123
  %1454 = vmatpush.bf16.msra.mxu0 %v1115
  %1455 = vmatpush.bf16.msra.mxu0 %v1107
  %1456 = vmatmul.bf16.gmra.mxu0 %v1348
  %v1457 = vpop.f32.mrf.mxu0
  %v1458 = vadd.f32 %v1444, %v1457
  %v1459 = vpop.f32.mrf.mxu0
  %v1460 = vadd.f32 %v1446, %v1459
  %1461 = vdwg.mxu0
  %1462 = vmatpush.bf16.msra.mxu0 %v972
  %1463 = vmatpush.bf16.msra.mxu0 %v964
  %1464 = vmatpush.bf16.msra.mxu0 %v956
  %1465 = vmatpush.bf16.msra.mxu0 %v948
  %1466 = vmatpush.bf16.msra.mxu0 %v940
  %1467 = vmatpush.bf16.msra.mxu0 %v932
  %1468 = vmatpush.bf16.msra.mxu0 %v924
  %1469 = vmatpush.bf16.msra.mxu0 %v916
  %1470 = vmatmul.bf16.gmra.mxu0 %v259
  %v1471 = vpop.f32.mrf.mxu0
  %v1472 = vadd.f32 %v240, %v1471
  %v1473 = vpop.f32.mrf.mxu0
  %v1474 = vadd.f32 %v245, %v1473
  %1475 = vdwg.mxu0
  %1476 = vmatpush.bf16.msra.mxu0 %v1036
  %1477 = vmatpush.bf16.msra.mxu0 %v1028
  %1478 = vmatpush.bf16.msra.mxu0 %v1020
  %1479 = vmatpush.bf16.msra.mxu0 %v1012
  %1480 = vmatpush.bf16.msra.mxu0 %v1004
  %1481 = vmatpush.bf16.msra.mxu0 %v996
  %1482 = vmatpush.bf16.msra.mxu0 %v988
  %1483 = vmatpush.bf16.msra.mxu0 %v980
  %1484 = vmatmul.bf16.gmra.mxu0 %v260
  %v1485 = vpop.f32.mrf.mxu0
  %v1486 = vadd.f32 %v1472, %v1485
  %v1487 = vpop.f32.mrf.mxu0
  %v1488 = vadd.f32 %v1474, %v1487
  %1489 = vdwg.mxu0
  %1490 = vmatpush.bf16.msra.mxu0 %v1100
  %1491 = vmatpush.bf16.msra.mxu0 %v1092
  %1492 = vmatpush.bf16.msra.mxu0 %v1084
  %1493 = vmatpush.bf16.msra.mxu0 %v1076
  %1494 = vmatpush.bf16.msra.mxu0 %v1068
  %1495 = vmatpush.bf16.msra.mxu0 %v1060
  %1496 = vmatpush.bf16.msra.mxu0 %v1052
  %1497 = vmatpush.bf16.msra.mxu0 %v1044
  %1498 = vmatmul.bf16.gmra.mxu0 %v261
  %v1499 = vpop.f32.mrf.mxu0
  %v1500 = vadd.f32 %v1486, %v1499
  %v1501 = vpop.f32.mrf.mxu0
  %v1502 = vadd.f32 %v1488, %v1501
  %1503 = vdwg.mxu0
  %1504 = vmatpush.bf16.msra.mxu0 0
  %1505 = vmatpush.bf16.msra.mxu0 0
  %1506 = vmatpush.bf16.msra.mxu0 0
  %1507 = vmatpush.bf16.msra.mxu0 0
  %1508 = vmatpush.bf16.msra.mxu0 0
  %1509 = vmatpush.bf16.msra.mxu0 %v1124
  %1510 = vmatpush.bf16.msra.mxu0 %v1116
  %1511 = vmatpush.bf16.msra.mxu0 %v1108
  %1512 = vmatmul.bf16.gmra.mxu0 %v1348
  %v1513 = vpop.f32.mrf.mxu0
  %v1514 = vadd.f32 %v1500, %v1513
  %v1515 = vpop.f32.mrf.mxu0
  %v1516 = vadd.f32 %v1502, %v1515
  %1517 = vdwg.mxu0
  %1518 = vmatpush.bf16.msra.mxu0 %v973
  %1519 = vmatpush.bf16.msra.mxu0 %v965
  %1520 = vmatpush.bf16.msra.mxu0 %v957
  %1521 = vmatpush.bf16.msra.mxu0 %v949
  %1522 = vmatpush.bf16.msra.mxu0 %v941
  %1523 = vmatpush.bf16.msra.mxu0 %v933
  %1524 = vmatpush.bf16.msra.mxu0 %v925
  %1525 = vmatpush.bf16.msra.mxu0 %v917
  %1526 = vmatmul.bf16.gmra.mxu0 %v259
  %v1527 = vpop.f32.mrf.mxu0
  %v1528 = vadd.f32 %v240, %v1527
  %v1529 = vpop.f32.mrf.mxu0
  %v1530 = vadd.f32 %v245, %v1529
  %1531 = vdwg.mxu0
  %1532 = vmatpush.bf16.msra.mxu0 %v1037
  %1533 = vmatpush.bf16.msra.mxu0 %v1029
  %1534 = vmatpush.bf16.msra.mxu0 %v1021
  %1535 = vmatpush.bf16.msra.mxu0 %v1013
  %1536 = vmatpush.bf16.msra.mxu0 %v1005
  %1537 = vmatpush.bf16.msra.mxu0 %v997
  %1538 = vmatpush.bf16.msra.mxu0 %v989
  %1539 = vmatpush.bf16.msra.mxu0 %v981
  %1540 = vmatmul.bf16.gmra.mxu0 %v260
  %v1541 = vpop.f32.mrf.mxu0
  %v1542 = vadd.f32 %v1528, %v1541
  %v1543 = vpop.f32.mrf.mxu0
  %v1544 = vadd.f32 %v1530, %v1543
  %1545 = vdwg.mxu0
  %1546 = vmatpush.bf16.msra.mxu0 %v1101
  %1547 = vmatpush.bf16.msra.mxu0 %v1093
  %1548 = vmatpush.bf16.msra.mxu0 %v1085
  %1549 = vmatpush.bf16.msra.mxu0 %v1077
  %1550 = vmatpush.bf16.msra.mxu0 %v1069
  %1551 = vmatpush.bf16.msra.mxu0 %v1061
  %1552 = vmatpush.bf16.msra.mxu0 %v1053
  %1553 = vmatpush.bf16.msra.mxu0 %v1045
  %1554 = vmatmul.bf16.gmra.mxu0 %v261
  %v1555 = vpop.f32.mrf.mxu0
  %v1556 = vadd.f32 %v1542, %v1555
  %v1557 = vpop.f32.mrf.mxu0
  %v1558 = vadd.f32 %v1544, %v1557
  %1559 = vdwg.mxu0
  %1560 = vmatpush.bf16.msra.mxu0 0
  %1561 = vmatpush.bf16.msra.mxu0 0
  %1562 = vmatpush.bf16.msra.mxu0 0
  %1563 = vmatpush.bf16.msra.mxu0 0
  %1564 = vmatpush.bf16.msra.mxu0 0
  %1565 = vmatpush.bf16.msra.mxu0 %v1125
  %1566 = vmatpush.bf16.msra.mxu0 %v1117
  %1567 = vmatpush.bf16.msra.mxu0 %v1109
  %1568 = vmatmul.bf16.gmra.mxu0 %v1348
  %v1569 = vpop.f32.mrf.mxu0
  %v1570 = vadd.f32 %v1556, %v1569
  %v1571 = vpop.f32.mrf.mxu0
  %v1572 = vadd.f32 %v1558, %v1571
  %1573 = vdwg.mxu0
  %1574 = vmatpush.bf16.msra.mxu0 %v974
  %1575 = vmatpush.bf16.msra.mxu0 %v966
  %1576 = vmatpush.bf16.msra.mxu0 %v958
  %1577 = vmatpush.bf16.msra.mxu0 %v950
  %1578 = vmatpush.bf16.msra.mxu0 %v942
  %1579 = vmatpush.bf16.msra.mxu0 %v934
  %1580 = vmatpush.bf16.msra.mxu0 %v926
  %1581 = vmatpush.bf16.msra.mxu0 %v918
  %1582 = vmatmul.bf16.gmra.mxu0 %v259
  %v1583 = vpop.f32.mrf.mxu0
  %v1584 = vadd.f32 %v240, %v1583
  %v1585 = vpop.f32.mrf.mxu0
  %v1586 = vadd.f32 %v245, %v1585
  %1587 = vdwg.mxu0
  %1588 = vmatpush.bf16.msra.mxu0 %v1038
  %1589 = vmatpush.bf16.msra.mxu0 %v1030
  %1590 = vmatpush.bf16.msra.mxu0 %v1022
  %1591 = vmatpush.bf16.msra.mxu0 %v1014
  %1592 = vmatpush.bf16.msra.mxu0 %v1006
  %1593 = vmatpush.bf16.msra.mxu0 %v998
  %1594 = vmatpush.bf16.msra.mxu0 %v990
  %1595 = vmatpush.bf16.msra.mxu0 %v982
  %1596 = vmatmul.bf16.gmra.mxu0 %v260
  %v1597 = vpop.f32.mrf.mxu0
  %v1598 = vadd.f32 %v1584, %v1597
  %v1599 = vpop.f32.mrf.mxu0
  %v1600 = vadd.f32 %v1586, %v1599
  %1601 = vdwg.mxu0
  %1602 = vmatpush.bf16.msra.mxu0 %v1102
  %1603 = vmatpush.bf16.msra.mxu0 %v1094
  %1604 = vmatpush.bf16.msra.mxu0 %v1086
  %1605 = vmatpush.bf16.msra.mxu0 %v1078
  %1606 = vmatpush.bf16.msra.mxu0 %v1070
  %1607 = vmatpush.bf16.msra.mxu0 %v1062
  %1608 = vmatpush.bf16.msra.mxu0 %v1054
  %1609 = vmatpush.bf16.msra.mxu0 %v1046
  %1610 = vmatmul.bf16.gmra.mxu0 %v261
  %v1611 = vpop.f32.mrf.mxu0
  %v1612 = vadd.f32 %v1598, %v1611
  %v1613 = vpop.f32.mrf.mxu0
  %v1614 = vadd.f32 %v1600, %v1613
  %1615 = vdwg.mxu0
  %1616 = vmatpush.bf16.msra.mxu0 0
  %1617 = vmatpush.bf16.msra.mxu0 0
  %1618 = vmatpush.bf16.msra.mxu0 0
  %1619 = vmatpush.bf16.msra.mxu0 0
  %1620 = vmatpush.bf16.msra.mxu0 0
  %1621 = vmatpush.bf16.msra.mxu0 %v1126
  %1622 = vmatpush.bf16.msra.mxu0 %v1118
  %1623 = vmatpush.bf16.msra.mxu0 %v1110
  %1624 = vmatmul.bf16.gmra.mxu0 %v1348
  %v1625 = vpop.f32.mrf.mxu0
  %v1626 = vadd.f32 %v1612, %v1625
  %v1627 = vpop.f32.mrf.mxu0
  %v1628 = vadd.f32 %v1614, %v1627
  %1629 = vdwg.mxu0
  %1630 = vmatpush.bf16.msra.mxu0 %v975
  %1631 = vmatpush.bf16.msra.mxu0 %v967
  %1632 = vmatpush.bf16.msra.mxu0 %v959
  %1633 = vmatpush.bf16.msra.mxu0 %v951
  %1634 = vmatpush.bf16.msra.mxu0 %v943
  %1635 = vmatpush.bf16.msra.mxu0 %v935
  %1636 = vmatpush.bf16.msra.mxu0 %v927
  %1637 = vmatpush.bf16.msra.mxu0 %v919
  %1638 = vmatmul.bf16.gmra.mxu0 %v259
  %v1639 = vpop.f32.mrf.mxu0
  %v1640 = vadd.f32 %v240, %v1639
  %v1641 = vpop.f32.mrf.mxu0
  %v1642 = vadd.f32 %v245, %v1641
  %1643 = vdwg.mxu0
  %1644 = vmatpush.bf16.msra.mxu0 %v1039
  %1645 = vmatpush.bf16.msra.mxu0 %v1031
  %1646 = vmatpush.bf16.msra.mxu0 %v1023
  %1647 = vmatpush.bf16.msra.mxu0 %v1015
  %1648 = vmatpush.bf16.msra.mxu0 %v1007
  %1649 = vmatpush.bf16.msra.mxu0 %v999
  %1650 = vmatpush.bf16.msra.mxu0 %v991
  %1651 = vmatpush.bf16.msra.mxu0 %v983
  %1652 = vmatmul.bf16.gmra.mxu0 %v260
  %v1653 = vpop.f32.mrf.mxu0
  %v1654 = vadd.f32 %v1640, %v1653
  %v1655 = vpop.f32.mrf.mxu0
  %v1656 = vadd.f32 %v1642, %v1655
  %1657 = vdwg.mxu0
  %1658 = vmatpush.bf16.msra.mxu0 %v1103
  %1659 = vmatpush.bf16.msra.mxu0 %v1095
  %1660 = vmatpush.bf16.msra.mxu0 %v1087
  %1661 = vmatpush.bf16.msra.mxu0 %v1079
  %1662 = vmatpush.bf16.msra.mxu0 %v1071
  %1663 = vmatpush.bf16.msra.mxu0 %v1063
  %1664 = vmatpush.bf16.msra.mxu0 %v1055
  %1665 = vmatpush.bf16.msra.mxu0 %v1047
  %1666 = vmatmul.bf16.gmra.mxu0 %v261
  %v1667 = vpop.f32.mrf.mxu0
  %v1668 = vadd.f32 %v1654, %v1667
  %v1669 = vpop.f32.mrf.mxu0
  %v1670 = vadd.f32 %v1656, %v1669
  %1671 = vdwg.mxu0
  %1672 = vmatpush.bf16.msra.mxu0 0
  %1673 = vmatpush.bf16.msra.mxu0 0
  %1674 = vmatpush.bf16.msra.mxu0 0
  %1675 = vmatpush.bf16.msra.mxu0 0
  %1676 = vmatpush.bf16.msra.mxu0 0
  %1677 = vmatpush.bf16.msra.mxu0 %v1127
  %1678 = vmatpush.bf16.msra.mxu0 %v1119
  %1679 = vmatpush.bf16.msra.mxu0 %v1111
  %1680 = vmatmul.bf16.gmra.mxu0 %v1348
  %v1681 = vpop.f32.mrf.mxu0
  %v1682 = vadd.f32 %v1668, %v1681
  %v1683 = vpop.f32.mrf.mxu0
  %v1684 = vadd.f32 %v1670, %v1683
  %1685 = vdwg.mxu0
  %1686 = vmatpush.bf16.msra.mxu0 %v976
  %1687 = vmatpush.bf16.msra.mxu0 %v968
  %1688 = vmatpush.bf16.msra.mxu0 %v960
  %1689 = vmatpush.bf16.msra.mxu0 %v952
  %1690 = vmatpush.bf16.msra.mxu0 %v944
  %1691 = vmatpush.bf16.msra.mxu0 %v936
  %1692 = vmatpush.bf16.msra.mxu0 %v928
  %1693 = vmatpush.bf16.msra.mxu0 %v920
  %1694 = vmatmul.bf16.gmra.mxu0 %v259
  %v1695 = vpop.f32.mrf.mxu0
  %v1696 = vadd.f32 %v240, %v1695
  %v1697 = vpop.f32.mrf.mxu0
  %v1698 = vadd.f32 %v245, %v1697
  %1699 = vdwg.mxu0
  %1700 = vmatpush.bf16.msra.mxu0 %v1040
  %1701 = vmatpush.bf16.msra.mxu0 %v1032
  %1702 = vmatpush.bf16.msra.mxu0 %v1024
  %1703 = vmatpush.bf16.msra.mxu0 %v1016
  %1704 = vmatpush.bf16.msra.mxu0 %v1008
  %1705 = vmatpush.bf16.msra.mxu0 %v1000
  %1706 = vmatpush.bf16.msra.mxu0 %v992
  %1707 = vmatpush.bf16.msra.mxu0 %v984
  %1708 = vmatmul.bf16.gmra.mxu0 %v260
  %v1709 = vpop.f32.mrf.mxu0
  %v1710 = vadd.f32 %v1696, %v1709
  %v1711 = vpop.f32.mrf.mxu0
  %v1712 = vadd.f32 %v1698, %v1711
  %1713 = vdwg.mxu0
  %1714 = vmatpush.bf16.msra.mxu0 %v1104
  %1715 = vmatpush.bf16.msra.mxu0 %v1096
  %1716 = vmatpush.bf16.msra.mxu0 %v1088
  %1717 = vmatpush.bf16.msra.mxu0 %v1080
  %1718 = vmatpush.bf16.msra.mxu0 %v1072
  %1719 = vmatpush.bf16.msra.mxu0 %v1064
  %1720 = vmatpush.bf16.msra.mxu0 %v1056
  %1721 = vmatpush.bf16.msra.mxu0 %v1048
  %1722 = vmatmul.bf16.gmra.mxu0 %v261
  %v1723 = vpop.f32.mrf.mxu0
  %v1724 = vadd.f32 %v1710, %v1723
  %v1725 = vpop.f32.mrf.mxu0
  %v1726 = vadd.f32 %v1712, %v1725
  %1727 = vdwg.mxu0
  %1728 = vmatpush.bf16.msra.mxu0 0
  %1729 = vmatpush.bf16.msra.mxu0 0
  %1730 = vmatpush.bf16.msra.mxu0 0
  %1731 = vmatpush.bf16.msra.mxu0 0
  %1732 = vmatpush.bf16.msra.mxu0 0
  %1733 = vmatpush.bf16.msra.mxu0 %v1128
  %1734 = vmatpush.bf16.msra.mxu0 %v1120
  %1735 = vmatpush.bf16.msra.mxu0 %v1112
  %1736 = vmatmul.bf16.gmra.mxu0 %v1348
  %v1737 = vpop.f32.mrf.mxu0
  %v1738 = vadd.f32 %v1724, %v1737
  %v1739 = vpop.f32.mrf.mxu0
  %v1740 = vadd.f32 %v1726, %v1739
  %1741 = vdwg.mxu0
  %1742 = vmatpush.bf16.msra.mxu0 %v977
  %1743 = vmatpush.bf16.msra.mxu0 %v969
  %1744 = vmatpush.bf16.msra.mxu0 %v961
  %1745 = vmatpush.bf16.msra.mxu0 %v953
  %1746 = vmatpush.bf16.msra.mxu0 %v945
  %1747 = vmatpush.bf16.msra.mxu0 %v937
  %1748 = vmatpush.bf16.msra.mxu0 %v929
  %1749 = vmatpush.bf16.msra.mxu0 %v921
  %1750 = vmatmul.bf16.gmra.mxu0 %v259
  %v1751 = vpop.f32.mrf.mxu0
  %v1752 = vadd.f32 %v240, %v1751
  %v1753 = vpop.f32.mrf.mxu0
  %v1754 = vadd.f32 %v245, %v1753
  %1755 = vdwg.mxu0
  %1756 = vmatpush.bf16.msra.mxu0 %v1041
  %1757 = vmatpush.bf16.msra.mxu0 %v1033
  %1758 = vmatpush.bf16.msra.mxu0 %v1025
  %1759 = vmatpush.bf16.msra.mxu0 %v1017
  %1760 = vmatpush.bf16.msra.mxu0 %v1009
  %1761 = vmatpush.bf16.msra.mxu0 %v1001
  %1762 = vmatpush.bf16.msra.mxu0 %v993
  %1763 = vmatpush.bf16.msra.mxu0 %v985
  %1764 = vmatmul.bf16.gmra.mxu0 %v260
  %v1765 = vpop.f32.mrf.mxu0
  %v1766 = vadd.f32 %v1752, %v1765
  %v1767 = vpop.f32.mrf.mxu0
  %v1768 = vadd.f32 %v1754, %v1767
  %1769 = vdwg.mxu0
  %1770 = vmatpush.bf16.msra.mxu0 %v1105
  %1771 = vmatpush.bf16.msra.mxu0 %v1097
  %1772 = vmatpush.bf16.msra.mxu0 %v1089
  %1773 = vmatpush.bf16.msra.mxu0 %v1081
  %1774 = vmatpush.bf16.msra.mxu0 %v1073
  %1775 = vmatpush.bf16.msra.mxu0 %v1065
  %1776 = vmatpush.bf16.msra.mxu0 %v1057
  %1777 = vmatpush.bf16.msra.mxu0 %v1049
  %1778 = vmatmul.bf16.gmra.mxu0 %v261
  %v1779 = vpop.f32.mrf.mxu0
  %v1780 = vadd.f32 %v1766, %v1779
  %v1781 = vpop.f32.mrf.mxu0
  %v1782 = vadd.f32 %v1768, %v1781
  %1783 = vdwg.mxu0
  %1784 = vmatpush.bf16.msra.mxu0 0
  %1785 = vmatpush.bf16.msra.mxu0 0
  %1786 = vmatpush.bf16.msra.mxu0 0
  %1787 = vmatpush.bf16.msra.mxu0 0
  %1788 = vmatpush.bf16.msra.mxu0 0
  %1789 = vmatpush.bf16.msra.mxu0 %v1129
  %1790 = vmatpush.bf16.msra.mxu0 %v1121
  %1791 = vmatpush.bf16.msra.mxu0 %v1113
  %1792 = vmatmul.bf16.gmra.mxu0 %v1348
  %v1793 = vpop.f32.mrf.mxu0
  %v1794 = vadd.f32 %v1780, %v1793
  %v1795 = vpop.f32.mrf.mxu0
  %v1796 = vadd.f32 %v1782, %v1795
  %1797 = vdwg.mxu0
  %vm1798 = vcmp.ge.f32.partialorder %v1402, 0.0
  %vm1799 = vcmp.ge.f32.partialorder %v1458, 0.0
  %vm1800 = vcmp.ge.f32.partialorder %v1514, 0.0
  %vm1801 = vcmp.ge.f32.partialorder %v1570, 0.0
  %vm1802 = vcmp.ge.f32.partialorder %v1626, 0.0
  %vm1803 = vcmp.ge.f32.partialorder %v1682, 0.0
  %vm1804 = vcmp.ge.f32.partialorder %v1738, 0.0
  %vm1805 = vcmp.ge.f32.partialorder %v1794, 0.0
  %vm1806 = vcmp.ge.f32.partialorder %v1404, 0.0
  %vm1807 = vcmp.ge.f32.partialorder %v1460, 0.0
  %vm1808 = vcmp.ge.f32.partialorder %v1516, 0.0
  %vm1809 = vcmp.ge.f32.partialorder %v1572, 0.0
  %vm1810 = vcmp.ge.f32.partialorder %v1628, 0.0
  %vm1811 = vcmp.ge.f32.partialorder %v1684, 0.0
  %vm1812 = vcmp.ge.f32.partialorder %v1740, 0.0
  %vm1813 = vcmp.ge.f32.partialorder %v1796, 0.0
  %v1814 = vmul.f32 %v1402, 0.01
  %v1815 = vmul.f32 %v1458, 0.01
  %v1816 = vmul.f32 %v1514, 0.01
  %v1817 = vmul.f32 %v1570, 0.01
  %v1818 = vmul.f32 %v1626, 0.01
  %v1819 = vmul.f32 %v1682, 0.01
  %v1820 = vmul.f32 %v1738, 0.01
  %v1821 = vmul.f32 %v1794, 0.01
  %v1822 = vmul.f32 %v1404, 0.01
  %v1823 = vmul.f32 %v1460, 0.01
  %v1824 = vmul.f32 %v1516, 0.01
  %v1825 = vmul.f32 %v1572, 0.01
  %v1826 = vmul.f32 %v1628, 0.01
  %v1827 = vmul.f32 %v1684, 0.01
  %v1828 = vmul.f32 %v1740, 0.01
  %v1829 = vmul.f32 %v1796, 0.01
  %v1830 = vsel %vm1798, %v1402, %v1814
  %v1831 = vsel %vm1799, %v1458, %v1815
  %v1832 = vsel %vm1800, %v1514, %v1816
  %v1833 = vsel %vm1801, %v1570, %v1817
  %v1834 = vsel %vm1802, %v1626, %v1818
  %v1835 = vsel %vm1803, %v1682, %v1819
  %v1836 = vsel %vm1804, %v1738, %v1820
  %v1837 = vsel %vm1805, %v1794, %v1821
  %v1838 = vsel %vm1806, %v1404, %v1822
  %v1839 = vsel %vm1807, %v1460, %v1823
  %v1840 = vsel %vm1808, %v1516, %v1824
  %v1841 = vsel %vm1809, %v1572, %v1825
  %v1842 = vsel %vm1810, %v1628, %v1826
  %v1843 = vsel %vm1811, %v1684, %v1827
  %v1844 = vsel %vm1812, %v1740, %v1828
  %v1845 = vsel %vm1813, %v1796, %v1829
  %v1846 = vpack.c.bf16 %v1831, %v1830
  %v1847 = vpack.c.bf16 %v1833, %v1832
  %v1848 = vpack.c.bf16 %v1835, %v1834
  %v1849 = vpack.c.bf16 %v1837, %v1836
  %v1850 = vpack.c.bf16 %v1839, %v1838
  %v1851 = vpack.c.bf16 %v1841, %v1840
  %v1852 = vpack.c.bf16 %v1843, %v1842
  %v1853 = vpack.c.bf16 %v1845, %v1844
  %1854 = vst [vmem:[%s3] sm:$0xff] %v1846
  %1855 = vst [vmem:[%s3 + $0x8] sm:$0xff] %v1847
  %1856 = vst [vmem:[%s3 + $0x10] sm:$0xff] %v1848
  %1857 = vst [vmem:[%s3 + $0x18] sm:$0xff] %v1849
  %1858 = vst [vmem:[%s3 + $0x20] sm:$0xff] %v1850
  %1859 = vst [vmem:[%s3 + $0x28] sm:$0xff] %v1851
  %1860 = vst [vmem:[%s3 + $0x30] sm:$0xff] %v1852
  %1861 = vst [vmem:[%s3 + $0x38] sm:$0xff] %v1853
  // Predicated region
  $region14: #{voxel_encoder_forward.12} parent=0 // pred_check
    _
  $region15: #{voxel_encoder_forward.12} parent=0 // pred_check_branch
    %1863 = sbr.rel (0) target = $region17
  $region16: #{voxel_encoder_forward.12} parent=0 // pred_region
    _
  $region17: #{voxel_encoder_forward.12} parent=0 // pred_fallthru
    _
  // Predicated region
  $region18: #{voxel_encoder_forward.12} parent=0 // pred_check
    _
  $region19: #{voxel_encoder_forward.12} parent=0 // pred_check_branch
    %1865 = sbr.rel (0) target = $region21
  $region20: #{voxel_encoder_forward.12} parent=0 // pred_region
    _
  $region21: #{voxel_encoder_forward.12} parent=0 // pred_fallthru
    _

// kernel: voxel_encoder_forward.13
$region0: #{voxel_encoder_forward.13}
  #allocation0 [shape = 'u32[]', space=smem, size = 0x4, offset = 0x4, fixed_abs, tag = 'smem constant byte address 0x4 - core index']
  #allocation1 [shape = 'u32[72,128]{1,0:T(1,128)}', space=vmem, size = 0x9000, scoped, tag = 'internal scratch']
  %s0 = inlined_call_operand.vmem [shape: bf16[32,432], index: 0, kind: input, shape index: {}]
  %s1 = inlined_call_operand.vmem [shape: bf16[432,128], index: 1, kind: input, shape index: {}]
  %s2 = inlined_call_operand.vmem [shape: f32[32,1], index: 2, kind: input, shape index: {}]
  %s3 = inlined_call_operand.vmem [shape: bf16[32,128], index: 3, kind: output, shape index: {}]
  %s4 = sld [smem:[#allocation0]]
  $region22: #{voxel_encoder_forward.13} parent=0
    _
  %s6 = ssub.s32 1, %s4
  %s7 = scalar_select 0, %s6, %s4
  // Predicated region
  $region2: #{voxel_encoder_forward.13} parent=0 // pred_check
    _
  $region3: #{voxel_encoder_forward.13} parent=0 // pred_check_branch
    %9 = sbr.rel (0) target = $region5
  $region4: #{voxel_encoder_forward.13} parent=0 // pred_region
    _
  $region5: #{voxel_encoder_forward.13} parent=0 // pred_fallthru
    _
  // Predicated region
  $region6: #{voxel_encoder_forward.13} parent=0 // pred_check
    _
  $region7: #{voxel_encoder_forward.13} parent=0 // pred_check_branch
    %11 = sbr.rel (0) target = $region9
  $region8: #{voxel_encoder_forward.13} parent=0 // pred_region
    _
  $region9: #{voxel_encoder_forward.13} parent=0 // pred_fallthru
    _
  // Predicated region
  $region10: #{voxel_encoder_forward.13} parent=0 // pred_check
    _
  $region11: #{voxel_encoder_forward.13} parent=0 // pred_check_branch
    %13 = sbr.rel (0) target = $region13
  $region12: #{voxel_encoder_forward.13} parent=0 // pred_region
    _
  $region13: #{voxel_encoder_forward.13} parent=0 // pred_fallthru
    _
  %v15 = vld [vmem:[%s0] sm:$0xff]
  %v16 = vld [vmem:[%s0 + $0x8] sm:$0xff]
  %v17 = vld [vmem:[%s0 + $0x10] sm:$0xff]
  %v18 = vld [vmem:[%s0 + $0x18] sm:$0xff]
  %v19 = vld [vmem:[%s0 + $0x20] sm:$0xff]
  %v20 = vld [vmem:[%s0 + $0x28] sm:$0xff]
  %v21 = vld [vmem:[%s0 + $0x30] sm:$0xff]
  %v22 = vld [vmem:[%s0 + $0x38] sm:$0xff]
  %v23 = vld [vmem:[%s1] sm:$0xf]
  %v24 = vld [vmem:[%s1 + $0x4] sm:$0xf]
  %v25 = vld [vmem:[%s1 + $0x8] sm:$0xf]
  %v26 = vld [vmem:[%s1 + $0xc] sm:$0xf]
  %v27 = vld [vmem:[%s1 + $0x10] sm:$0xf]
  %v28 = vld [vmem:[%s1 + $0x14] sm:$0xf]
  %v29 = vld [vmem:[%s1 + $0x18] sm:$0xf]
  %v30 = vld [vmem:[%s1 + $0x1c] sm:$0xf]
  %v31 = vld [vmem:[%s1 + $0x20] sm:$0xf]
  %v32 = vld [vmem:[%s1 + $0x24] sm:$0xf]
  %v33 = vld [vmem:[%s1 + $0x28] sm:$0xf]
  %v34 = vld [vmem:[%s1 + $0x2c] sm:$0xf]
  %v35 = vld [vmem:[%s1 + $0x30] sm:$0xf]
  %v36 = vld [vmem:[%s1 + $0x34] sm:$0xf]
  %v37 = vld [vmem:[%s1 + $0x38] sm:$0xf]
  %v38 = vld [vmem:[%s1 + $0x3c] sm:$0xf]
  %v39 = vld [vmem:[%s1 + $0x40] sm:$0xf]
  %v40 = vld [vmem:[%s1 + $0x44] sm:$0xf]
  %v41 = vld [vmem:[%s1 + $0x48] sm:$0xf]
  %v42 = vld [vmem:[%s1 + $0x4c] sm:$0xf]
  %v43 = vld [vmem:[%s1 + $0x50] sm:$0xf]
  %v44 = vld [vmem:[%s1 + $0x54] sm:$0xf]
  %v45 = vld [vmem:[%s1 + $0x58] sm:$0xf]
  %v46 = vld [vmem:[%s1 + $0x5c] sm:$0xf]
  %v47 = vld [vmem:[%s1 + $0x60] sm:$0xf]
  %v48 = vld [vmem:[%s1 + $0x64] sm:$0xf]
  %v49 = vld [vmem:[%s1 + $0x68] sm:$0xf]
  %v50 = vld [vmem:[%s1 + $0x6c] sm:$0xf]
  %v51 = vld [vmem:[%s1 + $0x70] sm:$0xf]
  %v52 = vld [vmem:[%s1 + $0x74] sm:$0xf]
  %v53 = vld [vmem:[%s1 + $0x78] sm:$0xf]
  %v54 = vld [vmem:[%s1 + $0x7c] sm:$0xf]
  %v55 = vld [vmem:[%s1 + $0x80] sm:$0xf]
  %v56 = vld [vmem:[%s1 + $0x84] sm:$0xf]
  %v57 = vld [vmem:[%s1 + $0x88] sm:$0xf]
  %v58 = vld [vmem:[%s1 + $0x8c] sm:$0xf]
  %v59 = vld [vmem:[%s1 + $0x90] sm:$0xf]
  %v60 = vld [vmem:[%s1 + $0x94] sm:$0xf]
  %v61 = vld [vmem:[%s1 + $0x98] sm:$0xf]
  %v62 = vld [vmem:[%s1 + $0x9c] sm:$0xf]
  %v63 = vld [vmem:[%s1 + $0xa0] sm:$0xf]
  %v64 = vld [vmem:[%s1 + $0xa4] sm:$0xf]
  %v65 = vld [vmem:[%s1 + $0xa8] sm:$0xf]
  %v66 = vld [vmem:[%s1 + $0xac] sm:$0xf]
  %v67 = vld [vmem:[%s1 + $0xb0] sm:$0xf]
  %v68 = vld [vmem:[%s1 + $0xb4] sm:$0xf]
  %v69 = vld [vmem:[%s1 + $0xb8] sm:$0xf]
  %v70 = vld [vmem:[%s1 + $0xbc] sm:$0xf]
  %v71 = vld [vmem:[%s1 + $0xc0] sm:$0xf]
  %v72 = vld [vmem:[%s1 + $0xc4] sm:$0xf]
  %v73 = vld [vmem:[%s1 + $0xc8] sm:$0xf]
  %v74 = vld [vmem:[%s1 + $0xcc] sm:$0xf]
  %v75 = vld [vmem:[%s1 + $0xd0] sm:$0xf]
  %v76 = vld [vmem:[%s1 + $0xd4] sm:$0xf]
  %v77 = vld [vmem:[%s2] sm:$0xff]
  %v78 = vld [vmem:[%s2 + $0x8] sm:$0xff]
  %v79 = vld [vmem:[%s2 + $0x10] sm:$0xff]
  %v80 = vld [vmem:[%s2 + $0x18] sm:$0xff]
  %82 = vset.pattern.permute.xlu0 0
  %83 = vperm.xlu0 %82, %v77
  %v84 = vpop.permute.xlu0 %83
  %87 = vset.pattern.permute.xlu0 0
  %88 = vperm.xlu0 %87, %v78
  %v89 = vpop.permute.xlu0 %88
  %92 = vset.pattern.permute.xlu0 0
  %93 = vperm.xlu0 %92, %v79
  %v94 = vpop.permute.xlu0 %93
  %97 = vset.pattern.permute.xlu0 0
  %98 = vperm.xlu0 %97, %v80
  %v99 = vpop.permute.xlu0 %98
  %v109 = vunpack.c.l.b16 %v15
  %v110 = vunpack.c.h.b16 %v15
  %v111 = vunpack.c.l.b16 %v16
  %v112 = vunpack.c.h.b16 %v16
  %v113 = vunpack.c.l.b16 %v17
  %v114 = vunpack.c.h.b16 %v17
  %v115 = vunpack.c.l.b16 %v18
  %v116 = vunpack.c.h.b16 %v18
  %v117 = vunpack.c.l.b16 %v19
  %v118 = vunpack.c.h.b16 %v19
  %v119 = vunpack.c.l.b16 %v20
  %v120 = vunpack.c.h.b16 %v20
  %v121 = vunpack.c.l.b16 %v21
  %v122 = vunpack.c.h.b16 %v21
  %v123 = vunpack.c.l.b16 %v22
  %v124 = vunpack.c.h.b16 %v22
  %v125 = vpack.c.b16 %v113, %v109
  %v126 = vpack.c.b16 %v114, %v110
  %v127 = vpack.c.b16 %v115, %v111
  %v128 = vpack.c.b16 %v116, %v112
  %v129 = vpack.c.b16 %v121, %v117
  %v130 = vpack.c.b16 %v122, %v118
  %v131 = vpack.c.b16 %v123, %v119
  %v132 = vpack.c.b16 %v124, %v120
  %v193 = vunpack.c.l.b16 %v23
  %v194 = vunpack.c.l.b16 %v24
  %v195 = vunpack.c.l.b16 %v25
  %v196 = vunpack.c.l.b16 %v26
  %v197 = vunpack.c.l.b16 %v27
  %v198 = vunpack.c.l.b16 %v28
  %v199 = vunpack.c.l.b16 %v29
  %v200 = vunpack.c.l.b16 %v30
  %v201 = vunpack.c.l.b16 %v31
  %v202 = vunpack.c.l.b16 %v32
  %v203 = vunpack.c.l.b16 %v33
  %v204 = vunpack.c.l.b16 %v34
  %v205 = vunpack.c.l.b16 %v35
  %v206 = vunpack.c.l.b16 %v36
  %v207 = vunpack.c.l.b16 %v37
  %v208 = vunpack.c.l.b16 %v38
  %v209 = vunpack.c.l.b16 %v39
  %v210 = vunpack.c.l.b16 %v40
  %v211 = vunpack.c.l.b16 %v41
  %v212 = vunpack.c.l.b16 %v42
  %v213 = vunpack.c.l.b16 %v43
  %v214 = vunpack.c.l.b16 %v44
  %v215 = vunpack.c.l.b16 %v45
  %v216 = vunpack.c.l.b16 %v46
  %v217 = vunpack.c.l.b16 %v47
  %v218 = vunpack.c.l.b16 %v48
  %v219 = vunpack.c.l.b16 %v49
  %v220 = vunpack.c.l.b16 %v50
  %v221 = vunpack.c.l.b16 %v51
  %v222 = vunpack.c.l.b16 %v52
  %v223 = vunpack.c.l.b16 %v53
  %v224 = vunpack.c.l.b16 %v54
  %v225 = vunpack.c.l.b16 %v55
  %v226 = vunpack.c.l.b16 %v56
  %v227 = vunpack.c.l.b16 %v57
  %v228 = vunpack.c.l.b16 %v58
  %v229 = vunpack.c.l.b16 %v59
  %v230 = vunpack.c.l.b16 %v60
  %v231 = vunpack.c.l.b16 %v61
  %v232 = vunpack.c.l.b16 %v62
  %v233 = vunpack.c.l.b16 %v63
  %v234 = vunpack.c.l.b16 %v64
  %v235 = vunpack.c.l.b16 %v65
  %v236 = vunpack.c.l.b16 %v66
  %v237 = vunpack.c.l.b16 %v67
  %v238 = vunpack.c.l.b16 %v68
  %v239 = vunpack.c.l.b16 %v69
  %v240 = vunpack.c.l.b16 %v70
  %v241 = vunpack.c.l.b16 %v71
  %v242 = vunpack.c.l.b16 %v72
  %v243 = vunpack.c.l.b16 %v73
  %v244 = vunpack.c.l.b16 %v74
  %v245 = vunpack.c.l.b16 %v75
  %v246 = vunpack.c.l.b16 %v76
  %v247 = vpack.c.b16 %v194, %v193
  %v248 = vpack.c.b16 %v196, %v195
  %v249 = vpack.c.b16 %v198, %v197
  %v250 = vpack.c.b16 %v200, %v199
  %v251 = vpack.c.b16 %v202, %v201
  %v252 = vpack.c.b16 %v204, %v203
  %v253 = vpack.c.b16 %v206, %v205
  %v254 = vpack.c.b16 %v208, %v207
  %v255 = vpack.c.b16 %v210, %v209
  %v256 = vpack.c.b16 %v212, %v211
  %v257 = vpack.c.b16 %v214, %v213
  %v258 = vpack.c.b16 %v216, %v215
  %v259 = vpack.c.b16 %v218, %v217
  %v260 = vpack.c.b16 %v220, %v219
  %v261 = vpack.c.b16 %v222, %v221
  %v262 = vpack.c.b16 %v224, %v223
  %v263 = vpack.c.b16 %v226, %v225
  %v264 = vpack.c.b16 %v228, %v227
  %v265 = vpack.c.b16 %v230, %v229
  %v266 = vpack.c.b16 %v232, %v231
  %v267 = vpack.c.b16 %v234, %v233
  %v268 = vpack.c.b16 %v236, %v235
  %v269 = vpack.c.b16 %v238, %v237
  %v270 = vpack.c.b16 %v240, %v239
  %v271 = vpack.c.b16 %v242, %v241
  %v272 = vpack.c.b16 %v244, %v243
  %v273 = vpack.c.b16 %v246, %v245
  %vm301 = vcmask 392192
  %v303 = vsel %vm301, %v128, 0
  %v306 = vsel %vm301, %v132, 0
  %308 = vmatpush.bf16.msra.mxu0 %v254
  %309 = vmatpush.bf16.msra.mxu0 %v253
  %310 = vmatpush.bf16.msra.mxu0 %v252
  %311 = vmatpush.bf16.msra.mxu0 %v251
  %312 = vmatpush.bf16.msra.mxu0 %v250
  %313 = vmatpush.bf16.msra.mxu0 %v249
  %314 = vmatpush.bf16.msra.mxu0 %v248
  %315 = vmatpush.bf16.msra.mxu0 %v247
  %316 = vmatmul.bf16.gmra.mxu0 %v125
  %v317 = vpop.f32.mrf.mxu0
  %v318 = vadd.f32 %v84, %v317
  %v319 = vpop.f32.mrf.mxu0
  %v320 = vadd.f32 %v89, %v319
  %321 = vmatmul.bf16.gmra.mxu0 %v129
  %v322 = vpop.f32.mrf.mxu0
  %v323 = vadd.f32 %v94, %v322
  %v324 = vpop.f32.mrf.mxu0
  %v325 = vadd.f32 %v99, %v324
  %326 = vdwg.mxu0
  %327 = vmatpush.bf16.msra.mxu0 %v262
  %328 = vmatpush.bf16.msra.mxu0 %v261
  %329 = vmatpush.bf16.msra.mxu0 %v260
  %330 = vmatpush.bf16.msra.mxu0 %v259
  %331 = vmatpush.bf16.msra.mxu0 %v258
  %332 = vmatpush.bf16.msra.mxu0 %v257
  %333 = vmatpush.bf16.msra.mxu0 %v256
  %334 = vmatpush.bf16.msra.mxu0 %v255
  %335 = vmatmul.bf16.gmra.mxu0 %v126
  %v336 = vpop.f32.mrf.mxu0
  %v337 = vadd.f32 %v318, %v336
  %v338 = vpop.f32.mrf.mxu0
  %v339 = vadd.f32 %v320, %v338
  %340 = vmatmul.bf16.gmra.mxu0 %v130
  %v341 = vpop.f32.mrf.mxu0
  %v342 = vadd.f32 %v323, %v341
  %v343 = vpop.f32.mrf.mxu0
  %v344 = vadd.f32 %v325, %v343
  %345 = vdwg.mxu0
  %346 = vmatpush.bf16.msra.mxu0 %v270
  %347 = vmatpush.bf16.msra.mxu0 %v269
  %348 = vmatpush.bf16.msra.mxu0 %v268
  %349 = vmatpush.bf16.msra.mxu0 %v267
  %350 = vmatpush.bf16.msra.mxu0 %v266
  %351 = vmatpush.bf16.msra.mxu0 %v265
  %352 = vmatpush.bf16.msra.mxu0 %v264
  %353 = vmatpush.bf16.msra.mxu0 %v263
  %354 = vmatmul.bf16.gmra.mxu0 %v127
  %v355 = vpop.f32.mrf.mxu0
  %v356 = vadd.f32 %v337, %v355
  %v357 = vpop.f32.mrf.mxu0
  %v358 = vadd.f32 %v339, %v357
  %359 = vmatmul.bf16.gmra.mxu0 %v131
  %v360 = vpop.f32.mrf.mxu0
  %v361 = vadd.f32 %v342, %v360
  %v362 = vpop.f32.mrf.mxu0
  %v363 = vadd.f32 %v344, %v362
  %364 = vdwg.mxu0
  %365 = vmatpush.bf16.msra.mxu0 0
  %366 = vmatpush.bf16.msra.mxu0 0
  %367 = vmatpush.bf16.msra.mxu0 0
  %368 = vmatpush.bf16.msra.mxu0 0
  %369 = vmatpush.bf16.msra.mxu0 0
  %370 = vmatpush.bf16.msra.mxu0 %v273
  %371 = vmatpush.bf16.msra.mxu0 %v272
  %372 = vmatpush.bf16.msra.mxu0 %v271
  %373 = vmatmul.bf16.gmra.mxu0 %v303
  %v374 = vpop.f32.mrf.mxu0
  %v375 = vadd.f32 %v356, %v374
  %v376 = vpop.f32.mrf.mxu0
  %v377 = vadd.f32 %v358, %v376
  %378 = vmatmul.bf16.gmra.mxu0 %v306
  %v379 = vpop.f32.mrf.mxu0
  %v380 = vadd.f32 %v361, %v379
  %v381 = vpop.f32.mrf.mxu0
  %v382 = vadd.f32 %v363, %v381
  %383 = vdwg.mxu0
  %vm384 = vcmp.ge.f32.partialorder %v375, 0.0
  %vm385 = vcmp.ge.f32.partialorder %v377, 0.0
  %vm386 = vcmp.ge.f32.partialorder %v380, 0.0
  %vm387 = vcmp.ge.f32.partialorder %v382, 0.0
  %v388 = vmul.f32 %v375, 0.01
  %v389 = vmul.f32 %v377, 0.01
  %v390 = vmul.f32 %v380, 0.01
  %v391 = vmul.f32 %v382, 0.01
  %v392 = vsel %vm384, %v375, %v388
  %v393 = vsel %vm385, %v377, %v389
  %v394 = vsel %vm386, %v380, %v390
  %v395 = vsel %vm387, %v382, %v391
  %v396 = vpack.c.bf16 %v392, %v392
  %v397 = vpack.c.bf16 %v393, %v393
  %v398 = vpack.c.bf16 %v394, %v394
  %v399 = vpack.c.bf16 %v395, %v395
  %400 = vst [vmem:[%s3] sm:$0xf] %v396
  %401 = vst [vmem:[%s3 + $0x4] sm:$0xf] %v397
  %402 = vst [vmem:[%s3 + $0x8] sm:$0xf] %v398
  %403 = vst [vmem:[%s3 + $0xc] sm:$0xf] %v399
  // Predicated region
  $region14: #{voxel_encoder_forward.13} parent=0 // pred_check
    _
  $region15: #{voxel_encoder_forward.13} parent=0 // pred_check_branch
    %405 = sbr.rel (0) target = $region17
  $region16: #{voxel_encoder_forward.13} parent=0 // pred_region
    _
  $region17: #{voxel_encoder_forward.13} parent=0 // pred_fallthru
    _
  // Predicated region
  $region18: #{voxel_encoder_forward.13} parent=0 // pred_check
    _
  $region19: #{voxel_encoder_forward.13} parent=0 // pred_check_branch
    %407 = sbr.rel (0) target = $region21
  $region20: #{voxel_encoder_forward.13} parent=0 // pred_region
    _
  $region21: #{voxel_encoder_forward.13} parent=0 // pred_fallthru
    _

// kernel: voxel_encoder_forward.14
$region0: #{voxel_encoder_forward.14}
  #allocation0 [shape = 'u32[]', space=smem, size = 0x4, offset = 0x4, fixed_abs, tag = 'smem constant byte address 0x4 - core index']
  #allocation1 [shape = 'u32[72,128]{1,0:T(1,128)}', space=vmem, size = 0x9000, scoped, tag = 'internal scratch']
  %s0 = inlined_call_operand.vmem [shape: bf16[32,864], index: 0, kind: input, shape index: {}]
  %s1 = inlined_call_operand.vmem [shape: bf16[864,128], index: 1, kind: input, shape index: {}]
  %s2 = inlined_call_operand.vmem [shape: f32[32,1], index: 2, kind: input, shape index: {}]
  %s3 = inlined_call_operand.vmem [shape: bf16[32,128], index: 3, kind: output, shape index: {}]
  %s4 = sld [smem:[#allocation0]]
  $region22: #{voxel_encoder_forward.14} parent=0
    _
  %s6 = ssub.s32 1, %s4
  %s7 = scalar_select 0, %s6, %s4
  // Predicated region
  $region2: #{voxel_encoder_forward.14} parent=0 // pred_check
    _
  $region3: #{voxel_encoder_forward.14} parent=0 // pred_check_branch
    %9 = sbr.rel (0) target = $region5
  $region4: #{voxel_encoder_forward.14} parent=0 // pred_region
    _
  $region5: #{voxel_encoder_forward.14} parent=0 // pred_fallthru
    _
  // Predicated region
  $region6: #{voxel_encoder_forward.14} parent=0 // pred_check
    _
  $region7: #{voxel_encoder_forward.14} parent=0 // pred_check_branch
    %11 = sbr.rel (0) target = $region9
  $region8: #{voxel_encoder_forward.14} parent=0 // pred_region
    _
  $region9: #{voxel_encoder_forward.14} parent=0 // pred_fallthru
    _
  // Predicated region
  $region10: #{voxel_encoder_forward.14} parent=0 // pred_check
    _
  $region11: #{voxel_encoder_forward.14} parent=0 // pred_check_branch
    %13 = sbr.rel (0) target = $region13
  $region12: #{voxel_encoder_forward.14} parent=0 // pred_region
    _
  $region13: #{voxel_encoder_forward.14} parent=0 // pred_fallthru
    _
  %v15 = vld [vmem:[%s0] sm:$0xff]
  %v16 = vld [vmem:[%s0 + $0x8] sm:$0xff]
  %v17 = vld [vmem:[%s0 + $0x10] sm:$0xff]
  %v18 = vld [vmem:[%s0 + $0x18] sm:$0xf]
  %v19 = vld [vmem:[%s0 + $0x1c] sm:$0xff]
  %v20 = vld [vmem:[%s0 + $0x24] sm:$0xff]
  %v21 = vld [vmem:[%s0 + $0x2c] sm:$0xff]
  %v22 = vld [vmem:[%s0 + $0x34] sm:$0xf]
  %v23 = vld [vmem:[%s0 + $0x38] sm:$0xff]
  %v24 = vld [vmem:[%s0 + $0x40] sm:$0xff]
  %v25 = vld [vmem:[%s0 + $0x48] sm:$0xff]
  %v26 = vld [vmem:[%s0 + $0x50] sm:$0xf]
  %v27 = vld [vmem:[%s0 + $0x54] sm:$0xff]
  %v28 = vld [vmem:[%s0 + $0x5c] sm:$0xff]
  %v29 = vld [vmem:[%s0 + $0x64] sm:$0xff]
  %v30 = vld [vmem:[%s0 + $0x6c] sm:$0xf]
  %v31 = vld [vmem:[%s1] sm:$0xf]
  %v32 = vld [vmem:[%s1 + $0x4] sm:$0xf]
  %v33 = vld [vmem:[%s1 + $0x8] sm:$0xf]
  %v34 = vld [vmem:[%s1 + $0xc] sm:$0xf]
  %v35 = vld [vmem:[%s1 + $0x10] sm:$0xf]
  %v36 = vld [vmem:[%s1 + $0x14] sm:$0xf]
  %v37 = vld [vmem:[%s1 + $0x18] sm:$0xf]
  %v38 = vld [vmem:[%s1 + $0x1c] sm:$0xf]
  %v39 = vld [vmem:[%s1 + $0x20] sm:$0xf]
  %v40 = vld [vmem:[%s1 + $0x24] sm:$0xf]
  %v41 = vld [vmem:[%s1 + $0x28] sm:$0xf]
  %v42 = vld [vmem:[%s1 + $0x2c] sm:$0xf]
  %v43 = vld [vmem:[%s1 + $0x30] sm:$0xf]
  %v44 = vld [vmem:[%s1 + $0x34] sm:$0xf]
  %v45 = vld [vmem:[%s1 + $0x38] sm:$0xf]
  %v46 = vld [vmem:[%s1 + $0x3c] sm:$0xf]
  %v47 = vld [vmem:[%s1 + $0x40] sm:$0xf]
  %v48 = vld [vmem:[%s1 + $0x44] sm:$0xf]
  %v49 = vld [vmem:[%s1 + $0x48] sm:$0xf]
  %v50 = vld [vmem:[%s1 + $0x4c] sm:$0xf]
  %v51 = vld [vmem:[%s1 + $0x50] sm:$0xf]
  %v52 = vld [vmem:[%s1 + $0x54] sm:$0xf]
  %v53 = vld [vmem:[%s1 + $0x58] sm:$0xf]
  %v54 = vld [vmem:[%s1 + $0x5c] sm:$0xf]
  %v55 = vld [vmem:[%s1 + $0x60] sm:$0xf]
  %v56 = vld [vmem:[%s1 + $0x64] sm:$0xf]
  %v57 = vld [vmem:[%s1 + $0x68] sm:$0xf]
  %v58 = vld [vmem:[%s1 + $0x6c] sm:$0xf]
  %v59 = vld [vmem:[%s1 + $0x70] sm:$0xf]
  %v60 = vld [vmem:[%s1 + $0x74] sm:$0xf]
  %v61 = vld [vmem:[%s1 + $0x78] sm:$0xf]
  %v62 = vld [vmem:[%s1 + $0x7c] sm:$0xf]
  %v63 = vld [vmem:[%s1 + $0x80] sm:$0xf]
  %v64 = vld [vmem:[%s1 + $0x84] sm:$0xf]
  %v65 = vld [vmem:[%s1 + $0x88] sm:$0xf]
  %v66 = vld [vmem:[%s1 + $0x8c] sm:$0xf]
  %v67 = vld [vmem:[%s1 + $0x90] sm:$0xf]
  %v68 = vld [vmem:[%s1 + $0x94] sm:$0xf]
  %v69 = vld [vmem:[%s1 + $0x98] sm:$0xf]
  %v70 = vld [vmem:[%s1 + $0x9c] sm:$0xf]
  %v71 = vld [vmem:[%s1 + $0xa0] sm:$0xf]
  %v72 = vld [vmem:[%s1 + $0xa4] sm:$0xf]
  %v73 = vld [vmem:[%s1 + $0xa8] sm:$0xf]
  %v74 = vld [vmem:[%s1 + $0xac] sm:$0xf]
  %v75 = vld [vmem:[%s1 + $0xb0] sm:$0xf]
  %v76 = vld [vmem:[%s1 + $0xb4] sm:$0xf]
  %v77 = vld [vmem:[%s1 + $0xb8] sm:$0xf]
  %v78 = vld [vmem:[%s1 + $0xbc] sm:$0xf]
  %v79 = vld [vmem:[%s1 + $0xc0] sm:$0xf]
  %v80 = vld [vmem:[%s1 + $0xc4] sm:$0xf]
  %v81 = vld [vmem:[%s1 + $0xc8] sm:$0xf]
  %v82 = vld [vmem:[%s1 + $0xcc] sm:$0xf]
  %v83 = vld [vmem:[%s1 + $0xd0] sm:$0xf]
  %v84 = vld [vmem:[%s1 + $0xd4] sm:$0xf]
  %v85 = vld [vmem:[%s1 + $0xd8] sm:$0xf]
  %v86 = vld [vmem:[%s1 + $0xdc] sm:$0xf]
  %v87 = vld [vmem:[%s1 + $0xe0] sm:$0xf]
  %v88 = vld [vmem:[%s1 + $0xe4] sm:$0xf]
  %v89 = vld [vmem:[%s1 + $0xe8] sm:$0xf]
  %v90 = vld [vmem:[%s1 + $0xec] sm:$0xf]
  %v91 = vld [vmem:[%s1 + $0xf0] sm:$0xf]
  %v92 = vld [vmem:[%s1 + $0xf4] sm:$0xf]
  %v93 = vld [vmem:[%s1 + $0xf8] sm:$0xf]
  %v94 = vld [vmem:[%s1 + $0xfc] sm:$0xf]
  %v95 = vld [vmem:[%s1 + $0x100] sm:$0xf]
  %v96 = vld [vmem:[%s1 + $0x104] sm:$0xf]
  %v97 = vld [vmem:[%s1 + $0x108] sm:$0xf]
  %v98 = vld [vmem:[%s1 + $0x10c] sm:$0xf]
  %v99 = vld [vmem:[%s1 + $0x110] sm:$0xf]
  %v100 = vld [vmem:[%s1 + $0x114] sm:$0xf]
  %v101 = vld [vmem:[%s1 + $0x118] sm:$0xf]
  %v102 = vld [vmem:[%s1 + $0x11c] sm:$0xf]
  %v103 = vld [vmem:[%s1 + $0x120] sm:$0xf]
  %v104 = vld [vmem:[%s1 + $0x124] sm:$0xf]
  %v105 = vld [vmem:[%s1 + $0x128] sm:$0xf]
  %v106 = vld [vmem:[%s1 + $0x12c] sm:$0xf]
  %v107 = vld [vmem:[%s1 + $0x130] sm:$0xf]
  %v108 = vld [vmem:[%s1 + $0x134] sm:$0xf]
  %v109 = vld [vmem:[%s1 + $0x138] sm:$0xf]
  %v110 = vld [vmem:[%s1 + $0x13c] sm:$0xf]
  %v111 = vld [vmem:[%s1 + $0x140] sm:$0xf]
  %v112 = vld [vmem:[%s1 + $0x144] sm:$0xf]
  %v113 = vld [vmem:[%s1 + $0x148] sm:$0xf]
  %v114 = vld [vmem:[%s1 + $0x14c] sm:$0xf]
  %v115 = vld [vmem:[%s1 + $0x150] sm:$0xf]
  %v116 = vld [vmem:[%s1 + $0x154] sm:$0xf]
  %v117 = vld [vmem:[%s1 + $0x158] sm:$0xf]
  %v118 = vld [vmem:[%s1 + $0x15c] sm:$0xf]
  %v119 = vld [vmem:[%s1 + $0x160] sm:$0xf]
  %v120 = vld [vmem:[%s1 + $0x164] sm:$0xf]
  %v121 = vld [vmem:[%s1 + $0x168] sm:$0xf]
  %v122 = vld [vmem:[%s1 + $0x16c] sm:$0xf]
  %v123 = vld [vmem:[%s1 + $0x170] sm:$0xf]
  %v124 = vld [vmem:[%s1 + $0x174] sm:$0xf]
  %v125 = vld [vmem:[%s1 + $0x178] sm:$0xf]
  %v126 = vld [vmem:[%s1 + $0x17c] sm:$0xf]
  %v127 = vld [vmem:[%s1 + $0x180] sm:$0xf]
  %v128 = vld [vmem:[%s1 + $0x184] sm:$0xf]
  %v129 = vld [vmem:[%s1 + $0x188] sm:$0xf]
  %v130 = vld [vmem:[%s1 + $0x18c] sm:$0xf]
  %v131 = vld [vmem:[%s1 + $0x190] sm:$0xf]
  %v132 = vld [vmem:[%s1 + $0x194] sm:$0xf]
  %v133 = vld [vmem:[%s1 + $0x198] sm:$0xf]
  %v134 = vld [vmem:[%s1 + $0x19c] sm:$0xf]
  %v135 = vld [vmem:[%s1 + $0x1a0] sm:$0xf]
  %v136 = vld [vmem:[%s1 + $0x1a4] sm:$0xf]
  %v137 = vld [vmem:[%s1 + $0x1a8] sm:$0xf]
  %v138 = vld [vmem:[%s1 + $0x1ac] sm:$0xf]
  %v139 = vld [vmem:[%s2] sm:$0xff]
  %v140 = vld [vmem:[%s2 + $0x8] sm:$0xff]
  %v141 = vld [vmem:[%s2 + $0x10] sm:$0xff]
  %v142 = vld [vmem:[%s2 + $0x18] sm:$0xff]
  %144 = vset.pattern.permute.xlu0 0
  %145 = vperm.xlu0 %144, %v139
  %v146 = vpop.permute.xlu0 %145
  %149 = vset.pattern.permute.xlu0 0
  %150 = vperm.xlu0 %149, %v140
  %v151 = vpop.permute.xlu0 %150
  %154 = vset.pattern.permute.xlu0 0
  %155 = vperm.xlu0 %154, %v141
  %v156 = vpop.permute.xlu0 %155
  %159 = vset.pattern.permute.xlu0 0
  %160 = vperm.xlu0 %159, %v142
  %v161 = vpop.permute.xlu0 %160
  %v179 = vunpack.c.l.b16 %v15
  %v180 = vunpack.c.h.b16 %v15
  %v181 = vunpack.c.l.b16 %v16
  %v182 = vunpack.c.h.b16 %v16
  %v183 = vunpack.c.l.b16 %v17
  %v184 = vunpack.c.h.b16 %v17
  %v185 = vunpack.c.l.b16 %v18
  %v186 = vunpack.c.l.b16 %v19
  %v187 = vunpack.c.h.b16 %v19
  %v188 = vunpack.c.l.b16 %v20
  %v189 = vunpack.c.h.b16 %v20
  %v190 = vunpack.c.l.b16 %v21
  %v191 = vunpack.c.h.b16 %v21
  %v192 = vunpack.c.l.b16 %v22
  %v193 = vunpack.c.l.b16 %v23
  %v194 = vunpack.c.h.b16 %v23
  %v195 = vunpack.c.l.b16 %v24
  %v196 = vunpack.c.h.b16 %v24
  %v197 = vunpack.c.l.b16 %v25
  %v198 = vunpack.c.h.b16 %v25
  %v199 = vunpack.c.l.b16 %v26
  %v200 = vunpack.c.l.b16 %v27
  %v201 = vunpack.c.h.b16 %v27
  %v202 = vunpack.c.l.b16 %v28
  %v203 = vunpack.c.h.b16 %v28
  %v204 = vunpack.c.l.b16 %v29
  %v205 = vunpack.c.h.b16 %v29
  %v206 = vunpack.c.l.b16 %v30
  %v207 = vpack.c.b16 %v186, %v179
  %v208 = vpack.c.b16 %v187, %v180
  %v209 = vpack.c.b16 %v188, %v181
  %v210 = vpack.c.b16 %v189, %v182
  %v211 = vpack.c.b16 %v190, %v183
  %v212 = vpack.c.b16 %v191, %v184
  %v213 = vpack.c.b16 %v192, %v185
  %v214 = vpack.c.b16 %v200, %v193
  %v215 = vpack.c.b16 %v201, %v194
  %v216 = vpack.c.b16 %v202, %v195
  %v217 = vpack.c.b16 %v203, %v196
  %v218 = vpack.c.b16 %v204, %v197
  %v219 = vpack.c.b16 %v205, %v198
  %v220 = vpack.c.b16 %v206, %v199
  %v341 = vunpack.c.l.b16 %v31
  %v342 = vunpack.c.l.b16 %v32
  %v343 = vunpack.c.l.b16 %v33
  %v344 = vunpack.c.l.b16 %v34
  %v345 = vunpack.c.l.b16 %v35
  %v346 = vunpack.c.l.b16 %v36
  %v347 = vunpack.c.l.b16 %v37
  %v348 = vunpack.c.l.b16 %v38
  %v349 = vunpack.c.l.b16 %v39
  %v350 = vunpack.c.l.b16 %v40
  %v351 = vunpack.c.l.b16 %v41
  %v352 = vunpack.c.l.b16 %v42
  %v353 = vunpack.c.l.b16 %v43
  %v354 = vunpack.c.l.b16 %v44
  %v355 = vunpack.c.l.b16 %v45
  %v356 = vunpack.c.l.b16 %v46
  %v357 = vunpack.c.l.b16 %v47
  %v358 = vunpack.c.l.b16 %v48
  %v359 = vunpack.c.l.b16 %v49
  %v360 = vunpack.c.l.b16 %v50
  %v361 = vunpack.c.l.b16 %v51
  %v362 = vunpack.c.l.b16 %v52
  %v363 = vunpack.c.l.b16 %v53
  %v364 = vunpack.c.l.b16 %v54
  %v365 = vunpack.c.l.b16 %v55
  %v366 = vunpack.c.l.b16 %v56
  %v367 = vunpack.c.l.b16 %v57
  %v368 = vunpack.c.l.b16 %v58
  %v369 = vunpack.c.l.b16 %v59
  %v370 = vunpack.c.l.b16 %v60
  %v371 = vunpack.c.l.b16 %v61
  %v372 = vunpack.c.l.b16 %v62
  %v373 = vunpack.c.l.b16 %v63
  %v374 = vunpack.c.l.b16 %v64
  %v375 = vunpack.c.l.b16 %v65
  %v376 = vunpack.c.l.b16 %v66
  %v377 = vunpack.c.l.b16 %v67
  %v378 = vunpack.c.l.b16 %v68
  %v379 = vunpack.c.l.b16 %v69
  %v380 = vunpack.c.l.b16 %v70
  %v381 = vunpack.c.l.b16 %v71
  %v382 = vunpack.c.l.b16 %v72
  %v383 = vunpack.c.l.b16 %v73
  %v384 = vunpack.c.l.b16 %v74
  %v385 = vunpack.c.l.b16 %v75
  %v386 = vunpack.c.l.b16 %v76
  %v387 = vunpack.c.l.b16 %v77
  %v388 = vunpack.c.l.b16 %v78
  %v389 = vunpack.c.l.b16 %v79
  %v390 = vunpack.c.l.b16 %v80
  %v391 = vunpack.c.l.b16 %v81
  %v392 = vunpack.c.l.b16 %v82
  %v393 = vunpack.c.l.b16 %v83
  %v394 = vunpack.c.l.b16 %v84
  %v395 = vunpack.c.l.b16 %v85
  %v396 = vunpack.c.l.b16 %v86
  %v397 = vunpack.c.l.b16 %v87
  %v398 = vunpack.c.l.b16 %v88
  %v399 = vunpack.c.l.b16 %v89
  %v400 = vunpack.c.l.b16 %v90
  %v401 = vunpack.c.l.b16 %v91
  %v402 = vunpack.c.l.b16 %v92
  %v403 = vunpack.c.l.b16 %v93
  %v404 = vunpack.c.l.b16 %v94
  %v405 = vunpack.c.l.b16 %v95
  %v406 = vunpack.c.l.b16 %v96
  %v407 = vunpack.c.l.b16 %v97
  %v408 = vunpack.c.l.b16 %v98
  %v409 = vunpack.c.l.b16 %v99
  %v410 = vunpack.c.l.b16 %v100
  %v411 = vunpack.c.l.b16 %v101
  %v412 = vunpack.c.l.b16 %v102
  %v413 = vunpack.c.l.b16 %v103
  %v414 = vunpack.c.l.b16 %v104
  %v415 = vunpack.c.l.b16 %v105
  %v416 = vunpack.c.l.b16 %v106
  %v417 = vunpack.c.l.b16 %v107
  %v418 = vunpack.c.l.b16 %v108
  %v419 = vunpack.c.l.b16 %v109
  %v420 = vunpack.c.l.b16 %v110
  %v421 = vunpack.c.l.b16 %v111
  %v422 = vunpack.c.l.b16 %v112
  %v423 = vunpack.c.l.b16 %v113
  %v424 = vunpack.c.l.b16 %v114
  %v425 = vunpack.c.l.b16 %v115
  %v426 = vunpack.c.l.b16 %v116
  %v427 = vunpack.c.l.b16 %v117
  %v428 = vunpack.c.l.b16 %v118
  %v429 = vunpack.c.l.b16 %v119
  %v430 = vunpack.c.l.b16 %v120
  %v431 = vunpack.c.l.b16 %v121
  %v432 = vunpack.c.l.b16 %v122
  %v433 = vunpack.c.l.b16 %v123
  %v434 = vunpack.c.l.b16 %v124
  %v435 = vunpack.c.l.b16 %v125
  %v436 = vunpack.c.l.b16 %v126
  %v437 = vunpack.c.l.b16 %v127
  %v438 = vunpack.c.l.b16 %v128
  %v439 = vunpack.c.l.b16 %v129
  %v440 = vunpack.c.l.b16 %v130
  %v441 = vunpack.c.l.b16 %v131
  %v442 = vunpack.c.l.b16 %v132
  %v443 = vunpack.c.l.b16 %v133
  %v444 = vunpack.c.l.b16 %v134
  %v445 = vunpack.c.l.b16 %v135
  %v446 = vunpack.c.l.b16 %v136
  %v447 = vunpack.c.l.b16 %v137
  %v448 = vunpack.c.l.b16 %v138
  %v449 = vpack.c.b16 %v342, %v341
  %v450 = vpack.c.b16 %v344, %v343
  %v451 = vpack.c.b16 %v346, %v345
  %v452 = vpack.c.b16 %v348, %v347
  %v453 = vpack.c.b16 %v350, %v349
  %v454 = vpack.c.b16 %v352, %v351
  %v455 = vpack.c.b16 %v354, %v353
  %v456 = vpack.c.b16 %v356, %v355
  %v457 = vpack.c.b16 %v358, %v357
  %v458 = vpack.c.b16 %v360, %v359
  %v459 = vpack.c.b16 %v362, %v361
  %v460 = vpack.c.b16 %v364, %v363
  %v461 = vpack.c.b16 %v366, %v365
  %v462 = vpack.c.b16 %v368, %v367
  %v463 = vpack.c.b16 %v370, %v369
  %v464 = vpack.c.b16 %v372, %v371
  %v465 = vpack.c.b16 %v374, %v373
  %v466 = vpack.c.b16 %v376, %v375
  %v467 = vpack.c.b16 %v378, %v377
  %v468 = vpack.c.b16 %v380, %v379
  %v469 = vpack.c.b16 %v382, %v381
  %v470 = vpack.c.b16 %v384, %v383
  %v471 = vpack.c.b16 %v386, %v385
  %v472 = vpack.c.b16 %v388, %v387
  %v473 = vpack.c.b16 %v390, %v389
  %v474 = vpack.c.b16 %v392, %v391
  %v475 = vpack.c.b16 %v394, %v393
  %v476 = vpack.c.b16 %v396, %v395
  %v477 = vpack.c.b16 %v398, %v397
  %v478 = vpack.c.b16 %v400, %v399
  %v479 = vpack.c.b16 %v402, %v401
  %v480 = vpack.c.b16 %v404, %v403
  %v481 = vpack.c.b16 %v406, %v405
  %v482 = vpack.c.b16 %v408, %v407
  %v483 = vpack.c.b16 %v410, %v409
  %v484 = vpack.c.b16 %v412, %v411
  %v485 = vpack.c.b16 %v414, %v413
  %v486 = vpack.c.b16 %v416, %v415
  %v487 = vpack.c.b16 %v418, %v417
  %v488 = vpack.c.b16 %v420, %v419
  %v489 = vpack.c.b16 %v422, %v421
  %v490 = vpack.c.b16 %v424, %v423
  %v491 = vpack.c.b16 %v426, %v425
  %v492 = vpack.c.b16 %v428, %v427
  %v493 = vpack.c.b16 %v430, %v429
  %v494 = vpack.c.b16 %v432, %v431
  %v495 = vpack.c.b16 %v434, %v433
  %v496 = vpack.c.b16 %v436, %v435
  %v497 = vpack.c.b16 %v438, %v437
  %v498 = vpack.c.b16 %v440, %v439
  %v499 = vpack.c.b16 %v442, %v441
  %v500 = vpack.c.b16 %v444, %v443
  %v501 = vpack.c.b16 %v446, %v445
  %v502 = vpack.c.b16 %v448, %v447
  %vm557 = vcmask 785408
  %v559 = vsel %vm557, %v213, 0
  %v562 = vsel %vm557, %v220, 0
  %564 = vmatpush.bf16.msra.mxu0 %v456
  %565 = vmatpush.bf16.msra.mxu0 %v455
  %566 = vmatpush.bf16.msra.mxu0 %v454
  %567 = vmatpush.bf16.msra.mxu0 %v453
  %568 = vmatpush.bf16.msra.mxu0 %v452
  %569 = vmatpush.bf16.msra.mxu0 %v451
  %570 = vmatpush.bf16.msra.mxu0 %v450
  %571 = vmatpush.bf16.msra.mxu0 %v449
  %572 = vmatmul.bf16.gmra.mxu0 %v207
  %v573 = vpop.f32.mrf.mxu0
  %v574 = vadd.f32 %v146, %v573
  %v575 = vpop.f32.mrf.mxu0
  %v576 = vadd.f32 %v151, %v575
  %577 = vmatmul.bf16.gmra.mxu0 %v214
  %v578 = vpop.f32.mrf.mxu0
  %v579 = vadd.f32 %v156, %v578
  %v580 = vpop.f32.mrf.mxu0
  %v581 = vadd.f32 %v161, %v580
  %582 = vdwg.mxu0
  %583 = vmatpush.bf16.msra.mxu0 %v464
  %584 = vmatpush.bf16.msra.mxu0 %v463
  %585 = vmatpush.bf16.msra.mxu0 %v462
  %586 = vmatpush.bf16.msra.mxu0 %v461
  %587 = vmatpush.bf16.msra.mxu0 %v460
  %588 = vmatpush.bf16.msra.mxu0 %v459
  %589 = vmatpush.bf16.msra.mxu0 %v458
  %590 = vmatpush.bf16.msra.mxu0 %v457
  %591 = vmatmul.bf16.gmra.mxu0 %v208
  %v592 = vpop.f32.mrf.mxu0
  %v593 = vadd.f32 %v574, %v592
  %v594 = vpop.f32.mrf.mxu0
  %v595 = vadd.f32 %v576, %v594
  %596 = vmatmul.bf16.gmra.mxu0 %v215
  %v597 = vpop.f32.mrf.mxu0
  %v598 = vadd.f32 %v579, %v597
  %v599 = vpop.f32.mrf.mxu0
  %v600 = vadd.f32 %v581, %v599
  %601 = vdwg.mxu0
  %602 = vmatpush.bf16.msra.mxu0 %v472
  %603 = vmatpush.bf16.msra.mxu0 %v471
  %604 = vmatpush.bf16.msra.mxu0 %v470
  %605 = vmatpush.bf16.msra.mxu0 %v469
  %606 = vmatpush.bf16.msra.mxu0 %v468
  %607 = vmatpush.bf16.msra.mxu0 %v467
  %608 = vmatpush.bf16.msra.mxu0 %v466
  %609 = vmatpush.bf16.msra.mxu0 %v465
  %610 = vmatmul.bf16.gmra.mxu0 %v209
  %v611 = vpop.f32.mrf.mxu0
  %v612 = vadd.f32 %v593, %v611
  %v613 = vpop.f32.mrf.mxu0
  %v614 = vadd.f32 %v595, %v613
  %615 = vmatmul.bf16.gmra.mxu0 %v216
  %v616 = vpop.f32.mrf.mxu0
  %v617 = vadd.f32 %v598, %v616
  %v618 = vpop.f32.mrf.mxu0
  %v619 = vadd.f32 %v600, %v618
  %620 = vdwg.mxu0
  %621 = vmatpush.bf16.msra.mxu0 %v480
  %622 = vmatpush.bf16.msra.mxu0 %v479
  %623 = vmatpush.bf16.msra.mxu0 %v478
  %624 = vmatpush.bf16.msra.mxu0 %v477
  %625 = vmatpush.bf16.msra.mxu0 %v476
  %626 = vmatpush.bf16.msra.mxu0 %v475
  %627 = vmatpush.bf16.msra.mxu0 %v474
  %628 = vmatpush.bf16.msra.mxu0 %v473
  %629 = vmatmul.bf16.gmra.mxu0 %v210
  %v630 = vpop.f32.mrf.mxu0
  %v631 = vadd.f32 %v612, %v630
  %v632 = vpop.f32.mrf.mxu0
  %v633 = vadd.f32 %v614, %v632
  %634 = vmatmul.bf16.gmra.mxu0 %v217
  %v635 = vpop.f32.mrf.mxu0
  %v636 = vadd.f32 %v617, %v635
  %v637 = vpop.f32.mrf.mxu0
  %v638 = vadd.f32 %v619, %v637
  %639 = vdwg.mxu0
  %640 = vmatpush.bf16.msra.mxu0 %v488
  %641 = vmatpush.bf16.msra.mxu0 %v487
  %642 = vmatpush.bf16.msra.mxu0 %v486
  %643 = vmatpush.bf16.msra.mxu0 %v485
  %644 = vmatpush.bf16.msra.mxu0 %v484
  %645 = vmatpush.bf16.msra.mxu0 %v483
  %646 = vmatpush.bf16.msra.mxu0 %v482
  %647 = vmatpush.bf16.msra.mxu0 %v481
  %648 = vmatmul.bf16.gmra.mxu0 %v211
  %v649 = vpop.f32.mrf.mxu0
  %v650 = vadd.f32 %v631, %v649
  %v651 = vpop.f32.mrf.mxu0
  %v652 = vadd.f32 %v633, %v651
  %653 = vmatmul.bf16.gmra.mxu0 %v218
  %v654 = vpop.f32.mrf.mxu0
  %v655 = vadd.f32 %v636, %v654
  %v656 = vpop.f32.mrf.mxu0
  %v657 = vadd.f32 %v638, %v656
  %658 = vdwg.mxu0
  %659 = vmatpush.bf16.msra.mxu0 %v496
  %660 = vmatpush.bf16.msra.mxu0 %v495
  %661 = vmatpush.bf16.msra.mxu0 %v494
  %662 = vmatpush.bf16.msra.mxu0 %v493
  %663 = vmatpush.bf16.msra.mxu0 %v492
  %664 = vmatpush.bf16.msra.mxu0 %v491
  %665 = vmatpush.bf16.msra.mxu0 %v490
  %666 = vmatpush.bf16.msra.mxu0 %v489
  %667 = vmatmul.bf16.gmra.mxu0 %v212
  %v668 = vpop.f32.mrf.mxu0
  %v669 = vadd.f32 %v650, %v668
  %v670 = vpop.f32.mrf.mxu0
  %v671 = vadd.f32 %v652, %v670
  %672 = vmatmul.bf16.gmra.mxu0 %v219
  %v673 = vpop.f32.mrf.mxu0
  %v674 = vadd.f32 %v655, %v673
  %v675 = vpop.f32.mrf.mxu0
  %v676 = vadd.f32 %v657, %v675
  %677 = vdwg.mxu0
  %678 = vmatpush.bf16.msra.mxu0 0
  %679 = vmatpush.bf16.msra.mxu0 0
  %680 = vmatpush.bf16.msra.mxu0 %v502
  %681 = vmatpush.bf16.msra.mxu0 %v501
  %682 = vmatpush.bf16.msra.mxu0 %v500
  %683 = vmatpush.bf16.msra.mxu0 %v499
  %684 = vmatpush.bf16.msra.mxu0 %v498
  %685 = vmatpush.bf16.msra.mxu0 %v497
  %686 = vmatmul.bf16.gmra.mxu0 %v559
  %v687 = vpop.f32.mrf.mxu0
  %v688 = vadd.f32 %v669, %v687
  %v689 = vpop.f32.mrf.mxu0
  %v690 = vadd.f32 %v671, %v689
  %691 = vmatmul.bf16.gmra.mxu0 %v562
  %v692 = vpop.f32.mrf.mxu0
  %v693 = vadd.f32 %v674, %v692
  %v694 = vpop.f32.mrf.mxu0
  %v695 = vadd.f32 %v676, %v694
  %696 = vdwg.mxu0
  %vm697 = vcmp.ge.f32.partialorder %v688, 0.0
  %vm698 = vcmp.ge.f32.partialorder %v690, 0.0
  %vm699 = vcmp.ge.f32.partialorder %v693, 0.0
  %vm700 = vcmp.ge.f32.partialorder %v695, 0.0
  %v701 = vmul.f32 %v688, 0.01
  %v702 = vmul.f32 %v690, 0.01
  %v703 = vmul.f32 %v693, 0.01
  %v704 = vmul.f32 %v695, 0.01
  %v705 = vsel %vm697, %v688, %v701
  %v706 = vsel %vm698, %v690, %v702
  %v707 = vsel %vm699, %v693, %v703
  %v708 = vsel %vm700, %v695, %v704
  %v709 = vpack.c.bf16 %v705, %v705
  %v710 = vpack.c.bf16 %v706, %v706
  %v711 = vpack.c.bf16 %v707, %v707
  %v712 = vpack.c.bf16 %v708, %v708
  %713 = vst [vmem:[%s3] sm:$0xf] %v709
  %714 = vst [vmem:[%s3 + $0x4] sm:$0xf] %v710
  %715 = vst [vmem:[%s3 + $0x8] sm:$0xf] %v711
  %716 = vst [vmem:[%s3 + $0xc] sm:$0xf] %v712
  // Predicated region
  $region14: #{voxel_encoder_forward.14} parent=0 // pred_check
    _
  $region15: #{voxel_encoder_forward.14} parent=0 // pred_check_branch
    %718 = sbr.rel (0) target = $region17
  $region16: #{voxel_encoder_forward.14} parent=0 // pred_region
    _
  $region17: #{voxel_encoder_forward.14} parent=0 // pred_fallthru
    _
  // Predicated region
  $region18: #{voxel_encoder_forward.14} parent=0 // pred_check
    _
  $region19: #{voxel_encoder_forward.14} parent=0 // pred_check_branch
    %720 = sbr.rel (0) target = $region21
  $region20: #{voxel_encoder_forward.14} parent=0 // pred_region
    _
  $region21: #{voxel_encoder_forward.14} parent=0 // pred_fallthru
    _

// kernel: voxel_encoder_forward.15
$region0: #{voxel_encoder_forward.15}
  #allocation0 [shape = 'u32[]', space=smem, size = 0x4, offset = 0x4, fixed_abs, tag = 'smem constant byte address 0x4 - core index']
  #allocation1 [shape = 'u32[72,128]{1,0:T(1,128)}', space=vmem, size = 0x9000, scoped, tag = 'internal scratch']
  %s0 = inlined_call_operand.vmem [shape: bf16[64,864], index: 0, kind: input, shape index: {}]
  %s1 = inlined_call_operand.vmem [shape: bf16[864,16], index: 1, kind: input, shape index: {}]
  %s2 = inlined_call_operand.vmem [shape: f32[64,1], index: 2, kind: input, shape index: {}]
  %s3 = inlined_call_operand.vmem [shape: bf16[64,16], index: 3, kind: output, shape index: {}]
  %s4 = sld [smem:[#allocation0]]
  $region22: #{voxel_encoder_forward.15} parent=0
    _
  %s6 = ssub.s32 1, %s4
  %s7 = scalar_select 0, %s6, %s4
  // Predicated region
  $region2: #{voxel_encoder_forward.15} parent=0 // pred_check
    _
  $region3: #{voxel_encoder_forward.15} parent=0 // pred_check_branch
    %9 = sbr.rel (0) target = $region5
  $region4: #{voxel_encoder_forward.15} parent=0 // pred_region
    _
  $region5: #{voxel_encoder_forward.15} parent=0 // pred_fallthru
    _
  // Predicated region
  $region6: #{voxel_encoder_forward.15} parent=0 // pred_check
    _
  $region7: #{voxel_encoder_forward.15} parent=0 // pred_check_branch
    %11 = sbr.rel (0) target = $region9
  $region8: #{voxel_encoder_forward.15} parent=0 // pred_region
    _
  $region9: #{voxel_encoder_forward.15} parent=0 // pred_fallthru
    _
  // Predicated region
  $region10: #{voxel_encoder_forward.15} parent=0 // pred_check
    _
  $region11: #{voxel_encoder_forward.15} parent=0 // pred_check_branch
    %13 = sbr.rel (0) target = $region13
  $region12: #{voxel_encoder_forward.15} parent=0 // pred_region
    _
  $region13: #{voxel_encoder_forward.15} parent=0 // pred_fallthru
    _
  %v15 = vld [vmem:[%s0] sm:$0xff]
  %v16 = vld [vmem:[%s0 + $0x8] sm:$0xff]
  %v17 = vld [vmem:[%s0 + $0x10] sm:$0xff]
  %v18 = vld [vmem:[%s0 + $0x18] sm:$0xf]
  %v19 = vld [vmem:[%s0 + $0x1c] sm:$0xff]
  %v20 = vld [vmem:[%s0 + $0x24] sm:$0xff]
  %v21 = vld [vmem:[%s0 + $0x2c] sm:$0xff]
  %v22 = vld [vmem:[%s0 + $0x34] sm:$0xf]
  %v23 = vld [vmem:[%s0 + $0x38] sm:$0xff]
  %v24 = vld [vmem:[%s0 + $0x40] sm:$0xff]
  %v25 = vld [vmem:[%s0 + $0x48] sm:$0xff]
  %v26 = vld [vmem:[%s0 + $0x50] sm:$0xf]
  %v27 = vld [vmem:[%s0 + $0x54] sm:$0xff]
  %v28 = vld [vmem:[%s0 + $0x5c] sm:$0xff]
  %v29 = vld [vmem:[%s0 + $0x64] sm:$0xff]
  %v30 = vld [vmem:[%s0 + $0x6c] sm:$0xf]
  %v31 = vld [vmem:[%s0 + $0x70] sm:$0xff]
  %v32 = vld [vmem:[%s0 + $0x78] sm:$0xff]
  %v33 = vld [vmem:[%s0 + $0x80] sm:$0xff]
  %v34 = vld [vmem:[%s0 + $0x88] sm:$0xf]
  %v35 = vld [vmem:[%s0 + $0x8c] sm:$0xff]
  %v36 = vld [vmem:[%s0 + $0x94] sm:$0xff]
  %v37 = vld [vmem:[%s0 + $0x9c] sm:$0xff]
  %v38 = vld [vmem:[%s0 + $0xa4] sm:$0xf]
  %v39 = vld [vmem:[%s0 + $0xa8] sm:$0xff]
  %v40 = vld [vmem:[%s0 + $0xb0] sm:$0xff]
  %v41 = vld [vmem:[%s0 + $0xb8] sm:$0xff]
  %v42 = vld [vmem:[%s0 + $0xc0] sm:$0xf]
  %v43 = vld [vmem:[%s0 + $0xc4] sm:$0xff]
  %v44 = vld [vmem:[%s0 + $0xcc] sm:$0xff]
  %v45 = vld [vmem:[%s0 + $0xd4] sm:$0xff]
  %v46 = vld [vmem:[%s0 + $0xdc] sm:$0xf]
  %v47 = vld [vmem:[%s1] sm:$0xf]
  %v48 = vld [vmem:[%s1 + $0x4] sm:$0xf]
  %v49 = vld [vmem:[%s1 + $0x8] sm:$0xf]
  %v50 = vld [vmem:[%s1 + $0xc] sm:$0xf]
  %v51 = vld [vmem:[%s1 + $0x10] sm:$0xf]
  %v52 = vld [vmem:[%s1 + $0x14] sm:$0xf]
  %v53 = vld [vmem:[%s1 + $0x18] sm:$0xf]
  %v54 = vld [vmem:[%s1 + $0x1c] sm:$0xf]
  %v55 = vld [vmem:[%s1 + $0x20] sm:$0xf]
  %v56 = vld [vmem:[%s1 + $0x24] sm:$0xf]
  %v57 = vld [vmem:[%s1 + $0x28] sm:$0xf]
  %v58 = vld [vmem:[%s1 + $0x2c] sm:$0xf]
  %v59 = vld [vmem:[%s1 + $0x30] sm:$0xf]
  %v60 = vld [vmem:[%s1 + $0x34] sm:$0xf]
  %v61 = vld [vmem:[%s1 + $0x38] sm:$0xf]
  %v62 = vld [vmem:[%s1 + $0x3c] sm:$0xf]
  %v63 = vld [vmem:[%s1 + $0x40] sm:$0xf]
  %v64 = vld [vmem:[%s1 + $0x44] sm:$0xf]
  %v65 = vld [vmem:[%s1 + $0x48] sm:$0xf]
  %v66 = vld [vmem:[%s1 + $0x4c] sm:$0xf]
  %v67 = vld [vmem:[%s1 + $0x50] sm:$0xf]
  %v68 = vld [vmem:[%s1 + $0x54] sm:$0xf]
  %v69 = vld [vmem:[%s1 + $0x58] sm:$0xf]
  %v70 = vld [vmem:[%s1 + $0x5c] sm:$0xf]
  %v71 = vld [vmem:[%s1 + $0x60] sm:$0xf]
  %v72 = vld [vmem:[%s1 + $0x64] sm:$0xf]
  %v73 = vld [vmem:[%s1 + $0x68] sm:$0xf]
  %v74 = vld [vmem:[%s1 + $0x6c] sm:$0xf]
  %v75 = vld [vmem:[%s1 + $0x70] sm:$0xf]
  %v76 = vld [vmem:[%s1 + $0x74] sm:$0xf]
  %v77 = vld [vmem:[%s1 + $0x78] sm:$0xf]
  %v78 = vld [vmem:[%s1 + $0x7c] sm:$0xf]
  %v79 = vld [vmem:[%s1 + $0x80] sm:$0xf]
  %v80 = vld [vmem:[%s1 + $0x84] sm:$0xf]
  %v81 = vld [vmem:[%s1 + $0x88] sm:$0xf]
  %v82 = vld [vmem:[%s1 + $0x8c] sm:$0xf]
  %v83 = vld [vmem:[%s1 + $0x90] sm:$0xf]
  %v84 = vld [vmem:[%s1 + $0x94] sm:$0xf]
  %v85 = vld [vmem:[%s1 + $0x98] sm:$0xf]
  %v86 = vld [vmem:[%s1 + $0x9c] sm:$0xf]
  %v87 = vld [vmem:[%s1 + $0xa0] sm:$0xf]
  %v88 = vld [vmem:[%s1 + $0xa4] sm:$0xf]
  %v89 = vld [vmem:[%s1 + $0xa8] sm:$0xf]
  %v90 = vld [vmem:[%s1 + $0xac] sm:$0xf]
  %v91 = vld [vmem:[%s1 + $0xb0] sm:$0xf]
  %v92 = vld [vmem:[%s1 + $0xb4] sm:$0xf]
  %v93 = vld [vmem:[%s1 + $0xb8] sm:$0xf]
  %v94 = vld [vmem:[%s1 + $0xbc] sm:$0xf]
  %v95 = vld [vmem:[%s1 + $0xc0] sm:$0xf]
  %v96 = vld [vmem:[%s1 + $0xc4] sm:$0xf]
  %v97 = vld [vmem:[%s1 + $0xc8] sm:$0xf]
  %v98 = vld [vmem:[%s1 + $0xcc] sm:$0xf]
  %v99 = vld [vmem:[%s1 + $0xd0] sm:$0xf]
  %v100 = vld [vmem:[%s1 + $0xd4] sm:$0xf]
  %v101 = vld [vmem:[%s1 + $0xd8] sm:$0xf]
  %v102 = vld [vmem:[%s1 + $0xdc] sm:$0xf]
  %v103 = vld [vmem:[%s1 + $0xe0] sm:$0xf]
  %v104 = vld [vmem:[%s1 + $0xe4] sm:$0xf]
  %v105 = vld [vmem:[%s1 + $0xe8] sm:$0xf]
  %v106 = vld [vmem:[%s1 + $0xec] sm:$0xf]
  %v107 = vld [vmem:[%s1 + $0xf0] sm:$0xf]
  %v108 = vld [vmem:[%s1 + $0xf4] sm:$0xf]
  %v109 = vld [vmem:[%s1 + $0xf8] sm:$0xf]
  %v110 = vld [vmem:[%s1 + $0xfc] sm:$0xf]
  %v111 = vld [vmem:[%s1 + $0x100] sm:$0xf]
  %v112 = vld [vmem:[%s1 + $0x104] sm:$0xf]
  %v113 = vld [vmem:[%s1 + $0x108] sm:$0xf]
  %v114 = vld [vmem:[%s1 + $0x10c] sm:$0xf]
  %v115 = vld [vmem:[%s1 + $0x110] sm:$0xf]
  %v116 = vld [vmem:[%s1 + $0x114] sm:$0xf]
  %v117 = vld [vmem:[%s1 + $0x118] sm:$0xf]
  %v118 = vld [vmem:[%s1 + $0x11c] sm:$0xf]
  %v119 = vld [vmem:[%s1 + $0x120] sm:$0xf]
  %v120 = vld [vmem:[%s1 + $0x124] sm:$0xf]
  %v121 = vld [vmem:[%s1 + $0x128] sm:$0xf]
  %v122 = vld [vmem:[%s1 + $0x12c] sm:$0xf]
  %v123 = vld [vmem:[%s1 + $0x130] sm:$0xf]
  %v124 = vld [vmem:[%s1 + $0x134] sm:$0xf]
  %v125 = vld [vmem:[%s1 + $0x138] sm:$0xf]
  %v126 = vld [vmem:[%s1 + $0x13c] sm:$0xf]
  %v127 = vld [vmem:[%s1 + $0x140] sm:$0xf]
  %v128 = vld [vmem:[%s1 + $0x144] sm:$0xf]
  %v129 = vld [vmem:[%s1 + $0x148] sm:$0xf]
  %v130 = vld [vmem:[%s1 + $0x14c] sm:$0xf]
  %v131 = vld [vmem:[%s1 + $0x150] sm:$0xf]
  %v132 = vld [vmem:[%s1 + $0x154] sm:$0xf]
  %v133 = vld [vmem:[%s1 + $0x158] sm:$0xf]
  %v134 = vld [vmem:[%s1 + $0x15c] sm:$0xf]
  %v135 = vld [vmem:[%s1 + $0x160] sm:$0xf]
  %v136 = vld [vmem:[%s1 + $0x164] sm:$0xf]
  %v137 = vld [vmem:[%s1 + $0x168] sm:$0xf]
  %v138 = vld [vmem:[%s1 + $0x16c] sm:$0xf]
  %v139 = vld [vmem:[%s1 + $0x170] sm:$0xf]
  %v140 = vld [vmem:[%s1 + $0x174] sm:$0xf]
  %v141 = vld [vmem:[%s1 + $0x178] sm:$0xf]
  %v142 = vld [vmem:[%s1 + $0x17c] sm:$0xf]
  %v143 = vld [vmem:[%s1 + $0x180] sm:$0xf]
  %v144 = vld [vmem:[%s1 + $0x184] sm:$0xf]
  %v145 = vld [vmem:[%s1 + $0x188] sm:$0xf]
  %v146 = vld [vmem:[%s1 + $0x18c] sm:$0xf]
  %v147 = vld [vmem:[%s1 + $0x190] sm:$0xf]
  %v148 = vld [vmem:[%s1 + $0x194] sm:$0xf]
  %v149 = vld [vmem:[%s1 + $0x198] sm:$0xf]
  %v150 = vld [vmem:[%s1 + $0x19c] sm:$0xf]
  %v151 = vld [vmem:[%s1 + $0x1a0] sm:$0xf]
  %v152 = vld [vmem:[%s1 + $0x1a4] sm:$0xf]
  %v153 = vld [vmem:[%s1 + $0x1a8] sm:$0xf]
  %v154 = vld [vmem:[%s1 + $0x1ac] sm:$0xf]
  %v155 = vld [vmem:[%s2] sm:$0xff]
  %v156 = vld [vmem:[%s2 + $0x8] sm:$0xff]
  %v157 = vld [vmem:[%s2 + $0x10] sm:$0xff]
  %v158 = vld [vmem:[%s2 + $0x18] sm:$0xff]
  %v159 = vld [vmem:[%s2 + $0x20] sm:$0xff]
  %v160 = vld [vmem:[%s2 + $0x28] sm:$0xff]
  %v161 = vld [vmem:[%s2 + $0x30] sm:$0xff]
  %v162 = vld [vmem:[%s2 + $0x38] sm:$0xff]
  %164 = vset.pattern.permute.xlu0 0
  %165 = vperm.xlu0 %164, %v155
  %v166 = vpop.permute.xlu0 %165
  %169 = vset.pattern.permute.xlu0 0
  %170 = vperm.xlu0 %169, %v156
  %v171 = vpop.permute.xlu0 %170
  %174 = vset.pattern.permute.xlu0 0
  %175 = vperm.xlu0 %174, %v157
  %v176 = vpop.permute.xlu0 %175
  %179 = vset.pattern.permute.xlu0 0
  %180 = vperm.xlu0 %179, %v158
  %v181 = vpop.permute.xlu0 %180
  %184 = vset.pattern.permute.xlu0 0
  %185 = vperm.xlu0 %184, %v159
  %v186 = vpop.permute.xlu0 %185
  %189 = vset.pattern.permute.xlu0 0
  %190 = vperm.xlu0 %189, %v160
  %v191 = vpop.permute.xlu0 %190
  %194 = vset.pattern.permute.xlu0 0
  %195 = vperm.xlu0 %194, %v161
  %v196 = vpop.permute.xlu0 %195
  %199 = vset.pattern.permute.xlu0 0
  %200 = vperm.xlu0 %199, %v162
  %v201 = vpop.permute.xlu0 %200
  %v235 = vunpack.c.l.b16 %v15
  %v236 = vunpack.c.h.b16 %v15
  %v237 = vunpack.c.l.b16 %v16
  %v238 = vunpack.c.h.b16 %v16
  %v239 = vunpack.c.l.b16 %v17
  %v240 = vunpack.c.h.b16 %v17
  %v241 = vunpack.c.l.b16 %v18
  %v242 = vunpack.c.l.b16 %v19
  %v243 = vunpack.c.h.b16 %v19
  %v244 = vunpack.c.l.b16 %v20
  %v245 = vunpack.c.h.b16 %v20
  %v246 = vunpack.c.l.b16 %v21
  %v247 = vunpack.c.h.b16 %v21
  %v248 = vunpack.c.l.b16 %v22
  %v249 = vunpack.c.l.b16 %v23
  %v250 = vunpack.c.h.b16 %v23
  %v251 = vunpack.c.l.b16 %v24
  %v252 = vunpack.c.h.b16 %v24
  %v253 = vunpack.c.l.b16 %v25
  %v254 = vunpack.c.h.b16 %v25
  %v255 = vunpack.c.l.b16 %v26
  %v256 = vunpack.c.l.b16 %v27
  %v257 = vunpack.c.h.b16 %v27
  %v258 = vunpack.c.l.b16 %v28
  %v259 = vunpack.c.h.b16 %v28
  %v260 = vunpack.c.l.b16 %v29
  %v261 = vunpack.c.h.b16 %v29
  %v262 = vunpack.c.l.b16 %v30
  %v263 = vunpack.c.l.b16 %v31
  %v264 = vunpack.c.h.b16 %v31
  %v265 = vunpack.c.l.b16 %v32
  %v266 = vunpack.c.h.b16 %v32
  %v267 = vunpack.c.l.b16 %v33
  %v268 = vunpack.c.h.b16 %v33
  %v269 = vunpack.c.l.b16 %v34
  %v270 = vunpack.c.l.b16 %v35
  %v271 = vunpack.c.h.b16 %v35
  %v272 = vunpack.c.l.b16 %v36
  %v273 = vunpack.c.h.b16 %v36
  %v274 = vunpack.c.l.b16 %v37
  %v275 = vunpack.c.h.b16 %v37
  %v276 = vunpack.c.l.b16 %v38
  %v277 = vunpack.c.l.b16 %v39
  %v278 = vunpack.c.h.b16 %v39
  %v279 = vunpack.c.l.b16 %v40
  %v280 = vunpack.c.h.b16 %v40
  %v281 = vunpack.c.l.b16 %v41
  %v282 = vunpack.c.h.b16 %v41
  %v283 = vunpack.c.l.b16 %v42
  %v284 = vunpack.c.l.b16 %v43
  %v285 = vunpack.c.h.b16 %v43
  %v286 = vunpack.c.l.b16 %v44
  %v287 = vunpack.c.h.b16 %v44
  %v288 = vunpack.c.l.b16 %v45
  %v289 = vunpack.c.h.b16 %v45
  %v290 = vunpack.c.l.b16 %v46
  %v291 = vpack.c.b16 %v242, %v235
  %v292 = vpack.c.b16 %v243, %v236
  %v293 = vpack.c.b16 %v244, %v237
  %v294 = vpack.c.b16 %v245, %v238
  %v295 = vpack.c.b16 %v246, %v239
  %v296 = vpack.c.b16 %v247, %v240
  %v297 = vpack.c.b16 %v248, %v241
  %v298 = vpack.c.b16 %v256, %v249
  %v299 = vpack.c.b16 %v257, %v250
  %v300 = vpack.c.b16 %v258, %v251
  %v301 = vpack.c.b16 %v259, %v252
  %v302 = vpack.c.b16 %v260, %v253
  %v303 = vpack.c.b16 %v261, %v254
  %v304 = vpack.c.b16 %v262, %v255
  %v305 = vpack.c.b16 %v270, %v263
  %v306 = vpack.c.b16 %v271, %v264
  %v307 = vpack.c.b16 %v272, %v265
  %v308 = vpack.c.b16 %v273, %v266
  %v309 = vpack.c.b16 %v274, %v267
  %v310 = vpack.c.b16 %v275, %v268
  %v311 = vpack.c.b16 %v276, %v269
  %v312 = vpack.c.b16 %v284, %v277
  %v313 = vpack.c.b16 %v285, %v278
  %v314 = vpack.c.b16 %v286, %v279
  %v315 = vpack.c.b16 %v287, %v280
  %v316 = vpack.c.b16 %v288, %v281
  %v317 = vpack.c.b16 %v289, %v282
  %v318 = vpack.c.b16 %v290, %v283
  %v451 = vunpack.c.l.b16 %v47
  %v452 = vunpack.c.l.b16 %v48
  %v453 = vunpack.c.l.b16 %v49
  %v454 = vunpack.c.l.b16 %v50
  %v455 = vunpack.c.l.b16 %v51
  %v456 = vunpack.c.l.b16 %v52
  %v457 = vunpack.c.l.b16 %v53
  %v458 = vunpack.c.l.b16 %v54
  %v459 = vunpack.c.l.b16 %v55
  %v460 = vunpack.c.l.b16 %v56
  %v461 = vunpack.c.l.b16 %v57
  %v462 = vunpack.c.l.b16 %v58
  %v463 = vunpack.c.l.b16 %v59
  %v464 = vunpack.c.l.b16 %v60
  %v465 = vunpack.c.l.b16 %v61
  %v466 = vunpack.c.l.b16 %v62
  %v467 = vunpack.c.l.b16 %v63
  %v468 = vunpack.c.l.b16 %v64
  %v469 = vunpack.c.l.b16 %v65
  %v470 = vunpack.c.l.b16 %v66
  %v471 = vunpack.c.l.b16 %v67
  %v472 = vunpack.c.l.b16 %v68
  %v473 = vunpack.c.l.b16 %v69
  %v474 = vunpack.c.l.b16 %v70
  %v475 = vunpack.c.l.b16 %v71
  %v476 = vunpack.c.l.b16 %v72
  %v477 = vunpack.c.l.b16 %v73
  %v478 = vunpack.c.l.b16 %v74
  %v479 = vunpack.c.l.b16 %v75
  %v480 = vunpack.c.l.b16 %v76
  %v481 = vunpack.c.l.b16 %v77
  %v482 = vunpack.c.l.b16 %v78
  %v483 = vunpack.c.l.b16 %v79
  %v484 = vunpack.c.l.b16 %v80
  %v485 = vunpack.c.l.b16 %v81
  %v486 = vunpack.c.l.b16 %v82
  %v487 = vunpack.c.l.b16 %v83
  %v488 = vunpack.c.l.b16 %v84
  %v489 = vunpack.c.l.b16 %v85
  %v490 = vunpack.c.l.b16 %v86
  %v491 = vunpack.c.l.b16 %v87
  %v492 = vunpack.c.l.b16 %v88
  %v493 = vunpack.c.l.b16 %v89
  %v494 = vunpack.c.l.b16 %v90
  %v495 = vunpack.c.l.b16 %v91
  %v496 = vunpack.c.l.b16 %v92
  %v497 = vunpack.c.l.b16 %v93
  %v498 = vunpack.c.l.b16 %v94
  %v499 = vunpack.c.l.b16 %v95
  %v500 = vunpack.c.l.b16 %v96
  %v501 = vunpack.c.l.b16 %v97
  %v502 = vunpack.c.l.b16 %v98
  %v503 = vunpack.c.l.b16 %v99
  %v504 = vunpack.c.l.b16 %v100
  %v505 = vunpack.c.l.b16 %v101
  %v506 = vunpack.c.l.b16 %v102
  %v507 = vunpack.c.l.b16 %v103
  %v508 = vunpack.c.l.b16 %v104
  %v509 = vunpack.c.l.b16 %v105
  %v510 = vunpack.c.l.b16 %v106
  %v511 = vunpack.c.l.b16 %v107
  %v512 = vunpack.c.l.b16 %v108
  %v513 = vunpack.c.l.b16 %v109
  %v514 = vunpack.c.l.b16 %v110
  %v515 = vunpack.c.l.b16 %v111
  %v516 = vunpack.c.l.b16 %v112
  %v517 = vunpack.c.l.b16 %v113
  %v518 = vunpack.c.l.b16 %v114
  %v519 = vunpack.c.l.b16 %v115
  %v520 = vunpack.c.l.b16 %v116
  %v521 = vunpack.c.l.b16 %v117
  %v522 = vunpack.c.l.b16 %v118
  %v523 = vunpack.c.l.b16 %v119
  %v524 = vunpack.c.l.b16 %v120
  %v525 = vunpack.c.l.b16 %v121
  %v526 = vunpack.c.l.b16 %v122
  %v527 = vunpack.c.l.b16 %v123
  %v528 = vunpack.c.l.b16 %v124
  %v529 = vunpack.c.l.b16 %v125
  %v530 = vunpack.c.l.b16 %v126
  %v531 = vunpack.c.l.b16 %v127
  %v532 = vunpack.c.l.b16 %v128
  %v533 = vunpack.c.l.b16 %v129
  %v534 = vunpack.c.l.b16 %v130
  %v535 = vunpack.c.l.b16 %v131
  %v536 = vunpack.c.l.b16 %v132
  %v537 = vunpack.c.l.b16 %v133
  %v538 = vunpack.c.l.b16 %v134
  %v539 = vunpack.c.l.b16 %v135
  %v540 = vunpack.c.l.b16 %v136
  %v541 = vunpack.c.l.b16 %v137
  %v542 = vunpack.c.l.b16 %v138
  %v543 = vunpack.c.l.b16 %v139
  %v544 = vunpack.c.l.b16 %v140
  %v545 = vunpack.c.l.b16 %v141
  %v546 = vunpack.c.l.b16 %v142
  %v547 = vunpack.c.l.b16 %v143
  %v548 = vunpack.c.l.b16 %v144
  %v549 = vunpack.c.l.b16 %v145
  %v550 = vunpack.c.l.b16 %v146
  %v551 = vunpack.c.l.b16 %v147
  %v552 = vunpack.c.l.b16 %v148
  %v553 = vunpack.c.l.b16 %v149
  %v554 = vunpack.c.l.b16 %v150
  %v555 = vunpack.c.l.b16 %v151
  %v556 = vunpack.c.l.b16 %v152
  %v557 = vunpack.c.l.b16 %v153
  %v558 = vunpack.c.l.b16 %v154
  %v559 = vpack.c.b16 %v452, %v451
  %v560 = vpack.c.b16 %v454, %v453
  %v561 = vpack.c.b16 %v456, %v455
  %v562 = vpack.c.b16 %v458, %v457
  %v563 = vpack.c.b16 %v460, %v459
  %v564 = vpack.c.b16 %v462, %v461
  %v565 = vpack.c.b16 %v464, %v463
  %v566 = vpack.c.b16 %v466, %v465
  %v567 = vpack.c.b16 %v468, %v467
  %v568 = vpack.c.b16 %v470, %v469
  %v569 = vpack.c.b16 %v472, %v471
  %v570 = vpack.c.b16 %v474, %v473
  %v571 = vpack.c.b16 %v476, %v475
  %v572 = vpack.c.b16 %v478, %v477
  %v573 = vpack.c.b16 %v480, %v479
  %v574 = vpack.c.b16 %v482, %v481
  %v575 = vpack.c.b16 %v484, %v483
  %v576 = vpack.c.b16 %v486, %v485
  %v577 = vpack.c.b16 %v488, %v487
  %v578 = vpack.c.b16 %v490, %v489
  %v579 = vpack.c.b16 %v492, %v491
  %v580 = vpack.c.b16 %v494, %v493
  %v581 = vpack.c.b16 %v496, %v495
  %v582 = vpack.c.b16 %v498, %v497
  %v583 = vpack.c.b16 %v500, %v499
  %v584 = vpack.c.b16 %v502, %v501
  %v585 = vpack.c.b16 %v504, %v503
  %v586 = vpack.c.b16 %v506, %v505
  %v587 = vpack.c.b16 %v508, %v507
  %v588 = vpack.c.b16 %v510, %v509
  %v589 = vpack.c.b16 %v512, %v511
  %v590 = vpack.c.b16 %v514, %v513
  %v591 = vpack.c.b16 %v516, %v515
  %v592 = vpack.c.b16 %v518, %v517
  %v593 = vpack.c.b16 %v520, %v519
  %v594 = vpack.c.b16 %v522, %v521
  %v595 = vpack.c.b16 %v524, %v523
  %v596 = vpack.c.b16 %v526, %v525
  %v597 = vpack.c.b16 %v528, %v527
  %v598 = vpack.c.b16 %v530, %v529
  %v599 = vpack.c.b16 %v532, %v531
  %v600 = vpack.c.b16 %v534, %v533
  %v601 = vpack.c.b16 %v536, %v535
  %v602 = vpack.c.b16 %v538, %v537
  %v603 = vpack.c.b16 %v540, %v539
  %v604 = vpack.c.b16 %v542, %v541
  %v605 = vpack.c.b16 %v544, %v543
  %v606 = vpack.c.b16 %v546, %v545
  %v607 = vpack.c.b16 %v548, %v547
  %v608 = vpack.c.b16 %v550, %v549
  %v609 = vpack.c.b16 %v552, %v551
  %v610 = vpack.c.b16 %v554, %v553
  %v611 = vpack.c.b16 %v556, %v555
  %v612 = vpack.c.b16 %v558, %v557
  %vm667 = vcmask 785408
  %v669 = vsel %vm667, %v297, 0
  %v672 = vsel %vm667, %v304, 0
  %v675 = vsel %vm667, %v311, 0
  %v678 = vsel %vm667, %v318, 0
  %680 = vmatpush.bf16.msra.mxu0 %v566
  %681 = vmatpush.bf16.msra.mxu0 %v565
  %682 = vmatpush.bf16.msra.mxu0 %v564
  %683 = vmatpush.bf16.msra.mxu0 %v563
  %684 = vmatpush.bf16.msra.mxu0 %v562
  %685 = vmatpush.bf16.msra.mxu0 %v561
  %686 = vmatpush.bf16.msra.mxu0 %v560
  %687 = vmatpush.bf16.msra.mxu0 %v559
  %688 = vmatmul.bf16.gmra.mxu0 %v291
  %v689 = vpop.f32.mrf.mxu0
  %v690 = vadd.f32 %v166, %v689
  %v691 = vpop.f32.mrf.mxu0
  %v692 = vadd.f32 %v171, %v691
  %693 = vmatmul.bf16.gmra.mxu0 %v298
  %v694 = vpop.f32.mrf.mxu0
  %v695 = vadd.f32 %v176, %v694
  %v696 = vpop.f32.mrf.mxu0
  %v697 = vadd.f32 %v181, %v696
  %698 = vmatmul.bf16.gmra.mxu0 %v305
  %v699 = vpop.f32.mrf.mxu0
  %v700 = vadd.f32 %v186, %v699
  %v701 = vpop.f32.mrf.mxu0
  %v702 = vadd.f32 %v191, %v701
  %703 = vmatmul.bf16.gmra.mxu0 %v312
  %v704 = vpop.f32.mrf.mxu0
  %v705 = vadd.f32 %v196, %v704
  %v706 = vpop.f32.mrf.mxu0
  %v707 = vadd.f32 %v201, %v706
  %708 = vdwg.mxu0
  %709 = vmatpush.bf16.msra.mxu0 %v574
  %710 = vmatpush.bf16.msra.mxu0 %v573
  %711 = vmatpush.bf16.msra.mxu0 %v572
  %712 = vmatpush.bf16.msra.mxu0 %v571
  %713 = vmatpush.bf16.msra.mxu0 %v570
  %714 = vmatpush.bf16.msra.mxu0 %v569
  %715 = vmatpush.bf16.msra.mxu0 %v568
  %716 = vmatpush.bf16.msra.mxu0 %v567
  %717 = vmatmul.bf16.gmra.mxu0 %v292
  %v718 = vpop.f32.mrf.mxu0
  %v719 = vadd.f32 %v690, %v718
  %v720 = vpop.f32.mrf.mxu0
  %v721 = vadd.f32 %v692, %v720
  %722 = vmatmul.bf16.gmra.mxu0 %v299
  %v723 = vpop.f32.mrf.mxu0
  %v724 = vadd.f32 %v695, %v723
  %v725 = vpop.f32.mrf.mxu0
  %v726 = vadd.f32 %v697, %v725
  %727 = vmatmul.bf16.gmra.mxu0 %v306
  %v728 = vpop.f32.mrf.mxu0
  %v729 = vadd.f32 %v700, %v728
  %v730 = vpop.f32.mrf.mxu0
  %v731 = vadd.f32 %v702, %v730
  %732 = vmatmul.bf16.gmra.mxu0 %v313
  %v733 = vpop.f32.mrf.mxu0
  %v734 = vadd.f32 %v705, %v733
  %v735 = vpop.f32.mrf.mxu0
  %v736 = vadd.f32 %v707, %v735
  %737 = vdwg.mxu0
  %738 = vmatpush.bf16.msra.mxu0 %v582
  %739 = vmatpush.bf16.msra.mxu0 %v581
  %740 = vmatpush.bf16.msra.mxu0 %v580
  %741 = vmatpush.bf16.msra.mxu0 %v579
  %742 = vmatpush.bf16.msra.mxu0 %v578
  %743 = vmatpush.bf16.msra.mxu0 %v577
  %744 = vmatpush.bf16.msra.mxu0 %v576
  %745 = vmatpush.bf16.msra.mxu0 %v575
  %746 = vmatmul.bf16.gmra.mxu0 %v293
  %v747 = vpop.f32.mrf.mxu0
  %v748 = vadd.f32 %v719, %v747
  %v749 = vpop.f32.mrf.mxu0
  %v750 = vadd.f32 %v721, %v749
  %751 = vmatmul.bf16.gmra.mxu0 %v300
  %v752 = vpop.f32.mrf.mxu0
  %v753 = vadd.f32 %v724, %v752
  %v754 = vpop.f32.mrf.mxu0
  %v755 = vadd.f32 %v726, %v754
  %756 = vmatmul.bf16.gmra.mxu0 %v307
  %v757 = vpop.f32.mrf.mxu0
  %v758 = vadd.f32 %v729, %v757
  %v759 = vpop.f32.mrf.mxu0
  %v760 = vadd.f32 %v731, %v759
  %761 = vmatmul.bf16.gmra.mxu0 %v314
  %v762 = vpop.f32.mrf.mxu0
  %v763 = vadd.f32 %v734, %v762
  %v764 = vpop.f32.mrf.mxu0
  %v765 = vadd.f32 %v736, %v764
  %766 = vdwg.mxu0
  %767 = vmatpush.bf16.msra.mxu0 %v590
  %768 = vmatpush.bf16.msra.mxu0 %v589
  %769 = vmatpush.bf16.msra.mxu0 %v588
  %770 = vmatpush.bf16.msra.mxu0 %v587
  %771 = vmatpush.bf16.msra.mxu0 %v586
  %772 = vmatpush.bf16.msra.mxu0 %v585
  %773 = vmatpush.bf16.msra.mxu0 %v584
  %774 = vmatpush.bf16.msra.mxu0 %v583
  %775 = vmatmul.bf16.gmra.mxu0 %v294
  %v776 = vpop.f32.mrf.mxu0
  %v777 = vadd.f32 %v748, %v776
  %v778 = vpop.f32.mrf.mxu0
  %v779 = vadd.f32 %v750, %v778
  %780 = vmatmul.bf16.gmra.mxu0 %v301
  %v781 = vpop.f32.mrf.mxu0
  %v782 = vadd.f32 %v753, %v781
  %v783 = vpop.f32.mrf.mxu0
  %v784 = vadd.f32 %v755, %v783
  %785 = vmatmul.bf16.gmra.mxu0 %v308
  %v786 = vpop.f32.mrf.mxu0
  %v787 = vadd.f32 %v758, %v786
  %v788 = vpop.f32.mrf.mxu0
  %v789 = vadd.f32 %v760, %v788
  %790 = vmatmul.bf16.gmra.mxu0 %v315
  %v791 = vpop.f32.mrf.mxu0
  %v792 = vadd.f32 %v763, %v791
  %v793 = vpop.f32.mrf.mxu0
  %v794 = vadd.f32 %v765, %v793
  %795 = vdwg.mxu0
  %796 = vmatpush.bf16.msra.mxu0 %v598
  %797 = vmatpush.bf16.msra.mxu0 %v597
  %798 = vmatpush.bf16.msra.mxu0 %v596
  %799 = vmatpush.bf16.msra.mxu0 %v595
  %800 = vmatpush.bf16.msra.mxu0 %v594
  %801 = vmatpush.bf16.msra.mxu0 %v593
  %802 = vmatpush.bf16.msra.mxu0 %v592
  %803 = vmatpush.bf16.msra.mxu0 %v591
  %804 = vmatmul.bf16.gmra.mxu0 %v295
  %v805 = vpop.f32.mrf.mxu0
  %v806 = vadd.f32 %v777, %v805
  %v807 = vpop.f32.mrf.mxu0
  %v808 = vadd.f32 %v779, %v807
  %809 = vmatmul.bf16.gmra.mxu0 %v302
  %v810 = vpop.f32.mrf.mxu0
  %v811 = vadd.f32 %v782, %v810
  %v812 = vpop.f32.mrf.mxu0
  %v813 = vadd.f32 %v784, %v812
  %814 = vmatmul.bf16.gmra.mxu0 %v309
  %v815 = vpop.f32.mrf.mxu0
  %v816 = vadd.f32 %v787, %v815
  %v817 = vpop.f32.mrf.mxu0
  %v818 = vadd.f32 %v789, %v817
  %819 = vmatmul.bf16.gmra.mxu0 %v316
  %v820 = vpop.f32.mrf.mxu0
  %v821 = vadd.f32 %v792, %v820
  %v822 = vpop.f32.mrf.mxu0
  %v823 = vadd.f32 %v794, %v822
  %824 = vdwg.mxu0
  %825 = vmatpush.bf16.msra.mxu0 %v606
  %826 = vmatpush.bf16.msra.mxu0 %v605
  %827 = vmatpush.bf16.msra.mxu0 %v604
  %828 = vmatpush.bf16.msra.mxu0 %v603
  %829 = vmatpush.bf16.msra.mxu0 %v602
  %830 = vmatpush.bf16.msra.mxu0 %v601
  %831 = vmatpush.bf16.msra.mxu0 %v600
  %832 = vmatpush.bf16.msra.mxu0 %v599
  %833 = vmatmul.bf16.gmra.mxu0 %v296
  %v834 = vpop.f32.mrf.mxu0
  %v835 = vadd.f32 %v806, %v834
  %v836 = vpop.f32.mrf.mxu0
  %v837 = vadd.f32 %v808, %v836
  %838 = vmatmul.bf16.gmra.mxu0 %v303
  %v839 = vpop.f32.mrf.mxu0
  %v840 = vadd.f32 %v811, %v839
  %v841 = vpop.f32.mrf.mxu0
  %v842 = vadd.f32 %v813, %v841
  %843 = vmatmul.bf16.gmra.mxu0 %v310
  %v844 = vpop.f32.mrf.mxu0
  %v845 = vadd.f32 %v816, %v844
  %v846 = vpop.f32.mrf.mxu0
  %v847 = vadd.f32 %v818, %v846
  %848 = vmatmul.bf16.gmra.mxu0 %v317
  %v849 = vpop.f32.mrf.mxu0
  %v850 = vadd.f32 %v821, %v849
  %v851 = vpop.f32.mrf.mxu0
  %v852 = vadd.f32 %v823, %v851
  %853 = vdwg.mxu0
  %854 = vmatpush.bf16.msra.mxu0 0
  %855 = vmatpush.bf16.msra.mxu0 0
  %856 = vmatpush.bf16.msra.mxu0 %v612
  %857 = vmatpush.bf16.msra.mxu0 %v611
  %858 = vmatpush.bf16.msra.mxu0 %v610
  %859 = vmatpush.bf16.msra.mxu0 %v609
  %860 = vmatpush.bf16.msra.mxu0 %v608
  %861 = vmatpush.bf16.msra.mxu0 %v607
  %862 = vmatmul.bf16.gmra.mxu0 %v669
  %v863 = vpop.f32.mrf.mxu0
  %v864 = vadd.f32 %v835, %v863
  %v865 = vpop.f32.mrf.mxu0
  %v866 = vadd.f32 %v837, %v865
  %867 = vmatmul.bf16.gmra.mxu0 %v672
  %v868 = vpop.f32.mrf.mxu0
  %v869 = vadd.f32 %v840, %v868
  %v870 = vpop.f32.mrf.mxu0
  %v871 = vadd.f32 %v842, %v870
  %872 = vmatmul.bf16.gmra.mxu0 %v675
  %v873 = vpop.f32.mrf.mxu0
  %v874 = vadd.f32 %v845, %v873
  %v875 = vpop.f32.mrf.mxu0
  %v876 = vadd.f32 %v847, %v875
  %877 = vmatmul.bf16.gmra.mxu0 %v678
  %v878 = vpop.f32.mrf.mxu0
  %v879 = vadd.f32 %v850, %v878
  %v880 = vpop.f32.mrf.mxu0
  %v881 = vadd.f32 %v852, %v880
  %882 = vdwg.mxu0
  %vm883 = vcmp.ge.f32.partialorder %v864, 0.0
  %vm884 = vcmp.ge.f32.partialorder %v866, 0.0
  %vm885 = vcmp.ge.f32.partialorder %v869, 0.0
  %vm886 = vcmp.ge.f32.partialorder %v871, 0.0
  %vm887 = vcmp.ge.f32.partialorder %v874, 0.0
  %vm888 = vcmp.ge.f32.partialorder %v876, 0.0
  %vm889 = vcmp.ge.f32.partialorder %v879, 0.0
  %vm890 = vcmp.ge.f32.partialorder %v881, 0.0
  %v891 = vmul.f32 %v864, 0.01
  %v892 = vmul.f32 %v866, 0.01
  %v893 = vmul.f32 %v869, 0.01
  %v894 = vmul.f32 %v871, 0.01
  %v895 = vmul.f32 %v874, 0.01
  %v896 = vmul.f32 %v876, 0.01
  %v897 = vmul.f32 %v879, 0.01
  %v898 = vmul.f32 %v881, 0.01
  %v899 = vsel %vm883, %v864, %v891
  %v900 = vsel %vm884, %v866, %v892
  %v901 = vsel %vm885, %v869, %v893
  %v902 = vsel %vm886, %v871, %v894
  %v903 = vsel %vm887, %v874, %v895
  %v904 = vsel %vm888, %v876, %v896
  %v905 = vsel %vm889, %v879, %v897
  %v906 = vsel %vm890, %v881, %v898
  %v907 = vpack.c.bf16 %v899, %v899
  %v908 = vpack.c.bf16 %v900, %v900
  %v909 = vpack.c.bf16 %v901, %v901
  %v910 = vpack.c.bf16 %v902, %v902
  %v911 = vpack.c.bf16 %v903, %v903
  %v912 = vpack.c.bf16 %v904, %v904
  %v913 = vpack.c.bf16 %v905, %v905
  %v914 = vpack.c.bf16 %v906, %v906
  %vm915 = vcmask 125952
  %916 = vst.msk [vmem:[%s3] sm:$0xf] %vm915, %v907
  %917 = vst.msk [vmem:[%s3 + $0x4] sm:$0xf] %vm915, %v908
  %918 = vst.msk [vmem:[%s3 + $0x8] sm:$0xf] %vm915, %v909
  %919 = vst.msk [vmem:[%s3 + $0xc] sm:$0xf] %vm915, %v910
  %920 = vst.msk [vmem:[%s3 + $0x10] sm:$0xf] %vm915, %v911
  %921 = vst.msk [vmem:[%s3 + $0x14] sm:$0xf] %vm915, %v912
  %922 = vst.msk [vmem:[%s3 + $0x18] sm:$0xf] %vm915, %v913
  %923 = vst.msk [vmem:[%s3 + $0x1c] sm:$0xf] %vm915, %v914
  // Predicated region
  $region14: #{voxel_encoder_forward.15} parent=0 // pred_check
    _
  $region15: #{voxel_encoder_forward.15} parent=0 // pred_check_branch
    %925 = sbr.rel (0) target = $region17
  $region16: #{voxel_encoder_forward.15} parent=0 // pred_region
    _
  $region17: #{voxel_encoder_forward.15} parent=0 // pred_fallthru
    _
  // Predicated region
  $region18: #{voxel_encoder_forward.15} parent=0 // pred_check
    _
  $region19: #{voxel_encoder_forward.15} parent=0 // pred_check_branch
    %927 = sbr.rel (0) target = $region21
  $region20: #{voxel_encoder_forward.15} parent=0 // pred_region
    _
  $region21: #{voxel_encoder_forward.15} parent=0 // pred_fallthru
    _

// kernel: voxel_encoder_forward.16
$region0: #{voxel_encoder_forward.16}
  #allocation0 [shape = 'u32[]', space=smem, size = 0x4, offset = 0x4, fixed_abs, tag = 'smem constant byte address 0x4 - core index']
  #allocation1 [shape = 'u32[72,128]{1,0:T(1,128)}', space=vmem, size = 0x9000, scoped, tag = 'internal scratch']
  %s0 = inlined_call_operand.vmem [shape: bf16[64,1728], index: 0, kind: input, shape index: {}]
  %s1 = inlined_call_operand.vmem [shape: bf16[1728,16], index: 1, kind: input, shape index: {}]
  %s2 = inlined_call_operand.vmem [shape: f32[64,1], index: 2, kind: input, shape index: {}]
  %s3 = inlined_call_operand.vmem [shape: bf16[64,16], index: 3, kind: output, shape index: {}]
  %s4 = sld [smem:[#allocation0]]
  $region22: #{voxel_encoder_forward.16} parent=0
    _
  %s6 = ssub.s32 1, %s4
  %s7 = scalar_select 0, %s6, %s4
  // Predicated region
  $region2: #{voxel_encoder_forward.16} parent=0 // pred_check
    _
  $region3: #{voxel_encoder_forward.16} parent=0 // pred_check_branch
    %9 = sbr.rel (0) target = $region5
  $region4: #{voxel_encoder_forward.16} parent=0 // pred_region
    _
  $region5: #{voxel_encoder_forward.16} parent=0 // pred_fallthru
    _
  // Predicated region
  $region6: #{voxel_encoder_forward.16} parent=0 // pred_check
    _
  $region7: #{voxel_encoder_forward.16} parent=0 // pred_check_branch
    %11 = sbr.rel (0) target = $region9
  $region8: #{voxel_encoder_forward.16} parent=0 // pred_region
    _
  $region9: #{voxel_encoder_forward.16} parent=0 // pred_fallthru
    _
  // Predicated region
  $region10: #{voxel_encoder_forward.16} parent=0 // pred_check
    _
  $region11: #{voxel_encoder_forward.16} parent=0 // pred_check_branch
    %13 = sbr.rel (0) target = $region13
  $region12: #{voxel_encoder_forward.16} parent=0 // pred_region
    _
  $region13: #{voxel_encoder_forward.16} parent=0 // pred_fallthru
    _
  %v15 = vld [vmem:[%s0] sm:$0xff]
  %v16 = vld [vmem:[%s0 + $0x8] sm:$0xff]
  %v17 = vld [vmem:[%s0 + $0x10] sm:$0xff]
  %v18 = vld [vmem:[%s0 + $0x18] sm:$0xff]
  %v19 = vld [vmem:[%s0 + $0x20] sm:$0xff]
  %v20 = vld [vmem:[%s0 + $0x28] sm:$0xff]
  %v21 = vld [vmem:[%s0 + $0x30] sm:$0xff]
  %v22 = vld [vmem:[%s0 + $0x38] sm:$0xff]
  %v23 = vld [vmem:[%s0 + $0x40] sm:$0xff]
  %v24 = vld [vmem:[%s0 + $0x48] sm:$0xff]
  %v25 = vld [vmem:[%s0 + $0x50] sm:$0xff]
  %v26 = vld [vmem:[%s0 + $0x58] sm:$0xff]
  %v27 = vld [vmem:[%s0 + $0x60] sm:$0xff]
  %v28 = vld [vmem:[%s0 + $0x68] sm:$0xff]
  %v29 = vld [vmem:[%s0 + $0x70] sm:$0xff]
  %v30 = vld [vmem:[%s0 + $0x78] sm:$0xff]
  %v31 = vld [vmem:[%s0 + $0x80] sm:$0xff]
  %v32 = vld [vmem:[%s0 + $0x88] sm:$0xff]
  %v33 = vld [vmem:[%s0 + $0x90] sm:$0xff]
  %v34 = vld [vmem:[%s0 + $0x98] sm:$0xff]
  %v35 = vld [vmem:[%s0 + $0xa0] sm:$0xff]
  %v36 = vld [vmem:[%s0 + $0xa8] sm:$0xff]
  %v37 = vld [vmem:[%s0 + $0xb0] sm:$0xff]
  %v38 = vld [vmem:[%s0 + $0xb8] sm:$0xff]
  %v39 = vld [vmem:[%s0 + $0xc0] sm:$0xff]
  %v40 = vld [vmem:[%s0 + $0xc8] sm:$0xff]
  %v41 = vld [vmem:[%s0 + $0xd0] sm:$0xff]
  %v42 = vld [vmem:[%s0 + $0xd8] sm:$0xff]
  %v43 = vld [vmem:[%s0 + $0xe0] sm:$0xff]
  %v44 = vld [vmem:[%s0 + $0xe8] sm:$0xff]
  %v45 = vld [vmem:[%s0 + $0xf0] sm:$0xff]
  %v46 = vld [vmem:[%s0 + $0xf8] sm:$0xff]
  %v47 = vld [vmem:[%s0 + $0x100] sm:$0xff]
  %v48 = vld [vmem:[%s0 + $0x108] sm:$0xff]
  %v49 = vld [vmem:[%s0 + $0x110] sm:$0xff]
  %v50 = vld [vmem:[%s0 + $0x118] sm:$0xff]
  %v51 = vld [vmem:[%s0 + $0x120] sm:$0xff]
  %v52 = vld [vmem:[%s0 + $0x128] sm:$0xff]
  %v53 = vld [vmem:[%s0 + $0x130] sm:$0xff]
  %v54 = vld [vmem:[%s0 + $0x138] sm:$0xff]
  %v55 = vld [vmem:[%s0 + $0x140] sm:$0xff]
  %v56 = vld [vmem:[%s0 + $0x148] sm:$0xff]
  %v57 = vld [vmem:[%s0 + $0x150] sm:$0xff]
  %v58 = vld [vmem:[%s0 + $0x158] sm:$0xff]
  %v59 = vld [vmem:[%s0 + $0x160] sm:$0xff]
  %v60 = vld [vmem:[%s0 + $0x168] sm:$0xff]
  %v61 = vld [vmem:[%s0 + $0x170] sm:$0xff]
  %v62 = vld [vmem:[%s0 + $0x178] sm:$0xff]
  %v63 = vld [vmem:[%s0 + $0x180] sm:$0xff]
  %v64 = vld [vmem:[%s0 + $0x188] sm:$0xff]
  %v65 = vld [vmem:[%s0 + $0x190] sm:$0xff]
  %v66 = vld [vmem:[%s0 + $0x198] sm:$0xff]
  %v67 = vld [vmem:[%s0 + $0x1a0] sm:$0xff]
  %v68 = vld [vmem:[%s0 + $0x1a8] sm:$0xff]
  %v69 = vld [vmem:[%s0 + $0x1b0] sm:$0xff]
  %v70 = vld [vmem:[%s0 + $0x1b8] sm:$0xff]
  %v71 = vld [vmem:[%s1] sm:$0xf]
  %v72 = vld [vmem:[%s1 + $0x4] sm:$0xf]
  %v73 = vld [vmem:[%s1 + $0x8] sm:$0xf]
  %v74 = vld [vmem:[%s1 + $0xc] sm:$0xf]
  %v75 = vld [vmem:[%s1 + $0x10] sm:$0xf]
  %v76 = vld [vmem:[%s1 + $0x14] sm:$0xf]
  %v77 = vld [vmem:[%s1 + $0x18] sm:$0xf]
  %v78 = vld [vmem:[%s1 + $0x1c] sm:$0xf]
  %v79 = vld [vmem:[%s1 + $0x20] sm:$0xf]
  %v80 = vld [vmem:[%s1 + $0x24] sm:$0xf]
  %v81 = vld [vmem:[%s1 + $0x28] sm:$0xf]
  %v82 = vld [vmem:[%s1 + $0x2c] sm:$0xf]
  %v83 = vld [vmem:[%s1 + $0x30] sm:$0xf]
  %v84 = vld [vmem:[%s1 + $0x34] sm:$0xf]
  %v85 = vld [vmem:[%s1 + $0x38] sm:$0xf]
  %v86 = vld [vmem:[%s1 + $0x3c] sm:$0xf]
  %v87 = vld [vmem:[%s1 + $0x40] sm:$0xf]
  %v88 = vld [vmem:[%s1 + $0x44] sm:$0xf]
  %v89 = vld [vmem:[%s1 + $0x48] sm:$0xf]
  %v90 = vld [vmem:[%s1 + $0x4c] sm:$0xf]
  %v91 = vld [vmem:[%s1 + $0x50] sm:$0xf]
  %v92 = vld [vmem:[%s1 + $0x54] sm:$0xf]
  %v93 = vld [vmem:[%s1 + $0x58] sm:$0xf]
  %v94 = vld [vmem:[%s1 + $0x5c] sm:$0xf]
  %v95 = vld [vmem:[%s1 + $0x60] sm:$0xf]
  %v96 = vld [vmem:[%s1 + $0x64] sm:$0xf]
  %v97 = vld [vmem:[%s1 + $0x68] sm:$0xf]
  %v98 = vld [vmem:[%s1 + $0x6c] sm:$0xf]
  %v99 = vld [vmem:[%s1 + $0x70] sm:$0xf]
  %v100 = vld [vmem:[%s1 + $0x74] sm:$0xf]
  %v101 = vld [vmem:[%s1 + $0x78] sm:$0xf]
  %v102 = vld [vmem:[%s1 + $0x7c] sm:$0xf]
  %v103 = vld [vmem:[%s1 + $0x80] sm:$0xf]
  %v104 = vld [vmem:[%s1 + $0x84] sm:$0xf]
  %v105 = vld [vmem:[%s1 + $0x88] sm:$0xf]
  %v106 = vld [vmem:[%s1 + $0x8c] sm:$0xf]
  %v107 = vld [vmem:[%s1 + $0x90] sm:$0xf]
  %v108 = vld [vmem:[%s1 + $0x94] sm:$0xf]
  %v109 = vld [vmem:[%s1 + $0x98] sm:$0xf]
  %v110 = vld [vmem:[%s1 + $0x9c] sm:$0xf]
  %v111 = vld [vmem:[%s1 + $0xa0] sm:$0xf]
  %v112 = vld [vmem:[%s1 + $0xa4] sm:$0xf]
  %v113 = vld [vmem:[%s1 + $0xa8] sm:$0xf]
  %v114 = vld [vmem:[%s1 + $0xac] sm:$0xf]
  %v115 = vld [vmem:[%s1 + $0xb0] sm:$0xf]
  %v116 = vld [vmem:[%s1 + $0xb4] sm:$0xf]
  %v117 = vld [vmem:[%s1 + $0xb8] sm:$0xf]
  %v118 = vld [vmem:[%s1 + $0xbc] sm:$0xf]
  %v119 = vld [vmem:[%s1 + $0xc0] sm:$0xf]
  %v120 = vld [vmem:[%s1 + $0xc4] sm:$0xf]
  %v121 = vld [vmem:[%s1 + $0xc8] sm:$0xf]
  %v122 = vld [vmem:[%s1 + $0xcc] sm:$0xf]
  %v123 = vld [vmem:[%s1 + $0xd0] sm:$0xf]
  %v124 = vld [vmem:[%s1 + $0xd4] sm:$0xf]
  %v125 = vld [vmem:[%s1 + $0xd8] sm:$0xf]
  %v126 = vld [vmem:[%s1 + $0xdc] sm:$0xf]
  %v127 = vld [vmem:[%s1 + $0xe0] sm:$0xf]
  %v128 = vld [vmem:[%s1 + $0xe4] sm:$0xf]
  %v129 = vld [vmem:[%s1 + $0xe8] sm:$0xf]
  %v130 = vld [vmem:[%s1 + $0xec] sm:$0xf]
  %v131 = vld [vmem:[%s1 + $0xf0] sm:$0xf]
  %v132 = vld [vmem:[%s1 + $0xf4] sm:$0xf]
  %v133 = vld [vmem:[%s1 + $0xf8] sm:$0xf]
  %v134 = vld [vmem:[%s1 + $0xfc] sm:$0xf]
  %v135 = vld [vmem:[%s1 + $0x100] sm:$0xf]
  %v136 = vld [vmem:[%s1 + $0x104] sm:$0xf]
  %v137 = vld [vmem:[%s1 + $0x108] sm:$0xf]
  %v138 = vld [vmem:[%s1 + $0x10c] sm:$0xf]
  %v139 = vld [vmem:[%s1 + $0x110] sm:$0xf]
  %v140 = vld [vmem:[%s1 + $0x114] sm:$0xf]
  %v141 = vld [vmem:[%s1 + $0x118] sm:$0xf]
  %v142 = vld [vmem:[%s1 + $0x11c] sm:$0xf]
  %v143 = vld [vmem:[%s1 + $0x120] sm:$0xf]
  %v144 = vld [vmem:[%s1 + $0x124] sm:$0xf]
  %v145 = vld [vmem:[%s1 + $0x128] sm:$0xf]
  %v146 = vld [vmem:[%s1 + $0x12c] sm:$0xf]
  %v147 = vld [vmem:[%s1 + $0x130] sm:$0xf]
  %v148 = vld [vmem:[%s1 + $0x134] sm:$0xf]
  %v149 = vld [vmem:[%s1 + $0x138] sm:$0xf]
  %v150 = vld [vmem:[%s1 + $0x13c] sm:$0xf]
  %v151 = vld [vmem:[%s1 + $0x140] sm:$0xf]
  %v152 = vld [vmem:[%s1 + $0x144] sm:$0xf]
  %v153 = vld [vmem:[%s1 + $0x148] sm:$0xf]
  %v154 = vld [vmem:[%s1 + $0x14c] sm:$0xf]
  %v155 = vld [vmem:[%s1 + $0x150] sm:$0xf]
  %v156 = vld [vmem:[%s1 + $0x154] sm:$0xf]
  %v157 = vld [vmem:[%s1 + $0x158] sm:$0xf]
  %v158 = vld [vmem:[%s1 + $0x15c] sm:$0xf]
  %v159 = vld [vmem:[%s1 + $0x160] sm:$0xf]
  %v160 = vld [vmem:[%s1 + $0x164] sm:$0xf]
  %v161 = vld [vmem:[%s1 + $0x168] sm:$0xf]
  %v162 = vld [vmem:[%s1 + $0x16c] sm:$0xf]
  %v163 = vld [vmem:[%s1 + $0x170] sm:$0xf]
  %v164 = vld [vmem:[%s1 + $0x174] sm:$0xf]
  %v165 = vld [vmem:[%s1 + $0x178] sm:$0xf]
  %v166 = vld [vmem:[%s1 + $0x17c] sm:$0xf]
  %v167 = vld [vmem:[%s1 + $0x180] sm:$0xf]
  %v168 = vld [vmem:[%s1 + $0x184] sm:$0xf]
  %v169 = vld [vmem:[%s1 + $0x188] sm:$0xf]
  %v170 = vld [vmem:[%s1 + $0x18c] sm:$0xf]
  %v171 = vld [vmem:[%s1 + $0x190] sm:$0xf]
  %v172 = vld [vmem:[%s1 + $0x194] sm:$0xf]
  %v173 = vld [vmem:[%s1 + $0x198] sm:$0xf]
  %v174 = vld [vmem:[%s1 + $0x19c] sm:$0xf]
  %v175 = vld [vmem:[%s1 + $0x1a0] sm:$0xf]
  %v176 = vld [vmem:[%s1 + $0x1a4] sm:$0xf]
  %v177 = vld [vmem:[%s1 + $0x1a8] sm:$0xf]
  %v178 = vld [vmem:[%s1 + $0x1ac] sm:$0xf]
  %v179 = vld [vmem:[%s1 + $0x1b0] sm:$0xf]
  %v180 = vld [vmem:[%s1 + $0x1b4] sm:$0xf]
  %v181 = vld [vmem:[%s1 + $0x1b8] sm:$0xf]
  %v182 = vld [vmem:[%s1 + $0x1bc] sm:$0xf]
  %v183 = vld [vmem:[%s1 + $0x1c0] sm:$0xf]
  %v184 = vld [vmem:[%s1 + $0x1c4] sm:$0xf]
  %v185 = vld [vmem:[%s1 + $0x1c8] sm:$0xf]
  %v186 = vld [vmem:[%s1 + $0x1cc] sm:$0xf]
  %v187 = vld [vmem:[%s1 + $0x1d0] sm:$0xf]
  %v188 = vld [vmem:[%s1 + $0x1d4] sm:$0xf]
  %v189 = vld [vmem:[%s1 + $0x1d8] sm:$0xf]
  %v190 = vld [vmem:[%s1 + $0x1dc] sm:$0xf]
  %v191 = vld [vmem:[%s1 + $0x1e0] sm:$0xf]
  %v192 = vld [vmem:[%s1 + $0x1e4] sm:$0xf]
  %v193 = vld [vmem:[%s1 + $0x1e8] sm:$0xf]
  %v194 = vld [vmem:[%s1 + $0x1ec] sm:$0xf]
  %v195 = vld [vmem:[%s1 + $0x1f0] sm:$0xf]
  %v196 = vld [vmem:[%s1 + $0x1f4] sm:$0xf]
  %v197 = vld [vmem:[%s1 + $0x1f8] sm:$0xf]
  %v198 = vld [vmem:[%s1 + $0x1fc] sm:$0xf]
  %v199 = vld [vmem:[%s1 + $0x200] sm:$0xf]
  %v200 = vld [vmem:[%s1 + $0x204] sm:$0xf]
  %v201 = vld [vmem:[%s1 + $0x208] sm:$0xf]
  %v202 = vld [vmem:[%s1 + $0x20c] sm:$0xf]
  %v203 = vld [vmem:[%s1 + $0x210] sm:$0xf]
  %v204 = vld [vmem:[%s1 + $0x214] sm:$0xf]
  %v205 = vld [vmem:[%s1 + $0x218] sm:$0xf]
  %v206 = vld [vmem:[%s1 + $0x21c] sm:$0xf]
  %v207 = vld [vmem:[%s1 + $0x220] sm:$0xf]
  %v208 = vld [vmem:[%s1 + $0x224] sm:$0xf]
  %v209 = vld [vmem:[%s1 + $0x228] sm:$0xf]
  %v210 = vld [vmem:[%s1 + $0x22c] sm:$0xf]
  %v211 = vld [vmem:[%s1 + $0x230] sm:$0xf]
  %v212 = vld [vmem:[%s1 + $0x234] sm:$0xf]
  %v213 = vld [vmem:[%s1 + $0x238] sm:$0xf]
  %v214 = vld [vmem:[%s1 + $0x23c] sm:$0xf]
  %v215 = vld [vmem:[%s1 + $0x240] sm:$0xf]
  %v216 = vld [vmem:[%s1 + $0x244] sm:$0xf]
  %v217 = vld [vmem:[%s1 + $0x248] sm:$0xf]
  %v218 = vld [vmem:[%s1 + $0x24c] sm:$0xf]
  %v219 = vld [vmem:[%s1 + $0x250] sm:$0xf]
  %v220 = vld [vmem:[%s1 + $0x254] sm:$0xf]
  %v221 = vld [vmem:[%s1 + $0x258] sm:$0xf]
  %v222 = vld [vmem:[%s1 + $0x25c] sm:$0xf]
  %v223 = vld [vmem:[%s1 + $0x260] sm:$0xf]
  %v224 = vld [vmem:[%s1 + $0x264] sm:$0xf]
  %v225 = vld [vmem:[%s1 + $0x268] sm:$0xf]
  %v226 = vld [vmem:[%s1 + $0x26c] sm:$0xf]
  %v227 = vld [vmem:[%s1 + $0x270] sm:$0xf]
  %v228 = vld [vmem:[%s1 + $0x274] sm:$0xf]
  %v229 = vld [vmem:[%s1 + $0x278] sm:$0xf]
  %v230 = vld [vmem:[%s1 + $0x27c] sm:$0xf]
  %v231 = vld [vmem:[%s1 + $0x280] sm:$0xf]
  %v232 = vld [vmem:[%s1 + $0x284] sm:$0xf]
  %v233 = vld [vmem:[%s1 + $0x288] sm:$0xf]
  %v234 = vld [vmem:[%s1 + $0x28c] sm:$0xf]
  %v235 = vld [vmem:[%s1 + $0x290] sm:$0xf]
  %v236 = vld [vmem:[%s1 + $0x294] sm:$0xf]
  %v237 = vld [vmem:[%s1 + $0x298] sm:$0xf]
  %v238 = vld [vmem:[%s1 + $0x29c] sm:$0xf]
  %v239 = vld [vmem:[%s1 + $0x2a0] sm:$0xf]
  %v240 = vld [vmem:[%s1 + $0x2a4] sm:$0xf]
  %v241 = vld [vmem:[%s1 + $0x2a8] sm:$0xf]
  %v242 = vld [vmem:[%s1 + $0x2ac] sm:$0xf]
  %v243 = vld [vmem:[%s1 + $0x2b0] sm:$0xf]
  %v244 = vld [vmem:[%s1 + $0x2b4] sm:$0xf]
  %v245 = vld [vmem:[%s1 + $0x2b8] sm:$0xf]
  %v246 = vld [vmem:[%s1 + $0x2bc] sm:$0xf]
  %v247 = vld [vmem:[%s1 + $0x2c0] sm:$0xf]
  %v248 = vld [vmem:[%s1 + $0x2c4] sm:$0xf]
  %v249 = vld [vmem:[%s1 + $0x2c8] sm:$0xf]
  %v250 = vld [vmem:[%s1 + $0x2cc] sm:$0xf]
  %v251 = vld [vmem:[%s1 + $0x2d0] sm:$0xf]
  %v252 = vld [vmem:[%s1 + $0x2d4] sm:$0xf]
  %v253 = vld [vmem:[%s1 + $0x2d8] sm:$0xf]
  %v254 = vld [vmem:[%s1 + $0x2dc] sm:$0xf]
  %v255 = vld [vmem:[%s1 + $0x2e0] sm:$0xf]
  %v256 = vld [vmem:[%s1 + $0x2e4] sm:$0xf]
  %v257 = vld [vmem:[%s1 + $0x2e8] sm:$0xf]
  %v258 = vld [vmem:[%s1 + $0x2ec] sm:$0xf]
  %v259 = vld [vmem:[%s1 + $0x2f0] sm:$0xf]
  %v260 = vld [vmem:[%s1 + $0x2f4] sm:$0xf]
  %v261 = vld [vmem:[%s1 + $0x2f8] sm:$0xf]
  %v262 = vld [vmem:[%s1 + $0x2fc] sm:$0xf]
  %v263 = vld [vmem:[%s1 + $0x300] sm:$0xf]
  %v264 = vld [vmem:[%s1 + $0x304] sm:$0xf]
  %v265 = vld [vmem:[%s1 + $0x308] sm:$0xf]
  %v266 = vld [vmem:[%s1 + $0x30c] sm:$0xf]
  %v267 = vld [vmem:[%s1 + $0x310] sm:$0xf]
  %v268 = vld [vmem:[%s1 + $0x314] sm:$0xf]
  %v269 = vld [vmem:[%s1 + $0x318] sm:$0xf]
  %v270 = vld [vmem:[%s1 + $0x31c] sm:$0xf]
  %v271 = vld [vmem:[%s1 + $0x320] sm:$0xf]
  %v272 = vld [vmem:[%s1 + $0x324] sm:$0xf]
  %v273 = vld [vmem:[%s1 + $0x328] sm:$0xf]
  %v274 = vld [vmem:[%s1 + $0x32c] sm:$0xf]
  %v275 = vld [vmem:[%s1 + $0x330] sm:$0xf]
  %v276 = vld [vmem:[%s1 + $0x334] sm:$0xf]
  %v277 = vld [vmem:[%s1 + $0x338] sm:$0xf]
  %v278 = vld [vmem:[%s1 + $0x33c] sm:$0xf]
  %v279 = vld [vmem:[%s1 + $0x340] sm:$0xf]
  %v280 = vld [vmem:[%s1 + $0x344] sm:$0xf]
  %v281 = vld [vmem:[%s1 + $0x348] sm:$0xf]
  %v282 = vld [vmem:[%s1 + $0x34c] sm:$0xf]
  %v283 = vld [vmem:[%s1 + $0x350] sm:$0xf]
  %v284 = vld [vmem:[%s1 + $0x354] sm:$0xf]
  %v285 = vld [vmem:[%s1 + $0x358] sm:$0xf]
  %v286 = vld [vmem:[%s1 + $0x35c] sm:$0xf]
  %v287 = vld [vmem:[%s2] sm:$0xff]
  %v288 = vld [vmem:[%s2 + $0x8] sm:$0xff]
  %v289 = vld [vmem:[%s2 + $0x10] sm:$0xff]
  %v290 = vld [vmem:[%s2 + $0x18] sm:$0xff]
  %v291 = vld [vmem:[%s2 + $0x20] sm:$0xff]
  %v292 = vld [vmem:[%s2 + $0x28] sm:$0xff]
  %v293 = vld [vmem:[%s2 + $0x30] sm:$0xff]
  %v294 = vld [vmem:[%s2 + $0x38] sm:$0xff]
  %296 = vset.pattern.permute.xlu0 0
  %297 = vperm.xlu0 %296, %v287
  %v298 = vpop.permute.xlu0 %297
  %301 = vset.pattern.permute.xlu0 0
  %302 = vperm.xlu0 %301, %v288
  %v303 = vpop.permute.xlu0 %302
  %306 = vset.pattern.permute.xlu0 0
  %307 = vperm.xlu0 %306, %v289
  %v308 = vpop.permute.xlu0 %307
  %311 = vset.pattern.permute.xlu0 0
  %312 = vperm.xlu0 %311, %v290
  %v313 = vpop.permute.xlu0 %312
  %316 = vset.pattern.permute.xlu0 0
  %317 = vperm.xlu0 %316, %v291
  %v318 = vpop.permute.xlu0 %317
  %321 = vset.pattern.permute.xlu0 0
  %322 = vperm.xlu0 %321, %v292
  %v323 = vpop.permute.xlu0 %322
  %326 = vset.pattern.permute.xlu0 0
  %327 = vperm.xlu0 %326, %v293
  %v328 = vpop.permute.xlu0 %327
  %331 = vset.pattern.permute.xlu0 0
  %332 = vperm.xlu0 %331, %v294
  %v333 = vpop.permute.xlu0 %332
  %v391 = vunpack.c.l.b16 %v15
  %v392 = vunpack.c.h.b16 %v15
  %v393 = vunpack.c.l.b16 %v16
  %v394 = vunpack.c.h.b16 %v16
  %v395 = vunpack.c.l.b16 %v17
  %v396 = vunpack.c.h.b16 %v17
  %v397 = vunpack.c.l.b16 %v18
  %v398 = vunpack.c.h.b16 %v18
  %v399 = vunpack.c.l.b16 %v19
  %v400 = vunpack.c.h.b16 %v19
  %v401 = vunpack.c.l.b16 %v20
  %v402 = vunpack.c.h.b16 %v20
  %v403 = vunpack.c.l.b16 %v21
  %v404 = vunpack.c.h.b16 %v21
  %v405 = vunpack.c.l.b16 %v22
  %v406 = vunpack.c.h.b16 %v22
  %v407 = vunpack.c.l.b16 %v23
  %v408 = vunpack.c.h.b16 %v23
  %v409 = vunpack.c.l.b16 %v24
  %v410 = vunpack.c.h.b16 %v24
  %v411 = vunpack.c.l.b16 %v25
  %v412 = vunpack.c.h.b16 %v25
  %v413 = vunpack.c.l.b16 %v26
  %v414 = vunpack.c.h.b16 %v26
  %v415 = vunpack.c.l.b16 %v27
  %v416 = vunpack.c.h.b16 %v27
  %v417 = vunpack.c.l.b16 %v28
  %v418 = vunpack.c.h.b16 %v28
  %v419 = vunpack.c.l.b16 %v29
  %v420 = vunpack.c.h.b16 %v29
  %v421 = vunpack.c.l.b16 %v30
  %v422 = vunpack.c.h.b16 %v30
  %v423 = vunpack.c.l.b16 %v31
  %v424 = vunpack.c.h.b16 %v31
  %v425 = vunpack.c.l.b16 %v32
  %v426 = vunpack.c.h.b16 %v32
  %v427 = vunpack.c.l.b16 %v33
  %v428 = vunpack.c.h.b16 %v33
  %v429 = vunpack.c.l.b16 %v34
  %v430 = vunpack.c.h.b16 %v34
  %v431 = vunpack.c.l.b16 %v35
  %v432 = vunpack.c.h.b16 %v35
  %v433 = vunpack.c.l.b16 %v36
  %v434 = vunpack.c.h.b16 %v36
  %v435 = vunpack.c.l.b16 %v37
  %v436 = vunpack.c.h.b16 %v37
  %v437 = vunpack.c.l.b16 %v38
  %v438 = vunpack.c.h.b16 %v38
  %v439 = vunpack.c.l.b16 %v39
  %v440 = vunpack.c.h.b16 %v39
  %v441 = vunpack.c.l.b16 %v40
  %v442 = vunpack.c.h.b16 %v40
  %v443 = vunpack.c.l.b16 %v41
  %v444 = vunpack.c.h.b16 %v41
  %v445 = vunpack.c.l.b16 %v42
  %v446 = vunpack.c.h.b16 %v42
  %v447 = vunpack.c.l.b16 %v43
  %v448 = vunpack.c.h.b16 %v43
  %v449 = vunpack.c.l.b16 %v44
  %v450 = vunpack.c.h.b16 %v44
  %v451 = vunpack.c.l.b16 %v45
  %v452 = vunpack.c.h.b16 %v45
  %v453 = vunpack.c.l.b16 %v46
  %v454 = vunpack.c.h.b16 %v46
  %v455 = vunpack.c.l.b16 %v47
  %v456 = vunpack.c.h.b16 %v47
  %v457 = vunpack.c.l.b16 %v48
  %v458 = vunpack.c.h.b16 %v48
  %v459 = vunpack.c.l.b16 %v49
  %v460 = vunpack.c.h.b16 %v49
  %v461 = vunpack.c.l.b16 %v50
  %v462 = vunpack.c.h.b16 %v50
  %v463 = vunpack.c.l.b16 %v51
  %v464 = vunpack.c.h.b16 %v51
  %v465 = vunpack.c.l.b16 %v52
  %v466 = vunpack.c.h.b16 %v52
  %v467 = vunpack.c.l.b16 %v53
  %v468 = vunpack.c.h.b16 %v53
  %v469 = vunpack.c.l.b16 %v54
  %v470 = vunpack.c.h.b16 %v54
  %v471 = vunpack.c.l.b16 %v55
  %v472 = vunpack.c.h.b16 %v55
  %v473 = vunpack.c.l.b16 %v56
  %v474 = vunpack.c.h.b16 %v56
  %v475 = vunpack.c.l.b16 %v57
  %v476 = vunpack.c.h.b16 %v57
  %v477 = vunpack.c.l.b16 %v58
  %v478 = vunpack.c.h.b16 %v58
  %v479 = vunpack.c.l.b16 %v59
  %v480 = vunpack.c.h.b16 %v59
  %v481 = vunpack.c.l.b16 %v60
  %v482 = vunpack.c.h.b16 %v60
  %v483 = vunpack.c.l.b16 %v61
  %v484 = vunpack.c.h.b16 %v61
  %v485 = vunpack.c.l.b16 %v62
  %v486 = vunpack.c.h.b16 %v62
  %v487 = vunpack.c.l.b16 %v63
  %v488 = vunpack.c.h.b16 %v63
  %v489 = vunpack.c.l.b16 %v64
  %v490 = vunpack.c.h.b16 %v64
  %v491 = vunpack.c.l.b16 %v65
  %v492 = vunpack.c.h.b16 %v65
  %v493 = vunpack.c.l.b16 %v66
  %v494 = vunpack.c.h.b16 %v66
  %v495 = vunpack.c.l.b16 %v67
  %v496 = vunpack.c.h.b16 %v67
  %v497 = vunpack.c.l.b16 %v68
  %v498 = vunpack.c.h.b16 %v68
  %v499 = vunpack.c.l.b16 %v69
  %v500 = vunpack.c.h.b16 %v69
  %v501 = vunpack.c.l.b16 %v70
  %v502 = vunpack.c.h.b16 %v70
  %v503 = vpack.c.b16 %v405, %v391
  %v504 = vpack.c.b16 %v406, %v392
  %v505 = vpack.c.b16 %v407, %v393
  %v506 = vpack.c.b16 %v408, %v394
  %v507 = vpack.c.b16 %v409, %v395
  %v508 = vpack.c.b16 %v410, %v396
  %v509 = vpack.c.b16 %v411, %v397
  %v510 = vpack.c.b16 %v412, %v398
  %v511 = vpack.c.b16 %v413, %v399
  %v512 = vpack.c.b16 %v414, %v400
  %v513 = vpack.c.b16 %v415, %v401
  %v514 = vpack.c.b16 %v416, %v402
  %v515 = vpack.c.b16 %v417, %v403
  %v516 = vpack.c.b16 %v418, %v404
  %v517 = vpack.c.b16 %v433, %v419
  %v518 = vpack.c.b16 %v434, %v420
  %v519 = vpack.c.b16 %v435, %v421
  %v520 = vpack.c.b16 %v436, %v422
  %v521 = vpack.c.b16 %v437, %v423
  %v522 = vpack.c.b16 %v438, %v424
  %v523 = vpack.c.b16 %v439, %v425
  %v524 = vpack.c.b16 %v440, %v426
  %v525 = vpack.c.b16 %v441, %v427
  %v526 = vpack.c.b16 %v442, %v428
  %v527 = vpack.c.b16 %v443, %v429
  %v528 = vpack.c.b16 %v444, %v430
  %v529 = vpack.c.b16 %v445, %v431
  %v530 = vpack.c.b16 %v446, %v432
  %v531 = vpack.c.b16 %v461, %v447
  %v532 = vpack.c.b16 %v462, %v448
  %v533 = vpack.c.b16 %v463, %v449
  %v534 = vpack.c.b16 %v464, %v450
  %v535 = vpack.c.b16 %v465, %v451
  %v536 = vpack.c.b16 %v466, %v452
  %v537 = vpack.c.b16 %v467, %v453
  %v538 = vpack.c.b16 %v468, %v454
  %v539 = vpack.c.b16 %v469, %v455
  %v540 = vpack.c.b16 %v470, %v456
  %v541 = vpack.c.b16 %v471, %v457
  %v542 = vpack.c.b16 %v472, %v458
  %v543 = vpack.c.b16 %v473, %v459
  %v544 = vpack.c.b16 %v474, %v460
  %v545 = vpack.c.b16 %v489, %v475
  %v546 = vpack.c.b16 %v490, %v476
  %v547 = vpack.c.b16 %v491, %v477
  %v548 = vpack.c.b16 %v492, %v478
  %v549 = vpack.c.b16 %v493, %v479
  %v550 = vpack.c.b16 %v494, %v480
  %v551 = vpack.c.b16 %v495, %v481
  %v552 = vpack.c.b16 %v496, %v482
  %v553 = vpack.c.b16 %v497, %v483
  %v554 = vpack.c.b16 %v498, %v484
  %v555 = vpack.c.b16 %v499, %v485
  %v556 = vpack.c.b16 %v500, %v486
  %v557 = vpack.c.b16 %v501, %v487
  %v558 = vpack.c.b16 %v502, %v488
  %v827 = vunpack.c.l.b16 %v71
  %v828 = vunpack.c.l.b16 %v72
  %v829 = vunpack.c.l.b16 %v73
  %v830 = vunpack.c.l.b16 %v74
  %v831 = vunpack.c.l.b16 %v75
  %v832 = vunpack.c.l.b16 %v76
  %v833 = vunpack.c.l.b16 %v77
  %v834 = vunpack.c.l.b16 %v78
  %v835 = vunpack.c.l.b16 %v79
  %v836 = vunpack.c.l.b16 %v80
  %v837 = vunpack.c.l.b16 %v81
  %v838 = vunpack.c.l.b16 %v82
  %v839 = vunpack.c.l.b16 %v83
  %v840 = vunpack.c.l.b16 %v84
  %v841 = vunpack.c.l.b16 %v85
  %v842 = vunpack.c.l.b16 %v86
  %v843 = vunpack.c.l.b16 %v87
  %v844 = vunpack.c.l.b16 %v88
  %v845 = vunpack.c.l.b16 %v89
  %v846 = vunpack.c.l.b16 %v90
  %v847 = vunpack.c.l.b16 %v91
  %v848 = vunpack.c.l.b16 %v92
  %v849 = vunpack.c.l.b16 %v93
  %v850 = vunpack.c.l.b16 %v94
  %v851 = vunpack.c.l.b16 %v95
  %v852 = vunpack.c.l.b16 %v96
  %v853 = vunpack.c.l.b16 %v97
  %v854 = vunpack.c.l.b16 %v98
  %v855 = vunpack.c.l.b16 %v99
  %v856 = vunpack.c.l.b16 %v100
  %v857 = vunpack.c.l.b16 %v101
  %v858 = vunpack.c.l.b16 %v102
  %v859 = vunpack.c.l.b16 %v103
  %v860 = vunpack.c.l.b16 %v104
  %v861 = vunpack.c.l.b16 %v105
  %v862 = vunpack.c.l.b16 %v106
  %v863 = vunpack.c.l.b16 %v107
  %v864 = vunpack.c.l.b16 %v108
  %v865 = vunpack.c.l.b16 %v109
  %v866 = vunpack.c.l.b16 %v110
  %v867 = vunpack.c.l.b16 %v111
  %v868 = vunpack.c.l.b16 %v112
  %v869 = vunpack.c.l.b16 %v113
  %v870 = vunpack.c.l.b16 %v114
  %v871 = vunpack.c.l.b16 %v115
  %v872 = vunpack.c.l.b16 %v116
  %v873 = vunpack.c.l.b16 %v117
  %v874 = vunpack.c.l.b16 %v118
  %v875 = vunpack.c.l.b16 %v119
  %v876 = vunpack.c.l.b16 %v120
  %v877 = vunpack.c.l.b16 %v121
  %v878 = vunpack.c.l.b16 %v122
  %v879 = vunpack.c.l.b16 %v123
  %v880 = vunpack.c.l.b16 %v124
  %v881 = vunpack.c.l.b16 %v125
  %v882 = vunpack.c.l.b16 %v126
  %v883 = vunpack.c.l.b16 %v127
  %v884 = vunpack.c.l.b16 %v128
  %v885 = vunpack.c.l.b16 %v129
  %v886 = vunpack.c.l.b16 %v130
  %v887 = vunpack.c.l.b16 %v131
  %v888 = vunpack.c.l.b16 %v132
  %v889 = vunpack.c.l.b16 %v133
  %v890 = vunpack.c.l.b16 %v134
  %v891 = vunpack.c.l.b16 %v135
  %v892 = vunpack.c.l.b16 %v136
  %v893 = vunpack.c.l.b16 %v137
  %v894 = vunpack.c.l.b16 %v138
  %v895 = vunpack.c.l.b16 %v139
  %v896 = vunpack.c.l.b16 %v140
  %v897 = vunpack.c.l.b16 %v141
  %v898 = vunpack.c.l.b16 %v142
  %v899 = vunpack.c.l.b16 %v143
  %v900 = vunpack.c.l.b16 %v144
  %v901 = vunpack.c.l.b16 %v145
  %v902 = vunpack.c.l.b16 %v146
  %v903 = vunpack.c.l.b16 %v147
  %v904 = vunpack.c.l.b16 %v148
  %v905 = vunpack.c.l.b16 %v149
  %v906 = vunpack.c.l.b16 %v150
  %v907 = vunpack.c.l.b16 %v151
  %v908 = vunpack.c.l.b16 %v152
  %v909 = vunpack.c.l.b16 %v153
  %v910 = vunpack.c.l.b16 %v154
  %v911 = vunpack.c.l.b16 %v155
  %v912 = vunpack.c.l.b16 %v156
  %v913 = vunpack.c.l.b16 %v157
  %v914 = vunpack.c.l.b16 %v158
  %v915 = vunpack.c.l.b16 %v159
  %v916 = vunpack.c.l.b16 %v160
  %v917 = vunpack.c.l.b16 %v161
  %v918 = vunpack.c.l.b16 %v162
  %v919 = vunpack.c.l.b16 %v163
  %v920 = vunpack.c.l.b16 %v164
  %v921 = vunpack.c.l.b16 %v165
  %v922 = vunpack.c.l.b16 %v166
  %v923 = vunpack.c.l.b16 %v167
  %v924 = vunpack.c.l.b16 %v168
  %v925 = vunpack.c.l.b16 %v169
  %v926 = vunpack.c.l.b16 %v170
  %v927 = vunpack.c.l.b16 %v171
  %v928 = vunpack.c.l.b16 %v172
  %v929 = vunpack.c.l.b16 %v173
  %v930 = vunpack.c.l.b16 %v174
  %v931 = vunpack.c.l.b16 %v175
  %v932 = vunpack.c.l.b16 %v176
  %v933 = vunpack.c.l.b16 %v177
  %v934 = vunpack.c.l.b16 %v178
  %v935 = vunpack.c.l.b16 %v179
  %v936 = vunpack.c.l.b16 %v180
  %v937 = vunpack.c.l.b16 %v181
  %v938 = vunpack.c.l.b16 %v182
  %v939 = vunpack.c.l.b16 %v183
  %v940 = vunpack.c.l.b16 %v184
  %v941 = vunpack.c.l.b16 %v185
  %v942 = vunpack.c.l.b16 %v186
  %v943 = vunpack.c.l.b16 %v187
  %v944 = vunpack.c.l.b16 %v188
  %v945 = vunpack.c.l.b16 %v189
  %v946 = vunpack.c.l.b16 %v190
  %v947 = vunpack.c.l.b16 %v191
  %v948 = vunpack.c.l.b16 %v192
  %v949 = vunpack.c.l.b16 %v193
  %v950 = vunpack.c.l.b16 %v194
  %v951 = vunpack.c.l.b16 %v195
  %v952 = vunpack.c.l.b16 %v196
  %v953 = vunpack.c.l.b16 %v197
  %v954 = vunpack.c.l.b16 %v198
  %v955 = vunpack.c.l.b16 %v199
  %v956 = vunpack.c.l.b16 %v200
  %v957 = vunpack.c.l.b16 %v201
  %v958 = vunpack.c.l.b16 %v202
  %v959 = vunpack.c.l.b16 %v203
  %v960 = vunpack.c.l.b16 %v204
  %v961 = vunpack.c.l.b16 %v205
  %v962 = vunpack.c.l.b16 %v206
  %v963 = vunpack.c.l.b16 %v207
  %v964 = vunpack.c.l.b16 %v208
  %v965 = vunpack.c.l.b16 %v209
  %v966 = vunpack.c.l.b16 %v210
  %v967 = vunpack.c.l.b16 %v211
  %v968 = vunpack.c.l.b16 %v212
  %v969 = vunpack.c.l.b16 %v213
  %v970 = vunpack.c.l.b16 %v214
  %v971 = vunpack.c.l.b16 %v215
  %v972 = vunpack.c.l.b16 %v216
  %v973 = vunpack.c.l.b16 %v217
  %v974 = vunpack.c.l.b16 %v218
  %v975 = vunpack.c.l.b16 %v219
  %v976 = vunpack.c.l.b16 %v220
  %v977 = vunpack.c.l.b16 %v221
  %v978 = vunpack.c.l.b16 %v222
  %v979 = vunpack.c.l.b16 %v223
  %v980 = vunpack.c.l.b16 %v224
  %v981 = vunpack.c.l.b16 %v225
  %v982 = vunpack.c.l.b16 %v226
  %v983 = vunpack.c.l.b16 %v227
  %v984 = vunpack.c.l.b16 %v228
  %v985 = vunpack.c.l.b16 %v229
  %v986 = vunpack.c.l.b16 %v230
  %v987 = vunpack.c.l.b16 %v231
  %v988 = vunpack.c.l.b16 %v232
  %v989 = vunpack.c.l.b16 %v233
  %v990 = vunpack.c.l.b16 %v234
  %v991 = vunpack.c.l.b16 %v235
  %v992 = vunpack.c.l.b16 %v236
  %v993 = vunpack.c.l.b16 %v237
  %v994 = vunpack.c.l.b16 %v238
  %v995 = vunpack.c.l.b16 %v239
  %v996 = vunpack.c.l.b16 %v240
  %v997 = vunpack.c.l.b16 %v241
  %v998 = vunpack.c.l.b16 %v242
  %v999 = vunpack.c.l.b16 %v243
  %v1000 = vunpack.c.l.b16 %v244
  %v1001 = vunpack.c.l.b16 %v245
  %v1002 = vunpack.c.l.b16 %v246
  %v1003 = vunpack.c.l.b16 %v247
  %v1004 = vunpack.c.l.b16 %v248
  %v1005 = vunpack.c.l.b16 %v249
  %v1006 = vunpack.c.l.b16 %v250
  %v1007 = vunpack.c.l.b16 %v251
  %v1008 = vunpack.c.l.b16 %v252
  %v1009 = vunpack.c.l.b16 %v253
  %v1010 = vunpack.c.l.b16 %v254
  %v1011 = vunpack.c.l.b16 %v255
  %v1012 = vunpack.c.l.b16 %v256
  %v1013 = vunpack.c.l.b16 %v257
  %v1014 = vunpack.c.l.b16 %v258
  %v1015 = vunpack.c.l.b16 %v259
  %v1016 = vunpack.c.l.b16 %v260
  %v1017 = vunpack.c.l.b16 %v261
  %v1018 = vunpack.c.l.b16 %v262
  %v1019 = vunpack.c.l.b16 %v263
  %v1020 = vunpack.c.l.b16 %v264
  %v1021 = vunpack.c.l.b16 %v265
  %v1022 = vunpack.c.l.b16 %v266
  %v1023 = vunpack.c.l.b16 %v267
  %v1024 = vunpack.c.l.b16 %v268
  %v1025 = vunpack.c.l.b16 %v269
  %v1026 = vunpack.c.l.b16 %v270
  %v1027 = vunpack.c.l.b16 %v271
  %v1028 = vunpack.c.l.b16 %v272
  %v1029 = vunpack.c.l.b16 %v273
  %v1030 = vunpack.c.l.b16 %v274
  %v1031 = vunpack.c.l.b16 %v275
  %v1032 = vunpack.c.l.b16 %v276
  %v1033 = vunpack.c.l.b16 %v277
  %v1034 = vunpack.c.l.b16 %v278
  %v1035 = vunpack.c.l.b16 %v279
  %v1036 = vunpack.c.l.b16 %v280
  %v1037 = vunpack.c.l.b16 %v281
  %v1038 = vunpack.c.l.b16 %v282
  %v1039 = vunpack.c.l.b16 %v283
  %v1040 = vunpack.c.l.b16 %v284
  %v1041 = vunpack.c.l.b16 %v285
  %v1042 = vunpack.c.l.b16 %v286
  %v1043 = vpack.c.b16 %v828, %v827
  %v1044 = vpack.c.b16 %v830, %v829
  %v1045 = vpack.c.b16 %v832, %v831
  %v1046 = vpack.c.b16 %v834, %v833
  %v1047 = vpack.c.b16 %v836, %v835
  %v1048 = vpack.c.b16 %v838, %v837
  %v1049 = vpack.c.b16 %v840, %v839
  %v1050 = vpack.c.b16 %v842, %v841
  %v1051 = vpack.c.b16 %v844, %v843
  %v1052 = vpack.c.b16 %v846, %v845
  %v1053 = vpack.c.b16 %v848, %v847
  %v1054 = vpack.c.b16 %v850, %v849
  %v1055 = vpack.c.b16 %v852, %v851
  %v1056 = vpack.c.b16 %v854, %v853
  %v1057 = vpack.c.b16 %v856, %v855
  %v1058 = vpack.c.b16 %v858, %v857
  %v1059 = vpack.c.b16 %v860, %v859
  %v1060 = vpack.c.b16 %v862, %v861
  %v1061 = vpack.c.b16 %v864, %v863
  %v1062 = vpack.c.b16 %v866, %v865
  %v1063 = vpack.c.b16 %v868, %v867
  %v1064 = vpack.c.b16 %v870, %v869
  %v1065 = vpack.c.b16 %v872, %v871
  %v1066 = vpack.c.b16 %v874, %v873
  %v1067 = vpack.c.b16 %v876, %v875
  %v1068 = vpack.c.b16 %v878, %v877
  %v1069 = vpack.c.b16 %v880, %v879
  %v1070 = vpack.c.b16 %v882, %v881
  %v1071 = vpack.c.b16 %v884, %v883
  %v1072 = vpack.c.b16 %v886, %v885
  %v1073 = vpack.c.b16 %v888, %v887
  %v1074 = vpack.c.b16 %v890, %v889
  %v1075 = vpack.c.b16 %v892, %v891
  %v1076 = vpack.c.b16 %v894, %v893
  %v1077 = vpack.c.b16 %v896, %v895
  %v1078 = vpack.c.b16 %v898, %v897
  %v1079 = vpack.c.b16 %v900, %v899
  %v1080 = vpack.c.b16 %v902, %v901
  %v1081 = vpack.c.b16 %v904, %v903
  %v1082 = vpack.c.b16 %v906, %v905
  %v1083 = vpack.c.b16 %v908, %v907
  %v1084 = vpack.c.b16 %v910, %v909
  %v1085 = vpack.c.b16 %v912, %v911
  %v1086 = vpack.c.b16 %v914, %v913
  %v1087 = vpack.c.b16 %v916, %v915
  %v1088 = vpack.c.b16 %v918, %v917
  %v1089 = vpack.c.b16 %v920, %v919
  %v1090 = vpack.c.b16 %v922, %v921
  %v1091 = vpack.c.b16 %v924, %v923
  %v1092 = vpack.c.b16 %v926, %v925
  %v1093 = vpack.c.b16 %v928, %v927
  %v1094 = vpack.c.b16 %v930, %v929
  %v1095 = vpack.c.b16 %v932, %v931
  %v1096 = vpack.c.b16 %v934, %v933
  %v1097 = vpack.c.b16 %v936, %v935
  %v1098 = vpack.c.b16 %v938, %v937
  %v1099 = vpack.c.b16 %v940, %v939
  %v1100 = vpack.c.b16 %v942, %v941
  %v1101 = vpack.c.b16 %v944, %v943
  %v1102 = vpack.c.b16 %v946, %v945
  %v1103 = vpack.c.b16 %v948, %v947
  %v1104 = vpack.c.b16 %v950, %v949
  %v1105 = vpack.c.b16 %v952, %v951
  %v1106 = vpack.c.b16 %v954, %v953
  %v1107 = vpack.c.b16 %v956, %v955
  %v1108 = vpack.c.b16 %v958, %v957
  %v1109 = vpack.c.b16 %v960, %v959
  %v1110 = vpack.c.b16 %v962, %v961
  %v1111 = vpack.c.b16 %v964, %v963
  %v1112 = vpack.c.b16 %v966, %v965
  %v1113 = vpack.c.b16 %v968, %v967
  %v1114 = vpack.c.b16 %v970, %v969
  %v1115 = vpack.c.b16 %v972, %v971
  %v1116 = vpack.c.b16 %v974, %v973
  %v1117 = vpack.c.b16 %v976, %v975
  %v1118 = vpack.c.b16 %v978, %v977
  %v1119 = vpack.c.b16 %v980, %v979
  %v1120 = vpack.c.b16 %v982, %v981
  %v1121 = vpack.c.b16 %v984, %v983
  %v1122 = vpack.c.b16 %v986, %v985
  %v1123 = vpack.c.b16 %v988, %v987
  %v1124 = vpack.c.b16 %v990, %v989
  %v1125 = vpack.c.b16 %v992, %v991
  %v1126 = vpack.c.b16 %v994, %v993
  %v1127 = vpack.c.b16 %v996, %v995
  %v1128 = vpack.c.b16 %v998, %v997
  %v1129 = vpack.c.b16 %v1000, %v999
  %v1130 = vpack.c.b16 %v1002, %v1001
  %v1131 = vpack.c.b16 %v1004, %v1003
  %v1132 = vpack.c.b16 %v1006, %v1005
  %v1133 = vpack.c.b16 %v1008, %v1007
  %v1134 = vpack.c.b16 %v1010, %v1009
  %v1135 = vpack.c.b16 %v1012, %v1011
  %v1136 = vpack.c.b16 %v1014, %v1013
  %v1137 = vpack.c.b16 %v1016, %v1015
  %v1138 = vpack.c.b16 %v1018, %v1017
  %v1139 = vpack.c.b16 %v1020, %v1019
  %v1140 = vpack.c.b16 %v1022, %v1021
  %v1141 = vpack.c.b16 %v1024, %v1023
  %v1142 = vpack.c.b16 %v1026, %v1025
  %v1143 = vpack.c.b16 %v1028, %v1027
  %v1144 = vpack.c.b16 %v1030, %v1029
  %v1145 = vpack.c.b16 %v1032, %v1031
  %v1146 = vpack.c.b16 %v1034, %v1033
  %v1147 = vpack.c.b16 %v1036, %v1035
  %v1148 = vpack.c.b16 %v1038, %v1037
  %v1149 = vpack.c.b16 %v1040, %v1039
  %v1150 = vpack.c.b16 %v1042, %v1041
  %vm1259 = vcmask 523264
  %v1261 = vsel %vm1259, %v516, 0
  %v1264 = vsel %vm1259, %v530, 0
  %v1267 = vsel %vm1259, %v544, 0
  %v1270 = vsel %vm1259, %v558, 0
  %1272 = vmatpush.bf16.msra.mxu0 %v1050
  %1273 = vmatpush.bf16.msra.mxu0 %v1049
  %1274 = vmatpush.bf16.msra.mxu0 %v1048
  %1275 = vmatpush.bf16.msra.mxu0 %v1047
  %1276 = vmatpush.bf16.msra.mxu0 %v1046
  %1277 = vmatpush.bf16.msra.mxu0 %v1045
  %1278 = vmatpush.bf16.msra.mxu0 %v1044
  %1279 = vmatpush.bf16.msra.mxu0 %v1043
  %1280 = vmatmul.bf16.gmra.mxu0 %v503
  %v1281 = vpop.f32.mrf.mxu0
  %v1282 = vadd.f32 %v298, %v1281
  %v1283 = vpop.f32.mrf.mxu0
  %v1284 = vadd.f32 %v303, %v1283
  %1285 = vmatmul.bf16.gmra.mxu0 %v517
  %v1286 = vpop.f32.mrf.mxu0
  %v1287 = vadd.f32 %v308, %v1286
  %v1288 = vpop.f32.mrf.mxu0
  %v1289 = vadd.f32 %v313, %v1288
  %1290 = vmatmul.bf16.gmra.mxu0 %v531
  %v1291 = vpop.f32.mrf.mxu0
  %v1292 = vadd.f32 %v318, %v1291
  %v1293 = vpop.f32.mrf.mxu0
  %v1294 = vadd.f32 %v323, %v1293
  %1295 = vmatmul.bf16.gmra.mxu0 %v545
  %v1296 = vpop.f32.mrf.mxu0
  %v1297 = vadd.f32 %v328, %v1296
  %v1298 = vpop.f32.mrf.mxu0
  %v1299 = vadd.f32 %v333, %v1298
  %1300 = vdwg.mxu0
  %1301 = vmatpush.bf16.msra.mxu0 %v1058
  %1302 = vmatpush.bf16.msra.mxu0 %v1057
  %1303 = vmatpush.bf16.msra.mxu0 %v1056
  %1304 = vmatpush.bf16.msra.mxu0 %v1055
  %1305 = vmatpush.bf16.msra.mxu0 %v1054
  %1306 = vmatpush.bf16.msra.mxu0 %v1053
  %1307 = vmatpush.bf16.msra.mxu0 %v1052
  %1308 = vmatpush.bf16.msra.mxu0 %v1051
  %1309 = vmatmul.bf16.gmra.mxu0 %v504
  %v1310 = vpop.f32.mrf.mxu0
  %v1311 = vadd.f32 %v1282, %v1310
  %v1312 = vpop.f32.mrf.mxu0
  %v1313 = vadd.f32 %v1284, %v1312
  %1314 = vmatmul.bf16.gmra.mxu0 %v518
  %v1315 = vpop.f32.mrf.mxu0
  %v1316 = vadd.f32 %v1287, %v1315
  %v1317 = vpop.f32.mrf.mxu0
  %v1318 = vadd.f32 %v1289, %v1317
  %1319 = vmatmul.bf16.gmra.mxu0 %v532
  %v1320 = vpop.f32.mrf.mxu0
  %v1321 = vadd.f32 %v1292, %v1320
  %v1322 = vpop.f32.mrf.mxu0
  %v1323 = vadd.f32 %v1294, %v1322
  %1324 = vmatmul.bf16.gmra.mxu0 %v546
  %v1325 = vpop.f32.mrf.mxu0
  %v1326 = vadd.f32 %v1297, %v1325
  %v1327 = vpop.f32.mrf.mxu0
  %v1328 = vadd.f32 %v1299, %v1327
  %1329 = vdwg.mxu0
  %1330 = vmatpush.bf16.msra.mxu0 %v1066
  %1331 = vmatpush.bf16.msra.mxu0 %v1065
  %1332 = vmatpush.bf16.msra.mxu0 %v1064
  %1333 = vmatpush.bf16.msra.mxu0 %v1063
  %1334 = vmatpush.bf16.msra.mxu0 %v1062
  %1335 = vmatpush.bf16.msra.mxu0 %v1061
  %1336 = vmatpush.bf16.msra.mxu0 %v1060
  %1337 = vmatpush.bf16.msra.mxu0 %v1059
  %1338 = vmatmul.bf16.gmra.mxu0 %v505
  %v1339 = vpop.f32.mrf.mxu0
  %v1340 = vadd.f32 %v1311, %v1339
  %v1341 = vpop.f32.mrf.mxu0
  %v1342 = vadd.f32 %v1313, %v1341
  %1343 = vmatmul.bf16.gmra.mxu0 %v519
  %v1344 = vpop.f32.mrf.mxu0
  %v1345 = vadd.f32 %v1316, %v1344
  %v1346 = vpop.f32.mrf.mxu0
  %v1347 = vadd.f32 %v1318, %v1346
  %1348 = vmatmul.bf16.gmra.mxu0 %v533
  %v1349 = vpop.f32.mrf.mxu0
  %v1350 = vadd.f32 %v1321, %v1349
  %v1351 = vpop.f32.mrf.mxu0
  %v1352 = vadd.f32 %v1323, %v1351
  %1353 = vmatmul.bf16.gmra.mxu0 %v547
  %v1354 = vpop.f32.mrf.mxu0
  %v1355 = vadd.f32 %v1326, %v1354
  %v1356 = vpop.f32.mrf.mxu0
  %v1357 = vadd.f32 %v1328, %v1356
  %1358 = vdwg.mxu0
  %1359 = vmatpush.bf16.msra.mxu0 %v1074
  %1360 = vmatpush.bf16.msra.mxu0 %v1073
  %1361 = vmatpush.bf16.msra.mxu0 %v1072
  %1362 = vmatpush.bf16.msra.mxu0 %v1071
  %1363 = vmatpush.bf16.msra.mxu0 %v1070
  %1364 = vmatpush.bf16.msra.mxu0 %v1069
  %1365 = vmatpush.bf16.msra.mxu0 %v1068
  %1366 = vmatpush.bf16.msra.mxu0 %v1067
  %1367 = vmatmul.bf16.gmra.mxu0 %v506
  %v1368 = vpop.f32.mrf.mxu0
  %v1369 = vadd.f32 %v1340, %v1368
  %v1370 = vpop.f32.mrf.mxu0
  %v1371 = vadd.f32 %v1342, %v1370
  %1372 = vmatmul.bf16.gmra.mxu0 %v520
  %v1373 = vpop.f32.mrf.mxu0
  %v1374 = vadd.f32 %v1345, %v1373
  %v1375 = vpop.f32.mrf.mxu0
  %v1376 = vadd.f32 %v1347, %v1375
  %1377 = vmatmul.bf16.gmra.mxu0 %v534
  %v1378 = vpop.f32.mrf.mxu0
  %v1379 = vadd.f32 %v1350, %v1378
  %v1380 = vpop.f32.mrf.mxu0
  %v1381 = vadd.f32 %v1352, %v1380
  %1382 = vmatmul.bf16.gmra.mxu0 %v548
  %v1383 = vpop.f32.mrf.mxu0
  %v1384 = vadd.f32 %v1355, %v1383
  %v1385 = vpop.f32.mrf.mxu0
  %v1386 = vadd.f32 %v1357, %v1385
  %1387 = vdwg.mxu0
  %1388 = vmatpush.bf16.msra.mxu0 %v1082
  %1389 = vmatpush.bf16.msra.mxu0 %v1081
  %1390 = vmatpush.bf16.msra.mxu0 %v1080
  %1391 = vmatpush.bf16.msra.mxu0 %v1079
  %1392 = vmatpush.bf16.msra.mxu0 %v1078
  %1393 = vmatpush.bf16.msra.mxu0 %v1077
  %1394 = vmatpush.bf16.msra.mxu0 %v1076
  %1395 = vmatpush.bf16.msra.mxu0 %v1075
  %1396 = vmatmul.bf16.gmra.mxu0 %v507
  %v1397 = vpop.f32.mrf.mxu0
  %v1398 = vadd.f32 %v1369, %v1397
  %v1399 = vpop.f32.mrf.mxu0
  %v1400 = vadd.f32 %v1371, %v1399
  %1401 = vmatmul.bf16.gmra.mxu0 %v521
  %v1402 = vpop.f32.mrf.mxu0
  %v1403 = vadd.f32 %v1374, %v1402
  %v1404 = vpop.f32.mrf.mxu0
  %v1405 = vadd.f32 %v1376, %v1404
  %1406 = vmatmul.bf16.gmra.mxu0 %v535
  %v1407 = vpop.f32.mrf.mxu0
  %v1408 = vadd.f32 %v1379, %v1407
  %v1409 = vpop.f32.mrf.mxu0
  %v1410 = vadd.f32 %v1381, %v1409
  %1411 = vmatmul.bf16.gmra.mxu0 %v549
  %v1412 = vpop.f32.mrf.mxu0
  %v1413 = vadd.f32 %v1384, %v1412
  %v1414 = vpop.f32.mrf.mxu0
  %v1415 = vadd.f32 %v1386, %v1414
  %1416 = vdwg.mxu0
  %1417 = vmatpush.bf16.msra.mxu0 %v1090
  %1418 = vmatpush.bf16.msra.mxu0 %v1089
  %1419 = vmatpush.bf16.msra.mxu0 %v1088
  %1420 = vmatpush.bf16.msra.mxu0 %v1087
  %1421 = vmatpush.bf16.msra.mxu0 %v1086
  %1422 = vmatpush.bf16.msra.mxu0 %v1085
  %1423 = vmatpush.bf16.msra.mxu0 %v1084
  %1424 = vmatpush.bf16.msra.mxu0 %v1083
  %1425 = vmatmul.bf16.gmra.mxu0 %v508
  %v1426 = vpop.f32.mrf.mxu0
  %v1427 = vadd.f32 %v1398, %v1426
  %v1428 = vpop.f32.mrf.mxu0
  %v1429 = vadd.f32 %v1400, %v1428
  %1430 = vmatmul.bf16.gmra.mxu0 %v522
  %v1431 = vpop.f32.mrf.mxu0
  %v1432 = vadd.f32 %v1403, %v1431
  %v1433 = vpop.f32.mrf.mxu0
  %v1434 = vadd.f32 %v1405, %v1433
  %1435 = vmatmul.bf16.gmra.mxu0 %v536
  %v1436 = vpop.f32.mrf.mxu0
  %v1437 = vadd.f32 %v1408, %v1436
  %v1438 = vpop.f32.mrf.mxu0
  %v1439 = vadd.f32 %v1410, %v1438
  %1440 = vmatmul.bf16.gmra.mxu0 %v550
  %v1441 = vpop.f32.mrf.mxu0
  %v1442 = vadd.f32 %v1413, %v1441
  %v1443 = vpop.f32.mrf.mxu0
  %v1444 = vadd.f32 %v1415, %v1443
  %1445 = vdwg.mxu0
  %1446 = vmatpush.bf16.msra.mxu0 %v1098
  %1447 = vmatpush.bf16.msra.mxu0 %v1097
  %1448 = vmatpush.bf16.msra.mxu0 %v1096
  %1449 = vmatpush.bf16.msra.mxu0 %v1095
  %1450 = vmatpush.bf16.msra.mxu0 %v1094
  %1451 = vmatpush.bf16.msra.mxu0 %v1093
  %1452 = vmatpush.bf16.msra.mxu0 %v1092
  %1453 = vmatpush.bf16.msra.mxu0 %v1091
  %1454 = vmatmul.bf16.gmra.mxu0 %v509
  %v1455 = vpop.f32.mrf.mxu0
  %v1456 = vadd.f32 %v1427, %v1455
  %v1457 = vpop.f32.mrf.mxu0
  %v1458 = vadd.f32 %v1429, %v1457
  %1459 = vmatmul.bf16.gmra.mxu0 %v523
  %v1460 = vpop.f32.mrf.mxu0
  %v1461 = vadd.f32 %v1432, %v1460
  %v1462 = vpop.f32.mrf.mxu0
  %v1463 = vadd.f32 %v1434, %v1462
  %1464 = vmatmul.bf16.gmra.mxu0 %v537
  %v1465 = vpop.f32.mrf.mxu0
  %v1466 = vadd.f32 %v1437, %v1465
  %v1467 = vpop.f32.mrf.mxu0
  %v1468 = vadd.f32 %v1439, %v1467
  %1469 = vmatmul.bf16.gmra.mxu0 %v551
  %v1470 = vpop.f32.mrf.mxu0
  %v1471 = vadd.f32 %v1442, %v1470
  %v1472 = vpop.f32.mrf.mxu0
  %v1473 = vadd.f32 %v1444, %v1472
  %1474 = vdwg.mxu0
  %1475 = vmatpush.bf16.msra.mxu0 %v1106
  %1476 = vmatpush.bf16.msra.mxu0 %v1105
  %1477 = vmatpush.bf16.msra.mxu0 %v1104
  %1478 = vmatpush.bf16.msra.mxu0 %v1103
  %1479 = vmatpush.bf16.msra.mxu0 %v1102
  %1480 = vmatpush.bf16.msra.mxu0 %v1101
  %1481 = vmatpush.bf16.msra.mxu0 %v1100
  %1482 = vmatpush.bf16.msra.mxu0 %v1099
  %1483 = vmatmul.bf16.gmra.mxu0 %v510
  %v1484 = vpop.f32.mrf.mxu0
  %v1485 = vadd.f32 %v1456, %v1484
  %v1486 = vpop.f32.mrf.mxu0
  %v1487 = vadd.f32 %v1458, %v1486
  %1488 = vmatmul.bf16.gmra.mxu0 %v524
  %v1489 = vpop.f32.mrf.mxu0
  %v1490 = vadd.f32 %v1461, %v1489
  %v1491 = vpop.f32.mrf.mxu0
  %v1492 = vadd.f32 %v1463, %v1491
  %1493 = vmatmul.bf16.gmra.mxu0 %v538
  %v1494 = vpop.f32.mrf.mxu0
  %v1495 = vadd.f32 %v1466, %v1494
  %v1496 = vpop.f32.mrf.mxu0
  %v1497 = vadd.f32 %v1468, %v1496
  %1498 = vmatmul.bf16.gmra.mxu0 %v552
  %v1499 = vpop.f32.mrf.mxu0
  %v1500 = vadd.f32 %v1471, %v1499
  %v1501 = vpop.f32.mrf.mxu0
  %v1502 = vadd.f32 %v1473, %v1501
  %1503 = vdwg.mxu0
  %1504 = vmatpush.bf16.msra.mxu0 %v1114
  %1505 = vmatpush.bf16.msra.mxu0 %v1113
  %1506 = vmatpush.bf16.msra.mxu0 %v1112
  %1507 = vmatpush.bf16.msra.mxu0 %v1111
  %1508 = vmatpush.bf16.msra.mxu0 %v1110
  %1509 = vmatpush.bf16.msra.mxu0 %v1109
  %1510 = vmatpush.bf16.msra.mxu0 %v1108
  %1511 = vmatpush.bf16.msra.mxu0 %v1107
  %1512 = vmatmul.bf16.gmra.mxu0 %v511
  %v1513 = vpop.f32.mrf.mxu0
  %v1514 = vadd.f32 %v1485, %v1513
  %v1515 = vpop.f32.mrf.mxu0
  %v1516 = vadd.f32 %v1487, %v1515
  %1517 = vmatmul.bf16.gmra.mxu0 %v525
  %v1518 = vpop.f32.mrf.mxu0
  %v1519 = vadd.f32 %v1490, %v1518
  %v1520 = vpop.f32.mrf.mxu0
  %v1521 = vadd.f32 %v1492, %v1520
  %1522 = vmatmul.bf16.gmra.mxu0 %v539
  %v1523 = vpop.f32.mrf.mxu0
  %v1524 = vadd.f32 %v1495, %v1523
  %v1525 = vpop.f32.mrf.mxu0
  %v1526 = vadd.f32 %v1497, %v1525
  %1527 = vmatmul.bf16.gmra.mxu0 %v553
  %v1528 = vpop.f32.mrf.mxu0
  %v1529 = vadd.f32 %v1500, %v1528
  %v1530 = vpop.f32.mrf.mxu0
  %v1531 = vadd.f32 %v1502, %v1530
  %1532 = vdwg.mxu0
  %1533 = vmatpush.bf16.msra.mxu0 %v1122
  %1534 = vmatpush.bf16.msra.mxu0 %v1121
  %1535 = vmatpush.bf16.msra.mxu0 %v1120
  %1536 = vmatpush.bf16.msra.mxu0 %v1119
  %1537 = vmatpush.bf16.msra.mxu0 %v1118
  %1538 = vmatpush.bf16.msra.mxu0 %v1117
  %1539 = vmatpush.bf16.msra.mxu0 %v1116
  %1540 = vmatpush.bf16.msra.mxu0 %v1115
  %1541 = vmatmul.bf16.gmra.mxu0 %v512
  %v1542 = vpop.f32.mrf.mxu0
  %v1543 = vadd.f32 %v1514, %v1542
  %v1544 = vpop.f32.mrf.mxu0
  %v1545 = vadd.f32 %v1516, %v1544
  %1546 = vmatmul.bf16.gmra.mxu0 %v526
  %v1547 = vpop.f32.mrf.mxu0
  %v1548 = vadd.f32 %v1519, %v1547
  %v1549 = vpop.f32.mrf.mxu0
  %v1550 = vadd.f32 %v1521, %v1549
  %1551 = vmatmul.bf16.gmra.mxu0 %v540
  %v1552 = vpop.f32.mrf.mxu0
  %v1553 = vadd.f32 %v1524, %v1552
  %v1554 = vpop.f32.mrf.mxu0
  %v1555 = vadd.f32 %v1526, %v1554
  %1556 = vmatmul.bf16.gmra.mxu0 %v554
  %v1557 = vpop.f32.mrf.mxu0
  %v1558 = vadd.f32 %v1529, %v1557
  %v1559 = vpop.f32.mrf.mxu0
  %v1560 = vadd.f32 %v1531, %v1559
  %1561 = vdwg.mxu0
  %1562 = vmatpush.bf16.msra.mxu0 %v1130
  %1563 = vmatpush.bf16.msra.mxu0 %v1129
  %1564 = vmatpush.bf16.msra.mxu0 %v1128
  %1565 = vmatpush.bf16.msra.mxu0 %v1127
  %1566 = vmatpush.bf16.msra.mxu0 %v1126
  %1567 = vmatpush.bf16.msra.mxu0 %v1125
  %1568 = vmatpush.bf16.msra.mxu0 %v1124
  %1569 = vmatpush.bf16.msra.mxu0 %v1123
  %1570 = vmatmul.bf16.gmra.mxu0 %v513
  %v1571 = vpop.f32.mrf.mxu0
  %v1572 = vadd.f32 %v1543, %v1571
  %v1573 = vpop.f32.mrf.mxu0
  %v1574 = vadd.f32 %v1545, %v1573
  %1575 = vmatmul.bf16.gmra.mxu0 %v527
  %v1576 = vpop.f32.mrf.mxu0
  %v1577 = vadd.f32 %v1548, %v1576
  %v1578 = vpop.f32.mrf.mxu0
  %v1579 = vadd.f32 %v1550, %v1578
  %1580 = vmatmul.bf16.gmra.mxu0 %v541
  %v1581 = vpop.f32.mrf.mxu0
  %v1582 = vadd.f32 %v1553, %v1581
  %v1583 = vpop.f32.mrf.mxu0
  %v1584 = vadd.f32 %v1555, %v1583
  %1585 = vmatmul.bf16.gmra.mxu0 %v555
  %v1586 = vpop.f32.mrf.mxu0
  %v1587 = vadd.f32 %v1558, %v1586
  %v1588 = vpop.f32.mrf.mxu0
  %v1589 = vadd.f32 %v1560, %v1588
  %1590 = vdwg.mxu0
  %1591 = vmatpush.bf16.msra.mxu0 %v1138
  %1592 = vmatpush.bf16.msra.mxu0 %v1137
  %1593 = vmatpush.bf16.msra.mxu0 %v1136
  %1594 = vmatpush.bf16.msra.mxu0 %v1135
  %1595 = vmatpush.bf16.msra.mxu0 %v1134
  %1596 = vmatpush.bf16.msra.mxu0 %v1133
  %1597 = vmatpush.bf16.msra.mxu0 %v1132
  %1598 = vmatpush.bf16.msra.mxu0 %v1131
  %1599 = vmatmul.bf16.gmra.mxu0 %v514
  %v1600 = vpop.f32.mrf.mxu0
  %v1601 = vadd.f32 %v1572, %v1600
  %v1602 = vpop.f32.mrf.mxu0
  %v1603 = vadd.f32 %v1574, %v1602
  %1604 = vmatmul.bf16.gmra.mxu0 %v528
  %v1605 = vpop.f32.mrf.mxu0
  %v1606 = vadd.f32 %v1577, %v1605
  %v1607 = vpop.f32.mrf.mxu0
  %v1608 = vadd.f32 %v1579, %v1607
  %1609 = vmatmul.bf16.gmra.mxu0 %v542
  %v1610 = vpop.f32.mrf.mxu0
  %v1611 = vadd.f32 %v1582, %v1610
  %v1612 = vpop.f32.mrf.mxu0
  %v1613 = vadd.f32 %v1584, %v1612
  %1614 = vmatmul.bf16.gmra.mxu0 %v556
  %v1615 = vpop.f32.mrf.mxu0
  %v1616 = vadd.f32 %v1587, %v1615
  %v1617 = vpop.f32.mrf.mxu0
  %v1618 = vadd.f32 %v1589, %v1617
  %1619 = vdwg.mxu0
  %1620 = vmatpush.bf16.msra.mxu0 %v1146
  %1621 = vmatpush.bf16.msra.mxu0 %v1145
  %1622 = vmatpush.bf16.msra.mxu0 %v1144
  %1623 = vmatpush.bf16.msra.mxu0 %v1143
  %1624 = vmatpush.bf16.msra.mxu0 %v1142
  %1625 = vmatpush.bf16.msra.mxu0 %v1141
  %1626 = vmatpush.bf16.msra.mxu0 %v1140
  %1627 = vmatpush.bf16.msra.mxu0 %v1139
  %1628 = vmatmul.bf16.gmra.mxu0 %v515
  %v1629 = vpop.f32.mrf.mxu0
  %v1630 = vadd.f32 %v1601, %v1629
  %v1631 = vpop.f32.mrf.mxu0
  %v1632 = vadd.f32 %v1603, %v1631
  %1633 = vmatmul.bf16.gmra.mxu0 %v529
  %v1634 = vpop.f32.mrf.mxu0
  %v1635 = vadd.f32 %v1606, %v1634
  %v1636 = vpop.f32.mrf.mxu0
  %v1637 = vadd.f32 %v1608, %v1636
  %1638 = vmatmul.bf16.gmra.mxu0 %v543
  %v1639 = vpop.f32.mrf.mxu0
  %v1640 = vadd.f32 %v1611, %v1639
  %v1641 = vpop.f32.mrf.mxu0
  %v1642 = vadd.f32 %v1613, %v1641
  %1643 = vmatmul.bf16.gmra.mxu0 %v557
  %v1644 = vpop.f32.mrf.mxu0
  %v1645 = vadd.f32 %v1616, %v1644
  %v1646 = vpop.f32.mrf.mxu0
  %v1647 = vadd.f32 %v1618, %v1646
  %1648 = vdwg.mxu0
  %1649 = vmatpush.bf16.msra.mxu0 0
  %1650 = vmatpush.bf16.msra.mxu0 0
  %1651 = vmatpush.bf16.msra.mxu0 0
  %1652 = vmatpush.bf16.msra.mxu0 0
  %1653 = vmatpush.bf16.msra.mxu0 %v1150
  %1654 = vmatpush.bf16.msra.mxu0 %v1149
  %1655 = vmatpush.bf16.msra.mxu0 %v1148
  %1656 = vmatpush.bf16.msra.mxu0 %v1147
  %1657 = vmatmul.bf16.gmra.mxu0 %v1261
  %v1658 = vpop.f32.mrf.mxu0
  %v1659 = vadd.f32 %v1630, %v1658
  %v1660 = vpop.f32.mrf.mxu0
  %v1661 = vadd.f32 %v1632, %v1660
  %1662 = vmatmul.bf16.gmra.mxu0 %v1264
  %v1663 = vpop.f32.mrf.mxu0
  %v1664 = vadd.f32 %v1635, %v1663
  %v1665 = vpop.f32.mrf.mxu0
  %v1666 = vadd.f32 %v1637, %v1665
  %1667 = vmatmul.bf16.gmra.mxu0 %v1267
  %v1668 = vpop.f32.mrf.mxu0
  %v1669 = vadd.f32 %v1640, %v1668
  %v1670 = vpop.f32.mrf.mxu0
  %v1671 = vadd.f32 %v1642, %v1670
  %1672 = vmatmul.bf16.gmra.mxu0 %v1270
  %v1673 = vpop.f32.mrf.mxu0
  %v1674 = vadd.f32 %v1645, %v1673
  %v1675 = vpop.f32.mrf.mxu0
  %v1676 = vadd.f32 %v1647, %v1675
  %1677 = vdwg.mxu0
  %vm1678 = vcmp.ge.f32.partialorder %v1659, 0.0
  %vm1679 = vcmp.ge.f32.partialorder %v1661, 0.0
  %vm1680 = vcmp.ge.f32.partialorder %v1664, 0.0
  %vm1681 = vcmp.ge.f32.partialorder %v1666, 0.0
  %vm1682 = vcmp.ge.f32.partialorder %v1669, 0.0
  %vm1683 = vcmp.ge.f32.partialorder %v1671, 0.0
  %vm1684 = vcmp.ge.f32.partialorder %v1674, 0.0
  %vm1685 = vcmp.ge.f32.partialorder %v1676, 0.0
  %v1686 = vmul.f32 %v1659, 0.01
  %v1687 = vmul.f32 %v1661, 0.01
  %v1688 = vmul.f32 %v1664, 0.01
  %v1689 = vmul.f32 %v1666, 0.01
  %v1690 = vmul.f32 %v1669, 0.01
  %v1691 = vmul.f32 %v1671, 0.01
  %v1692 = vmul.f32 %v1674, 0.01
  %v1693 = vmul.f32 %v1676, 0.01
  %v1694 = vsel %vm1678, %v1659, %v1686
  %v1695 = vsel %vm1679, %v1661, %v1687
  %v1696 = vsel %vm1680, %v1664, %v1688
  %v1697 = vsel %vm1681, %v1666, %v1689
  %v1698 = vsel %vm1682, %v1669, %v1690
  %v1699 = vsel %vm1683, %v1671, %v1691
  %v1700 = vsel %vm1684, %v1674, %v1692
  %v1701 = vsel %vm1685, %v1676, %v1693
  %v1702 = vpack.c.bf16 %v1694, %v1694
  %v1703 = vpack.c.bf16 %v1695, %v1695
  %v1704 = vpack.c.bf16 %v1696, %v1696
  %v1705 = vpack.c.bf16 %v1697, %v1697
  %v1706 = vpack.c.bf16 %v1698, %v1698
  %v1707 = vpack.c.bf16 %v1699, %v1699
  %v1708 = vpack.c.bf16 %v1700, %v1700
  %v1709 = vpack.c.bf16 %v1701, %v1701
  %vm1710 = vcmask 125952
  %1711 = vst.msk [vmem:[%s3] sm:$0xf] %vm1710, %v1702
  %1712 = vst.msk [vmem:[%s3 + $0x4] sm:$0xf] %vm1710, %v1703
  %1713 = vst.msk [vmem:[%s3 + $0x8] sm:$0xf] %vm1710, %v1704
  %1714 = vst.msk [vmem:[%s3 + $0xc] sm:$0xf] %vm1710, %v1705
  %1715 = vst.msk [vmem:[%s3 + $0x10] sm:$0xf] %vm1710, %v1706
  %1716 = vst.msk [vmem:[%s3 + $0x14] sm:$0xf] %vm1710, %v1707
  %1717 = vst.msk [vmem:[%s3 + $0x18] sm:$0xf] %vm1710, %v1708
  %1718 = vst.msk [vmem:[%s3 + $0x1c] sm:$0xf] %vm1710, %v1709
  // Predicated region
  $region14: #{voxel_encoder_forward.16} parent=0 // pred_check
    _
  $region15: #{voxel_encoder_forward.16} parent=0 // pred_check_branch
    %1720 = sbr.rel (0) target = $region17
  $region16: #{voxel_encoder_forward.16} parent=0 // pred_region
    _
  $region17: #{voxel_encoder_forward.16} parent=0 // pred_fallthru
    _
  // Predicated region
  $region18: #{voxel_encoder_forward.16} parent=0 // pred_check
    _
  $region19: #{voxel_encoder_forward.16} parent=0 // pred_check_branch
    %1722 = sbr.rel (0) target = $region21
  $region20: #{voxel_encoder_forward.16} parent=0 // pred_region
    _
  $region21: #{voxel_encoder_forward.16} parent=0 // pred_fallthru
    _

// kernel: voxel_encoder_forward.17
$region0: #{voxel_encoder_forward.17}
  #allocation0 [shape = 'u32[]', space=smem, size = 0x4, offset = 0x4, fixed_abs, tag = 'smem constant byte address 0x4 - core index']
  #allocation1 [shape = 'u32[72,128]{1,0:T(1,128)}', space=vmem, size = 0x9000, scoped, tag = 'internal scratch']
  %s0 = inlined_call_operand.vmem [shape: bf16[256,512], index: 0, kind: input, shape index: {}]
  %s1 = inlined_call_operand.vmem [shape: bf16[512,16], index: 1, kind: input, shape index: {}]
  %s2 = inlined_call_operand.vmem [shape: f32[256,1], index: 2, kind: input, shape index: {}]
  %s3 = inlined_call_operand.vmem [shape: bf16[256,16], index: 3, kind: input, shape index: {}]
  %s4 = inlined_call_operand.vmem [shape: bf16[256,16], index: 4, kind: output, shape index: {}]
  %s5 = sld [smem:[#allocation0]]
  $region26: #{voxel_encoder_forward.17} parent=0
    _
  %s7 = ssub.s32 1, %s5
  %s8 = scalar_select 0, %s7, %s5
  // Predicated region
  $region2: #{voxel_encoder_forward.17} parent=0 // pred_check
    _
  $region3: #{voxel_encoder_forward.17} parent=0 // pred_check_branch
    %10 = sbr.rel (0) target = $region5
  $region4: #{voxel_encoder_forward.17} parent=0 // pred_region
    _
  $region5: #{voxel_encoder_forward.17} parent=0 // pred_fallthru
    _
  // Predicated region
  $region6: #{voxel_encoder_forward.17} parent=0 // pred_check
    _
  $region7: #{voxel_encoder_forward.17} parent=0 // pred_check_branch
    %12 = sbr.rel (0) target = $region9
  $region8: #{voxel_encoder_forward.17} parent=0 // pred_region
    _
  $region9: #{voxel_encoder_forward.17} parent=0 // pred_fallthru
    _
  // Predicated region
  $region10: #{voxel_encoder_forward.17} parent=0 // pred_check
    _
  $region11: #{voxel_encoder_forward.17} parent=0 // pred_check_branch
    %14 = sbr.rel (0) target = $region13
  $region12: #{voxel_encoder_forward.17} parent=0 // pred_region
    _
  $region13: #{voxel_encoder_forward.17} parent=0 // pred_fallthru
    _
  // Predicated region
  $region14: #{voxel_encoder_forward.17} parent=0 // pred_check
    _
  $region15: #{voxel_encoder_forward.17} parent=0 // pred_check_branch
    %16 = sbr.rel (0) target = $region17
  $region16: #{voxel_encoder_forward.17} parent=0 // pred_region
    _
  $region17: #{voxel_encoder_forward.17} parent=0 // pred_fallthru
    _
  %v17 = vld [vmem:[%s0] sm:$0xff]
  %v18 = vld [vmem:[%s0 + $0x8] sm:$0xff]
  %v19 = vld [vmem:[%s0 + $0x10] sm:$0xff]
  %v20 = vld [vmem:[%s0 + $0x18] sm:$0xff]
  %v21 = vld [vmem:[%s0 + $0x20] sm:$0xff]
  %v22 = vld [vmem:[%s0 + $0x28] sm:$0xff]
  %v23 = vld [vmem:[%s0 + $0x30] sm:$0xff]
  %v24 = vld [vmem:[%s0 + $0x38] sm:$0xff]
  %v25 = vld [vmem:[%s0 + $0x40] sm:$0xff]
  %v26 = vld [vmem:[%s0 + $0x48] sm:$0xff]
  %v27 = vld [vmem:[%s0 + $0x50] sm:$0xff]
  %v28 = vld [vmem:[%s0 + $0x58] sm:$0xff]
  %v29 = vld [vmem:[%s0 + $0x60] sm:$0xff]
  %v30 = vld [vmem:[%s0 + $0x68] sm:$0xff]
  %v31 = vld [vmem:[%s0 + $0x70] sm:$0xff]
  %v32 = vld [vmem:[%s0 + $0x78] sm:$0xff]
  %v33 = vld [vmem:[%s0 + $0x80] sm:$0xff]
  %v34 = vld [vmem:[%s0 + $0x88] sm:$0xff]
  %v35 = vld [vmem:[%s0 + $0x90] sm:$0xff]
  %v36 = vld [vmem:[%s0 + $0x98] sm:$0xff]
  %v37 = vld [vmem:[%s0 + $0xa0] sm:$0xff]
  %v38 = vld [vmem:[%s0 + $0xa8] sm:$0xff]
  %v39 = vld [vmem:[%s0 + $0xb0] sm:$0xff]
  %v40 = vld [vmem:[%s0 + $0xb8] sm:$0xff]
  %v41 = vld [vmem:[%s0 + $0xc0] sm:$0xff]
  %v42 = vld [vmem:[%s0 + $0xc8] sm:$0xff]
  %v43 = vld [vmem:[%s0 + $0xd0] sm:$0xff]
  %v44 = vld [vmem:[%s0 + $0xd8] sm:$0xff]
  %v45 = vld [vmem:[%s0 + $0xe0] sm:$0xff]
  %v46 = vld [vmem:[%s0 + $0xe8] sm:$0xff]
  %v47 = vld [vmem:[%s0 + $0xf0] sm:$0xff]
  %v48 = vld [vmem:[%s0 + $0xf8] sm:$0xff]
  %v49 = vld [vmem:[%s0 + $0x100] sm:$0xff]
  %v50 = vld [vmem:[%s0 + $0x108] sm:$0xff]
  %v51 = vld [vmem:[%s0 + $0x110] sm:$0xff]
  %v52 = vld [vmem:[%s0 + $0x118] sm:$0xff]
  %v53 = vld [vmem:[%s0 + $0x120] sm:$0xff]
  %v54 = vld [vmem:[%s0 + $0x128] sm:$0xff]
  %v55 = vld [vmem:[%s0 + $0x130] sm:$0xff]
  %v56 = vld [vmem:[%s0 + $0x138] sm:$0xff]
  %v57 = vld [vmem:[%s0 + $0x140] sm:$0xff]
  %v58 = vld [vmem:[%s0 + $0x148] sm:$0xff]
  %v59 = vld [vmem:[%s0 + $0x150] sm:$0xff]
  %v60 = vld [vmem:[%s0 + $0x158] sm:$0xff]
  %v61 = vld [vmem:[%s0 + $0x160] sm:$0xff]
  %v62 = vld [vmem:[%s0 + $0x168] sm:$0xff]
  %v63 = vld [vmem:[%s0 + $0x170] sm:$0xff]
  %v64 = vld [vmem:[%s0 + $0x178] sm:$0xff]
  %v65 = vld [vmem:[%s0 + $0x180] sm:$0xff]
  %v66 = vld [vmem:[%s0 + $0x188] sm:$0xff]
  %v67 = vld [vmem:[%s0 + $0x190] sm:$0xff]
  %v68 = vld [vmem:[%s0 + $0x198] sm:$0xff]
  %v69 = vld [vmem:[%s0 + $0x1a0] sm:$0xff]
  %v70 = vld [vmem:[%s0 + $0x1a8] sm:$0xff]
  %v71 = vld [vmem:[%s0 + $0x1b0] sm:$0xff]
  %v72 = vld [vmem:[%s0 + $0x1b8] sm:$0xff]
  %v73 = vld [vmem:[%s0 + $0x1c0] sm:$0xff]
  %v74 = vld [vmem:[%s0 + $0x1c8] sm:$0xff]
  %v75 = vld [vmem:[%s0 + $0x1d0] sm:$0xff]
  %v76 = vld [vmem:[%s0 + $0x1d8] sm:$0xff]
  %v77 = vld [vmem:[%s0 + $0x1e0] sm:$0xff]
  %v78 = vld [vmem:[%s0 + $0x1e8] sm:$0xff]
  %v79 = vld [vmem:[%s0 + $0x1f0] sm:$0xff]
  %v80 = vld [vmem:[%s0 + $0x1f8] sm:$0xff]
  %v81 = vld [vmem:[%s1] sm:$0xf]
  %v82 = vld [vmem:[%s1 + $0x4] sm:$0xf]
  %v83 = vld [vmem:[%s1 + $0x8] sm:$0xf]
  %v84 = vld [vmem:[%s1 + $0xc] sm:$0xf]
  %v85 = vld [vmem:[%s1 + $0x10] sm:$0xf]
  %v86 = vld [vmem:[%s1 + $0x14] sm:$0xf]
  %v87 = vld [vmem:[%s1 + $0x18] sm:$0xf]
  %v88 = vld [vmem:[%s1 + $0x1c] sm:$0xf]
  %v89 = vld [vmem:[%s1 + $0x20] sm:$0xf]
  %v90 = vld [vmem:[%s1 + $0x24] sm:$0xf]
  %v91 = vld [vmem:[%s1 + $0x28] sm:$0xf]
  %v92 = vld [vmem:[%s1 + $0x2c] sm:$0xf]
  %v93 = vld [vmem:[%s1 + $0x30] sm:$0xf]
  %v94 = vld [vmem:[%s1 + $0x34] sm:$0xf]
  %v95 = vld [vmem:[%s1 + $0x38] sm:$0xf]
  %v96 = vld [vmem:[%s1 + $0x3c] sm:$0xf]
  %v97 = vld [vmem:[%s1 + $0x40] sm:$0xf]
  %v98 = vld [vmem:[%s1 + $0x44] sm:$0xf]
  %v99 = vld [vmem:[%s1 + $0x48] sm:$0xf]
  %v100 = vld [vmem:[%s1 + $0x4c] sm:$0xf]
  %v101 = vld [vmem:[%s1 + $0x50] sm:$0xf]
  %v102 = vld [vmem:[%s1 + $0x54] sm:$0xf]
  %v103 = vld [vmem:[%s1 + $0x58] sm:$0xf]
  %v104 = vld [vmem:[%s1 + $0x5c] sm:$0xf]
  %v105 = vld [vmem:[%s1 + $0x60] sm:$0xf]
  %v106 = vld [vmem:[%s1 + $0x64] sm:$0xf]
  %v107 = vld [vmem:[%s1 + $0x68] sm:$0xf]
  %v108 = vld [vmem:[%s1 + $0x6c] sm:$0xf]
  %v109 = vld [vmem:[%s1 + $0x70] sm:$0xf]
  %v110 = vld [vmem:[%s1 + $0x74] sm:$0xf]
  %v111 = vld [vmem:[%s1 + $0x78] sm:$0xf]
  %v112 = vld [vmem:[%s1 + $0x7c] sm:$0xf]
  %v113 = vld [vmem:[%s1 + $0x80] sm:$0xf]
  %v114 = vld [vmem:[%s1 + $0x84] sm:$0xf]
  %v115 = vld [vmem:[%s1 + $0x88] sm:$0xf]
  %v116 = vld [vmem:[%s1 + $0x8c] sm:$0xf]
  %v117 = vld [vmem:[%s1 + $0x90] sm:$0xf]
  %v118 = vld [vmem:[%s1 + $0x94] sm:$0xf]
  %v119 = vld [vmem:[%s1 + $0x98] sm:$0xf]
  %v120 = vld [vmem:[%s1 + $0x9c] sm:$0xf]
  %v121 = vld [vmem:[%s1 + $0xa0] sm:$0xf]
  %v122 = vld [vmem:[%s1 + $0xa4] sm:$0xf]
  %v123 = vld [vmem:[%s1 + $0xa8] sm:$0xf]
  %v124 = vld [vmem:[%s1 + $0xac] sm:$0xf]
  %v125 = vld [vmem:[%s1 + $0xb0] sm:$0xf]
  %v126 = vld [vmem:[%s1 + $0xb4] sm:$0xf]
  %v127 = vld [vmem:[%s1 + $0xb8] sm:$0xf]
  %v128 = vld [vmem:[%s1 + $0xbc] sm:$0xf]
  %v129 = vld [vmem:[%s1 + $0xc0] sm:$0xf]
  %v130 = vld [vmem:[%s1 + $0xc4] sm:$0xf]
  %v131 = vld [vmem:[%s1 + $0xc8] sm:$0xf]
  %v132 = vld [vmem:[%s1 + $0xcc] sm:$0xf]
  %v133 = vld [vmem:[%s1 + $0xd0] sm:$0xf]
  %v134 = vld [vmem:[%s1 + $0xd4] sm:$0xf]
  %v135 = vld [vmem:[%s1 + $0xd8] sm:$0xf]
  %v136 = vld [vmem:[%s1 + $0xdc] sm:$0xf]
  %v137 = vld [vmem:[%s1 + $0xe0] sm:$0xf]
  %v138 = vld [vmem:[%s1 + $0xe4] sm:$0xf]
  %v139 = vld [vmem:[%s1 + $0xe8] sm:$0xf]
  %v140 = vld [vmem:[%s1 + $0xec] sm:$0xf]
  %v141 = vld [vmem:[%s1 + $0xf0] sm:$0xf]
  %v142 = vld [vmem:[%s1 + $0xf4] sm:$0xf]
  %v143 = vld [vmem:[%s1 + $0xf8] sm:$0xf]
  %v144 = vld [vmem:[%s1 + $0xfc] sm:$0xf]
  %v145 = vld [vmem:[%s2] sm:$0xff]
  %v146 = vld [vmem:[%s2 + $0x8] sm:$0xff]
  %v147 = vld [vmem:[%s2 + $0x10] sm:$0xff]
  %v148 = vld [vmem:[%s2 + $0x18] sm:$0xff]
  %v149 = vld [vmem:[%s2 + $0x20] sm:$0xff]
  %v150 = vld [vmem:[%s2 + $0x28] sm:$0xff]
  %v151 = vld [vmem:[%s2 + $0x30] sm:$0xff]
  %v152 = vld [vmem:[%s2 + $0x38] sm:$0xff]
  %v153 = vld [vmem:[%s2 + $0x40] sm:$0xff]
  %v154 = vld [vmem:[%s2 + $0x48] sm:$0xff]
  %v155 = vld [vmem:[%s2 + $0x50] sm:$0xff]
  %v156 = vld [vmem:[%s2 + $0x58] sm:$0xff]
  %v157 = vld [vmem:[%s2 + $0x60] sm:$0xff]
  %v158 = vld [vmem:[%s2 + $0x68] sm:$0xff]
  %v159 = vld [vmem:[%s2 + $0x70] sm:$0xff]
  %v160 = vld [vmem:[%s2 + $0x78] sm:$0xff]
  %v161 = vld [vmem:[%s2 + $0x80] sm:$0xff]
  %v162 = vld [vmem:[%s2 + $0x88] sm:$0xff]
  %v163 = vld [vmem:[%s2 + $0x90] sm:$0xff]
  %v164 = vld [vmem:[%s2 + $0x98] sm:$0xff]
  %v165 = vld [vmem:[%s2 + $0xa0] sm:$0xff]
  %v166 = vld [vmem:[%s2 + $0xa8] sm:$0xff]
  %v167 = vld [vmem:[%s2 + $0xb0] sm:$0xff]
  %v168 = vld [vmem:[%s2 + $0xb8] sm:$0xff]
  %v169 = vld [vmem:[%s2 + $0xc0] sm:$0xff]
  %v170 = vld [vmem:[%s2 + $0xc8] sm:$0xff]
  %v171 = vld [vmem:[%s2 + $0xd0] sm:$0xff]
  %v172 = vld [vmem:[%s2 + $0xd8] sm:$0xff]
  %v173 = vld [vmem:[%s2 + $0xe0] sm:$0xff]
  %v174 = vld [vmem:[%s2 + $0xe8] sm:$0xff]
  %v175 = vld [vmem:[%s2 + $0xf0] sm:$0xff]
  %v176 = vld [vmem:[%s2 + $0xf8] sm:$0xff]
  %178 = vset.pattern.permute.xlu0 0
  %179 = vperm.xlu0 %178, %v145
  %v180 = vpop.permute.xlu0 %179
  %183 = vset.pattern.permute.xlu0 0
  %184 = vperm.xlu0 %183, %v146
  %v185 = vpop.permute.xlu0 %184
  %188 = vset.pattern.permute.xlu0 0
  %189 = vperm.xlu0 %188, %v147
  %v190 = vpop.permute.xlu0 %189
  %193 = vset.pattern.permute.xlu0 0
  %194 = vperm.xlu0 %193, %v148
  %v195 = vpop.permute.xlu0 %194
  %198 = vset.pattern.permute.xlu0 0
  %199 = vperm.xlu0 %198, %v149
  %v200 = vpop.permute.xlu0 %199
  %203 = vset.pattern.permute.xlu0 0
  %204 = vperm.xlu0 %203, %v150
  %v205 = vpop.permute.xlu0 %204
  %208 = vset.pattern.permute.xlu0 0
  %209 = vperm.xlu0 %208, %v151
  %v210 = vpop.permute.xlu0 %209
  %213 = vset.pattern.permute.xlu0 0
  %214 = vperm.xlu0 %213, %v152
  %v215 = vpop.permute.xlu0 %214
  %218 = vset.pattern.permute.xlu0 0
  %219 = vperm.xlu0 %218, %v153
  %v220 = vpop.permute.xlu0 %219
  %223 = vset.pattern.permute.xlu0 0
  %224 = vperm.xlu0 %223, %v154
  %v225 = vpop.permute.xlu0 %224
  %228 = vset.pattern.permute.xlu0 0
  %229 = vperm.xlu0 %228, %v155
  %v230 = vpop.permute.xlu0 %229
  %233 = vset.pattern.permute.xlu0 0
  %234 = vperm.xlu0 %233, %v156
  %v235 = vpop.permute.xlu0 %234
  %238 = vset.pattern.permute.xlu0 0
  %239 = vperm.xlu0 %238, %v157
  %v240 = vpop.permute.xlu0 %239
  %243 = vset.pattern.permute.xlu0 0
  %244 = vperm.xlu0 %243, %v158
  %v245 = vpop.permute.xlu0 %244
  %248 = vset.pattern.permute.xlu0 0
  %249 = vperm.xlu0 %248, %v159
  %v250 = vpop.permute.xlu0 %249
  %253 = vset.pattern.permute.xlu0 0
  %254 = vperm.xlu0 %253, %v160
  %v255 = vpop.permute.xlu0 %254
  %258 = vset.pattern.permute.xlu0 0
  %259 = vperm.xlu0 %258, %v161
  %v260 = vpop.permute.xlu0 %259
  %263 = vset.pattern.permute.xlu0 0
  %264 = vperm.xlu0 %263, %v162
  %v265 = vpop.permute.xlu0 %264
  %268 = vset.pattern.permute.xlu0 0
  %269 = vperm.xlu0 %268, %v163
  %v270 = vpop.permute.xlu0 %269
  %273 = vset.pattern.permute.xlu0 0
  %274 = vperm.xlu0 %273, %v164
  %v275 = vpop.permute.xlu0 %274
  %278 = vset.pattern.permute.xlu0 0
  %279 = vperm.xlu0 %278, %v165
  %v280 = vpop.permute.xlu0 %279
  %283 = vset.pattern.permute.xlu0 0
  %284 = vperm.xlu0 %283, %v166
  %v285 = vpop.permute.xlu0 %284
  %288 = vset.pattern.permute.xlu0 0
  %289 = vperm.xlu0 %288, %v167
  %v290 = vpop.permute.xlu0 %289
  %293 = vset.pattern.permute.xlu0 0
  %294 = vperm.xlu0 %293, %v168
  %v295 = vpop.permute.xlu0 %294
  %298 = vset.pattern.permute.xlu0 0
  %299 = vperm.xlu0 %298, %v169
  %v300 = vpop.permute.xlu0 %299
  %303 = vset.pattern.permute.xlu0 0
  %304 = vperm.xlu0 %303, %v170
  %v305 = vpop.permute.xlu0 %304
  %308 = vset.pattern.permute.xlu0 0
  %309 = vperm.xlu0 %308, %v171
  %v310 = vpop.permute.xlu0 %309
  %313 = vset.pattern.permute.xlu0 0
  %314 = vperm.xlu0 %313, %v172
  %v315 = vpop.permute.xlu0 %314
  %318 = vset.pattern.permute.xlu0 0
  %319 = vperm.xlu0 %318, %v173
  %v320 = vpop.permute.xlu0 %319
  %323 = vset.pattern.permute.xlu0 0
  %324 = vperm.xlu0 %323, %v174
  %v325 = vpop.permute.xlu0 %324
  %328 = vset.pattern.permute.xlu0 0
  %329 = vperm.xlu0 %328, %v175
  %v330 = vpop.permute.xlu0 %329
  %333 = vset.pattern.permute.xlu0 0
  %334 = vperm.xlu0 %333, %v176
  %v335 = vpop.permute.xlu0 %334
  %v401 = vunpack.c.l.b16 %v17
  %v402 = vunpack.c.h.b16 %v17
  %v403 = vunpack.c.l.b16 %v18
  %v404 = vunpack.c.h.b16 %v18
  %v405 = vunpack.c.l.b16 %v19
  %v406 = vunpack.c.h.b16 %v19
  %v407 = vunpack.c.l.b16 %v20
  %v408 = vunpack.c.h.b16 %v20
  %v409 = vunpack.c.l.b16 %v21
  %v410 = vunpack.c.h.b16 %v21
  %v411 = vunpack.c.l.b16 %v22
  %v412 = vunpack.c.h.b16 %v22
  %v413 = vunpack.c.l.b16 %v23
  %v414 = vunpack.c.h.b16 %v23
  %v415 = vunpack.c.l.b16 %v24
  %v416 = vunpack.c.h.b16 %v24
  %v417 = vunpack.c.l.b16 %v25
  %v418 = vunpack.c.h.b16 %v25
  %v419 = vunpack.c.l.b16 %v26
  %v420 = vunpack.c.h.b16 %v26
  %v421 = vunpack.c.l.b16 %v27
  %v422 = vunpack.c.h.b16 %v27
  %v423 = vunpack.c.l.b16 %v28
  %v424 = vunpack.c.h.b16 %v28
  %v425 = vunpack.c.l.b16 %v29
  %v426 = vunpack.c.h.b16 %v29
  %v427 = vunpack.c.l.b16 %v30
  %v428 = vunpack.c.h.b16 %v30
  %v429 = vunpack.c.l.b16 %v31
  %v430 = vunpack.c.h.b16 %v31
  %v431 = vunpack.c.l.b16 %v32
  %v432 = vunpack.c.h.b16 %v32
  %v433 = vunpack.c.l.b16 %v33
  %v434 = vunpack.c.h.b16 %v33
  %v435 = vunpack.c.l.b16 %v34
  %v436 = vunpack.c.h.b16 %v34
  %v437 = vunpack.c.l.b16 %v35
  %v438 = vunpack.c.h.b16 %v35
  %v439 = vunpack.c.l.b16 %v36
  %v440 = vunpack.c.h.b16 %v36
  %v441 = vunpack.c.l.b16 %v37
  %v442 = vunpack.c.h.b16 %v37
  %v443 = vunpack.c.l.b16 %v38
  %v444 = vunpack.c.h.b16 %v38
  %v445 = vunpack.c.l.b16 %v39
  %v446 = vunpack.c.h.b16 %v39
  %v447 = vunpack.c.l.b16 %v40
  %v448 = vunpack.c.h.b16 %v40
  %v449 = vunpack.c.l.b16 %v41
  %v450 = vunpack.c.h.b16 %v41
  %v451 = vunpack.c.l.b16 %v42
  %v452 = vunpack.c.h.b16 %v42
  %v453 = vunpack.c.l.b16 %v43
  %v454 = vunpack.c.h.b16 %v43
  %v455 = vunpack.c.l.b16 %v44
  %v456 = vunpack.c.h.b16 %v44
  %v457 = vunpack.c.l.b16 %v45
  %v458 = vunpack.c.h.b16 %v45
  %v459 = vunpack.c.l.b16 %v46
  %v460 = vunpack.c.h.b16 %v46
  %v461 = vunpack.c.l.b16 %v47
  %v462 = vunpack.c.h.b16 %v47
  %v463 = vunpack.c.l.b16 %v48
  %v464 = vunpack.c.h.b16 %v48
  %v465 = vunpack.c.l.b16 %v49
  %v466 = vunpack.c.h.b16 %v49
  %v467 = vunpack.c.l.b16 %v50
  %v468 = vunpack.c.h.b16 %v50
  %v469 = vunpack.c.l.b16 %v51
  %v470 = vunpack.c.h.b16 %v51
  %v471 = vunpack.c.l.b16 %v52
  %v472 = vunpack.c.h.b16 %v52
  %v473 = vunpack.c.l.b16 %v53
  %v474 = vunpack.c.h.b16 %v53
  %v475 = vunpack.c.l.b16 %v54
  %v476 = vunpack.c.h.b16 %v54
  %v477 = vunpack.c.l.b16 %v55
  %v478 = vunpack.c.h.b16 %v55
  %v479 = vunpack.c.l.b16 %v56
  %v480 = vunpack.c.h.b16 %v56
  %v481 = vunpack.c.l.b16 %v57
  %v482 = vunpack.c.h.b16 %v57
  %v483 = vunpack.c.l.b16 %v58
  %v484 = vunpack.c.h.b16 %v58
  %v485 = vunpack.c.l.b16 %v59
  %v486 = vunpack.c.h.b16 %v59
  %v487 = vunpack.c.l.b16 %v60
  %v488 = vunpack.c.h.b16 %v60
  %v489 = vunpack.c.l.b16 %v61
  %v490 = vunpack.c.h.b16 %v61
  %v491 = vunpack.c.l.b16 %v62
  %v492 = vunpack.c.h.b16 %v62
  %v493 = vunpack.c.l.b16 %v63
  %v494 = vunpack.c.h.b16 %v63
  %v495 = vunpack.c.l.b16 %v64
  %v496 = vunpack.c.h.b16 %v64
  %v497 = vunpack.c.l.b16 %v65
  %v498 = vunpack.c.h.b16 %v65
  %v499 = vunpack.c.l.b16 %v66
  %v500 = vunpack.c.h.b16 %v66
  %v501 = vunpack.c.l.b16 %v67
  %v502 = vunpack.c.h.b16 %v67
  %v503 = vunpack.c.l.b16 %v68
  %v504 = vunpack.c.h.b16 %v68
  %v505 = vunpack.c.l.b16 %v69
  %v506 = vunpack.c.h.b16 %v69
  %v507 = vunpack.c.l.b16 %v70
  %v508 = vunpack.c.h.b16 %v70
  %v509 = vunpack.c.l.b16 %v71
  %v510 = vunpack.c.h.b16 %v71
  %v511 = vunpack.c.l.b16 %v72
  %v512 = vunpack.c.h.b16 %v72
  %v513 = vunpack.c.l.b16 %v73
  %v514 = vunpack.c.h.b16 %v73
  %v515 = vunpack.c.l.b16 %v74
  %v516 = vunpack.c.h.b16 %v74
  %v517 = vunpack.c.l.b16 %v75
  %v518 = vunpack.c.h.b16 %v75
  %v519 = vunpack.c.l.b16 %v76
  %v520 = vunpack.c.h.b16 %v76
  %v521 = vunpack.c.l.b16 %v77
  %v522 = vunpack.c.h.b16 %v77
  %v523 = vunpack.c.l.b16 %v78
  %v524 = vunpack.c.h.b16 %v78
  %v525 = vunpack.c.l.b16 %v79
  %v526 = vunpack.c.h.b16 %v79
  %v527 = vunpack.c.l.b16 %v80
  %v528 = vunpack.c.h.b16 %v80
  %v529 = vpack.c.b16 %v405, %v401
  %v530 = vpack.c.b16 %v406, %v402
  %v531 = vpack.c.b16 %v407, %v403
  %v532 = vpack.c.b16 %v408, %v404
  %v533 = vpack.c.b16 %v413, %v409
  %v534 = vpack.c.b16 %v414, %v410
  %v535 = vpack.c.b16 %v415, %v411
  %v536 = vpack.c.b16 %v416, %v412
  %v537 = vpack.c.b16 %v421, %v417
  %v538 = vpack.c.b16 %v422, %v418
  %v539 = vpack.c.b16 %v423, %v419
  %v540 = vpack.c.b16 %v424, %v420
  %v541 = vpack.c.b16 %v429, %v425
  %v542 = vpack.c.b16 %v430, %v426
  %v543 = vpack.c.b16 %v431, %v427
  %v544 = vpack.c.b16 %v432, %v428
  %v545 = vpack.c.b16 %v437, %v433
  %v546 = vpack.c.b16 %v438, %v434
  %v547 = vpack.c.b16 %v439, %v435
  %v548 = vpack.c.b16 %v440, %v436
  %v549 = vpack.c.b16 %v445, %v441
  %v550 = vpack.c.b16 %v446, %v442
  %v551 = vpack.c.b16 %v447, %v443
  %v552 = vpack.c.b16 %v448, %v444
  %v553 = vpack.c.b16 %v453, %v449
  %v554 = vpack.c.b16 %v454, %v450
  %v555 = vpack.c.b16 %v455, %v451
  %v556 = vpack.c.b16 %v456, %v452
  %v557 = vpack.c.b16 %v461, %v457
  %v558 = vpack.c.b16 %v462, %v458
  %v559 = vpack.c.b16 %v463, %v459
  %v560 = vpack.c.b16 %v464, %v460
  %v561 = vpack.c.b16 %v469, %v465
  %v562 = vpack.c.b16 %v470, %v466
  %v563 = vpack.c.b16 %v471, %v467
  %v564 = vpack.c.b16 %v472, %v468
  %v565 = vpack.c.b16 %v477, %v473
  %v566 = vpack.c.b16 %v478, %v474
  %v567 = vpack.c.b16 %v479, %v475
  %v568 = vpack.c.b16 %v480, %v476
  %v569 = vpack.c.b16 %v485, %v481
  %v570 = vpack.c.b16 %v486, %v482
  %v571 = vpack.c.b16 %v487, %v483
  %v572 = vpack.c.b16 %v488, %v484
  %v573 = vpack.c.b16 %v493, %v489
  %v574 = vpack.c.b16 %v494, %v490
  %v575 = vpack.c.b16 %v495, %v491
  %v576 = vpack.c.b16 %v496, %v492
  %v577 = vpack.c.b16 %v501, %v497
  %v578 = vpack.c.b16 %v502, %v498
  %v579 = vpack.c.b16 %v503, %v499
  %v580 = vpack.c.b16 %v504, %v500
  %v581 = vpack.c.b16 %v509, %v505
  %v582 = vpack.c.b16 %v510, %v506
  %v583 = vpack.c.b16 %v511, %v507
  %v584 = vpack.c.b16 %v512, %v508
  %v585 = vpack.c.b16 %v517, %v513
  %v586 = vpack.c.b16 %v518, %v514
  %v587 = vpack.c.b16 %v519, %v515
  %v588 = vpack.c.b16 %v520, %v516
  %v589 = vpack.c.b16 %v525, %v521
  %v590 = vpack.c.b16 %v526, %v522
  %v591 = vpack.c.b16 %v527, %v523
  %v592 = vpack.c.b16 %v528, %v524
  %v721 = vunpack.c.l.b16 %v81
  %v722 = vunpack.c.l.b16 %v82
  %v723 = vunpack.c.l.b16 %v83
  %v724 = vunpack.c.l.b16 %v84
  %v725 = vunpack.c.l.b16 %v85
  %v726 = vunpack.c.l.b16 %v86
  %v727 = vunpack.c.l.b16 %v87
  %v728 = vunpack.c.l.b16 %v88
  %v729 = vunpack.c.l.b16 %v89
  %v730 = vunpack.c.l.b16 %v90
  %v731 = vunpack.c.l.b16 %v91
  %v732 = vunpack.c.l.b16 %v92
  %v733 = vunpack.c.l.b16 %v93
  %v734 = vunpack.c.l.b16 %v94
  %v735 = vunpack.c.l.b16 %v95
  %v736 = vunpack.c.l.b16 %v96
  %v737 = vunpack.c.l.b16 %v97
  %v738 = vunpack.c.l.b16 %v98
  %v739 = vunpack.c.l.b16 %v99
  %v740 = vunpack.c.l.b16 %v100
  %v741 = vunpack.c.l.b16 %v101
  %v742 = vunpack.c.l.b16 %v102
  %v743 = vunpack.c.l.b16 %v103
  %v744 = vunpack.c.l.b16 %v104
  %v745 = vunpack.c.l.b16 %v105
  %v746 = vunpack.c.l.b16 %v106
  %v747 = vunpack.c.l.b16 %v107
  %v748 = vunpack.c.l.b16 %v108
  %v749 = vunpack.c.l.b16 %v109
  %v750 = vunpack.c.l.b16 %v110
  %v751 = vunpack.c.l.b16 %v111
  %v752 = vunpack.c.l.b16 %v112
  %v753 = vunpack.c.l.b16 %v113
  %v754 = vunpack.c.l.b16 %v114
  %v755 = vunpack.c.l.b16 %v115
  %v756 = vunpack.c.l.b16 %v116
  %v757 = vunpack.c.l.b16 %v117
  %v758 = vunpack.c.l.b16 %v118
  %v759 = vunpack.c.l.b16 %v119
  %v760 = vunpack.c.l.b16 %v120
  %v761 = vunpack.c.l.b16 %v121
  %v762 = vunpack.c.l.b16 %v122
  %v763 = vunpack.c.l.b16 %v123
  %v764 = vunpack.c.l.b16 %v124
  %v765 = vunpack.c.l.b16 %v125
  %v766 = vunpack.c.l.b16 %v126
  %v767 = vunpack.c.l.b16 %v127
  %v768 = vunpack.c.l.b16 %v128
  %v769 = vunpack.c.l.b16 %v129
  %v770 = vunpack.c.l.b16 %v130
  %v771 = vunpack.c.l.b16 %v131
  %v772 = vunpack.c.l.b16 %v132
  %v773 = vunpack.c.l.b16 %v133
  %v774 = vunpack.c.l.b16 %v134
  %v775 = vunpack.c.l.b16 %v135
  %v776 = vunpack.c.l.b16 %v136
  %v777 = vunpack.c.l.b16 %v137
  %v778 = vunpack.c.l.b16 %v138
  %v779 = vunpack.c.l.b16 %v139
  %v780 = vunpack.c.l.b16 %v140
  %v781 = vunpack.c.l.b16 %v141
  %v782 = vunpack.c.l.b16 %v142
  %v783 = vunpack.c.l.b16 %v143
  %v784 = vunpack.c.l.b16 %v144
  %v785 = vpack.c.b16 %v722, %v721
  %v786 = vpack.c.b16 %v724, %v723
  %v787 = vpack.c.b16 %v726, %v725
  %v788 = vpack.c.b16 %v728, %v727
  %v789 = vpack.c.b16 %v730, %v729
  %v790 = vpack.c.b16 %v732, %v731
  %v791 = vpack.c.b16 %v734, %v733
  %v792 = vpack.c.b16 %v736, %v735
  %v793 = vpack.c.b16 %v738, %v737
  %v794 = vpack.c.b16 %v740, %v739
  %v795 = vpack.c.b16 %v742, %v741
  %v796 = vpack.c.b16 %v744, %v743
  %v797 = vpack.c.b16 %v746, %v745
  %v798 = vpack.c.b16 %v748, %v747
  %v799 = vpack.c.b16 %v750, %v749
  %v800 = vpack.c.b16 %v752, %v751
  %v801 = vpack.c.b16 %v754, %v753
  %v802 = vpack.c.b16 %v756, %v755
  %v803 = vpack.c.b16 %v758, %v757
  %v804 = vpack.c.b16 %v760, %v759
  %v805 = vpack.c.b16 %v762, %v761
  %v806 = vpack.c.b16 %v764, %v763
  %v807 = vpack.c.b16 %v766, %v765
  %v808 = vpack.c.b16 %v768, %v767
  %v809 = vpack.c.b16 %v770, %v769
  %v810 = vpack.c.b16 %v772, %v771
  %v811 = vpack.c.b16 %v774, %v773
  %v812 = vpack.c.b16 %v776, %v775
  %v813 = vpack.c.b16 %v778, %v777
  %v814 = vpack.c.b16 %v780, %v779
  %v815 = vpack.c.b16 %v782, %v781
  %v816 = vpack.c.b16 %v784, %v783
  %849 = vmatpush.bf16.msra.mxu0 %v792
  %850 = vmatpush.bf16.msra.mxu0 %v791
  %851 = vmatpush.bf16.msra.mxu0 %v790
  %852 = vmatpush.bf16.msra.mxu0 %v789
  %853 = vmatpush.bf16.msra.mxu0 %v788
  %854 = vmatpush.bf16.msra.mxu0 %v787
  %855 = vmatpush.bf16.msra.mxu0 %v786
  %856 = vmatpush.bf16.msra.mxu0 %v785
  %857 = vmatmul.bf16.gmra.mxu0 %v529
  %v858 = vpop.f32.mrf.mxu0
  %v859 = vadd.f32 %v180, %v858
  %v860 = vpop.f32.mrf.mxu0
  %v861 = vadd.f32 %v185, %v860
  %862 = vmatmul.bf16.gmra.mxu0 %v533
  %v863 = vpop.f32.mrf.mxu0
  %v864 = vadd.f32 %v190, %v863
  %v865 = vpop.f32.mrf.mxu0
  %v866 = vadd.f32 %v195, %v865
  %867 = vmatmul.bf16.gmra.mxu0 %v537
  %v868 = vpop.f32.mrf.mxu0
  %v869 = vadd.f32 %v200, %v868
  %v870 = vpop.f32.mrf.mxu0
  %v871 = vadd.f32 %v205, %v870
  %872 = vmatmul.bf16.gmra.mxu0 %v541
  %v873 = vpop.f32.mrf.mxu0
  %v874 = vadd.f32 %v210, %v873
  %v875 = vpop.f32.mrf.mxu0
  %v876 = vadd.f32 %v215, %v875
  %877 = vmatmul.bf16.gmra.mxu0 %v545
  %v878 = vpop.f32.mrf.mxu0
  %v879 = vadd.f32 %v220, %v878
  %v880 = vpop.f32.mrf.mxu0
  %v881 = vadd.f32 %v225, %v880
  %882 = vmatmul.bf16.gmra.mxu0 %v549
  %v883 = vpop.f32.mrf.mxu0
  %v884 = vadd.f32 %v230, %v883
  %v885 = vpop.f32.mrf.mxu0
  %v886 = vadd.f32 %v235, %v885
  %887 = vmatmul.bf16.gmra.mxu0 %v553
  %v888 = vpop.f32.mrf.mxu0
  %v889 = vadd.f32 %v240, %v888
  %v890 = vpop.f32.mrf.mxu0
  %v891 = vadd.f32 %v245, %v890
  %892 = vmatmul.bf16.gmra.mxu0 %v557
  %v893 = vpop.f32.mrf.mxu0
  %v894 = vadd.f32 %v250, %v893
  %v895 = vpop.f32.mrf.mxu0
  %v896 = vadd.f32 %v255, %v895
  %897 = vmatmul.bf16.gmra.mxu0 %v561
  %v898 = vpop.f32.mrf.mxu0
  %v899 = vadd.f32 %v260, %v898
  %v900 = vpop.f32.mrf.mxu0
  %v901 = vadd.f32 %v265, %v900
  %902 = vmatmul.bf16.gmra.mxu0 %v565
  %v903 = vpop.f32.mrf.mxu0
  %v904 = vadd.f32 %v270, %v903
  %v905 = vpop.f32.mrf.mxu0
  %v906 = vadd.f32 %v275, %v905
  %907 = vmatmul.bf16.gmra.mxu0 %v569
  %v908 = vpop.f32.mrf.mxu0
  %v909 = vadd.f32 %v280, %v908
  %v910 = vpop.f32.mrf.mxu0
  %v911 = vadd.f32 %v285, %v910
  %912 = vmatmul.bf16.gmra.mxu0 %v573
  %v913 = vpop.f32.mrf.mxu0
  %v914 = vadd.f32 %v290, %v913
  %v915 = vpop.f32.mrf.mxu0
  %v916 = vadd.f32 %v295, %v915
  %917 = vmatmul.bf16.gmra.mxu0 %v577
  %v918 = vpop.f32.mrf.mxu0
  %v919 = vadd.f32 %v300, %v918
  %v920 = vpop.f32.mrf.mxu0
  %v921 = vadd.f32 %v305, %v920
  %922 = vmatmul.bf16.gmra.mxu0 %v581
  %v923 = vpop.f32.mrf.mxu0
  %v924 = vadd.f32 %v310, %v923
  %v925 = vpop.f32.mrf.mxu0
  %v926 = vadd.f32 %v315, %v925
  %927 = vmatmul.bf16.gmra.mxu0 %v585
  %v928 = vpop.f32.mrf.mxu0
  %v929 = vadd.f32 %v320, %v928
  %v930 = vpop.f32.mrf.mxu0
  %v931 = vadd.f32 %v325, %v930
  %932 = vmatmul.bf16.gmra.mxu0 %v589
  %v933 = vpop.f32.mrf.mxu0
  %v934 = vadd.f32 %v330, %v933
  %v935 = vpop.f32.mrf.mxu0
  %v936 = vadd.f32 %v335, %v935
  %937 = vdwg.mxu0
  %938 = vmatpush.bf16.msra.mxu0 %v800
  %939 = vmatpush.bf16.msra.mxu0 %v799
  %940 = vmatpush.bf16.msra.mxu0 %v798
  %941 = vmatpush.bf16.msra.mxu0 %v797
  %942 = vmatpush.bf16.msra.mxu0 %v796
  %943 = vmatpush.bf16.msra.mxu0 %v795
  %944 = vmatpush.bf16.msra.mxu0 %v794
  %945 = vmatpush.bf16.msra.mxu0 %v793
  %946 = vmatmul.bf16.gmra.mxu0 %v530
  %v947 = vpop.f32.mrf.mxu0
  %v948 = vadd.f32 %v859, %v947
  %v949 = vpop.f32.mrf.mxu0
  %v950 = vadd.f32 %v861, %v949
  %951 = vmatmul.bf16.gmra.mxu0 %v534
  %v952 = vpop.f32.mrf.mxu0
  %v953 = vadd.f32 %v864, %v952
  %v954 = vpop.f32.mrf.mxu0
  %v955 = vadd.f32 %v866, %v954
  %956 = vmatmul.bf16.gmra.mxu0 %v538
  %v957 = vpop.f32.mrf.mxu0
  %v958 = vadd.f32 %v869, %v957
  %v959 = vpop.f32.mrf.mxu0
  %v960 = vadd.f32 %v871, %v959
  %961 = vmatmul.bf16.gmra.mxu0 %v542
  %v962 = vpop.f32.mrf.mxu0
  %v963 = vadd.f32 %v874, %v962
  %v964 = vpop.f32.mrf.mxu0
  %v965 = vadd.f32 %v876, %v964
  %966 = vmatmul.bf16.gmra.mxu0 %v546
  %v967 = vpop.f32.mrf.mxu0
  %v968 = vadd.f32 %v879, %v967
  %v969 = vpop.f32.mrf.mxu0
  %v970 = vadd.f32 %v881, %v969
  %971 = vmatmul.bf16.gmra.mxu0 %v550
  %v972 = vpop.f32.mrf.mxu0
  %v973 = vadd.f32 %v884, %v972
  %v974 = vpop.f32.mrf.mxu0
  %v975 = vadd.f32 %v886, %v974
  %976 = vmatmul.bf16.gmra.mxu0 %v554
  %v977 = vpop.f32.mrf.mxu0
  %v978 = vadd.f32 %v889, %v977
  %v979 = vpop.f32.mrf.mxu0
  %v980 = vadd.f32 %v891, %v979
  %981 = vmatmul.bf16.gmra.mxu0 %v558
  %v982 = vpop.f32.mrf.mxu0
  %v983 = vadd.f32 %v894, %v982
  %v984 = vpop.f32.mrf.mxu0
  %v985 = vadd.f32 %v896, %v984
  %986 = vmatmul.bf16.gmra.mxu0 %v562
  %v987 = vpop.f32.mrf.mxu0
  %v988 = vadd.f32 %v899, %v987
  %v989 = vpop.f32.mrf.mxu0
  %v990 = vadd.f32 %v901, %v989
  %991 = vmatmul.bf16.gmra.mxu0 %v566
  %v992 = vpop.f32.mrf.mxu0
  %v993 = vadd.f32 %v904, %v992
  %v994 = vpop.f32.mrf.mxu0
  %v995 = vadd.f32 %v906, %v994
  %996 = vmatmul.bf16.gmra.mxu0 %v570
  %v997 = vpop.f32.mrf.mxu0
  %v998 = vadd.f32 %v909, %v997
  %v999 = vpop.f32.mrf.mxu0
  %v1000 = vadd.f32 %v911, %v999
  %1001 = vmatmul.bf16.gmra.mxu0 %v574
  %v1002 = vpop.f32.mrf.mxu0
  %v1003 = vadd.f32 %v914, %v1002
  %v1004 = vpop.f32.mrf.mxu0
  %v1005 = vadd.f32 %v916, %v1004
  %1006 = vmatmul.bf16.gmra.mxu0 %v578
  %v1007 = vpop.f32.mrf.mxu0
  %v1008 = vadd.f32 %v919, %v1007
  %v1009 = vpop.f32.mrf.mxu0
  %v1010 = vadd.f32 %v921, %v1009
  %1011 = vmatmul.bf16.gmra.mxu0 %v582
  %v1012 = vpop.f32.mrf.mxu0
  %v1013 = vadd.f32 %v924, %v1012
  %v1014 = vpop.f32.mrf.mxu0
  %v1015 = vadd.f32 %v926, %v1014
  %1016 = vmatmul.bf16.gmra.mxu0 %v586
  %v1017 = vpop.f32.mrf.mxu0
  %v1018 = vadd.f32 %v929, %v1017
  %v1019 = vpop.f32.mrf.mxu0
  %v1020 = vadd.f32 %v931, %v1019
  %1021 = vmatmul.bf16.gmra.mxu0 %v590
  %v1022 = vpop.f32.mrf.mxu0
  %v1023 = vadd.f32 %v934, %v1022
  %v1024 = vpop.f32.mrf.mxu0
  %v1025 = vadd.f32 %v936, %v1024
  %1026 = vdwg.mxu0
  %1027 = vmatpush.bf16.msra.mxu0 %v808
  %1028 = vmatpush.bf16.msra.mxu0 %v807
  %1029 = vmatpush.bf16.msra.mxu0 %v806
  %1030 = vmatpush.bf16.msra.mxu0 %v805
  %1031 = vmatpush.bf16.msra.mxu0 %v804
  %1032 = vmatpush.bf16.msra.mxu0 %v803
  %1033 = vmatpush.bf16.msra.mxu0 %v802
  %1034 = vmatpush.bf16.msra.mxu0 %v801
  %1035 = vmatmul.bf16.gmra.mxu0 %v531
  %v1036 = vpop.f32.mrf.mxu0
  %v1037 = vadd.f32 %v948, %v1036
  %v1038 = vpop.f32.mrf.mxu0
  %v1039 = vadd.f32 %v950, %v1038
  %1040 = vmatmul.bf16.gmra.mxu0 %v535
  %v1041 = vpop.f32.mrf.mxu0
  %v1042 = vadd.f32 %v953, %v1041
  %v1043 = vpop.f32.mrf.mxu0
  %v1044 = vadd.f32 %v955, %v1043
  %1045 = vmatmul.bf16.gmra.mxu0 %v539
  %v1046 = vpop.f32.mrf.mxu0
  %v1047 = vadd.f32 %v958, %v1046
  %v1048 = vpop.f32.mrf.mxu0
  %v1049 = vadd.f32 %v960, %v1048
  %1050 = vmatmul.bf16.gmra.mxu0 %v543
  %v1051 = vpop.f32.mrf.mxu0
  %v1052 = vadd.f32 %v963, %v1051
  %v1053 = vpop.f32.mrf.mxu0
  %v1054 = vadd.f32 %v965, %v1053
  %1055 = vmatmul.bf16.gmra.mxu0 %v547
  %v1056 = vpop.f32.mrf.mxu0
  %v1057 = vadd.f32 %v968, %v1056
  %v1058 = vpop.f32.mrf.mxu0
  %v1059 = vadd.f32 %v970, %v1058
  %1060 = vmatmul.bf16.gmra.mxu0 %v551
  %v1061 = vpop.f32.mrf.mxu0
  %v1062 = vadd.f32 %v973, %v1061
  %v1063 = vpop.f32.mrf.mxu0
  %v1064 = vadd.f32 %v975, %v1063
  %1065 = vmatmul.bf16.gmra.mxu0 %v555
  %v1066 = vpop.f32.mrf.mxu0
  %v1067 = vadd.f32 %v978, %v1066
  %v1068 = vpop.f32.mrf.mxu0
  %v1069 = vadd.f32 %v980, %v1068
  %1070 = vmatmul.bf16.gmra.mxu0 %v559
  %v1071 = vpop.f32.mrf.mxu0
  %v1072 = vadd.f32 %v983, %v1071
  %v1073 = vpop.f32.mrf.mxu0
  %v1074 = vadd.f32 %v985, %v1073
  %1075 = vmatmul.bf16.gmra.mxu0 %v563
  %v1076 = vpop.f32.mrf.mxu0
  %v1077 = vadd.f32 %v988, %v1076
  %v1078 = vpop.f32.mrf.mxu0
  %v1079 = vadd.f32 %v990, %v1078
  %1080 = vmatmul.bf16.gmra.mxu0 %v567
  %v1081 = vpop.f32.mrf.mxu0
  %v1082 = vadd.f32 %v993, %v1081
  %v1083 = vpop.f32.mrf.mxu0
  %v1084 = vadd.f32 %v995, %v1083
  %1085 = vmatmul.bf16.gmra.mxu0 %v571
  %v1086 = vpop.f32.mrf.mxu0
  %v1087 = vadd.f32 %v998, %v1086
  %v1088 = vpop.f32.mrf.mxu0
  %v1089 = vadd.f32 %v1000, %v1088
  %1090 = vmatmul.bf16.gmra.mxu0 %v575
  %v1091 = vpop.f32.mrf.mxu0
  %v1092 = vadd.f32 %v1003, %v1091
  %v1093 = vpop.f32.mrf.mxu0
  %v1094 = vadd.f32 %v1005, %v1093
  %1095 = vmatmul.bf16.gmra.mxu0 %v579
  %v1096 = vpop.f32.mrf.mxu0
  %v1097 = vadd.f32 %v1008, %v1096
  %v1098 = vpop.f32.mrf.mxu0
  %v1099 = vadd.f32 %v1010, %v1098
  %1100 = vmatmul.bf16.gmra.mxu0 %v583
  %v1101 = vpop.f32.mrf.mxu0
  %v1102 = vadd.f32 %v1013, %v1101
  %v1103 = vpop.f32.mrf.mxu0
  %v1104 = vadd.f32 %v1015, %v1103
  %1105 = vmatmul.bf16.gmra.mxu0 %v587
  %v1106 = vpop.f32.mrf.mxu0
  %v1107 = vadd.f32 %v1018, %v1106
  %v1108 = vpop.f32.mrf.mxu0
  %v1109 = vadd.f32 %v1020, %v1108
  %1110 = vmatmul.bf16.gmra.mxu0 %v591
  %v1111 = vpop.f32.mrf.mxu0
  %v1112 = vadd.f32 %v1023, %v1111
  %v1113 = vpop.f32.mrf.mxu0
  %v1114 = vadd.f32 %v1025, %v1113
  %1115 = vdwg.mxu0
  %1116 = vmatpush.bf16.msra.mxu0 %v816
  %1117 = vmatpush.bf16.msra.mxu0 %v815
  %1118 = vmatpush.bf16.msra.mxu0 %v814
  %1119 = vmatpush.bf16.msra.mxu0 %v813
  %1120 = vmatpush.bf16.msra.mxu0 %v812
  %1121 = vmatpush.bf16.msra.mxu0 %v811
  %1122 = vmatpush.bf16.msra.mxu0 %v810
  %1123 = vmatpush.bf16.msra.mxu0 %v809
  %1124 = vmatmul.bf16.gmra.mxu0 %v532
  %v1125 = vpop.f32.mrf.mxu0
  %v1126 = vadd.f32 %v1037, %v1125
  %v1127 = vpop.f32.mrf.mxu0
  %v1128 = vadd.f32 %v1039, %v1127
  %1129 = vmatmul.bf16.gmra.mxu0 %v536
  %v1130 = vpop.f32.mrf.mxu0
  %v1131 = vadd.f32 %v1042, %v1130
  %v1132 = vpop.f32.mrf.mxu0
  %v1133 = vadd.f32 %v1044, %v1132
  %1134 = vmatmul.bf16.gmra.mxu0 %v540
  %v1135 = vpop.f32.mrf.mxu0
  %v1136 = vadd.f32 %v1047, %v1135
  %v1137 = vpop.f32.mrf.mxu0
  %v1138 = vadd.f32 %v1049, %v1137
  %1139 = vmatmul.bf16.gmra.mxu0 %v544
  %v1140 = vpop.f32.mrf.mxu0
  %v1141 = vadd.f32 %v1052, %v1140
  %v1142 = vpop.f32.mrf.mxu0
  %v1143 = vadd.f32 %v1054, %v1142
  %1144 = vmatmul.bf16.gmra.mxu0 %v548
  %v1145 = vpop.f32.mrf.mxu0
  %v1146 = vadd.f32 %v1057, %v1145
  %v1147 = vpop.f32.mrf.mxu0
  %v1148 = vadd.f32 %v1059, %v1147
  %1149 = vmatmul.bf16.gmra.mxu0 %v552
  %v1150 = vpop.f32.mrf.mxu0
  %v1151 = vadd.f32 %v1062, %v1150
  %v1152 = vpop.f32.mrf.mxu0
  %v1153 = vadd.f32 %v1064, %v1152
  %1154 = vmatmul.bf16.gmra.mxu0 %v556
  %v1155 = vpop.f32.mrf.mxu0
  %v1156 = vadd.f32 %v1067, %v1155
  %v1157 = vpop.f32.mrf.mxu0
  %v1158 = vadd.f32 %v1069, %v1157
  %1159 = vmatmul.bf16.gmra.mxu0 %v560
  %v1160 = vpop.f32.mrf.mxu0
  %v1161 = vadd.f32 %v1072, %v1160
  %v1162 = vpop.f32.mrf.mxu0
  %v1163 = vadd.f32 %v1074, %v1162
  %1164 = vmatmul.bf16.gmra.mxu0 %v564
  %v1165 = vpop.f32.mrf.mxu0
  %v1166 = vadd.f32 %v1077, %v1165
  %v1167 = vpop.f32.mrf.mxu0
  %v1168 = vadd.f32 %v1079, %v1167
  %1169 = vmatmul.bf16.gmra.mxu0 %v568
  %v1170 = vpop.f32.mrf.mxu0
  %v1171 = vadd.f32 %v1082, %v1170
  %v1172 = vpop.f32.mrf.mxu0
  %v1173 = vadd.f32 %v1084, %v1172
  %1174 = vmatmul.bf16.gmra.mxu0 %v572
  %v1175 = vpop.f32.mrf.mxu0
  %v1176 = vadd.f32 %v1087, %v1175
  %v1177 = vpop.f32.mrf.mxu0
  %v1178 = vadd.f32 %v1089, %v1177
  %1179 = vmatmul.bf16.gmra.mxu0 %v576
  %v1180 = vpop.f32.mrf.mxu0
  %v1181 = vadd.f32 %v1092, %v1180
  %v1182 = vpop.f32.mrf.mxu0
  %v1183 = vadd.f32 %v1094, %v1182
  %1184 = vmatmul.bf16.gmra.mxu0 %v580
  %v1185 = vpop.f32.mrf.mxu0
  %v1186 = vadd.f32 %v1097, %v1185
  %v1187 = vpop.f32.mrf.mxu0
  %v1188 = vadd.f32 %v1099, %v1187
  %1189 = vmatmul.bf16.gmra.mxu0 %v584
  %v1190 = vpop.f32.mrf.mxu0
  %v1191 = vadd.f32 %v1102, %v1190
  %v1192 = vpop.f32.mrf.mxu0
  %v1193 = vadd.f32 %v1104, %v1192
  %1194 = vmatmul.bf16.gmra.mxu0 %v588
  %v1195 = vpop.f32.mrf.mxu0
  %v1196 = vadd.f32 %v1107, %v1195
  %v1197 = vpop.f32.mrf.mxu0
  %v1198 = vadd.f32 %v1109, %v1197
  %1199 = vmatmul.bf16.gmra.mxu0 %v592
  %v1200 = vpop.f32.mrf.mxu0
  %v1201 = vadd.f32 %v1112, %v1200
  %v1202 = vpop.f32.mrf.mxu0
  %v1203 = vadd.f32 %v1114, %v1202
  %1204 = vdwg.mxu0
  %vm1205 = vcmp.ge.f32.partialorder %v1126, 0.0
  %vm1206 = vcmp.ge.f32.partialorder %v1128, 0.0
  %vm1207 = vcmp.ge.f32.partialorder %v1131, 0.0
  %vm1208 = vcmp.ge.f32.partialorder %v1133, 0.0
  %vm1209 = vcmp.ge.f32.partialorder %v1136, 0.0
  %vm1210 = vcmp.ge.f32.partialorder %v1138, 0.0
  %vm1211 = vcmp.ge.f32.partialorder %v1141, 0.0
  %vm1212 = vcmp.ge.f32.partialorder %v1143, 0.0
  %vm1213 = vcmp.ge.f32.partialorder %v1146, 0.0
  %vm1214 = vcmp.ge.f32.partialorder %v1148, 0.0
  %vm1215 = vcmp.ge.f32.partialorder %v1151, 0.0
  %vm1216 = vcmp.ge.f32.partialorder %v1153, 0.0
  %vm1217 = vcmp.ge.f32.partialorder %v1156, 0.0
  %vm1218 = vcmp.ge.f32.partialorder %v1158, 0.0
  %vm1219 = vcmp.ge.f32.partialorder %v1161, 0.0
  %vm1220 = vcmp.ge.f32.partialorder %v1163, 0.0
  %vm1221 = vcmp.ge.f32.partialorder %v1166, 0.0
  %vm1222 = vcmp.ge.f32.partialorder %v1168, 0.0
  %vm1223 = vcmp.ge.f32.partialorder %v1171, 0.0
  %vm1224 = vcmp.ge.f32.partialorder %v1173, 0.0
  %vm1225 = vcmp.ge.f32.partialorder %v1176, 0.0
  %vm1226 = vcmp.ge.f32.partialorder %v1178, 0.0
  %vm1227 = vcmp.ge.f32.partialorder %v1181, 0.0
  %vm1228 = vcmp.ge.f32.partialorder %v1183, 0.0
  %vm1229 = vcmp.ge.f32.partialorder %v1186, 0.0
  %vm1230 = vcmp.ge.f32.partialorder %v1188, 0.0
  %vm1231 = vcmp.ge.f32.partialorder %v1191, 0.0
  %vm1232 = vcmp.ge.f32.partialorder %v1193, 0.0
  %vm1233 = vcmp.ge.f32.partialorder %v1196, 0.0
  %vm1234 = vcmp.ge.f32.partialorder %v1198, 0.0
  %vm1235 = vcmp.ge.f32.partialorder %v1201, 0.0
  %vm1236 = vcmp.ge.f32.partialorder %v1203, 0.0
  %v1237 = vmul.f32 %v1126, 0.01
  %v1238 = vmul.f32 %v1128, 0.01
  %v1239 = vmul.f32 %v1131, 0.01
  %v1240 = vmul.f32 %v1133, 0.01
  %v1241 = vmul.f32 %v1136, 0.01
  %v1242 = vmul.f32 %v1138, 0.01
  %v1243 = vmul.f32 %v1141, 0.01
  %v1244 = vmul.f32 %v1143, 0.01
  %v1245 = vmul.f32 %v1146, 0.01
  %v1246 = vmul.f32 %v1148, 0.01
  %v1247 = vmul.f32 %v1151, 0.01
  %v1248 = vmul.f32 %v1153, 0.01
  %v1249 = vmul.f32 %v1156, 0.01
  %v1250 = vmul.f32 %v1158, 0.01
  %v1251 = vmul.f32 %v1161, 0.01
  %v1252 = vmul.f32 %v1163, 0.01
  %v1253 = vmul.f32 %v1166, 0.01
  %v1254 = vmul.f32 %v1168, 0.01
  %v1255 = vmul.f32 %v1171, 0.01
  %v1256 = vmul.f32 %v1173, 0.01
  %v1257 = vmul.f32 %v1176, 0.01
  %v1258 = vmul.f32 %v1178, 0.01
  %v1259 = vmul.f32 %v1181, 0.01
  %v1260 = vmul.f32 %v1183, 0.01
  %v1261 = vmul.f32 %v1186, 0.01
  %v1262 = vmul.f32 %v1188, 0.01
  %v1263 = vmul.f32 %v1191, 0.01
  %v1264 = vmul.f32 %v1193, 0.01
  %v1265 = vmul.f32 %v1196, 0.01
  %v1266 = vmul.f32 %v1198, 0.01
  %v1267 = vmul.f32 %v1201, 0.01
  %v1268 = vmul.f32 %v1203, 0.01
  %v1269 = vsel %vm1205, %v1126, %v1237
  %v1270 = vsel %vm1206, %v1128, %v1238
  %v1271 = vsel %vm1207, %v1131, %v1239
  %v1272 = vsel %vm1208, %v1133, %v1240
  %v1273 = vsel %vm1209, %v1136, %v1241
  %v1274 = vsel %vm1210, %v1138, %v1242
  %v1275 = vsel %vm1211, %v1141, %v1243
  %v1276 = vsel %vm1212, %v1143, %v1244
  %v1277 = vsel %vm1213, %v1146, %v1245
  %v1278 = vsel %vm1214, %v1148, %v1246
  %v1279 = vsel %vm1215, %v1151, %v1247
  %v1280 = vsel %vm1216, %v1153, %v1248
  %v1281 = vsel %vm1217, %v1156, %v1249
  %v1282 = vsel %vm1218, %v1158, %v1250
  %v1283 = vsel %vm1219, %v1161, %v1251
  %v1284 = vsel %vm1220, %v1163, %v1252
  %v1285 = vsel %vm1221, %v1166, %v1253
  %v1286 = vsel %vm1222, %v1168, %v1254
  %v1287 = vsel %vm1223, %v1171, %v1255
  %v1288 = vsel %vm1224, %v1173, %v1256
  %v1289 = vsel %vm1225, %v1176, %v1257
  %v1290 = vsel %vm1226, %v1178, %v1258
  %v1291 = vsel %vm1227, %v1181, %v1259
  %v1292 = vsel %vm1228, %v1183, %v1260
  %v1293 = vsel %vm1229, %v1186, %v1261
  %v1294 = vsel %vm1230, %v1188, %v1262
  %v1295 = vsel %vm1231, %v1191, %v1263
  %v1296 = vsel %vm1232, %v1193, %v1264
  %v1297 = vsel %vm1233, %v1196, %v1265
  %v1298 = vsel %vm1234, %v1198, %v1266
  %v1299 = vsel %vm1235, %v1201, %v1267
  %v1300 = vsel %vm1236, %v1203, %v1268
  %v1301 = vld [vmem:[%s3] sm:$0xf]
  %v1302 = vld [vmem:[%s3 + $0x4] sm:$0xf]
  %v1303 = vld [vmem:[%s3 + $0x8] sm:$0xf]
  %v1304 = vld [vmem:[%s3 + $0xc] sm:$0xf]
  %v1305 = vld [vmem:[%s3 + $0x10] sm:$0xf]
  %v1306 = vld [vmem:[%s3 + $0x14] sm:$0xf]
  %v1307 = vld [vmem:[%s3 + $0x18] sm:$0xf]
  %v1308 = vld [vmem:[%s3 + $0x1c] sm:$0xf]
  %v1309 = vld [vmem:[%s3 + $0x20] sm:$0xf]
  %v1310 = vld [vmem:[%s3 + $0x24] sm:$0xf]
  %v1311 = vld [vmem:[%s3 + $0x28] sm:$0xf]
  %v1312 = vld [vmem:[%s3 + $0x2c] sm:$0xf]
  %v1313 = vld [vmem:[%s3 + $0x30] sm:$0xf]
  %v1314 = vld [vmem:[%s3 + $0x34] sm:$0xf]
  %v1315 = vld [vmem:[%s3 + $0x38] sm:$0xf]
  %v1316 = vld [vmem:[%s3 + $0x3c] sm:$0xf]
  %v1317 = vld [vmem:[%s3 + $0x40] sm:$0xf]
  %v1318 = vld [vmem:[%s3 + $0x44] sm:$0xf]
  %v1319 = vld [vmem:[%s3 + $0x48] sm:$0xf]
  %v1320 = vld [vmem:[%s3 + $0x4c] sm:$0xf]
  %v1321 = vld [vmem:[%s3 + $0x50] sm:$0xf]
  %v1322 = vld [vmem:[%s3 + $0x54] sm:$0xf]
  %v1323 = vld [vmem:[%s3 + $0x58] sm:$0xf]
  %v1324 = vld [vmem:[%s3 + $0x5c] sm:$0xf]
  %v1325 = vld [vmem:[%s3 + $0x60] sm:$0xf]
  %v1326 = vld [vmem:[%s3 + $0x64] sm:$0xf]
  %v1327 = vld [vmem:[%s3 + $0x68] sm:$0xf]
  %v1328 = vld [vmem:[%s3 + $0x6c] sm:$0xf]
  %v1329 = vld [vmem:[%s3 + $0x70] sm:$0xf]
  %v1330 = vld [vmem:[%s3 + $0x74] sm:$0xf]
  %v1331 = vld [vmem:[%s3 + $0x78] sm:$0xf]
  %v1332 = vld [vmem:[%s3 + $0x7c] sm:$0xf]
  %v1333 = vunpack.c.l.bf16 %v1301
  %v1334 = vunpack.c.l.bf16 %v1302
  %v1335 = vunpack.c.l.bf16 %v1303
  %v1336 = vunpack.c.l.bf16 %v1304
  %v1337 = vunpack.c.l.bf16 %v1305
  %v1338 = vunpack.c.l.bf16 %v1306
  %v1339 = vunpack.c.l.bf16 %v1307
  %v1340 = vunpack.c.l.bf16 %v1308
  %v1341 = vunpack.c.l.bf16 %v1309
  %v1342 = vunpack.c.l.bf16 %v1310
  %v1343 = vunpack.c.l.bf16 %v1311
  %v1344 = vunpack.c.l.bf16 %v1312
  %v1345 = vunpack.c.l.bf16 %v1313
  %v1346 = vunpack.c.l.bf16 %v1314
  %v1347 = vunpack.c.l.bf16 %v1315
  %v1348 = vunpack.c.l.bf16 %v1316
  %v1349 = vunpack.c.l.bf16 %v1317
  %v1350 = vunpack.c.l.bf16 %v1318
  %v1351 = vunpack.c.l.bf16 %v1319
  %v1352 = vunpack.c.l.bf16 %v1320
  %v1353 = vunpack.c.l.bf16 %v1321
  %v1354 = vunpack.c.l.bf16 %v1322
  %v1355 = vunpack.c.l.bf16 %v1323
  %v1356 = vunpack.c.l.bf16 %v1324
  %v1357 = vunpack.c.l.bf16 %v1325
  %v1358 = vunpack.c.l.bf16 %v1326
  %v1359 = vunpack.c.l.bf16 %v1327
  %v1360 = vunpack.c.l.bf16 %v1328
  %v1361 = vunpack.c.l.bf16 %v1329
  %v1362 = vunpack.c.l.bf16 %v1330
  %v1363 = vunpack.c.l.bf16 %v1331
  %v1364 = vunpack.c.l.bf16 %v1332
  %v1365 = vadd.f32 %v1269, %v1333
  %v1366 = vadd.f32 %v1270, %v1334
  %v1367 = vadd.f32 %v1271, %v1335
  %v1368 = vadd.f32 %v1272, %v1336
  %v1369 = vadd.f32 %v1273, %v1337
  %v1370 = vadd.f32 %v1274, %v1338
  %v1371 = vadd.f32 %v1275, %v1339
  %v1372 = vadd.f32 %v1276, %v1340
  %v1373 = vadd.f32 %v1277, %v1341
  %v1374 = vadd.f32 %v1278, %v1342
  %v1375 = vadd.f32 %v1279, %v1343
  %v1376 = vadd.f32 %v1280, %v1344
  %v1377 = vadd.f32 %v1281, %v1345
  %v1378 = vadd.f32 %v1282, %v1346
  %v1379 = vadd.f32 %v1283, %v1347
  %v1380 = vadd.f32 %v1284, %v1348
  %v1381 = vadd.f32 %v1285, %v1349
  %v1382 = vadd.f32 %v1286, %v1350
  %v1383 = vadd.f32 %v1287, %v1351
  %v1384 = vadd.f32 %v1288, %v1352
  %v1385 = vadd.f32 %v1289, %v1353
  %v1386 = vadd.f32 %v1290, %v1354
  %v1387 = vadd.f32 %v1291, %v1355
  %v1388 = vadd.f32 %v1292, %v1356
  %v1389 = vadd.f32 %v1293, %v1357
  %v1390 = vadd.f32 %v1294, %v1358
  %v1391 = vadd.f32 %v1295, %v1359
  %v1392 = vadd.f32 %v1296, %v1360
  %v1393 = vadd.f32 %v1297, %v1361
  %v1394 = vadd.f32 %v1298, %v1362
  %v1395 = vadd.f32 %v1299, %v1363
  %v1396 = vadd.f32 %v1300, %v1364
  %v1397 = vpack.c.bf16 %v1365, %v1365
  %v1398 = vpack.c.bf16 %v1366, %v1366
  %v1399 = vpack.c.bf16 %v1367, %v1367
  %v1400 = vpack.c.bf16 %v1368, %v1368
  %v1401 = vpack.c.bf16 %v1369, %v1369
  %v1402 = vpack.c.bf16 %v1370, %v1370
  %v1403 = vpack.c.bf16 %v1371, %v1371
  %v1404 = vpack.c.bf16 %v1372, %v1372
  %v1405 = vpack.c.bf16 %v1373, %v1373
  %v1406 = vpack.c.bf16 %v1374, %v1374
  %v1407 = vpack.c.bf16 %v1375, %v1375
  %v1408 = vpack.c.bf16 %v1376, %v1376
  %v1409 = vpack.c.bf16 %v1377, %v1377
  %v1410 = vpack.c.bf16 %v1378, %v1378
  %v1411 = vpack.c.bf16 %v1379, %v1379
  %v1412 = vpack.c.bf16 %v1380, %v1380
  %v1413 = vpack.c.bf16 %v1381, %v1381
  %v1414 = vpack.c.bf16 %v1382, %v1382
  %v1415 = vpack.c.bf16 %v1383, %v1383
  %v1416 = vpack.c.bf16 %v1384, %v1384
  %v1417 = vpack.c.bf16 %v1385, %v1385
  %v1418 = vpack.c.bf16 %v1386, %v1386
  %v1419 = vpack.c.bf16 %v1387, %v1387
  %v1420 = vpack.c.bf16 %v1388, %v1388
  %v1421 = vpack.c.bf16 %v1389, %v1389
  %v1422 = vpack.c.bf16 %v1390, %v1390
  %v1423 = vpack.c.bf16 %v1391, %v1391
  %v1424 = vpack.c.bf16 %v1392, %v1392
  %v1425 = vpack.c.bf16 %v1393, %v1393
  %v1426 = vpack.c.bf16 %v1394, %v1394
  %v1427 = vpack.c.bf16 %v1395, %v1395
  %v1428 = vpack.c.bf16 %v1396, %v1396
  %vm1429 = vcmask 125952
  %1430 = vst.msk [vmem:[%s4] sm:$0xf] %vm1429, %v1397
  %1431 = vst.msk [vmem:[%s4 + $0x4] sm:$0xf] %vm1429, %v1398
  %1432 = vst.msk [vmem:[%s4 + $0x8] sm:$0xf] %vm1429, %v1399
  %1433 = vst.msk [vmem:[%s4 + $0xc] sm:$0xf] %vm1429, %v1400
  %1434 = vst.msk [vmem:[%s4 + $0x10] sm:$0xf] %vm1429, %v1401
  %1435 = vst.msk [vmem:[%s4 + $0x14] sm:$0xf] %vm1429, %v1402
  %1436 = vst.msk [vmem:[%s4 + $0x18] sm:$0xf] %vm1429, %v1403
  %1437 = vst.msk [vmem:[%s4 + $0x1c] sm:$0xf] %vm1429, %v1404
  %1438 = vst.msk [vmem:[%s4 + $0x20] sm:$0xf] %vm1429, %v1405
  %1439 = vst.msk [vmem:[%s4 + $0x24] sm:$0xf] %vm1429, %v1406
  %1440 = vst.msk [vmem:[%s4 + $0x28] sm:$0xf] %vm1429, %v1407
  %1441 = vst.msk [vmem:[%s4 + $0x2c] sm:$0xf] %vm1429, %v1408
  %1442 = vst.msk [vmem:[%s4 + $0x30] sm:$0xf] %vm1429, %v1409
  %1443 = vst.msk [vmem:[%s4 + $0x34] sm:$0xf] %vm1429, %v1410
  %1444 = vst.msk [vmem:[%s4 + $0x38] sm:$0xf] %vm1429, %v1411
  %1445 = vst.msk [vmem:[%s4 + $0x3c] sm:$0xf] %vm1429, %v1412
  %1446 = vst.msk [vmem:[%s4 + $0x40] sm:$0xf] %vm1429, %v1413
  %1447 = vst.msk [vmem:[%s4 + $0x44] sm:$0xf] %vm1429, %v1414
  %1448 = vst.msk [vmem:[%s4 + $0x48] sm:$0xf] %vm1429, %v1415
  %1449 = vst.msk [vmem:[%s4 + $0x4c] sm:$0xf] %vm1429, %v1416
  %1450 = vst.msk [vmem:[%s4 + $0x50] sm:$0xf] %vm1429, %v1417
  %1451 = vst.msk [vmem:[%s4 + $0x54] sm:$0xf] %vm1429, %v1418
  %1452 = vst.msk [vmem:[%s4 + $0x58] sm:$0xf] %vm1429, %v1419
  %1453 = vst.msk [vmem:[%s4 + $0x5c] sm:$0xf] %vm1429, %v1420
  %1454 = vst.msk [vmem:[%s4 + $0x60] sm:$0xf] %vm1429, %v1421
  %1455 = vst.msk [vmem:[%s4 + $0x64] sm:$0xf] %vm1429, %v1422
  %1456 = vst.msk [vmem:[%s4 + $0x68] sm:$0xf] %vm1429, %v1423
  %1457 = vst.msk [vmem:[%s4 + $0x6c] sm:$0xf] %vm1429, %v1424
  %1458 = vst.msk [vmem:[%s4 + $0x70] sm:$0xf] %vm1429, %v1425
  %1459 = vst.msk [vmem:[%s4 + $0x74] sm:$0xf] %vm1429, %v1426
  %1460 = vst.msk [vmem:[%s4 + $0x78] sm:$0xf] %vm1429, %v1427
  %1461 = vst.msk [vmem:[%s4 + $0x7c] sm:$0xf] %vm1429, %v1428
  // Predicated region
  $region18: #{voxel_encoder_forward.17} parent=0 // pred_check
    _
  $region19: #{voxel_encoder_forward.17} parent=0 // pred_check_branch
    %1463 = sbr.rel (0) target = $region21
  $region20: #{voxel_encoder_forward.17} parent=0 // pred_region
    _
  $region21: #{voxel_encoder_forward.17} parent=0 // pred_fallthru
    _
  // Predicated region
  $region22: #{voxel_encoder_forward.17} parent=0 // pred_check
    _
  $region23: #{voxel_encoder_forward.17} parent=0 // pred_check_branch
    %1465 = sbr.rel (0) target = $region25
  $region24: #{voxel_encoder_forward.17} parent=0 // pred_region
    _
  $region25: #{voxel_encoder_forward.17} parent=0 // pred_fallthru
    _

// kernel: voxel_encoder_forward.18
$region0: #{voxel_encoder_forward.18}
  #allocation0 [shape = 'u32[]', space=smem, size = 0x4, offset = 0x4, fixed_abs, tag = 'smem constant byte address 0x4 - core index']
  #allocation1 [shape = 'u32[72,128]{1,0:T(1,128)}', space=vmem, size = 0x9000, scoped, tag = 'internal scratch']
  %s0 = inlined_call_operand.vmem [shape: bf16[128,256], index: 0, kind: input, shape index: {}]
  %s1 = inlined_call_operand.vmem [shape: bf16[256,128], index: 1, kind: input, shape index: {}]
  %s2 = inlined_call_operand.vmem [shape: f32[128,1], index: 2, kind: input, shape index: {}]
  %s3 = inlined_call_operand.vmem [shape: bf16[128,128], index: 3, kind: input, shape index: {}]
  %s4 = inlined_call_operand.vmem [shape: bf16[128,128], index: 4, kind: output, shape index: {}]
  %s5 = sld [smem:[#allocation0]]
  $region26: #{voxel_encoder_forward.18} parent=0
    _
  %s7 = ssub.s32 1, %s5
  %s8 = scalar_select 0, %s7, %s5
  // Predicated region
  $region2: #{voxel_encoder_forward.18} parent=0 // pred_check
    _
  $region3: #{voxel_encoder_forward.18} parent=0 // pred_check_branch
    %10 = sbr.rel (0) target = $region5
  $region4: #{voxel_encoder_forward.18} parent=0 // pred_region
    _
  $region5: #{voxel_encoder_forward.18} parent=0 // pred_fallthru
    _
  // Predicated region
  $region6: #{voxel_encoder_forward.18} parent=0 // pred_check
    _
  $region7: #{voxel_encoder_forward.18} parent=0 // pred_check_branch
    %12 = sbr.rel (0) target = $region9
  $region8: #{voxel_encoder_forward.18} parent=0 // pred_region
    _
  $region9: #{voxel_encoder_forward.18} parent=0 // pred_fallthru
    _
  // Predicated region
  $region10: #{voxel_encoder_forward.18} parent=0 // pred_check
    _
  $region11: #{voxel_encoder_forward.18} parent=0 // pred_check_branch
    %14 = sbr.rel (0) target = $region13
  $region12: #{voxel_encoder_forward.18} parent=0 // pred_region
    _
  $region13: #{voxel_encoder_forward.18} parent=0 // pred_fallthru
    _
  // Predicated region
  $region14: #{voxel_encoder_forward.18} parent=0 // pred_check
    _
  $region15: #{voxel_encoder_forward.18} parent=0 // pred_check_branch
    %16 = sbr.rel (0) target = $region17
  $region16: #{voxel_encoder_forward.18} parent=0 // pred_region
    _
  $region17: #{voxel_encoder_forward.18} parent=0 // pred_fallthru
    _
  %v17 = vld [vmem:[%s0] sm:$0xff]
  %v18 = vld [vmem:[%s0 + $0x8] sm:$0xff]
  %v19 = vld [vmem:[%s0 + $0x10] sm:$0xff]
  %v20 = vld [vmem:[%s0 + $0x18] sm:$0xff]
  %v21 = vld [vmem:[%s0 + $0x20] sm:$0xff]
  %v22 = vld [vmem:[%s0 + $0x28] sm:$0xff]
  %v23 = vld [vmem:[%s0 + $0x30] sm:$0xff]
  %v24 = vld [vmem:[%s0 + $0x38] sm:$0xff]
  %v25 = vld [vmem:[%s0 + $0x40] sm:$0xff]
  %v26 = vld [vmem:[%s0 + $0x48] sm:$0xff]
  %v27 = vld [vmem:[%s0 + $0x50] sm:$0xff]
  %v28 = vld [vmem:[%s0 + $0x58] sm:$0xff]
  %v29 = vld [vmem:[%s0 + $0x60] sm:$0xff]
  %v30 = vld [vmem:[%s0 + $0x68] sm:$0xff]
  %v31 = vld [vmem:[%s0 + $0x70] sm:$0xff]
  %v32 = vld [vmem:[%s0 + $0x78] sm:$0xff]
  %v33 = vld [vmem:[%s1] sm:$0xf]
  %v34 = vld [vmem:[%s1 + $0x4] sm:$0xf]
  %v35 = vld [vmem:[%s1 + $0x8] sm:$0xf]
  %v36 = vld [vmem:[%s1 + $0xc] sm:$0xf]
  %v37 = vld [vmem:[%s1 + $0x10] sm:$0xf]
  %v38 = vld [vmem:[%s1 + $0x14] sm:$0xf]
  %v39 = vld [vmem:[%s1 + $0x18] sm:$0xf]
  %v40 = vld [vmem:[%s1 + $0x1c] sm:$0xf]
  %v41 = vld [vmem:[%s1 + $0x20] sm:$0xf]
  %v42 = vld [vmem:[%s1 + $0x24] sm:$0xf]
  %v43 = vld [vmem:[%s1 + $0x28] sm:$0xf]
  %v44 = vld [vmem:[%s1 + $0x2c] sm:$0xf]
  %v45 = vld [vmem:[%s1 + $0x30] sm:$0xf]
  %v46 = vld [vmem:[%s1 + $0x34] sm:$0xf]
  %v47 = vld [vmem:[%s1 + $0x38] sm:$0xf]
  %v48 = vld [vmem:[%s1 + $0x3c] sm:$0xf]
  %v49 = vld [vmem:[%s1 + $0x40] sm:$0xf]
  %v50 = vld [vmem:[%s1 + $0x44] sm:$0xf]
  %v51 = vld [vmem:[%s1 + $0x48] sm:$0xf]
  %v52 = vld [vmem:[%s1 + $0x4c] sm:$0xf]
  %v53 = vld [vmem:[%s1 + $0x50] sm:$0xf]
  %v54 = vld [vmem:[%s1 + $0x54] sm:$0xf]
  %v55 = vld [vmem:[%s1 + $0x58] sm:$0xf]
  %v56 = vld [vmem:[%s1 + $0x5c] sm:$0xf]
  %v57 = vld [vmem:[%s1 + $0x60] sm:$0xf]
  %v58 = vld [vmem:[%s1 + $0x64] sm:$0xf]
  %v59 = vld [vmem:[%s1 + $0x68] sm:$0xf]
  %v60 = vld [vmem:[%s1 + $0x6c] sm:$0xf]
  %v61 = vld [vmem:[%s1 + $0x70] sm:$0xf]
  %v62 = vld [vmem:[%s1 + $0x74] sm:$0xf]
  %v63 = vld [vmem:[%s1 + $0x78] sm:$0xf]
  %v64 = vld [vmem:[%s1 + $0x7c] sm:$0xf]
  %v65 = vld [vmem:[%s2] sm:$0xff]
  %v66 = vld [vmem:[%s2 + $0x8] sm:$0xff]
  %v67 = vld [vmem:[%s2 + $0x10] sm:$0xff]
  %v68 = vld [vmem:[%s2 + $0x18] sm:$0xff]
  %v69 = vld [vmem:[%s2 + $0x20] sm:$0xff]
  %v70 = vld [vmem:[%s2 + $0x28] sm:$0xff]
  %v71 = vld [vmem:[%s2 + $0x30] sm:$0xff]
  %v72 = vld [vmem:[%s2 + $0x38] sm:$0xff]
  %v73 = vld [vmem:[%s2 + $0x40] sm:$0xff]
  %v74 = vld [vmem:[%s2 + $0x48] sm:$0xff]
  %v75 = vld [vmem:[%s2 + $0x50] sm:$0xff]
  %v76 = vld [vmem:[%s2 + $0x58] sm:$0xff]
  %v77 = vld [vmem:[%s2 + $0x60] sm:$0xff]
  %v78 = vld [vmem:[%s2 + $0x68] sm:$0xff]
  %v79 = vld [vmem:[%s2 + $0x70] sm:$0xff]
  %v80 = vld [vmem:[%s2 + $0x78] sm:$0xff]
  %82 = vset.pattern.permute.xlu0 0
  %83 = vperm.xlu0 %82, %v65
  %v84 = vpop.permute.xlu0 %83
  %87 = vset.pattern.permute.xlu0 0
  %88 = vperm.xlu0 %87, %v66
  %v89 = vpop.permute.xlu0 %88
  %92 = vset.pattern.permute.xlu0 0
  %93 = vperm.xlu0 %92, %v67
  %v94 = vpop.permute.xlu0 %93
  %97 = vset.pattern.permute.xlu0 0
  %98 = vperm.xlu0 %97, %v68
  %v99 = vpop.permute.xlu0 %98
  %102 = vset.pattern.permute.xlu0 0
  %103 = vperm.xlu0 %102, %v69
  %v104 = vpop.permute.xlu0 %103
  %107 = vset.pattern.permute.xlu0 0
  %108 = vperm.xlu0 %107, %v70
  %v109 = vpop.permute.xlu0 %108
  %112 = vset.pattern.permute.xlu0 0
  %113 = vperm.xlu0 %112, %v71
  %v114 = vpop.permute.xlu0 %113
  %117 = vset.pattern.permute.xlu0 0
  %118 = vperm.xlu0 %117, %v72
  %v119 = vpop.permute.xlu0 %118
  %122 = vset.pattern.permute.xlu0 0
  %123 = vperm.xlu0 %122, %v73
  %v124 = vpop.permute.xlu0 %123
  %127 = vset.pattern.permute.xlu0 0
  %128 = vperm.xlu0 %127, %v74
  %v129 = vpop.permute.xlu0 %128
  %132 = vset.pattern.permute.xlu0 0
  %133 = vperm.xlu0 %132, %v75
  %v134 = vpop.permute.xlu0 %133
  %137 = vset.pattern.permute.xlu0 0
  %138 = vperm.xlu0 %137, %v76
  %v139 = vpop.permute.xlu0 %138
  %142 = vset.pattern.permute.xlu0 0
  %143 = vperm.xlu0 %142, %v77
  %v144 = vpop.permute.xlu0 %143
  %147 = vset.pattern.permute.xlu0 0
  %148 = vperm.xlu0 %147, %v78
  %v149 = vpop.permute.xlu0 %148
  %152 = vset.pattern.permute.xlu0 0
  %153 = vperm.xlu0 %152, %v79
  %v154 = vpop.permute.xlu0 %153
  %157 = vset.pattern.permute.xlu0 0
  %158 = vperm.xlu0 %157, %v80
  %v159 = vpop.permute.xlu0 %158
  %v177 = vunpack.c.l.b16 %v17
  %v178 = vunpack.c.h.b16 %v17
  %v179 = vunpack.c.l.b16 %v18
  %v180 = vunpack.c.h.b16 %v18
  %v181 = vunpack.c.l.b16 %v19
  %v182 = vunpack.c.h.b16 %v19
  %v183 = vunpack.c.l.b16 %v20
  %v184 = vunpack.c.h.b16 %v20
  %v185 = vunpack.c.l.b16 %v21
  %v186 = vunpack.c.h.b16 %v21
  %v187 = vunpack.c.l.b16 %v22
  %v188 = vunpack.c.h.b16 %v22
  %v189 = vunpack.c.l.b16 %v23
  %v190 = vunpack.c.h.b16 %v23
  %v191 = vunpack.c.l.b16 %v24
  %v192 = vunpack.c.h.b16 %v24
  %v193 = vunpack.c.l.b16 %v25
  %v194 = vunpack.c.h.b16 %v25
  %v195 = vunpack.c.l.b16 %v26
  %v196 = vunpack.c.h.b16 %v26
  %v197 = vunpack.c.l.b16 %v27
  %v198 = vunpack.c.h.b16 %v27
  %v199 = vunpack.c.l.b16 %v28
  %v200 = vunpack.c.h.b16 %v28
  %v201 = vunpack.c.l.b16 %v29
  %v202 = vunpack.c.h.b16 %v29
  %v203 = vunpack.c.l.b16 %v30
  %v204 = vunpack.c.h.b16 %v30
  %v205 = vunpack.c.l.b16 %v31
  %v206 = vunpack.c.h.b16 %v31
  %v207 = vunpack.c.l.b16 %v32
  %v208 = vunpack.c.h.b16 %v32
  %v209 = vpack.c.b16 %v179, %v177
  %v210 = vpack.c.b16 %v180, %v178
  %v211 = vpack.c.b16 %v183, %v181
  %v212 = vpack.c.b16 %v184, %v182
  %v213 = vpack.c.b16 %v187, %v185
  %v214 = vpack.c.b16 %v188, %v186
  %v215 = vpack.c.b16 %v191, %v189
  %v216 = vpack.c.b16 %v192, %v190
  %v217 = vpack.c.b16 %v195, %v193
  %v218 = vpack.c.b16 %v196, %v194
  %v219 = vpack.c.b16 %v199, %v197
  %v220 = vpack.c.b16 %v200, %v198
  %v221 = vpack.c.b16 %v203, %v201
  %v222 = vpack.c.b16 %v204, %v202
  %v223 = vpack.c.b16 %v207, %v205
  %v224 = vpack.c.b16 %v208, %v206
  %v273 = vunpack.c.l.b16 %v33
  %v274 = vunpack.c.l.b16 %v34
  %v275 = vunpack.c.l.b16 %v35
  %v276 = vunpack.c.l.b16 %v36
  %v277 = vunpack.c.l.b16 %v37
  %v278 = vunpack.c.l.b16 %v38
  %v279 = vunpack.c.l.b16 %v39
  %v280 = vunpack.c.l.b16 %v40
  %v281 = vunpack.c.l.b16 %v41
  %v282 = vunpack.c.l.b16 %v42
  %v283 = vunpack.c.l.b16 %v43
  %v284 = vunpack.c.l.b16 %v44
  %v285 = vunpack.c.l.b16 %v45
  %v286 = vunpack.c.l.b16 %v46
  %v287 = vunpack.c.l.b16 %v47
  %v288 = vunpack.c.l.b16 %v48
  %v289 = vunpack.c.l.b16 %v49
  %v290 = vunpack.c.l.b16 %v50
  %v291 = vunpack.c.l.b16 %v51
  %v292 = vunpack.c.l.b16 %v52
  %v293 = vunpack.c.l.b16 %v53
  %v294 = vunpack.c.l.b16 %v54
  %v295 = vunpack.c.l.b16 %v55
  %v296 = vunpack.c.l.b16 %v56
  %v297 = vunpack.c.l.b16 %v57
  %v298 = vunpack.c.l.b16 %v58
  %v299 = vunpack.c.l.b16 %v59
  %v300 = vunpack.c.l.b16 %v60
  %v301 = vunpack.c.l.b16 %v61
  %v302 = vunpack.c.l.b16 %v62
  %v303 = vunpack.c.l.b16 %v63
  %v304 = vunpack.c.l.b16 %v64
  %v305 = vpack.c.b16 %v274, %v273
  %v306 = vpack.c.b16 %v276, %v275
  %v307 = vpack.c.b16 %v278, %v277
  %v308 = vpack.c.b16 %v280, %v279
  %v309 = vpack.c.b16 %v282, %v281
  %v310 = vpack.c.b16 %v284, %v283
  %v311 = vpack.c.b16 %v286, %v285
  %v312 = vpack.c.b16 %v288, %v287
  %v313 = vpack.c.b16 %v290, %v289
  %v314 = vpack.c.b16 %v292, %v291
  %v315 = vpack.c.b16 %v294, %v293
  %v316 = vpack.c.b16 %v296, %v295
  %v317 = vpack.c.b16 %v298, %v297
  %v318 = vpack.c.b16 %v300, %v299
  %v319 = vpack.c.b16 %v302, %v301
  %v320 = vpack.c.b16 %v304, %v303
  %337 = vmatpush.bf16.msra.mxu0 %v312
  %338 = vmatpush.bf16.msra.mxu0 %v311
  %339 = vmatpush.bf16.msra.mxu0 %v310
  %340 = vmatpush.bf16.msra.mxu0 %v309
  %341 = vmatpush.bf16.msra.mxu0 %v308
  %342 = vmatpush.bf16.msra.mxu0 %v307
  %343 = vmatpush.bf16.msra.mxu0 %v306
  %344 = vmatpush.bf16.msra.mxu0 %v305
  %345 = vmatmul.bf16.gmra.mxu0 %v209
  %v346 = vpop.f32.mrf.mxu0
  %v347 = vadd.f32 %v84, %v346
  %v348 = vpop.f32.mrf.mxu0
  %v349 = vadd.f32 %v89, %v348
  %350 = vmatmul.bf16.gmra.mxu0 %v211
  %v351 = vpop.f32.mrf.mxu0
  %v352 = vadd.f32 %v94, %v351
  %v353 = vpop.f32.mrf.mxu0
  %v354 = vadd.f32 %v99, %v353
  %355 = vmatmul.bf16.gmra.mxu0 %v213
  %v356 = vpop.f32.mrf.mxu0
  %v357 = vadd.f32 %v104, %v356
  %v358 = vpop.f32.mrf.mxu0
  %v359 = vadd.f32 %v109, %v358
  %360 = vmatmul.bf16.gmra.mxu0 %v215
  %v361 = vpop.f32.mrf.mxu0
  %v362 = vadd.f32 %v114, %v361
  %v363 = vpop.f32.mrf.mxu0
  %v364 = vadd.f32 %v119, %v363
  %365 = vmatmul.bf16.gmra.mxu0 %v217
  %v366 = vpop.f32.mrf.mxu0
  %v367 = vadd.f32 %v124, %v366
  %v368 = vpop.f32.mrf.mxu0
  %v369 = vadd.f32 %v129, %v368
  %370 = vmatmul.bf16.gmra.mxu0 %v219
  %v371 = vpop.f32.mrf.mxu0
  %v372 = vadd.f32 %v134, %v371
  %v373 = vpop.f32.mrf.mxu0
  %v374 = vadd.f32 %v139, %v373
  %375 = vmatmul.bf16.gmra.mxu0 %v221
  %v376 = vpop.f32.mrf.mxu0
  %v377 = vadd.f32 %v144, %v376
  %v378 = vpop.f32.mrf.mxu0
  %v379 = vadd.f32 %v149, %v378
  %380 = vmatmul.bf16.gmra.mxu0 %v223
  %v381 = vpop.f32.mrf.mxu0
  %v382 = vadd.f32 %v154, %v381
  %v383 = vpop.f32.mrf.mxu0
  %v384 = vadd.f32 %v159, %v383
  %385 = vdwg.mxu0
  %386 = vmatpush.bf16.msra.mxu0 %v320
  %387 = vmatpush.bf16.msra.mxu0 %v319
  %388 = vmatpush.bf16.msra.mxu0 %v318
  %389 = vmatpush.bf16.msra.mxu0 %v317
  %390 = vmatpush.bf16.msra.mxu0 %v316
  %391 = vmatpush.bf16.msra.mxu0 %v315
  %392 = vmatpush.bf16.msra.mxu0 %v314
  %393 = vmatpush.bf16.msra.mxu0 %v313
  %394 = vmatmul.bf16.gmra.mxu0 %v210
  %v395 = vpop.f32.mrf.mxu0
  %v396 = vadd.f32 %v347, %v395
  %v397 = vpop.f32.mrf.mxu0
  %v398 = vadd.f32 %v349, %v397
  %399 = vmatmul.bf16.gmra.mxu0 %v212
  %v400 = vpop.f32.mrf.mxu0
  %v401 = vadd.f32 %v352, %v400
  %v402 = vpop.f32.mrf.mxu0
  %v403 = vadd.f32 %v354, %v402
  %404 = vmatmul.bf16.gmra.mxu0 %v214
  %v405 = vpop.f32.mrf.mxu0
  %v406 = vadd.f32 %v357, %v405
  %v407 = vpop.f32.mrf.mxu0
  %v408 = vadd.f32 %v359, %v407
  %409 = vmatmul.bf16.gmra.mxu0 %v216
  %v410 = vpop.f32.mrf.mxu0
  %v411 = vadd.f32 %v362, %v410
  %v412 = vpop.f32.mrf.mxu0
  %v413 = vadd.f32 %v364, %v412
  %414 = vmatmul.bf16.gmra.mxu0 %v218
  %v415 = vpop.f32.mrf.mxu0
  %v416 = vadd.f32 %v367, %v415
  %v417 = vpop.f32.mrf.mxu0
  %v418 = vadd.f32 %v369, %v417
  %419 = vmatmul.bf16.gmra.mxu0 %v220
  %v420 = vpop.f32.mrf.mxu0
  %v421 = vadd.f32 %v372, %v420
  %v422 = vpop.f32.mrf.mxu0
  %v423 = vadd.f32 %v374, %v422
  %424 = vmatmul.bf16.gmra.mxu0 %v222
  %v425 = vpop.f32.mrf.mxu0
  %v426 = vadd.f32 %v377, %v425
  %v427 = vpop.f32.mrf.mxu0
  %v428 = vadd.f32 %v379, %v427
  %429 = vmatmul.bf16.gmra.mxu0 %v224
  %v430 = vpop.f32.mrf.mxu0
  %v431 = vadd.f32 %v382, %v430
  %v432 = vpop.f32.mrf.mxu0
  %v433 = vadd.f32 %v384, %v432
  %434 = vdwg.mxu0
  %vm435 = vcmp.ge.f32.partialorder %v396, 0.0
  %vm436 = vcmp.ge.f32.partialorder %v398, 0.0
  %vm437 = vcmp.ge.f32.partialorder %v401, 0.0
  %vm438 = vcmp.ge.f32.partialorder %v403, 0.0
  %vm439 = vcmp.ge.f32.partialorder %v406, 0.0
  %vm440 = vcmp.ge.f32.partialorder %v408, 0.0
  %vm441 = vcmp.ge.f32.partialorder %v411, 0.0
  %vm442 = vcmp.ge.f32.partialorder %v413, 0.0
  %vm443 = vcmp.ge.f32.partialorder %v416, 0.0
  %vm444 = vcmp.ge.f32.partialorder %v418, 0.0
  %vm445 = vcmp.ge.f32.partialorder %v421, 0.0
  %vm446 = vcmp.ge.f32.partialorder %v423, 0.0
  %vm447 = vcmp.ge.f32.partialorder %v426, 0.0
  %vm448 = vcmp.ge.f32.partialorder %v428, 0.0
  %vm449 = vcmp.ge.f32.partialorder %v431, 0.0
  %vm450 = vcmp.ge.f32.partialorder %v433, 0.0
  %v451 = vmul.f32 %v396, 0.01
  %v452 = vmul.f32 %v398, 0.01
  %v453 = vmul.f32 %v401, 0.01
  %v454 = vmul.f32 %v403, 0.01
  %v455 = vmul.f32 %v406, 0.01
  %v456 = vmul.f32 %v408, 0.01
  %v457 = vmul.f32 %v411, 0.01
  %v458 = vmul.f32 %v413, 0.01
  %v459 = vmul.f32 %v416, 0.01
  %v460 = vmul.f32 %v418, 0.01
  %v461 = vmul.f32 %v421, 0.01
  %v462 = vmul.f32 %v423, 0.01
  %v463 = vmul.f32 %v426, 0.01
  %v464 = vmul.f32 %v428, 0.01
  %v465 = vmul.f32 %v431, 0.01
  %v466 = vmul.f32 %v433, 0.01
  %v467 = vsel %vm435, %v396, %v451
  %v468 = vsel %vm436, %v398, %v452
  %v469 = vsel %vm437, %v401, %v453
  %v470 = vsel %vm438, %v403, %v454
  %v471 = vsel %vm439, %v406, %v455
  %v472 = vsel %vm440, %v408, %v456
  %v473 = vsel %vm441, %v411, %v457
  %v474 = vsel %vm442, %v413, %v458
  %v475 = vsel %vm443, %v416, %v459
  %v476 = vsel %vm444, %v418, %v460
  %v477 = vsel %vm445, %v421, %v461
  %v478 = vsel %vm446, %v423, %v462
  %v479 = vsel %vm447, %v426, %v463
  %v480 = vsel %vm448, %v428, %v464
  %v481 = vsel %vm449, %v431, %v465
  %v482 = vsel %vm450, %v433, %v466
  %v483 = vld [vmem:[%s3] sm:$0xf]
  %v484 = vld [vmem:[%s3 + $0x4] sm:$0xf]
  %v485 = vld [vmem:[%s3 + $0x8] sm:$0xf]
  %v486 = vld [vmem:[%s3 + $0xc] sm:$0xf]
  %v487 = vld [vmem:[%s3 + $0x10] sm:$0xf]
  %v488 = vld [vmem:[%s3 + $0x14] sm:$0xf]
  %v489 = vld [vmem:[%s3 + $0x18] sm:$0xf]
  %v490 = vld [vmem:[%s3 + $0x1c] sm:$0xf]
  %v491 = vld [vmem:[%s3 + $0x20] sm:$0xf]
  %v492 = vld [vmem:[%s3 + $0x24] sm:$0xf]
  %v493 = vld [vmem:[%s3 + $0x28] sm:$0xf]
  %v494 = vld [vmem:[%s3 + $0x2c] sm:$0xf]
  %v495 = vld [vmem:[%s3 + $0x30] sm:$0xf]
  %v496 = vld [vmem:[%s3 + $0x34] sm:$0xf]
  %v497 = vld [vmem:[%s3 + $0x38] sm:$0xf]
  %v498 = vld [vmem:[%s3 + $0x3c] sm:$0xf]
  %v499 = vunpack.c.l.bf16 %v483
  %v500 = vunpack.c.l.bf16 %v484
  %v501 = vunpack.c.l.bf16 %v485
  %v502 = vunpack.c.l.bf16 %v486
  %v503 = vunpack.c.l.bf16 %v487
  %v504 = vunpack.c.l.bf16 %v488
  %v505 = vunpack.c.l.bf16 %v489
  %v506 = vunpack.c.l.bf16 %v490
  %v507 = vunpack.c.l.bf16 %v491
  %v508 = vunpack.c.l.bf16 %v492
  %v509 = vunpack.c.l.bf16 %v493
  %v510 = vunpack.c.l.bf16 %v494
  %v511 = vunpack.c.l.bf16 %v495
  %v512 = vunpack.c.l.bf16 %v496
  %v513 = vunpack.c.l.bf16 %v497
  %v514 = vunpack.c.l.bf16 %v498
  %v515 = vadd.f32 %v467, %v499
  %v516 = vadd.f32 %v468, %v500
  %v517 = vadd.f32 %v469, %v501
  %v518 = vadd.f32 %v470, %v502
  %v519 = vadd.f32 %v471, %v503
  %v520 = vadd.f32 %v472, %v504
  %v521 = vadd.f32 %v473, %v505
  %v522 = vadd.f32 %v474, %v506
  %v523 = vadd.f32 %v475, %v507
  %v524 = vadd.f32 %v476, %v508
  %v525 = vadd.f32 %v477, %v509
  %v526 = vadd.f32 %v478, %v510
  %v527 = vadd.f32 %v479, %v511
  %v528 = vadd.f32 %v480, %v512
  %v529 = vadd.f32 %v481, %v513
  %v530 = vadd.f32 %v482, %v514
  %v531 = vpack.c.bf16 %v515, %v515
  %v532 = vpack.c.bf16 %v516, %v516
  %v533 = vpack.c.bf16 %v517, %v517
  %v534 = vpack.c.bf16 %v518, %v518
  %v535 = vpack.c.bf16 %v519, %v519
  %v536 = vpack.c.bf16 %v520, %v520
  %v537 = vpack.c.bf16 %v521, %v521
  %v538 = vpack.c.bf16 %v522, %v522
  %v539 = vpack.c.bf16 %v523, %v523
  %v540 = vpack.c.bf16 %v524, %v524
  %v541 = vpack.c.bf16 %v525, %v525
  %v542 = vpack.c.bf16 %v526, %v526
  %v543 = vpack.c.bf16 %v527, %v527
  %v544 = vpack.c.bf16 %v528, %v528
  %v545 = vpack.c.bf16 %v529, %v529
  %v546 = vpack.c.bf16 %v530, %v530
  %547 = vst [vmem:[%s4] sm:$0xf] %v531
  %548 = vst [vmem:[%s4 + $0x4] sm:$0xf] %v532
  %549 = vst [vmem:[%s4 + $0x8] sm:$0xf] %v533
  %550 = vst [vmem:[%s4 + $0xc] sm:$0xf] %v534
  %551 = vst [vmem:[%s4 + $0x10] sm:$0xf] %v535
  %552 = vst [vmem:[%s4 + $0x14] sm:$0xf] %v536
  %553 = vst [vmem:[%s4 + $0x18] sm:$0xf] %v537
  %554 = vst [vmem:[%s4 + $0x1c] sm:$0xf] %v538
  %555 = vst [vmem:[%s4 + $0x20] sm:$0xf] %v539
  %556 = vst [vmem:[%s4 + $0x24] sm:$0xf] %v540
  %557 = vst [vmem:[%s4 + $0x28] sm:$0xf] %v541
  %558 = vst [vmem:[%s4 + $0x2c] sm:$0xf] %v542
  %559 = vst [vmem:[%s4 + $0x30] sm:$0xf] %v543
  %560 = vst [vmem:[%s4 + $0x34] sm:$0xf] %v544
  %561 = vst [vmem:[%s4 + $0x38] sm:$0xf] %v545
  %562 = vst [vmem:[%s4 + $0x3c] sm:$0xf] %v546
  // Predicated region
  $region18: #{voxel_encoder_forward.18} parent=0 // pred_check
    _
  $region19: #{voxel_encoder_forward.18} parent=0 // pred_check_branch
    %564 = sbr.rel (0) target = $region21
  $region20: #{voxel_encoder_forward.18} parent=0 // pred_region
    _
  $region21: #{voxel_encoder_forward.18} parent=0 // pred_fallthru
    _
  // Predicated region
  $region22: #{voxel_encoder_forward.18} parent=0 // pred_check
    _
  $region23: #{voxel_encoder_forward.18} parent=0 // pred_check_branch
    %566 = sbr.rel (0) target = $region25
  $region24: #{voxel_encoder_forward.18} parent=0 // pred_region
    _
  $region25: #{voxel_encoder_forward.18} parent=0 // pred_fallthru
    _

// kernel: voxel_encoder_forward.19
$region0: #{voxel_encoder_forward.19}
  #allocation0 [shape = 'u32[]', space=smem, size = 0x4, offset = 0x4, fixed_abs, tag = 'smem constant byte address 0x4 - core index']
  #allocation1 [shape = 'u32[72,128]{1,0:T(1,128)}', space=vmem, size = 0x9000, scoped, tag = 'internal scratch']
  %s0 = inlined_call_operand.vmem [shape: bf16[64,128], index: 0, kind: input, shape index: {}]
  %s1 = inlined_call_operand.vmem [shape: bf16[128,1024], index: 1, kind: input, shape index: {}]
  %s2 = inlined_call_operand.vmem [shape: f32[64,1], index: 2, kind: input, shape index: {}]
  %s3 = inlined_call_operand.vmem [shape: bf16[64,1024], index: 3, kind: input, shape index: {}]
  %s4 = inlined_call_operand.vmem [shape: f32[64,1024], index: 4, kind: output, shape index: {}]
  %s5 = sld [smem:[#allocation0]]
  $region26: #{voxel_encoder_forward.19} parent=0
    _
  %s7 = ssub.s32 1, %s5
  %s8 = scalar_select 0, %s7, %s5
  // Predicated region
  $region2: #{voxel_encoder_forward.19} parent=0 // pred_check
    _
  $region3: #{voxel_encoder_forward.19} parent=0 // pred_check_branch
    %10 = sbr.rel (0) target = $region5
  $region4: #{voxel_encoder_forward.19} parent=0 // pred_region
    _
  $region5: #{voxel_encoder_forward.19} parent=0 // pred_fallthru
    _
  // Predicated region
  $region6: #{voxel_encoder_forward.19} parent=0 // pred_check
    _
  $region7: #{voxel_encoder_forward.19} parent=0 // pred_check_branch
    %12 = sbr.rel (0) target = $region9
  $region8: #{voxel_encoder_forward.19} parent=0 // pred_region
    _
  $region9: #{voxel_encoder_forward.19} parent=0 // pred_fallthru
    _
  // Predicated region
  $region10: #{voxel_encoder_forward.19} parent=0 // pred_check
    _
  $region11: #{voxel_encoder_forward.19} parent=0 // pred_check_branch
    %14 = sbr.rel (0) target = $region13
  $region12: #{voxel_encoder_forward.19} parent=0 // pred_region
    _
  $region13: #{voxel_encoder_forward.19} parent=0 // pred_fallthru
    _
  // Predicated region
  $region14: #{voxel_encoder_forward.19} parent=0 // pred_check
    _
  $region15: #{voxel_encoder_forward.19} parent=0 // pred_check_branch
    %16 = sbr.rel (0) target = $region17
  $region16: #{voxel_encoder_forward.19} parent=0 // pred_region
    _
  $region17: #{voxel_encoder_forward.19} parent=0 // pred_fallthru
    _
  %v17 = vld [vmem:[%s0] sm:$0xf]
  %v18 = vld [vmem:[%s0 + $0x4] sm:$0xf]
  %v19 = vld [vmem:[%s0 + $0x8] sm:$0xf]
  %v20 = vld [vmem:[%s0 + $0xc] sm:$0xf]
  %v21 = vld [vmem:[%s0 + $0x10] sm:$0xf]
  %v22 = vld [vmem:[%s0 + $0x14] sm:$0xf]
  %v23 = vld [vmem:[%s0 + $0x18] sm:$0xf]
  %v24 = vld [vmem:[%s0 + $0x1c] sm:$0xf]
  %v25 = vld [vmem:[%s1] sm:$0xff]
  %v26 = vld [vmem:[%s1 + $0x8] sm:$0xff]
  %v27 = vld [vmem:[%s1 + $0x10] sm:$0xff]
  %v28 = vld [vmem:[%s1 + $0x18] sm:$0xff]
  %v29 = vld [vmem:[%s1 + $0x20] sm:$0xff]
  %v30 = vld [vmem:[%s1 + $0x28] sm:$0xff]
  %v31 = vld [vmem:[%s1 + $0x30] sm:$0xff]
  %v32 = vld [vmem:[%s1 + $0x38] sm:$0xff]
  %v33 = vld [vmem:[%s1 + $0x40] sm:$0xff]
  %v34 = vld [vmem:[%s1 + $0x48] sm:$0xff]
  %v35 = vld [vmem:[%s1 + $0x50] sm:$0xff]
  %v36 = vld [vmem:[%s1 + $0x58] sm:$0xff]
  %v37 = vld [vmem:[%s1 + $0x60] sm:$0xff]
  %v38 = vld [vmem:[%s1 + $0x68] sm:$0xff]
  %v39 = vld [vmem:[%s1 + $0x70] sm:$0xff]
  %v40 = vld [vmem:[%s1 + $0x78] sm:$0xff]
  %v41 = vld [vmem:[%s1 + $0x80] sm:$0xff]
  %v42 = vld [vmem:[%s1 + $0x88] sm:$0xff]
  %v43 = vld [vmem:[%s1 + $0x90] sm:$0xff]
  %v44 = vld [vmem:[%s1 + $0x98] sm:$0xff]
  %v45 = vld [vmem:[%s1 + $0xa0] sm:$0xff]
  %v46 = vld [vmem:[%s1 + $0xa8] sm:$0xff]
  %v47 = vld [vmem:[%s1 + $0xb0] sm:$0xff]
  %v48 = vld [vmem:[%s1 + $0xb8] sm:$0xff]
  %v49 = vld [vmem:[%s1 + $0xc0] sm:$0xff]
  %v50 = vld [vmem:[%s1 + $0xc8] sm:$0xff]
  %v51 = vld [vmem:[%s1 + $0xd0] sm:$0xff]
  %v52 = vld [vmem:[%s1 + $0xd8] sm:$0xff]
  %v53 = vld [vmem:[%s1 + $0xe0] sm:$0xff]
  %v54 = vld [vmem:[%s1 + $0xe8] sm:$0xff]
  %v55 = vld [vmem:[%s1 + $0xf0] sm:$0xff]
  %v56 = vld [vmem:[%s1 + $0xf8] sm:$0xff]
  %v57 = vld [vmem:[%s1 + $0x100] sm:$0xff]
  %v58 = vld [vmem:[%s1 + $0x108] sm:$0xff]
  %v59 = vld [vmem:[%s1 + $0x110] sm:$0xff]
  %v60 = vld [vmem:[%s1 + $0x118] sm:$0xff]
  %v61 = vld [vmem:[%s1 + $0x120] sm:$0xff]
  %v62 = vld [vmem:[%s1 + $0x128] sm:$0xff]
  %v63 = vld [vmem:[%s1 + $0x130] sm:$0xff]
  %v64 = vld [vmem:[%s1 + $0x138] sm:$0xff]
  %v65 = vld [vmem:[%s1 + $0x140] sm:$0xff]
  %v66 = vld [vmem:[%s1 + $0x148] sm:$0xff]
  %v67 = vld [vmem:[%s1 + $0x150] sm:$0xff]
  %v68 = vld [vmem:[%s1 + $0x158] sm:$0xff]
  %v69 = vld [vmem:[%s1 + $0x160] sm:$0xff]
  %v70 = vld [vmem:[%s1 + $0x168] sm:$0xff]
  %v71 = vld [vmem:[%s1 + $0x170] sm:$0xff]
  %v72 = vld [vmem:[%s1 + $0x178] sm:$0xff]
  %v73 = vld [vmem:[%s1 + $0x180] sm:$0xff]
  %v74 = vld [vmem:[%s1 + $0x188] sm:$0xff]
  %v75 = vld [vmem:[%s1 + $0x190] sm:$0xff]
  %v76 = vld [vmem:[%s1 + $0x198] sm:$0xff]
  %v77 = vld [vmem:[%s1 + $0x1a0] sm:$0xff]
  %v78 = vld [vmem:[%s1 + $0x1a8] sm:$0xff]
  %v79 = vld [vmem:[%s1 + $0x1b0] sm:$0xff]
  %v80 = vld [vmem:[%s1 + $0x1b8] sm:$0xff]
  %v81 = vld [vmem:[%s1 + $0x1c0] sm:$0xff]
  %v82 = vld [vmem:[%s1 + $0x1c8] sm:$0xff]
  %v83 = vld [vmem:[%s1 + $0x1d0] sm:$0xff]
  %v84 = vld [vmem:[%s1 + $0x1d8] sm:$0xff]
  %v85 = vld [vmem:[%s1 + $0x1e0] sm:$0xff]
  %v86 = vld [vmem:[%s1 + $0x1e8] sm:$0xff]
  %v87 = vld [vmem:[%s1 + $0x1f0] sm:$0xff]
  %v88 = vld [vmem:[%s1 + $0x1f8] sm:$0xff]
  %v89 = vld [vmem:[%s2] sm:$0xff]
  %v90 = vld [vmem:[%s2 + $0x8] sm:$0xff]
  %v91 = vld [vmem:[%s2 + $0x10] sm:$0xff]
  %v92 = vld [vmem:[%s2 + $0x18] sm:$0xff]
  %v93 = vld [vmem:[%s2 + $0x20] sm:$0xff]
  %v94 = vld [vmem:[%s2 + $0x28] sm:$0xff]
  %v95 = vld [vmem:[%s2 + $0x30] sm:$0xff]
  %v96 = vld [vmem:[%s2 + $0x38] sm:$0xff]
  %98 = vset.pattern.permute.xlu0 0
  %99 = vperm.xlu0 %98, %v89
  %v100 = vpop.permute.xlu0 %99
  %103 = vset.pattern.permute.xlu0 0
  %104 = vperm.xlu0 %103, %v90
  %v105 = vpop.permute.xlu0 %104
  %108 = vset.pattern.permute.xlu0 0
  %109 = vperm.xlu0 %108, %v91
  %v110 = vpop.permute.xlu0 %109
  %113 = vset.pattern.permute.xlu0 0
  %114 = vperm.xlu0 %113, %v92
  %v115 = vpop.permute.xlu0 %114
  %118 = vset.pattern.permute.xlu0 0
  %119 = vperm.xlu0 %118, %v93
  %v120 = vpop.permute.xlu0 %119
  %123 = vset.pattern.permute.xlu0 0
  %124 = vperm.xlu0 %123, %v94
  %v125 = vpop.permute.xlu0 %124
  %128 = vset.pattern.permute.xlu0 0
  %129 = vperm.xlu0 %128, %v95
  %v130 = vpop.permute.xlu0 %129
  %133 = vset.pattern.permute.xlu0 0
  %134 = vperm.xlu0 %133, %v96
  %v135 = vpop.permute.xlu0 %134
  %v145 = vunpack.c.l.b16 %v17
  %v146 = vunpack.c.l.b16 %v18
  %v147 = vunpack.c.l.b16 %v19
  %v148 = vunpack.c.l.b16 %v20
  %v149 = vunpack.c.l.b16 %v21
  %v150 = vunpack.c.l.b16 %v22
  %v151 = vunpack.c.l.b16 %v23
  %v152 = vunpack.c.l.b16 %v24
  %v153 = vpack.c.b16 %v146, %v145
  %v154 = vpack.c.b16 %v148, %v147
  %v155 = vpack.c.b16 %v150, %v149
  %v156 = vpack.c.b16 %v152, %v151
  %v225 = vunpack.c.l.b16 %v25
  %v226 = vunpack.c.h.b16 %v25
  %v227 = vunpack.c.l.b16 %v26
  %v228 = vunpack.c.h.b16 %v26
  %v229 = vunpack.c.l.b16 %v27
  %v230 = vunpack.c.h.b16 %v27
  %v231 = vunpack.c.l.b16 %v28
  %v232 = vunpack.c.h.b16 %v28
  %v233 = vunpack.c.l.b16 %v29
  %v234 = vunpack.c.h.b16 %v29
  %v235 = vunpack.c.l.b16 %v30
  %v236 = vunpack.c.h.b16 %v30
  %v237 = vunpack.c.l.b16 %v31
  %v238 = vunpack.c.h.b16 %v31
  %v239 = vunpack.c.l.b16 %v32
  %v240 = vunpack.c.h.b16 %v32
  %v241 = vunpack.c.l.b16 %v33
  %v242 = vunpack.c.h.b16 %v33
  %v243 = vunpack.c.l.b16 %v34
  %v244 = vunpack.c.h.b16 %v34
  %v245 = vunpack.c.l.b16 %v35
  %v246 = vunpack.c.h.b16 %v35
  %v247 = vunpack.c.l.b16 %v36
  %v248 = vunpack.c.h.b16 %v36
  %v249 = vunpack.c.l.b16 %v37
  %v250 = vunpack.c.h.b16 %v37
  %v251 = vunpack.c.l.b16 %v38
  %v252 = vunpack.c.h.b16 %v38
  %v253 = vunpack.c.l.b16 %v39
  %v254 = vunpack.c.h.b16 %v39
  %v255 = vunpack.c.l.b16 %v40
  %v256 = vunpack.c.h.b16 %v40
  %v257 = vunpack.c.l.b16 %v41
  %v258 = vunpack.c.h.b16 %v41
  %v259 = vunpack.c.l.b16 %v42
  %v260 = vunpack.c.h.b16 %v42
  %v261 = vunpack.c.l.b16 %v43
  %v262 = vunpack.c.h.b16 %v43
  %v263 = vunpack.c.l.b16 %v44
  %v264 = vunpack.c.h.b16 %v44
  %v265 = vunpack.c.l.b16 %v45
  %v266 = vunpack.c.h.b16 %v45
  %v267 = vunpack.c.l.b16 %v46
  %v268 = vunpack.c.h.b16 %v46
  %v269 = vunpack.c.l.b16 %v47
  %v270 = vunpack.c.h.b16 %v47
  %v271 = vunpack.c.l.b16 %v48
  %v272 = vunpack.c.h.b16 %v48
  %v273 = vunpack.c.l.b16 %v49
  %v274 = vunpack.c.h.b16 %v49
  %v275 = vunpack.c.l.b16 %v50
  %v276 = vunpack.c.h.b16 %v50
  %v277 = vunpack.c.l.b16 %v51
  %v278 = vunpack.c.h.b16 %v51
  %v279 = vunpack.c.l.b16 %v52
  %v280 = vunpack.c.h.b16 %v52
  %v281 = vunpack.c.l.b16 %v53
  %v282 = vunpack.c.h.b16 %v53
  %v283 = vunpack.c.l.b16 %v54
  %v284 = vunpack.c.h.b16 %v54
  %v285 = vunpack.c.l.b16 %v55
  %v286 = vunpack.c.h.b16 %v55
  %v287 = vunpack.c.l.b16 %v56
  %v288 = vunpack.c.h.b16 %v56
  %v289 = vunpack.c.l.b16 %v57
  %v290 = vunpack.c.h.b16 %v57
  %v291 = vunpack.c.l.b16 %v58
  %v292 = vunpack.c.h.b16 %v58
  %v293 = vunpack.c.l.b16 %v59
  %v294 = vunpack.c.h.b16 %v59
  %v295 = vunpack.c.l.b16 %v60
  %v296 = vunpack.c.h.b16 %v60
  %v297 = vunpack.c.l.b16 %v61
  %v298 = vunpack.c.h.b16 %v61
  %v299 = vunpack.c.l.b16 %v62
  %v300 = vunpack.c.h.b16 %v62
  %v301 = vunpack.c.l.b16 %v63
  %v302 = vunpack.c.h.b16 %v63
  %v303 = vunpack.c.l.b16 %v64
  %v304 = vunpack.c.h.b16 %v64
  %v305 = vunpack.c.l.b16 %v65
  %v306 = vunpack.c.h.b16 %v65
  %v307 = vunpack.c.l.b16 %v66
  %v308 = vunpack.c.h.b16 %v66
  %v309 = vunpack.c.l.b16 %v67
  %v310 = vunpack.c.h.b16 %v67
  %v311 = vunpack.c.l.b16 %v68
  %v312 = vunpack.c.h.b16 %v68
  %v313 = vunpack.c.l.b16 %v69
  %v314 = vunpack.c.h.b16 %v69
  %v315 = vunpack.c.l.b16 %v70
  %v316 = vunpack.c.h.b16 %v70
  %v317 = vunpack.c.l.b16 %v71
  %v318 = vunpack.c.h.b16 %v71
  %v319 = vunpack.c.l.b16 %v72
  %v320 = vunpack.c.h.b16 %v72
  %v321 = vunpack.c.l.b16 %v73
  %v322 = vunpack.c.h.b16 %v73
  %v323 = vunpack.c.l.b16 %v74
  %v324 = vunpack.c.h.b16 %v74
  %v325 = vunpack.c.l.b16 %v75
  %v326 = vunpack.c.h.b16 %v75
  %v327 = vunpack.c.l.b16 %v76
  %v328 = vunpack.c.h.b16 %v76
  %v329 = vunpack.c.l.b16 %v77
  %v330 = vunpack.c.h.b16 %v77
  %v331 = vunpack.c.l.b16 %v78
  %v332 = vunpack.c.h.b16 %v78
  %v333 = vunpack.c.l.b16 %v79
  %v334 = vunpack.c.h.b16 %v79
  %v335 = vunpack.c.l.b16 %v80
  %v336 = vunpack.c.h.b16 %v80
  %v337 = vunpack.c.l.b16 %v81
  %v338 = vunpack.c.h.b16 %v81
  %v339 = vunpack.c.l.b16 %v82
  %v340 = vunpack.c.h.b16 %v82
  %v341 = vunpack.c.l.b16 %v83
  %v342 = vunpack.c.h.b16 %v83
  %v343 = vunpack.c.l.b16 %v84
  %v344 = vunpack.c.h.b16 %v84
  %v345 = vunpack.c.l.b16 %v85
  %v346 = vunpack.c.h.b16 %v85
  %v347 = vunpack.c.l.b16 %v86
  %v348 = vunpack.c.h.b16 %v86
  %v349 = vunpack.c.l.b16 %v87
  %v350 = vunpack.c.h.b16 %v87
  %v351 = vunpack.c.l.b16 %v88
  %v352 = vunpack.c.h.b16 %v88
  %v353 = vpack.c.b16 %v233, %v225
  %v354 = vpack.c.b16 %v234, %v226
  %v355 = vpack.c.b16 %v235, %v227
  %v356 = vpack.c.b16 %v236, %v228
  %v357 = vpack.c.b16 %v237, %v229
  %v358 = vpack.c.b16 %v238, %v230
  %v359 = vpack.c.b16 %v239, %v231
  %v360 = vpack.c.b16 %v240, %v232
  %v361 = vpack.c.b16 %v249, %v241
  %v362 = vpack.c.b16 %v250, %v242
  %v363 = vpack.c.b16 %v251, %v243
  %v364 = vpack.c.b16 %v252, %v244
  %v365 = vpack.c.b16 %v253, %v245
  %v366 = vpack.c.b16 %v254, %v246
  %v367 = vpack.c.b16 %v255, %v247
  %v368 = vpack.c.b16 %v256, %v248
  %v369 = vpack.c.b16 %v265, %v257
  %v370 = vpack.c.b16 %v266, %v258
  %v371 = vpack.c.b16 %v267, %v259
  %v372 = vpack.c.b16 %v268, %v260
  %v373 = vpack.c.b16 %v269, %v261
  %v374 = vpack.c.b16 %v270, %v262
  %v375 = vpack.c.b16 %v271, %v263
  %v376 = vpack.c.b16 %v272, %v264
  %v377 = vpack.c.b16 %v281, %v273
  %v378 = vpack.c.b16 %v282, %v274
  %v379 = vpack.c.b16 %v283, %v275
  %v380 = vpack.c.b16 %v284, %v276
  %v381 = vpack.c.b16 %v285, %v277
  %v382 = vpack.c.b16 %v286, %v278
  %v383 = vpack.c.b16 %v287, %v279
  %v384 = vpack.c.b16 %v288, %v280
  %v385 = vpack.c.b16 %v297, %v289
  %v386 = vpack.c.b16 %v298, %v290
  %v387 = vpack.c.b16 %v299, %v291
  %v388 = vpack.c.b16 %v300, %v292
  %v389 = vpack.c.b16 %v301, %v293
  %v390 = vpack.c.b16 %v302, %v294
  %v391 = vpack.c.b16 %v303, %v295
  %v392 = vpack.c.b16 %v304, %v296
  %v393 = vpack.c.b16 %v313, %v305
  %v394 = vpack.c.b16 %v314, %v306
  %v395 = vpack.c.b16 %v315, %v307
  %v396 = vpack.c.b16 %v316, %v308
  %v397 = vpack.c.b16 %v317, %v309
  %v398 = vpack.c.b16 %v318, %v310
  %v399 = vpack.c.b16 %v319, %v311
  %v400 = vpack.c.b16 %v320, %v312
  %v401 = vpack.c.b16 %v329, %v321
  %v402 = vpack.c.b16 %v330, %v322
  %v403 = vpack.c.b16 %v331, %v323
  %v404 = vpack.c.b16 %v332, %v324
  %v405 = vpack.c.b16 %v333, %v325
  %v406 = vpack.c.b16 %v334, %v326
  %v407 = vpack.c.b16 %v335, %v327
  %v408 = vpack.c.b16 %v336, %v328
  %v409 = vpack.c.b16 %v345, %v337
  %v410 = vpack.c.b16 %v346, %v338
  %v411 = vpack.c.b16 %v347, %v339
  %v412 = vpack.c.b16 %v348, %v340
  %v413 = vpack.c.b16 %v349, %v341
  %v414 = vpack.c.b16 %v350, %v342
  %v415 = vpack.c.b16 %v351, %v343
  %v416 = vpack.c.b16 %v352, %v344
  %481 = vmatpush.bf16.msra.mxu0 %v409
  %482 = vmatpush.bf16.msra.mxu0 %v401
  %483 = vmatpush.bf16.msra.mxu0 %v393
  %484 = vmatpush.bf16.msra.mxu0 %v385
  %485 = vmatpush.bf16.msra.mxu0 %v377
  %486 = vmatpush.bf16.msra.mxu0 %v369
  %487 = vmatpush.bf16.msra.mxu0 %v361
  %488 = vmatpush.bf16.msra.mxu0 %v353
  %489 = vmatmul.bf16.gmra.mxu0 %v153
  %v490 = vpop.f32.mrf.mxu0
  %v491 = vadd.f32 %v100, %v490
  %v492 = vpop.f32.mrf.mxu0
  %v493 = vadd.f32 %v105, %v492
  %494 = vmatmul.bf16.gmra.mxu0 %v154
  %v495 = vpop.f32.mrf.mxu0
  %v496 = vadd.f32 %v110, %v495
  %v497 = vpop.f32.mrf.mxu0
  %v498 = vadd.f32 %v115, %v497
  %499 = vmatmul.bf16.gmra.mxu0 %v155
  %v500 = vpop.f32.mrf.mxu0
  %v501 = vadd.f32 %v120, %v500
  %v502 = vpop.f32.mrf.mxu0
  %v503 = vadd.f32 %v125, %v502
  %504 = vmatmul.bf16.gmra.mxu0 %v156
  %v505 = vpop.f32.mrf.mxu0
  %v506 = vadd.f32 %v130, %v505
  %v507 = vpop.f32.mrf.mxu0
  %v508 = vadd.f32 %v135, %v507
  %509 = vdwg.mxu0
  %510 = vmatpush.bf16.msra.mxu0 %v410
  %511 = vmatpush.bf16.msra.mxu0 %v402
  %512 = vmatpush.bf16.msra.mxu0 %v394
  %513 = vmatpush.bf16.msra.mxu0 %v386
  %514 = vmatpush.bf16.msra.mxu0 %v378
  %515 = vmatpush.bf16.msra.mxu0 %v370
  %516 = vmatpush.bf16.msra.mxu0 %v362
  %517 = vmatpush.bf16.msra.mxu0 %v354
  %518 = vmatmul.bf16.gmra.mxu0 %v153
  %v519 = vpop.f32.mrf.mxu0
  %v520 = vadd.f32 %v100, %v519
  %v521 = vpop.f32.mrf.mxu0
  %v522 = vadd.f32 %v105, %v521
  %523 = vmatmul.bf16.gmra.mxu0 %v154
  %v524 = vpop.f32.mrf.mxu0
  %v525 = vadd.f32 %v110, %v524
  %v526 = vpop.f32.mrf.mxu0
  %v527 = vadd.f32 %v115, %v526
  %528 = vmatmul.bf16.gmra.mxu0 %v155
  %v529 = vpop.f32.mrf.mxu0
  %v530 = vadd.f32 %v120, %v529
  %v531 = vpop.f32.mrf.mxu0
  %v532 = vadd.f32 %v125, %v531
  %533 = vmatmul.bf16.gmra.mxu0 %v156
  %v534 = vpop.f32.mrf.mxu0
  %v535 = vadd.f32 %v130, %v534
  %v536 = vpop.f32.mrf.mxu0
  %v537 = vadd.f32 %v135, %v536
  %538 = vdwg.mxu0
  %539 = vmatpush.bf16.msra.mxu0 %v411
  %540 = vmatpush.bf16.msra.mxu0 %v403
  %541 = vmatpush.bf16.msra.mxu0 %v395
  %542 = vmatpush.bf16.msra.mxu0 %v387
  %543 = vmatpush.bf16.msra.mxu0 %v379
  %544 = vmatpush.bf16.msra.mxu0 %v371
  %545 = vmatpush.bf16.msra.mxu0 %v363
  %546 = vmatpush.bf16.msra.mxu0 %v355
  %547 = vmatmul.bf16.gmra.mxu0 %v153
  %v548 = vpop.f32.mrf.mxu0
  %v549 = vadd.f32 %v100, %v548
  %v550 = vpop.f32.mrf.mxu0
  %v551 = vadd.f32 %v105, %v550
  %552 = vmatmul.bf16.gmra.mxu0 %v154
  %v553 = vpop.f32.mrf.mxu0
  %v554 = vadd.f32 %v110, %v553
  %v555 = vpop.f32.mrf.mxu0
  %v556 = vadd.f32 %v115, %v555
  %557 = vmatmul.bf16.gmra.mxu0 %v155
  %v558 = vpop.f32.mrf.mxu0
  %v559 = vadd.f32 %v120, %v558
  %v560 = vpop.f32.mrf.mxu0
  %v561 = vadd.f32 %v125, %v560
  %562 = vmatmul.bf16.gmra.mxu0 %v156
  %v563 = vpop.f32.mrf.mxu0
  %v564 = vadd.f32 %v130, %v563
  %v565 = vpop.f32.mrf.mxu0
  %v566 = vadd.f32 %v135, %v565
  %567 = vdwg.mxu0
  %568 = vmatpush.bf16.msra.mxu0 %v412
  %569 = vmatpush.bf16.msra.mxu0 %v404
  %570 = vmatpush.bf16.msra.mxu0 %v396
  %571 = vmatpush.bf16.msra.mxu0 %v388
  %572 = vmatpush.bf16.msra.mxu0 %v380
  %573 = vmatpush.bf16.msra.mxu0 %v372
  %574 = vmatpush.bf16.msra.mxu0 %v364
  %575 = vmatpush.bf16.msra.mxu0 %v356
  %576 = vmatmul.bf16.gmra.mxu0 %v153
  %v577 = vpop.f32.mrf.mxu0
  %v578 = vadd.f32 %v100, %v577
  %v579 = vpop.f32.mrf.mxu0
  %v580 = vadd.f32 %v105, %v579
  %581 = vmatmul.bf16.gmra.mxu0 %v154
  %v582 = vpop.f32.mrf.mxu0
  %v583 = vadd.f32 %v110, %v582
  %v584 = vpop.f32.mrf.mxu0
  %v585 = vadd.f32 %v115, %v584
  %586 = vmatmul.bf16.gmra.mxu0 %v155
  %v587 = vpop.f32.mrf.mxu0
  %v588 = vadd.f32 %v120, %v587
  %v589 = vpop.f32.mrf.mxu0
  %v590 = vadd.f32 %v125, %v589
  %591 = vmatmul.bf16.gmra.mxu0 %v156
  %v592 = vpop.f32.mrf.mxu0
  %v593 = vadd.f32 %v130, %v592
  %v594 = vpop.f32.mrf.mxu0
  %v595 = vadd.f32 %v135, %v594
  %596 = vdwg.mxu0
  %597 = vmatpush.bf16.msra.mxu0 %v413
  %598 = vmatpush.bf16.msra.mxu0 %v405
  %599 = vmatpush.bf16.msra.mxu0 %v397
  %600 = vmatpush.bf16.msra.mxu0 %v389
  %601 = vmatpush.bf16.msra.mxu0 %v381
  %602 = vmatpush.bf16.msra.mxu0 %v373
  %603 = vmatpush.bf16.msra.mxu0 %v365
  %604 = vmatpush.bf16.msra.mxu0 %v357
  %605 = vmatmul.bf16.gmra.mxu0 %v153
  %v606 = vpop.f32.mrf.mxu0
  %v607 = vadd.f32 %v100, %v606
  %v608 = vpop.f32.mrf.mxu0
  %v609 = vadd.f32 %v105, %v608
  %610 = vmatmul.bf16.gmra.mxu0 %v154
  %v611 = vpop.f32.mrf.mxu0
  %v612 = vadd.f32 %v110, %v611
  %v613 = vpop.f32.mrf.mxu0
  %v614 = vadd.f32 %v115, %v613
  %615 = vmatmul.bf16.gmra.mxu0 %v155
  %v616 = vpop.f32.mrf.mxu0
  %v617 = vadd.f32 %v120, %v616
  %v618 = vpop.f32.mrf.mxu0
  %v619 = vadd.f32 %v125, %v618
  %620 = vmatmul.bf16.gmra.mxu0 %v156
  %v621 = vpop.f32.mrf.mxu0
  %v622 = vadd.f32 %v130, %v621
  %v623 = vpop.f32.mrf.mxu0
  %v624 = vadd.f32 %v135, %v623
  %625 = vdwg.mxu0
  %626 = vmatpush.bf16.msra.mxu0 %v414
  %627 = vmatpush.bf16.msra.mxu0 %v406
  %628 = vmatpush.bf16.msra.mxu0 %v398
  %629 = vmatpush.bf16.msra.mxu0 %v390
  %630 = vmatpush.bf16.msra.mxu0 %v382
  %631 = vmatpush.bf16.msra.mxu0 %v374
  %632 = vmatpush.bf16.msra.mxu0 %v366
  %633 = vmatpush.bf16.msra.mxu0 %v358
  %634 = vmatmul.bf16.gmra.mxu0 %v153
  %v635 = vpop.f32.mrf.mxu0
  %v636 = vadd.f32 %v100, %v635
  %v637 = vpop.f32.mrf.mxu0
  %v638 = vadd.f32 %v105, %v637
  %639 = vmatmul.bf16.gmra.mxu0 %v154
  %v640 = vpop.f32.mrf.mxu0
  %v641 = vadd.f32 %v110, %v640
  %v642 = vpop.f32.mrf.mxu0
  %v643 = vadd.f32 %v115, %v642
  %644 = vmatmul.bf16.gmra.mxu0 %v155
  %v645 = vpop.f32.mrf.mxu0
  %v646 = vadd.f32 %v120, %v645
  %v647 = vpop.f32.mrf.mxu0
  %v648 = vadd.f32 %v125, %v647
  %649 = vmatmul.bf16.gmra.mxu0 %v156
  %v650 = vpop.f32.mrf.mxu0
  %v651 = vadd.f32 %v130, %v650
  %v652 = vpop.f32.mrf.mxu0
  %v653 = vadd.f32 %v135, %v652
  %654 = vdwg.mxu0
  %655 = vmatpush.bf16.msra.mxu0 %v415
  %656 = vmatpush.bf16.msra.mxu0 %v407
  %657 = vmatpush.bf16.msra.mxu0 %v399
  %658 = vmatpush.bf16.msra.mxu0 %v391
  %659 = vmatpush.bf16.msra.mxu0 %v383
  %660 = vmatpush.bf16.msra.mxu0 %v375
  %661 = vmatpush.bf16.msra.mxu0 %v367
  %662 = vmatpush.bf16.msra.mxu0 %v359
  %663 = vmatmul.bf16.gmra.mxu0 %v153
  %v664 = vpop.f32.mrf.mxu0
  %v665 = vadd.f32 %v100, %v664
  %v666 = vpop.f32.mrf.mxu0
  %v667 = vadd.f32 %v105, %v666
  %668 = vmatmul.bf16.gmra.mxu0 %v154
  %v669 = vpop.f32.mrf.mxu0
  %v670 = vadd.f32 %v110, %v669
  %v671 = vpop.f32.mrf.mxu0
  %v672 = vadd.f32 %v115, %v671
  %673 = vmatmul.bf16.gmra.mxu0 %v155
  %v674 = vpop.f32.mrf.mxu0
  %v675 = vadd.f32 %v120, %v674
  %v676 = vpop.f32.mrf.mxu0
  %v677 = vadd.f32 %v125, %v676
  %678 = vmatmul.bf16.gmra.mxu0 %v156
  %v679 = vpop.f32.mrf.mxu0
  %v680 = vadd.f32 %v130, %v679
  %v681 = vpop.f32.mrf.mxu0
  %v682 = vadd.f32 %v135, %v681
  %683 = vdwg.mxu0
  %684 = vmatpush.bf16.msra.mxu0 %v416
  %685 = vmatpush.bf16.msra.mxu0 %v408
  %686 = vmatpush.bf16.msra.mxu0 %v400
  %687 = vmatpush.bf16.msra.mxu0 %v392
  %688 = vmatpush.bf16.msra.mxu0 %v384
  %689 = vmatpush.bf16.msra.mxu0 %v376
  %690 = vmatpush.bf16.msra.mxu0 %v368
  %691 = vmatpush.bf16.msra.mxu0 %v360
  %692 = vmatmul.bf16.gmra.mxu0 %v153
  %v693 = vpop.f32.mrf.mxu0
  %v694 = vadd.f32 %v100, %v693
  %v695 = vpop.f32.mrf.mxu0
  %v696 = vadd.f32 %v105, %v695
  %697 = vmatmul.bf16.gmra.mxu0 %v154
  %v698 = vpop.f32.mrf.mxu0
  %v699 = vadd.f32 %v110, %v698
  %v700 = vpop.f32.mrf.mxu0
  %v701 = vadd.f32 %v115, %v700
  %702 = vmatmul.bf16.gmra.mxu0 %v155
  %v703 = vpop.f32.mrf.mxu0
  %v704 = vadd.f32 %v120, %v703
  %v705 = vpop.f32.mrf.mxu0
  %v706 = vadd.f32 %v125, %v705
  %707 = vmatmul.bf16.gmra.mxu0 %v156
  %v708 = vpop.f32.mrf.mxu0
  %v709 = vadd.f32 %v130, %v708
  %v710 = vpop.f32.mrf.mxu0
  %v711 = vadd.f32 %v135, %v710
  %712 = vdwg.mxu0
  %v713 = vld [vmem:[%s3] sm:$0xff]
  %v714 = vld [vmem:[%s3 + $0x8] sm:$0xff]
  %v715 = vld [vmem:[%s3 + $0x10] sm:$0xff]
  %v716 = vld [vmem:[%s3 + $0x18] sm:$0xff]
  %v717 = vld [vmem:[%s3 + $0x20] sm:$0xff]
  %v718 = vld [vmem:[%s3 + $0x28] sm:$0xff]
  %v719 = vld [vmem:[%s3 + $0x30] sm:$0xff]
  %v720 = vld [vmem:[%s3 + $0x38] sm:$0xff]
  %v721 = vld [vmem:[%s3 + $0x40] sm:$0xff]
  %v722 = vld [vmem:[%s3 + $0x48] sm:$0xff]
  %v723 = vld [vmem:[%s3 + $0x50] sm:$0xff]
  %v724 = vld [vmem:[%s3 + $0x58] sm:$0xff]
  %v725 = vld [vmem:[%s3 + $0x60] sm:$0xff]
  %v726 = vld [vmem:[%s3 + $0x68] sm:$0xff]
  %v727 = vld [vmem:[%s3 + $0x70] sm:$0xff]
  %v728 = vld [vmem:[%s3 + $0x78] sm:$0xff]
  %v729 = vld [vmem:[%s3 + $0x80] sm:$0xff]
  %v730 = vld [vmem:[%s3 + $0x88] sm:$0xff]
  %v731 = vld [vmem:[%s3 + $0x90] sm:$0xff]
  %v732 = vld [vmem:[%s3 + $0x98] sm:$0xff]
  %v733 = vld [vmem:[%s3 + $0xa0] sm:$0xff]
  %v734 = vld [vmem:[%s3 + $0xa8] sm:$0xff]
  %v735 = vld [vmem:[%s3 + $0xb0] sm:$0xff]
  %v736 = vld [vmem:[%s3 + $0xb8] sm:$0xff]
  %v737 = vld [vmem:[%s3 + $0xc0] sm:$0xff]
  %v738 = vld [vmem:[%s3 + $0xc8] sm:$0xff]
  %v739 = vld [vmem:[%s3 + $0xd0] sm:$0xff]
  %v740 = vld [vmem:[%s3 + $0xd8] sm:$0xff]
  %v741 = vld [vmem:[%s3 + $0xe0] sm:$0xff]
  %v742 = vld [vmem:[%s3 + $0xe8] sm:$0xff]
  %v743 = vld [vmem:[%s3 + $0xf0] sm:$0xff]
  %v744 = vld [vmem:[%s3 + $0xf8] sm:$0xff]
  %v745 = vunpack.c.l.bf16 %v713
  %v746 = vunpack.c.h.bf16 %v713
  %v747 = vunpack.c.l.bf16 %v714
  %v748 = vunpack.c.h.bf16 %v714
  %v749 = vunpack.c.l.bf16 %v715
  %v750 = vunpack.c.h.bf16 %v715
  %v751 = vunpack.c.l.bf16 %v716
  %v752 = vunpack.c.h.bf16 %v716
  %v753 = vunpack.c.l.bf16 %v717
  %v754 = vunpack.c.h.bf16 %v717
  %v755 = vunpack.c.l.bf16 %v718
  %v756 = vunpack.c.h.bf16 %v718
  %v757 = vunpack.c.l.bf16 %v719
  %v758 = vunpack.c.h.bf16 %v719
  %v759 = vunpack.c.l.bf16 %v720
  %v760 = vunpack.c.h.bf16 %v720
  %v761 = vunpack.c.l.bf16 %v721
  %v762 = vunpack.c.h.bf16 %v721
  %v763 = vunpack.c.l.bf16 %v722
  %v764 = vunpack.c.h.bf16 %v722
  %v765 = vunpack.c.l.bf16 %v723
  %v766 = vunpack.c.h.bf16 %v723
  %v767 = vunpack.c.l.bf16 %v724
  %v768 = vunpack.c.h.bf16 %v724
  %v769 = vunpack.c.l.bf16 %v725
  %v770 = vunpack.c.h.bf16 %v725
  %v771 = vunpack.c.l.bf16 %v726
  %v772 = vunpack.c.h.bf16 %v726
  %v773 = vunpack.c.l.bf16 %v727
  %v774 = vunpack.c.h.bf16 %v727
  %v775 = vunpack.c.l.bf16 %v728
  %v776 = vunpack.c.h.bf16 %v728
  %v777 = vunpack.c.l.bf16 %v729
  %v778 = vunpack.c.h.bf16 %v729
  %v779 = vunpack.c.l.bf16 %v730
  %v780 = vunpack.c.h.bf16 %v730
  %v781 = vunpack.c.l.bf16 %v731
  %v782 = vunpack.c.h.bf16 %v731
  %v783 = vunpack.c.l.bf16 %v732
  %v784 = vunpack.c.h.bf16 %v732
  %v785 = vunpack.c.l.bf16 %v733
  %v786 = vunpack.c.h.bf16 %v733
  %v787 = vunpack.c.l.bf16 %v734
  %v788 = vunpack.c.h.bf16 %v734
  %v789 = vunpack.c.l.bf16 %v735
  %v790 = vunpack.c.h.bf16 %v735
  %v791 = vunpack.c.l.bf16 %v736
  %v792 = vunpack.c.h.bf16 %v736
  %v793 = vunpack.c.l.bf16 %v737
  %v794 = vunpack.c.h.bf16 %v737
  %v795 = vunpack.c.l.bf16 %v738
  %v796 = vunpack.c.h.bf16 %v738
  %v797 = vunpack.c.l.bf16 %v739
  %v798 = vunpack.c.h.bf16 %v739
  %v799 = vunpack.c.l.bf16 %v740
  %v800 = vunpack.c.h.bf16 %v740
  %v801 = vunpack.c.l.bf16 %v741
  %v802 = vunpack.c.h.bf16 %v741
  %v803 = vunpack.c.l.bf16 %v742
  %v804 = vunpack.c.h.bf16 %v742
  %v805 = vunpack.c.l.bf16 %v743
  %v806 = vunpack.c.h.bf16 %v743
  %v807 = vunpack.c.l.bf16 %v744
  %v808 = vunpack.c.h.bf16 %v744
  %v809 = vadd.f32 %v491, %v745
  %v810 = vadd.f32 %v520, %v746
  %v811 = vadd.f32 %v549, %v747
  %v812 = vadd.f32 %v578, %v748
  %v813 = vadd.f32 %v607, %v749
  %v814 = vadd.f32 %v636, %v750
  %v815 = vadd.f32 %v665, %v751
  %v816 = vadd.f32 %v694, %v752
  %v817 = vadd.f32 %v493, %v753
  %v818 = vadd.f32 %v522, %v754
  %v819 = vadd.f32 %v551, %v755
  %v820 = vadd.f32 %v580, %v756
  %v821 = vadd.f32 %v609, %v757
  %v822 = vadd.f32 %v638, %v758
  %v823 = vadd.f32 %v667, %v759
  %v824 = vadd.f32 %v696, %v760
  %v825 = vadd.f32 %v496, %v761
  %v826 = vadd.f32 %v525, %v762
  %v827 = vadd.f32 %v554, %v763
  %v828 = vadd.f32 %v583, %v764
  %v829 = vadd.f32 %v612, %v765
  %v830 = vadd.f32 %v641, %v766
  %v831 = vadd.f32 %v670, %v767
  %v832 = vadd.f32 %v699, %v768
  %v833 = vadd.f32 %v498, %v769
  %v834 = vadd.f32 %v527, %v770
  %v835 = vadd.f32 %v556, %v771
  %v836 = vadd.f32 %v585, %v772
  %v837 = vadd.f32 %v614, %v773
  %v838 = vadd.f32 %v643, %v774
  %v839 = vadd.f32 %v672, %v775
  %v840 = vadd.f32 %v701, %v776
  %v841 = vadd.f32 %v501, %v777
  %v842 = vadd.f32 %v530, %v778
  %v843 = vadd.f32 %v559, %v779
  %v844 = vadd.f32 %v588, %v780
  %v845 = vadd.f32 %v617, %v781
  %v846 = vadd.f32 %v646, %v782
  %v847 = vadd.f32 %v675, %v783
  %v848 = vadd.f32 %v704, %v784
  %v849 = vadd.f32 %v503, %v785
  %v850 = vadd.f32 %v532, %v786
  %v851 = vadd.f32 %v561, %v787
  %v852 = vadd.f32 %v590, %v788
  %v853 = vadd.f32 %v619, %v789
  %v854 = vadd.f32 %v648, %v790
  %v855 = vadd.f32 %v677, %v791
  %v856 = vadd.f32 %v706, %v792
  %v857 = vadd.f32 %v506, %v793
  %v858 = vadd.f32 %v535, %v794
  %v859 = vadd.f32 %v564, %v795
  %v860 = vadd.f32 %v593, %v796
  %v861 = vadd.f32 %v622, %v797
  %v862 = vadd.f32 %v651, %v798
  %v863 = vadd.f32 %v680, %v799
  %v864 = vadd.f32 %v709, %v800
  %v865 = vadd.f32 %v508, %v801
  %v866 = vadd.f32 %v537, %v802
  %v867 = vadd.f32 %v566, %v803
  %v868 = vadd.f32 %v595, %v804
  %v869 = vadd.f32 %v624, %v805
  %v870 = vadd.f32 %v653, %v806
  %v871 = vadd.f32 %v682, %v807
  %v872 = vadd.f32 %v711, %v808
  %873 = vst [vmem:[%s4] sm:$0xff] %v809
  %874 = vst [vmem:[%s4 + $0x8] sm:$0xff] %v810
  %875 = vst [vmem:[%s4 + $0x10] sm:$0xff] %v811
  %876 = vst [vmem:[%s4 + $0x18] sm:$0xff] %v812
  %877 = vst [vmem:[%s4 + $0x20] sm:$0xff] %v813
  %878 = vst [vmem:[%s4 + $0x28] sm:$0xff] %v814
  %879 = vst [vmem:[%s4 + $0x30] sm:$0xff] %v815
  %880 = vst [vmem:[%s4 + $0x38] sm:$0xff] %v816
  %881 = vst [vmem:[%s4 + $0x40] sm:$0xff] %v817
  %882 = vst [vmem:[%s4 + $0x48] sm:$0xff] %v818
  %883 = vst [vmem:[%s4 + $0x50] sm:$0xff] %v819
  %884 = vst [vmem:[%s4 + $0x58] sm:$0xff] %v820
  %885 = vst [vmem:[%s4 + $0x60] sm:$0xff] %v821
  %886 = vst [vmem:[%s4 + $0x68] sm:$0xff] %v822
  %887 = vst [vmem:[%s4 + $0x70] sm:$0xff] %v823
  %888 = vst [vmem:[%s4 + $0x78] sm:$0xff] %v824
  %889 = vst [vmem:[%s4 + $0x80] sm:$0xff] %v825
  %890 = vst [vmem:[%s4 + $0x88] sm:$0xff] %v826
  %891 = vst [vmem:[%s4 + $0x90] sm:$0xff] %v827
  %892 = vst [vmem:[%s4 + $0x98] sm:$0xff] %v828
  %893 = vst [vmem:[%s4 + $0xa0] sm:$0xff] %v829
  %894 = vst [vmem:[%s4 + $0xa8] sm:$0xff] %v830
  %895 = vst [vmem:[%s4 + $0xb0] sm:$0xff] %v831
  %896 = vst [vmem:[%s4 + $0xb8] sm:$0xff] %v832
  %897 = vst [vmem:[%s4 + $0xc0] sm:$0xff] %v833
  %898 = vst [vmem:[%s4 + $0xc8] sm:$0xff] %v834
  %899 = vst [vmem:[%s4 + $0xd0] sm:$0xff] %v835
  %900 = vst [vmem:[%s4 + $0xd8] sm:$0xff] %v836
  %901 = vst [vmem:[%s4 + $0xe0] sm:$0xff] %v837
  %902 = vst [vmem:[%s4 + $0xe8] sm:$0xff] %v838
  %903 = vst [vmem:[%s4 + $0xf0] sm:$0xff] %v839
  %904 = vst [vmem:[%s4 + $0xf8] sm:$0xff] %v840
  %905 = vst [vmem:[%s4 + $0x100] sm:$0xff] %v841
  %906 = vst [vmem:[%s4 + $0x108] sm:$0xff] %v842
  %907 = vst [vmem:[%s4 + $0x110] sm:$0xff] %v843
  %908 = vst [vmem:[%s4 + $0x118] sm:$0xff] %v844
  %909 = vst [vmem:[%s4 + $0x120] sm:$0xff] %v845
  %910 = vst [vmem:[%s4 + $0x128] sm:$0xff] %v846
  %911 = vst [vmem:[%s4 + $0x130] sm:$0xff] %v847
  %912 = vst [vmem:[%s4 + $0x138] sm:$0xff] %v848
  %913 = vst [vmem:[%s4 + $0x140] sm:$0xff] %v849
  %914 = vst [vmem:[%s4 + $0x148] sm:$0xff] %v850
  %915 = vst [vmem:[%s4 + $0x150] sm:$0xff] %v851
  %916 = vst [vmem:[%s4 + $0x158] sm:$0xff] %v852
  %917 = vst [vmem:[%s4 + $0x160] sm:$0xff] %v853
  %918 = vst [vmem:[%s4 + $0x168] sm:$0xff] %v854
  %919 = vst [vmem:[%s4 + $0x170] sm:$0xff] %v855
  %920 = vst [vmem:[%s4 + $0x178] sm:$0xff] %v856
  %921 = vst [vmem:[%s4 + $0x180] sm:$0xff] %v857
  %922 = vst [vmem:[%s4 + $0x188] sm:$0xff] %v858
  %923 = vst [vmem:[%s4 + $0x190] sm:$0xff] %v859
  %924 = vst [vmem:[%s4 + $0x198] sm:$0xff] %v860
  %925 = vst [vmem:[%s4 + $0x1a0] sm:$0xff] %v861
  %926 = vst [vmem:[%s4 + $0x1a8] sm:$0xff] %v862
  %927 = vst [vmem:[%s4 + $0x1b0] sm:$0xff] %v863
  %928 = vst [vmem:[%s4 + $0x1b8] sm:$0xff] %v864
  %929 = vst [vmem:[%s4 + $0x1c0] sm:$0xff] %v865
  %930 = vst [vmem:[%s4 + $0x1c8] sm:$0xff] %v866
  %931 = vst [vmem:[%s4 + $0x1d0] sm:$0xff] %v867
  %932 = vst [vmem:[%s4 + $0x1d8] sm:$0xff] %v868
  %933 = vst [vmem:[%s4 + $0x1e0] sm:$0xff] %v869
  %934 = vst [vmem:[%s4 + $0x1e8] sm:$0xff] %v870
  %935 = vst [vmem:[%s4 + $0x1f0] sm:$0xff] %v871
  %936 = vst [vmem:[%s4 + $0x1f8] sm:$0xff] %v872
  // Predicated region
  $region18: #{voxel_encoder_forward.19} parent=0 // pred_check
    _
  $region19: #{voxel_encoder_forward.19} parent=0 // pred_check_branch
    %938 = sbr.rel (0) target = $region21
  $region20: #{voxel_encoder_forward.19} parent=0 // pred_region
    _
  $region21: #{voxel_encoder_forward.19} parent=0 // pred_fallthru
    _
  // Predicated region
  $region22: #{voxel_encoder_forward.19} parent=0 // pred_check
    _
  $region23: #{voxel_encoder_forward.19} parent=0 // pred_check_branch
    %940 = sbr.rel (0) target = $region25
  $region24: #{voxel_encoder_forward.19} parent=0 // pred_region
    _
  $region25: #{voxel_encoder_forward.19} parent=0 // pred_fallthru
    _

</llo_original>
